<compile_context>
chip_gen: v7x
topology: tpu7x:2x2x1
jax: 0.10.0
libtpu: 0.0.40
codegen_flags: <defaults>
</compile_context>

<pallas_src>
import functools
import math

import jax
import jax.numpy as jnp
from jax.experimental import pallas as pl
from jax.experimental.pallas import tpu as pltpu

EPS = 1e-5                      # PyTorch BatchNorm default eps
LEAKY_SLOPE = 0.2


# ----------------------------------------------------------------------------
# Small hardware-introspection helpers (safe fallbacks if queries fail)
# ----------------------------------------------------------------------------
@functools.lru_cache(maxsize=None)
def _vmem_limit_bytes():
    try:
        cap = int(pltpu.get_tpu_info().vmem_capacity_bytes)
    except Exception:
        cap = 64 * 1024 * 1024                      # conservative (v7x physical)
    # ~3/4 of physical: 48 MiB on v7x (64 MiB), 96 MiB on v5e/v6e (128 MiB).
    return min(int(cap * 3 // 4), 100 * 1024 * 1024)


@functools.lru_cache(maxsize=None)
def _is_v5e():
    try:
        kind = jax.devices()[0].device_kind.lower()
        return ("v5 lite" in kind) or ("v5e" in kind) or ("v5lite" in kind)
    except Exception:
        return False


def _pick_k_chunk(k, tile_n, n):
    # Keep the batched one-hot mask intermediate around <= ~8 MiB (f32 worst case)
    budget = 8 * 1024 * 1024
    per_neighbor = max(tile_n * n * 4, 1)
    kc = max(1, min(k, 8, budget // per_neighbor))
    if tile_n % 8 != 0:            # only when tile_n == N and N not 8-aligned
        kc = 1                     # avoid unaligned sublane slicing of the chunk result
    return kc


# ----------------------------------------------------------------------------
# kNN graph (plain JAX glue, shared by the Pallas path and the reference path)
# ----------------------------------------------------------------------------
def knn_idx(feat_bnc, k):
    """Same math as the PyTorch knn(): top-k of -||xi - xj||^2 (self included)."""
    f32 = feat_bnc.astype(jnp.float32)
    sq = jnp.sum(f32 * f32, axis=-1)                                         # (B, N)
    inner = jnp.einsum('bnc,bmc->bnm', feat_bnc, feat_bnc,
                       preferred_element_type=jnp.float32)                   # (B, N, N)
    neg_dist = 2.0 * inner - sq[:, :, None] - sq[:, None, :]
    _, idx = jax.lax.top_k(neg_dist, k)
    return idx.astype(jnp.int32)                                             # (B, N, k)


# ----------------------------------------------------------------------------
# Pallas kernel 1: fused edge-conv (gather + 1x1 conv + BN + LeakyReLU + max_k)
# ----------------------------------------------------------------------------
def _edge_conv_kernel(x_ref, idx_ref, wa_ref, wd_ref, scale_ref, bias_ref, out_ref,
                      *, alpha, compute_dtype, k_chunk, gather_in_cout):
    cdt = compute_dtype
    n = x_ref.shape[1]                      # number of points (gather source rows)
    tsz = idx_ref.shape[1]                  # points in this tile
    nbr_k = idx_ref.shape[2]                # neighbors per point

    x = x_ref[0].astype(cdt)                # (N, C) gather source (VMEM resident)
    wa = wa_ref[...]                        # (C, Cout) already in compute dtype
    scale = scale_ref[...]                  # (1, Cout) folded BN scale (f32)
    bias = bias_ref[...]                    # (1, Cout) folded BN bias  (f32)

    # Centers: slice the already-resident full cloud (no second DMA stream).
    start = pl.multiple_of(pl.program_id(1) * tsz, tsz)
    ctr = x_ref[0, pl.ds(start, tsz), :].astype(cdt)                         # (T, C)
    idx = idx_ref[0]                        # (T, k) int32 neighbor indices

    # Center term with folded BN:  cat(nb-ctr, ctr)@[Wa;Wb] == nb@Wa + ctr@(Wb-Wa)
    q = jnp.dot(ctr, wd_ref[...], preferred_element_type=jnp.float32) * scale + bias

    # Hoisted gather source: gather directly in output space when profitable.
    if gather_in_cout:
        src = jnp.dot(x, wa, preferred_element_type=jnp.float32).astype(cdt)  # (N, Cout)
    else:
        src = x                                                               # (N, C)

    lane = jax.lax.broadcasted_iota(jnp.int32, (tsz, n), 1)
    one = jnp.ones((), dtype=cdt)
    zero = jnp.zeros((), dtype=cdt)

    acc = None
    # Short static unroll over neighbor chunks (<= ceil(k/8) bodies); the chunked
    # matmul already bounds live ranges so no fori_loop is needed here.
    for j0 in range(0, nbr_k, k_chunk):
        kc = min(k_chunk, nbr_k - j0)
        # Batched one-hot mask for kc neighbors, built directly in compute dtype.
        masks = [jnp.where(idx[:, j:j + 1] == lane, one, zero)
                 for j in range(j0, j0 + kc)]                                # kc x (T, N)
        mask = masks[0] if kc == 1 else jnp.concatenate(masks, axis=0)        # (kc*T, N)
        g = jnp.dot(mask, src, preferred_element_type=jnp.float32)            # (kc*T, Cw)
        if not gather_in_cout:
            g = jnp.dot(g.astype(cdt), wa, preferred_element_type=jnp.float32)  # (kc*T, Cout)
        for jj in range(kc):
            h = g[jj * tsz:(jj + 1) * tsz] * scale + q                        # (T, Cout) f32
            acc = h if acc is None else jnp.maximum(acc, h)                   # max over k

    # LeakyReLU once (monotone increasing, so it commutes with the neighbor max).
    acc = jnp.where(acc > 0, acc, alpha * acc)
    out_ref[0] = acc.astype(out_ref.dtype)


def edge_conv_pallas(feat_bnc, idx, p, *, compute_dtype, alpha=LEAKY_SLOPE,
                     tile_n=None, out_dtype=None):
    B, N, C = feat_bnc.shape
    k = idx.shape[-1]
    w = p['w']                                 # (2C, Cout) f32 master weights
    Cout = w.shape[1]
    wdt = compute_dtype
    wa = w[:C].astype(wdt)                     # pairs with the neighbor term
    wd = (w[C:] - w[:C]).astype(wdt)           # pairs with center; f32 diff, one cast
    if out_dtype is None:
        out_dtype = compute_dtype              # bf16 inter-layer features on perf path

    if tile_n is None:
        tile_n = N
        for cand in (256, 128, 64, 32, 16, 8):
            if N > cand and N % cand == 0:
                tile_n = cand
                break
        # Keep >=2 parallel grid steps so both v7x TensorCores get work.
        if B == 1 and N // tile_n < 2 and (N // 2) % 8 == 0 and N >= 16:
            tile_n = N // 2
    assert N % tile_n == 0, "num_points must be divisible by tile_n"
    nt = N // tile_n

    # v5e has a 128-wide MXU: gathering in Cout=256 space would double the dominant
    # matmul passes for the (128 -> 256) layer; keep the two-step gather there.
    gather_in_cout = (Cout <= 128) or (Cout <= C) or (not _is_v5e())
    k_chunk = _pick_k_chunk(k, tile_n, N)

    kern = functools.partial(_edge_conv_kernel, alpha=alpha, compute_dtype=compute_dtype,
                             k_chunk=k_chunk, gather_in_cout=gather_in_cout)

    cw = Cout if gather_in_cout else C
    flops = (2.0 * B * N * k * N * cw            # one-hot gather matmul
             + 2.0 * B * nt * N * C * Cout       # hoisted x@Wa per tile
             + 2.0 * B * N * C * Cout)           # center term
    if not gather_in_cout:
        flops += 2.0 * B * N * k * C * Cout
    bytes_accessed = (feat_bnc.size * feat_bnc.dtype.itemsize
                      + idx.size * 4
                      + (wa.size + wd.size) * jnp.dtype(wdt).itemsize
                      + B * N * Cout * jnp.dtype(out_dtype).itemsize)

    return pl.pallas_call(
        kern,
        out_shape=jax.ShapeDtypeStruct((B, N, Cout), out_dtype),
        grid_spec=pltpu.PrefetchScalarGridSpec(
            num_scalar_prefetch=0,
            grid=(B, nt),
            in_specs=[
                pl.BlockSpec((1, N, C), lambda b, t: (b, 0, 0)),        # full cloud (gather src + centers)
                pl.BlockSpec((1, tile_n, k), lambda b, t: (b, t, 0)),   # knn indices for this tile
                pl.BlockSpec((C, Cout), lambda b, t: (0, 0)),           # Wa (VMEM-resident)
                pl.BlockSpec((C, Cout), lambda b, t: (0, 0)),           # Wd = Wb - Wa (VMEM-resident)
                pl.BlockSpec((1, Cout), lambda b, t: (0, 0)),           # folded BN scale
                pl.BlockSpec((1, Cout), lambda b, t: (0, 0)),           # folded BN bias
            ],
            out_specs=pl.BlockSpec((1, tile_n, Cout), lambda b, t: (b, t, 0)),
        ),
        compiler_params=pltpu.CompilerParams(
            dimension_semantics=("parallel", "parallel"),
            vmem_limit_bytes=_vmem_limit_bytes()),
        cost_estimate=pl.CostEstimate(flops=int(flops), transcendentals=0,
                                      bytes_accessed=int(bytes_accessed)),
    )(feat_bnc, idx, wa, wd, p['scale'], p['bias'])


# ----------------------------------------------------------------------------
# Pallas kernel 2: conv5 (1x1 Conv1d + BN + LeakyReLU) + global max over points.
# Takes the four edge-layer outputs directly (no HBM concat); weights are split
# per input and accumulated in-kernel; running max kept in an f32 VMEM scratch.
# ----------------------------------------------------------------------------
def _conv5_max_kernel(*refs, alpha, compute_dtype, n_in):
    x_refs = refs[:n_in]
    w_refs = refs[n_in:2 * n_in]
    scale_ref = refs[2 * n_in]
    bias_ref = refs[2 * n_in + 1]
    out_ref = refs[2 * n_in + 2]
    acc_ref = refs[2 * n_in + 3]

    cdt = compute_dtype
    h = None
    for xr, wr in zip(x_refs, w_refs):
        d = jnp.dot(xr[0].astype(cdt), wr[...], preferred_element_type=jnp.float32)
        h = d if h is None else h + d                                        # (T, F)
    h = h * scale_ref[...] + bias_ref[...]                                   # folded BN
    blk = jnp.max(h, axis=0, keepdims=True)                                  # (1, F)

    t_idx = pl.program_id(1)

    @pl.when(t_idx == 0)
    def _():
        acc_ref[...] = blk

    @pl.when(t_idx > 0)
    def _():
        acc_ref[...] = jnp.maximum(acc_ref[...], blk)

    @pl.when(t_idx == pl.num_programs(1) - 1)
    def _():
        a = acc_ref[...]
        # LeakyReLU is monotone, so applying it after the global max is identical.
        out_ref[0] = jnp.where(a > 0, a, alpha * a).astype(out_ref.dtype)


def conv5_pallas(feats, p, *, compute_dtype, alpha=LEAKY_SLOPE, tile_n=None):
    B, N = feats[0].shape[:2]
    dims = [f.shape[-1] for f in feats]
    F = p['w'].shape[1]
    wdt = compute_dtype

    ws, off = [], 0
    for c in dims:
        ws.append(p['w'][off:off + c].astype(wdt))
        off += c
    assert off == p['w'].shape[0]

    if tile_n is None:
        tile_n = N
        for cand in (2048, 1024, 512, 256, 128):
            if N >= cand and N % cand == 0:
                tile_n = cand
                break
    assert N % tile_n == 0
    nt = N // tile_n
    n_in = len(feats)

    kern = functools.partial(_conv5_max_kernel, alpha=alpha,
                             compute_dtype=compute_dtype, n_in=n_in)

    in_specs = ([pl.BlockSpec((1, tile_n, c), lambda b, t: (b, t, 0)) for c in dims]
                + [pl.BlockSpec((c, F), lambda b, t: (0, 0)) for c in dims]
                + [pl.BlockSpec((1, F), lambda b, t: (0, 0)),
                   pl.BlockSpec((1, F), lambda b, t: (0, 0))])

    cin = sum(dims)
    bytes_accessed = (sum(f.size * f.dtype.itemsize for f in feats)
                      + cin * F * jnp.dtype(wdt).itemsize + B * F * 4)

    return pl.pallas_call(
        kern,
        out_shape=jax.ShapeDtypeStruct((B, 1, F), jnp.float32),
        grid_spec=pltpu.PrefetchScalarGridSpec(
            num_scalar_prefetch=0,
            grid=(B, nt),
            in_specs=in_specs,
            out_specs=pl.BlockSpec((1, 1, F), lambda b, t: (b, 0, 0)),
            scratch_shapes=[pltpu.VMEM((1, F), jnp.float32)],
        ),
        compiler_params=pltpu.CompilerParams(
            dimension_semantics=("parallel", "arbitrary"),
            vmem_limit_bytes=_vmem_limit_bytes()),
        cost_estimate=pl.CostEstimate(flops=2 * B * N * cin * F, transcendentals=0,
                                      bytes_accessed=int(bytes_accessed)),
    )(*feats, *ws, p['scale'], p['bias'])


# ----------------------------------------------------------------------------
# Reference implementations (faithful jnp mirror of the PyTorch module)
# ----------------------------------------------------------------------------
def edge_conv_reference(feat_bnc, idx, p, *, alpha=LEAKY_SLOPE):
    w = p['w'].astype(jnp.float32)                                           # (2C, Cout)
    f32 = feat_bnc.astype(jnp.float32)
    nb = jax.vmap(lambda f, i: f[i, :])(f32, idx)                            # (B, N, k, C)
    ctr = jnp.broadcast_to(f32[:, :, None, :], nb.shape)
    ef = jnp.concatenate([nb - ctr, ctr], axis=-1)                           # cat((feature - x, x))
    h = jnp.einsum('bnkc,co->bnko', ef, w, precision=jax.lax.Precision.HIGHEST)
    h = (h - p['mean']) / jnp.sqrt(p['var'] + EPS) * p['gamma'] + p['beta']  # BatchNorm2d (eval)
    h = jnp.where(h > 0, h, alpha * h)
    return jnp.max(h, axis=2)                                                # max over k


def conv5_reference(feats, p, *, alpha=LEAKY_SLOPE):
    x = jnp.concatenate([f.astype(jnp.float32) for f in feats], axis=-1)     # (B, N, 512)
    h = jnp.einsum('bnc,co->bno', x, p['w'].astype(jnp.float32),
                   precision=jax.lax.Precision.HIGHEST)
    h = (h - p['mean']) / jnp.sqrt(p['var'] + EPS) * p['gamma'] + p['beta']  # BatchNorm1d (eval)
    h = jnp.where(h > 0, h, alpha * h)
    return jnp.max(h, axis=1)[:, None, :]                                    # global max, unsqueeze(1)


# ----------------------------------------------------------------------------
# Full DGCNN_Encoder forward
# ----------------------------------------------------------------------------
def dgcnn_encoder_forward(x_b3n, params, *, k, edge_conv_fn, conv5_fn,
                          idx_list=None, return_idx=False):
    """x_b3n: (B, 3, num_points) -> feat (B, 1, feat_dim)."""
    h = jnp.transpose(x_b3n, (0, 2, 1))                  # channels-last working layout
    feats, used_idx = [], []
    for li, p in enumerate(params['edge']):
        idx = knn_idx(h, k) if idx_list is None else idx_list[li]
        used_idx.append(idx)
        h = edge_conv_fn(h, idx, p)                      # (B, N, Cout_li)
        feats.append(h)
    feat = conv5_fn(feats, params['conv5'])              # (B, 1, feat_dim) == cat + conv5 + max
    return (feat, used_idx) if return_idx else feat


def pallas_forward(x, params, idx_list=None, *, k, compute_dtype=jnp.bfloat16,
                   return_idx=False):
    return dgcnn_encoder_forward(
        x, params, k=k,
        edge_conv_fn=functools.partial(edge_conv_pallas, compute_dtype=compute_dtype),
        conv5_fn=functools.partial(conv5_pallas, compute_dtype=compute_dtype),
        idx_list=idx_list, return_idx=return_idx)


def reference_forward(x, params, idx_list=None, *, k):
    return dgcnn_encoder_forward(
        x, params, k=k,
        edge_conv_fn=edge_conv_reference, conv5_fn=conv5_reference,
        idx_list=idx_list)


# ----------------------------------------------------------------------------
# Parameter init (PyTorch-like conv init; BatchNorm in eval mode, pre-folded)
# ----------------------------------------------------------------------------
def init_params(key, feat_dim=128):
    def bn_params(bkey, c):
        kg, kb, km, kv = jax.random.split(bkey, 4)
        gamma = jax.random.uniform(kg, (c,), jnp.float32, 0.5, 1.5)
        beta = jax.random.uniform(kb, (c,), jnp.float32, -0.2, 0.2)
        mean = 0.1 * jax.random.normal(km, (c,), jnp.float32)
        var = jax.random.uniform(kv, (c,), jnp.float32, 0.5, 1.5)
        scale = gamma / jnp.sqrt(var + EPS)
        bias = beta - scale * mean
        return dict(gamma=gamma, beta=beta, mean=mean, var=var,
                    scale=scale.reshape(1, c), bias=bias.reshape(1, c))

    edge_dims = [(3, 64), (64, 64), (64, 128), (128, 256)]
    edge = []
    for cin, cout in edge_dims:
        key, kw, kbn = jax.random.split(key, 3)
        bound = 1.0 / math.sqrt(2 * cin)
        w = jax.random.uniform(kw, (2 * cin, cout), jnp.float32, -bound, bound)
        layer = dict(w=w)                                # f32 master weights
        layer.update(bn_params(kbn, cout))
        edge.append(layer)

    key, kw, kbn = jax.random.split(key, 3)
    cin5 = sum(c for _, c in edge_dims)                  # 512
    bound = 1.0 / math.sqrt(cin5)
    w5 = jax.random.uniform(kw, (cin5, feat_dim), jnp.float32, -bound, bound)
    conv5 = dict(w=w5)
    conv5.update(bn_params(kbn, feat_dim))
    return dict(edge=edge, conv5=conv5)


# ----------------------------------------------------------------------------
if __name__ == "__main__":
    BATCH, NUM_POINTS, K_NN, FEAT_DIM = 2, 64, 8, 128    # small stand-in shapes

    key = jax.random.PRNGKey(0)
    key, kx = jax.random.split(key)
    x = jax.random.normal(kx, (BATCH, 3, NUM_POINTS), jnp.float32)
    params = init_params(key, FEAT_DIM)

    # Correctness check in f32 compute mode (tight tolerance). The reference is
    # run on the same kNN graphs (the module's get_graph_feature accepts idx) so
    # the comparison isolates the Pallas kernels from top-k tie-break noise.
    fwd_f32 = jax.jit(functools.partial(pallas_forward, k=K_NN,
                                        compute_dtype=jnp.float32, return_idx=True))
    out_f32, idx_list = fwd_f32(x, params)
    out_f32 = jax.block_until_ready(out_f32)

    ref_fwd = jax.jit(functools.partial(reference_forward, k=K_NN))
    out_ref = jax.block_until_ready(ref_fwd(x, params, idx_list))

    assert out_f32.shape == (BATCH, 1, FEAT_DIM), out_f32.shape
    assert jnp.allclose(out_f32, out_ref, atol=2e-3, rtol=2e-3), \
        float(jnp.max(jnp.abs(out_f32 - out_ref)))

    # Performance path: bf16 MXU operands and bf16 inter-layer features.
    fwd_bf16 = jax.jit(functools.partial(pallas_forward, k=K_NN,
                                         compute_dtype=jnp.bfloat16))
    out_bf16 = jax.block_until_ready(fwd_bf16(x, params))
    assert out_bf16.shape == (BATCH, 1, FEAT_DIM), out_bf16.shape
    assert bool(jnp.all(jnp.isfinite(out_bf16.astype(jnp.float32))))

    print("KERNEL_OK")
</pallas_src>

<mosaic_0001>
module attributes {stable_mosaic.version = 11 : i64} {
  func.func @_edge_conv_kernel(%arg0: i32, %arg1: i32, %arg2: memref<1x64x3xf32, #tpu.memory_space<vmem>>, %arg3: memref<1x32x8xi32, #tpu.memory_space<vmem>>, %arg4: memref<3x64xf32, #tpu.memory_space<vmem>>, %arg5: memref<3x64xf32, #tpu.memory_space<vmem>>, %arg6: memref<1x64xf32, #tpu.memory_space<vmem>>, %arg7: memref<1x64xf32, #tpu.memory_space<vmem>>, %arg8: memref<1x32x64xf32, #tpu.memory_space<vmem>>) attributes {dimension_semantics = [#tpu.dimension_semantics<parallel>, #tpu.dimension_semantics<parallel>], iteration_bounds = array<i64: 2, 2>, scalar_prefetch = 0 : i64, scratch_operands = 0 : i64, tpu.core_type = #tpu.core_type<tc>, window_params = [{transform_indices = @transform_0, window_bounds = array<i64: 1, 64, 3>}, {transform_indices = @transform_1, window_bounds = array<i64: 1, 32, 8>}, {pipeline_mode = #tpu.pipeline_mode<synchronous>, transform_indices = @transform_2, window_bounds = array<i64: 3, 64>}, {pipeline_mode = #tpu.pipeline_mode<synchronous>, transform_indices = @transform_3, window_bounds = array<i64: 3, 64>}, {pipeline_mode = #tpu.pipeline_mode<synchronous>, transform_indices = @transform_4, window_bounds = array<i64: 1, 64>}, {pipeline_mode = #tpu.pipeline_mode<synchronous>, transform_indices = @transform_5, window_bounds = array<i64: 1, 64>}, {transform_indices = @transform_6, window_bounds = array<i64: 1, 32, 64>}]} {
    %c0 = arith.constant 0 : index
    %c0_0 = arith.constant 0 : index
    %c0_1 = arith.constant 0 : index
    %0 = vector.load %arg2[%c0, %c0_0, %c0_1] : memref<1x64x3xf32, #tpu.memory_space<vmem>>, vector<1x64x3xf32>
    %1 = vector.shape_cast %0 : vector<1x64x3xf32> to vector<64x3xf32>
    %c0_2 = arith.constant 0 : index
    %c0_3 = arith.constant 0 : index
    %2 = vector.load %arg4[%c0_2, %c0_3] : memref<3x64xf32, #tpu.memory_space<vmem>>, vector<3x64xf32>
    %c0_4 = arith.constant 0 : index
    %c0_5 = arith.constant 0 : index
    %3 = vector.load %arg6[%c0_4, %c0_5] : memref<1x64xf32, #tpu.memory_space<vmem>>, vector<1x64xf32>
    %c0_6 = arith.constant 0 : index
    %c0_7 = arith.constant 0 : index
    %4 = vector.load %arg7[%c0_6, %c0_7] : memref<1x64xf32, #tpu.memory_space<vmem>>, vector<1x64xf32>
    %c32_i32 = arith.constant 32 : i32
    %5 = arith.muli %arg1, %c32_i32 : i32
    %6 = tpu.assume_multiple %5, 32 : i32
    %c0_8 = arith.constant 0 : index
    %7 = arith.index_cast %6 : i32 to index
    %c0_9 = arith.constant 0 : index
    %8 = vector.load %arg2[%c0_8, %7, %c0_9] : memref<1x64x3xf32, #tpu.memory_space<vmem>>, vector<1x32x3xf32>
    %9 = vector.shape_cast %8 : vector<1x32x3xf32> to vector<32x3xf32>
    %c0_10 = arith.constant 0 : index
    %c0_11 = arith.constant 0 : index
    %c0_12 = arith.constant 0 : index
    %10 = vector.load %arg3[%c0_10, %c0_11, %c0_12] : memref<1x32x8xi32, #tpu.memory_space<vmem>>, vector<1x32x8xi32>
    %11 = vector.shape_cast %10 : vector<1x32x8xi32> to vector<32x8xi32>
    %c0_13 = arith.constant 0 : index
    %c0_14 = arith.constant 0 : index
    %12 = vector.load %arg5[%c0_13, %c0_14] : memref<3x64xf32, #tpu.memory_space<vmem>>, vector<3x64xf32>
    %cst = arith.constant dense<0.000000e+00> : vector<32x64xf32>
    %13 = tpu.matmul %9, %12, %cst {dimension_numbers = #tpu.dot_dimension_numbers<[1], [0], [0], [1], [0, 0, 1, 1], [], []>} : vector<32x3xf32>, vector<3x64xf32>, vector<32x64xf32> -> vector<32x64xf32>
    %14 = vector.broadcast %3 : vector<1x64xf32> to vector<32x64xf32>
    %15 = arith.mulf %13, %14 : vector<32x64xf32>
    %16 = vector.broadcast %4 : vector<1x64xf32> to vector<32x64xf32>
    %17 = arith.addf %15, %16 : vector<32x64xf32>
    %cst_15 = arith.constant dense<0.000000e+00> : vector<64x64xf32>
    %18 = tpu.matmul %1, %2, %cst_15 {dimension_numbers = #tpu.dot_dimension_numbers<[1], [0], [0], [1], [0, 0, 1, 1], [], []>} : vector<64x3xf32>, vector<3x64xf32>, vector<64x64xf32> -> vector<64x64xf32>
    %19 = tpu.iota {dimensions = array<i32: 1>} : vector<32x64xi32>
    %20 = vector.extract_strided_slice %11 {offsets = [0, 0], sizes = [32, 1], strides = [1, 1]} : vector<32x8xi32> to vector<32x1xi32>
    %21 = vector.broadcast %20 : vector<32x1xi32> to vector<32x64xi32>
    %22 = arith.cmpi eq, %21, %19 : vector<32x64xi32>
    %cst_16 = arith.constant 1.000000e+00 : f32
    %cst_17 = arith.constant 0.000000e+00 : f32
    %23 = vector.broadcast %cst_16 : f32 to vector<32x64xf32>
    %24 = vector.broadcast %cst_17 : f32 to vector<32x64xf32>
    %25 = arith.select %22, %23, %24 : vector<32x64xi1>, vector<32x64xf32>
    %26 = vector.extract_strided_slice %11 {offsets = [0, 1], sizes = [32, 1], strides = [1, 1]} : vector<32x8xi32> to vector<32x1xi32>
    %27 = vector.broadcast %26 : vector<32x1xi32> to vector<32x64xi32>
    %28 = arith.cmpi eq, %27, %19 : vector<32x64xi32>
    %cst_18 = arith.constant 1.000000e+00 : f32
    %cst_19 = arith.constant 0.000000e+00 : f32
    %29 = vector.broadcast %cst_18 : f32 to vector<32x64xf32>
    %30 = vector.broadcast %cst_19 : f32 to vector<32x64xf32>
    %31 = arith.select %28, %29, %30 : vector<32x64xi1>, vector<32x64xf32>
    %32 = vector.extract_strided_slice %11 {offsets = [0, 2], sizes = [32, 1], strides = [1, 1]} : vector<32x8xi32> to vector<32x1xi32>
    %33 = vector.broadcast %32 : vector<32x1xi32> to vector<32x64xi32>
    %34 = arith.cmpi eq, %33, %19 : vector<32x64xi32>
    %cst_20 = arith.constant 1.000000e+00 : f32
    %cst_21 = arith.constant 0.000000e+00 : f32
    %35 = vector.broadcast %cst_20 : f32 to vector<32x64xf32>
    %36 = vector.broadcast %cst_21 : f32 to vector<32x64xf32>
    %37 = arith.select %34, %35, %36 : vector<32x64xi1>, vector<32x64xf32>
    %38 = vector.extract_strided_slice %11 {offsets = [0, 3], sizes = [32, 1], strides = [1, 1]} : vector<32x8xi32> to vector<32x1xi32>
    %39 = vector.broadcast %38 : vector<32x1xi32> to vector<32x64xi32>
    %40 = arith.cmpi eq, %39, %19 : vector<32x64xi32>
    %cst_22 = arith.constant 1.000000e+00 : f32
    %cst_23 = arith.constant 0.000000e+00 : f32
    %41 = vector.broadcast %cst_22 : f32 to vector<32x64xf32>
    %42 = vector.broadcast %cst_23 : f32 to vector<32x64xf32>
    %43 = arith.select %40, %41, %42 : vector<32x64xi1>, vector<32x64xf32>
    %44 = vector.extract_strided_slice %11 {offsets = [0, 4], sizes = [32, 1], strides = [1, 1]} : vector<32x8xi32> to vector<32x1xi32>
    %45 = vector.broadcast %44 : vector<32x1xi32> to vector<32x64xi32>
    %46 = arith.cmpi eq, %45, %19 : vector<32x64xi32>
    %cst_24 = arith.constant 1.000000e+00 : f32
    %cst_25 = arith.constant 0.000000e+00 : f32
    %47 = vector.broadcast %cst_24 : f32 to vector<32x64xf32>
    %48 = vector.broadcast %cst_25 : f32 to vector<32x64xf32>
    %49 = arith.select %46, %47, %48 : vector<32x64xi1>, vector<32x64xf32>
    %50 = vector.extract_strided_slice %11 {offsets = [0, 5], sizes = [32, 1], strides = [1, 1]} : vector<32x8xi32> to vector<32x1xi32>
    %51 = vector.broadcast %50 : vector<32x1xi32> to vector<32x64xi32>
    %52 = arith.cmpi eq, %51, %19 : vector<32x64xi32>
    %cst_26 = arith.constant 1.000000e+00 : f32
    %cst_27 = arith.constant 0.000000e+00 : f32
    %53 = vector.broadcast %cst_26 : f32 to vector<32x64xf32>
    %54 = vector.broadcast %cst_27 : f32 to vector<32x64xf32>
    %55 = arith.select %52, %53, %54 : vector<32x64xi1>, vector<32x64xf32>
    %56 = vector.extract_strided_slice %11 {offsets = [0, 6], sizes = [32, 1], strides = [1, 1]} : vector<32x8xi32> to vector<32x1xi32>
    %57 = vector.broadcast %56 : vector<32x1xi32> to vector<32x64xi32>
    %58 = arith.cmpi eq, %57, %19 : vector<32x64xi32>
    %cst_28 = arith.constant 1.000000e+00 : f32
    %cst_29 = arith.constant 0.000000e+00 : f32
    %59 = vector.broadcast %cst_28 : f32 to vector<32x64xf32>
    %60 = vector.broadcast %cst_29 : f32 to vector<32x64xf32>
    %61 = arith.select %58, %59, %60 : vector<32x64xi1>, vector<32x64xf32>
    %62 = vector.extract_strided_slice %11 {offsets = [0, 7], sizes = [32, 1], strides = [1, 1]} : vector<32x8xi32> to vector<32x1xi32>
    %63 = vector.broadcast %62 : vector<32x1xi32> to vector<32x64xi32>
    %64 = arith.cmpi eq, %63, %19 : vector<32x64xi32>
    %cst_30 = arith.constant 1.000000e+00 : f32
    %cst_31 = arith.constant 0.000000e+00 : f32
    %65 = vector.broadcast %cst_30 : f32 to vector<32x64xf32>
    %66 = vector.broadcast %cst_31 : f32 to vector<32x64xf32>
    %67 = arith.select %64, %65, %66 : vector<32x64xi1>, vector<32x64xf32>
    %68 = tpu.concatenate %25, %31, %37, %43, %49, %55, %61, %67 in 0 : vector<32x64xf32>, vector<32x64xf32>, vector<32x64xf32>, vector<32x64xf32>, vector<32x64xf32>, vector<32x64xf32>, vector<32x64xf32>, vector<32x64xf32> -> vector<256x64xf32>
    %cst_32 = arith.constant dense<0.000000e+00> : vector<256x64xf32>
    %69 = tpu.matmul %68, %18, %cst_32 {dimension_numbers = #tpu.dot_dimension_numbers<[1], [0], [0], [1], [0, 0, 1, 1], [], []>} : vector<256x64xf32>, vector<64x64xf32>, vector<256x64xf32> -> vector<256x64xf32>
    %70 = vector.extract_strided_slice %69 {offsets = [0, 0], sizes = [32, 64], strides = [1, 1]} : vector<256x64xf32> to vector<32x64xf32>
    %71 = vector.broadcast %3 : vector<1x64xf32> to vector<32x64xf32>
    %72 = arith.mulf %70, %71 : vector<32x64xf32>
    %73 = arith.addf %72, %17 : vector<32x64xf32>
    %74 = vector.extract_strided_slice %69 {offsets = [32, 0], sizes = [32, 64], strides = [1, 1]} : vector<256x64xf32> to vector<32x64xf32>
    %75 = vector.broadcast %3 : vector<1x64xf32> to vector<32x64xf32>
    %76 = arith.mulf %74, %75 : vector<32x64xf32>
    %77 = arith.addf %76, %17 : vector<32x64xf32>
    %78 = arith.maximumf %73, %77 : vector<32x64xf32>
    %79 = vector.extract_strided_slice %69 {offsets = [64, 0], sizes = [32, 64], strides = [1, 1]} : vector<256x64xf32> to vector<32x64xf32>
    %80 = vector.broadcast %3 : vector<1x64xf32> to vector<32x64xf32>
    %81 = arith.mulf %79, %80 : vector<32x64xf32>
    %82 = arith.addf %81, %17 : vector<32x64xf32>
    %83 = arith.maximumf %78, %82 : vector<32x64xf32>
    %84 = vector.extract_strided_slice %69 {offsets = [96, 0], sizes = [32, 64], strides = [1, 1]} : vector<256x64xf32> to vector<32x64xf32>
    %85 = vector.broadcast %3 : vector<1x64xf32> to vector<32x64xf32>
    %86 = arith.mulf %84, %85 : vector<32x64xf32>
    %87 = arith.addf %86, %17 : vector<32x64xf32>
    %88 = arith.maximumf %83, %87 : vector<32x64xf32>
    %89 = vector.extract_strided_slice %69 {offsets = [128, 0], sizes = [32, 64], strides = [1, 1]} : vector<256x64xf32> to vector<32x64xf32>
    %90 = vector.broadcast %3 : vector<1x64xf32> to vector<32x64xf32>
    %91 = arith.mulf %89, %90 : vector<32x64xf32>
    %92 = arith.addf %91, %17 : vector<32x64xf32>
    %93 = arith.maximumf %88, %92 : vector<32x64xf32>
    %94 = vector.extract_strided_slice %69 {offsets = [160, 0], sizes = [32, 64], strides = [1, 1]} : vector<256x64xf32> to vector<32x64xf32>
    %95 = vector.broadcast %3 : vector<1x64xf32> to vector<32x64xf32>
    %96 = arith.mulf %94, %95 : vector<32x64xf32>
    %97 = arith.addf %96, %17 : vector<32x64xf32>
    %98 = arith.maximumf %93, %97 : vector<32x64xf32>
    %99 = vector.extract_strided_slice %69 {offsets = [192, 0], sizes = [32, 64], strides = [1, 1]} : vector<256x64xf32> to vector<32x64xf32>
    %100 = vector.broadcast %3 : vector<1x64xf32> to vector<32x64xf32>
    %101 = arith.mulf %99, %100 : vector<32x64xf32>
    %102 = arith.addf %101, %17 : vector<32x64xf32>
    %103 = arith.maximumf %98, %102 : vector<32x64xf32>
    %104 = vector.extract_strided_slice %69 {offsets = [224, 0], sizes = [32, 64], strides = [1, 1]} : vector<256x64xf32> to vector<32x64xf32>
    %105 = vector.broadcast %3 : vector<1x64xf32> to vector<32x64xf32>
    %106 = arith.mulf %104, %105 : vector<32x64xf32>
    %107 = arith.addf %106, %17 : vector<32x64xf32>
    %108 = arith.maximumf %103, %107 : vector<32x64xf32>
    %cst_33 = arith.constant 0.000000e+00 : f32
    %109 = vector.broadcast %cst_33 : f32 to vector<32x64xf32>
    %110 = arith.cmpf ogt, %108, %109 : vector<32x64xf32>
    %cst_34 = arith.constant 2.000000e-01 : f32
    %111 = vector.broadcast %cst_34 : f32 to vector<32x64xf32>
    %112 = arith.mulf %111, %108 : vector<32x64xf32>
    %113 = arith.select %110, %108, %112 : vector<32x64xi1>, vector<32x64xf32>
    %c0_35 = arith.constant 0 : index
    %c0_36 = arith.constant 0 : index
    %c0_37 = arith.constant 0 : index
    %114 = vector.load %arg8[%c0_35, %c0_36, %c0_37] : memref<1x32x64xf32, #tpu.memory_space<vmem>>, vector<1x32x64xf32>
    %115 = vector.shape_cast %114 : vector<1x32x64xf32> to vector<32x64xf32>
    %116 = vector.shape_cast %113 : vector<32x64xf32> to vector<1x32x64xf32>
    tpu.vector_store %arg8[%c0_35, %c0_36, %c0_37], %116 {strides = array<i32>} : memref<1x32x64xf32, #tpu.memory_space<vmem>>, vector<1x32x64xf32>,
    return
  }
  func.func @transform_0(%arg0: i32, %arg1: i32) -> (i32, i32, i32) {
    %c0_i32 = arith.constant 0 : i32
    %c0_i32_0 = arith.constant 0 : i32
    %c0_i32_1 = arith.constant 0 : i32
    return %arg0, %c0_i32, %c0_i32_0 : i32, i32, i32
  }
  func.func @transform_1(%arg0: i32, %arg1: i32) -> (i32, i32, i32) {
    %c0_i32 = arith.constant 0 : i32
    %c0_i32_0 = arith.constant 0 : i32
    return %arg0, %arg1, %c0_i32 : i32, i32, i32
  }
  func.func @transform_2(%arg0: i32, %arg1: i32) -> (i32, i32) {
    %c0_i32 = arith.constant 0 : i32
    %c0_i32_0 = arith.constant 0 : i32
    %c0_i32_1 = arith.constant 0 : i32
    return %c0_i32, %c0_i32_0 : i32, i32
  }
  func.func @transform_3(%arg0: i32, %arg1: i32) -> (i32, i32) {
    %c0_i32 = arith.constant 0 : i32
    %c0_i32_0 = arith.constant 0 : i32
    %c0_i32_1 = arith.constant 0 : i32
    return %c0_i32, %c0_i32_0 : i32, i32
  }
  func.func @transform_4(%arg0: i32, %arg1: i32) -> (i32, i32) {
    %c0_i32 = arith.constant 0 : i32
    %c0_i32_0 = arith.constant 0 : i32
    %c0_i32_1 = arith.constant 0 : i32
    return %c0_i32, %c0_i32_0 : i32, i32
  }
  func.func @transform_5(%arg0: i32, %arg1: i32) -> (i32, i32) {
    %c0_i32 = arith.constant 0 : i32
    %c0_i32_0 = arith.constant 0 : i32
    %c0_i32_1 = arith.constant 0 : i32
    return %c0_i32, %c0_i32_0 : i32, i32
  }
  func.func @transform_6(%arg0: i32, %arg1: i32) -> (i32, i32, i32) {
    %c0_i32 = arith.constant 0 : i32
    %c0_i32_0 = arith.constant 0 : i32
    return %arg0, %arg1, %c0_i32 : i32, i32, i32
  }
}

module attributes {stable_mosaic.version = 11 : i64} {
  func.func @_edge_conv_kernel(%arg0: i32, %arg1: i32, %arg2: memref<1x64x64xf32, #tpu.memory_space<vmem>>, %arg3: memref<1x32x8xi32, #tpu.memory_space<vmem>>, %arg4: memref<64x64xf32, #tpu.memory_space<vmem>>, %arg5: memref<64x64xf32, #tpu.memory_space<vmem>>, %arg6: memref<1x64xf32, #tpu.memory_space<vmem>>, %arg7: memref<1x64xf32, #tpu.memory_space<vmem>>, %arg8: memref<1x32x64xf32, #tpu.memory_space<vmem>>) attributes {dimension_semantics = [#tpu.dimension_semantics<parallel>, #tpu.dimension_semantics<parallel>], iteration_bounds = array<i64: 2, 2>, scalar_prefetch = 0 : i64, scratch_operands = 0 : i64, tpu.core_type = #tpu.core_type<tc>, window_params = [{transform_indices = @transform_0, window_bounds = array<i64: 1, 64, 64>}, {transform_indices = @transform_1, window_bounds = array<i64: 1, 32, 8>}, {pipeline_mode = #tpu.pipeline_mode<synchronous>, transform_indices = @transform_2, window_bounds = array<i64: 64, 64>}, {pipeline_mode = #tpu.pipeline_mode<synchronous>, transform_indices = @transform_3, window_bounds = array<i64: 64, 64>}, {pipeline_mode = #tpu.pipeline_mode<synchronous>, transform_indices = @transform_4, window_bounds = array<i64: 1, 64>}, {pipeline_mode = #tpu.pipeline_mode<synchronous>, transform_indices = @transform_5, window_bounds = array<i64: 1, 64>}, {transform_indices = @transform_6, window_bounds = array<i64: 1, 32, 64>}]} {
    %c0 = arith.constant 0 : index
    %c0_0 = arith.constant 0 : index
    %c0_1 = arith.constant 0 : index
    %0 = vector.load %arg2[%c0, %c0_0, %c0_1] : memref<1x64x64xf32, #tpu.memory_space<vmem>>, vector<1x64x64xf32>
    %1 = vector.shape_cast %0 : vector<1x64x64xf32> to vector<64x64xf32>
    %c0_2 = arith.constant 0 : index
    %c0_3 = arith.constant 0 : index
    %2 = vector.load %arg4[%c0_2, %c0_3] : memref<64x64xf32, #tpu.memory_space<vmem>>, vector<64x64xf32>
    %c0_4 = arith.constant 0 : index
    %c0_5 = arith.constant 0 : index
    %3 = vector.load %arg6[%c0_4, %c0_5] : memref<1x64xf32, #tpu.memory_space<vmem>>, vector<1x64xf32>
    %c0_6 = arith.constant 0 : index
    %c0_7 = arith.constant 0 : index
    %4 = vector.load %arg7[%c0_6, %c0_7] : memref<1x64xf32, #tpu.memory_space<vmem>>, vector<1x64xf32>
    %c32_i32 = arith.constant 32 : i32
    %5 = arith.muli %arg1, %c32_i32 : i32
    %6 = tpu.assume_multiple %5, 32 : i32
    %c0_8 = arith.constant 0 : index
    %7 = arith.index_cast %6 : i32 to index
    %c0_9 = arith.constant 0 : index
    %8 = vector.load %arg2[%c0_8, %7, %c0_9] : memref<1x64x64xf32, #tpu.memory_space<vmem>>, vector<1x32x64xf32>
    %9 = vector.shape_cast %8 : vector<1x32x64xf32> to vector<32x64xf32>
    %c0_10 = arith.constant 0 : index
    %c0_11 = arith.constant 0 : index
    %c0_12 = arith.constant 0 : index
    %10 = vector.load %arg3[%c0_10, %c0_11, %c0_12] : memref<1x32x8xi32, #tpu.memory_space<vmem>>, vector<1x32x8xi32>
    %11 = vector.shape_cast %10 : vector<1x32x8xi32> to vector<32x8xi32>
    %c0_13 = arith.constant 0 : index
    %c0_14 = arith.constant 0 : index
    %12 = vector.load %arg5[%c0_13, %c0_14] : memref<64x64xf32, #tpu.memory_space<vmem>>, vector<64x64xf32>
    %cst = arith.constant dense<0.000000e+00> : vector<32x64xf32>
    %13 = tpu.matmul %9, %12, %cst {dimension_numbers = #tpu.dot_dimension_numbers<[1], [0], [0], [1], [0, 0, 1, 1], [], []>} : vector<32x64xf32>, vector<64x64xf32>, vector<32x64xf32> -> vector<32x64xf32>
    %14 = vector.broadcast %3 : vector<1x64xf32> to vector<32x64xf32>
    %15 = arith.mulf %13, %14 : vector<32x64xf32>
    %16 = vector.broadcast %4 : vector<1x64xf32> to vector<32x64xf32>
    %17 = arith.addf %15, %16 : vector<32x64xf32>
    %cst_15 = arith.constant dense<0.000000e+00> : vector<64x64xf32>
    %18 = tpu.matmul %1, %2, %cst_15 {dimension_numbers = #tpu.dot_dimension_numbers<[1], [0], [0], [1], [0, 0, 1, 1], [], []>} : vector<64x64xf32>, vector<64x64xf32>, vector<64x64xf32> -> vector<64x64xf32>
    %19 = tpu.iota {dimensions = array<i32: 1>} : vector<32x64xi32>
    %20 = vector.extract_strided_slice %11 {offsets = [0, 0], sizes = [32, 1], strides = [1, 1]} : vector<32x8xi32> to vector<32x1xi32>
    %21 = vector.broadcast %20 : vector<32x1xi32> to vector<32x64xi32>
    %22 = arith.cmpi eq, %21, %19 : vector<32x64xi32>
    %cst_16 = arith.constant 1.000000e+00 : f32
    %cst_17 = arith.constant 0.000000e+00 : f32
    %23 = vector.broadcast %cst_16 : f32 to vector<32x64xf32>
    %24 = vector.broadcast %cst_17 : f32 to vector<32x64xf32>
    %25 = arith.select %22, %23, %24 : vector<32x64xi1>, vector<32x64xf32>
    %26 = vector.extract_strided_slice %11 {offsets = [0, 1], sizes = [32, 1], strides = [1, 1]} : vector<32x8xi32> to vector<32x1xi32>
    %27 = vector.broadcast %26 : vector<32x1xi32> to vector<32x64xi32>
    %28 = arith.cmpi eq, %27, %19 : vector<32x64xi32>
    %cst_18 = arith.constant 1.000000e+00 : f32
    %cst_19 = arith.constant 0.000000e+00 : f32
    %29 = vector.broadcast %cst_18 : f32 to vector<32x64xf32>
    %30 = vector.broadcast %cst_19 : f32 to vector<32x64xf32>
    %31 = arith.select %28, %29, %30 : vector<32x64xi1>, vector<32x64xf32>
    %32 = vector.extract_strided_slice %11 {offsets = [0, 2], sizes = [32, 1], strides = [1, 1]} : vector<32x8xi32> to vector<32x1xi32>
    %33 = vector.broadcast %32 : vector<32x1xi32> to vector<32x64xi32>
    %34 = arith.cmpi eq, %33, %19 : vector<32x64xi32>
    %cst_20 = arith.constant 1.000000e+00 : f32
    %cst_21 = arith.constant 0.000000e+00 : f32
    %35 = vector.broadcast %cst_20 : f32 to vector<32x64xf32>
    %36 = vector.broadcast %cst_21 : f32 to vector<32x64xf32>
    %37 = arith.select %34, %35, %36 : vector<32x64xi1>, vector<32x64xf32>
    %38 = vector.extract_strided_slice %11 {offsets = [0, 3], sizes = [32, 1], strides = [1, 1]} : vector<32x8xi32> to vector<32x1xi32>
    %39 = vector.broadcast %38 : vector<32x1xi32> to vector<32x64xi32>
    %40 = arith.cmpi eq, %39, %19 : vector<32x64xi32>
    %cst_22 = arith.constant 1.000000e+00 : f32
    %cst_23 = arith.constant 0.000000e+00 : f32
    %41 = vector.broadcast %cst_22 : f32 to vector<32x64xf32>
    %42 = vector.broadcast %cst_23 : f32 to vector<32x64xf32>
    %43 = arith.select %40, %41, %42 : vector<32x64xi1>, vector<32x64xf32>
    %44 = vector.extract_strided_slice %11 {offsets = [0, 4], sizes = [32, 1], strides = [1, 1]} : vector<32x8xi32> to vector<32x1xi32>
    %45 = vector.broadcast %44 : vector<32x1xi32> to vector<32x64xi32>
    %46 = arith.cmpi eq, %45, %19 : vector<32x64xi32>
    %cst_24 = arith.constant 1.000000e+00 : f32
    %cst_25 = arith.constant 0.000000e+00 : f32
    %47 = vector.broadcast %cst_24 : f32 to vector<32x64xf32>
    %48 = vector.broadcast %cst_25 : f32 to vector<32x64xf32>
    %49 = arith.select %46, %47, %48 : vector<32x64xi1>, vector<32x64xf32>
    %50 = vector.extract_strided_slice %11 {offsets = [0, 5], sizes = [32, 1], strides = [1, 1]} : vector<32x8xi32> to vector<32x1xi32>
    %51 = vector.broadcast %50 : vector<32x1xi32> to vector<32x64xi32>
    %52 = arith.cmpi eq, %51, %19 : vector<32x64xi32>
    %cst_26 = arith.constant 1.000000e+00 : f32
    %cst_27 = arith.constant 0.000000e+00 : f32
    %53 = vector.broadcast %cst_26 : f32 to vector<32x64xf32>
    %54 = vector.broadcast %cst_27 : f32 to vector<32x64xf32>
    %55 = arith.select %52, %53, %54 : vector<32x64xi1>, vector<32x64xf32>
    %56 = vector.extract_strided_slice %11 {offsets = [0, 6], sizes = [32, 1], strides = [1, 1]} : vector<32x8xi32> to vector<32x1xi32>
    %57 = vector.broadcast %56 : vector<32x1xi32> to vector<32x64xi32>
    %58 = arith.cmpi eq, %57, %19 : vector<32x64xi32>
    %cst_28 = arith.constant 1.000000e+00 : f32
    %cst_29 = arith.constant 0.000000e+00 : f32
    %59 = vector.broadcast %cst_28 : f32 to vector<32x64xf32>
    %60 = vector.broadcast %cst_29 : f32 to vector<32x64xf32>
    %61 = arith.select %58, %59, %60 : vector<32x64xi1>, vector<32x64xf32>
    %62 = vector.extract_strided_slice %11 {offsets = [0, 7], sizes = [32, 1], strides = [1, 1]} : vector<32x8xi32> to vector<32x1xi32>
    %63 = vector.broadcast %62 : vector<32x1xi32> to vector<32x64xi32>
    %64 = arith.cmpi eq, %63, %19 : vector<32x64xi32>
    %cst_30 = arith.constant 1.000000e+00 : f32
    %cst_31 = arith.constant 0.000000e+00 : f32
    %65 = vector.broadcast %cst_30 : f32 to vector<32x64xf32>
    %66 = vector.broadcast %cst_31 : f32 to vector<32x64xf32>
    %67 = arith.select %64, %65, %66 : vector<32x64xi1>, vector<32x64xf32>
    %68 = tpu.concatenate %25, %31, %37, %43, %49, %55, %61, %67 in 0 : vector<32x64xf32>, vector<32x64xf32>, vector<32x64xf32>, vector<32x64xf32>, vector<32x64xf32>, vector<32x64xf32>, vector<32x64xf32>, vector<32x64xf32> -> vector<256x64xf32>
    %cst_32 = arith.constant dense<0.000000e+00> : vector<256x64xf32>
    %69 = tpu.matmul %68, %18, %cst_32 {dimension_numbers = #tpu.dot_dimension_numbers<[1], [0], [0], [1], [0, 0, 1, 1], [], []>} : vector<256x64xf32>, vector<64x64xf32>, vector<256x64xf32> -> vector<256x64xf32>
    %70 = vector.extract_strided_slice %69 {offsets = [0, 0], sizes = [32, 64], strides = [1, 1]} : vector<256x64xf32> to vector<32x64xf32>
    %71 = vector.broadcast %3 : vector<1x64xf32> to vector<32x64xf32>
    %72 = arith.mulf %70, %71 : vector<32x64xf32>
    %73 = arith.addf %72, %17 : vector<32x64xf32>
    %74 = vector.extract_strided_slice %69 {offsets = [32, 0], sizes = [32, 64], strides = [1, 1]} : vector<256x64xf32> to vector<32x64xf32>
    %75 = vector.broadcast %3 : vector<1x64xf32> to vector<32x64xf32>
    %76 = arith.mulf %74, %75 : vector<32x64xf32>
    %77 = arith.addf %76, %17 : vector<32x64xf32>
    %78 = arith.maximumf %73, %77 : vector<32x64xf32>
    %79 = vector.extract_strided_slice %69 {offsets = [64, 0], sizes = [32, 64], strides = [1, 1]} : vector<256x64xf32> to vector<32x64xf32>
    %80 = vector.broadcast %3 : vector<1x64xf32> to vector<32x64xf32>
    %81 = arith.mulf %79, %80 : vector<32x64xf32>
    %82 = arith.addf %81, %17 : vector<32x64xf32>
    %83 = arith.maximumf %78, %82 : vector<32x64xf32>
    %84 = vector.extract_strided_slice %69 {offsets = [96, 0], sizes = [32, 64], strides = [1, 1]} : vector<256x64xf32> to vector<32x64xf32>
    %85 = vector.broadcast %3 : vector<1x64xf32> to vector<32x64xf32>
    %86 = arith.mulf %84, %85 : vector<32x64xf32>
    %87 = arith.addf %86, %17 : vector<32x64xf32>
    %88 = arith.maximumf %83, %87 : vector<32x64xf32>
    %89 = vector.extract_strided_slice %69 {offsets = [128, 0], sizes = [32, 64], strides = [1, 1]} : vector<256x64xf32> to vector<32x64xf32>
    %90 = vector.broadcast %3 : vector<1x64xf32> to vector<32x64xf32>
    %91 = arith.mulf %89, %90 : vector<32x64xf32>
    %92 = arith.addf %91, %17 : vector<32x64xf32>
    %93 = arith.maximumf %88, %92 : vector<32x64xf32>
    %94 = vector.extract_strided_slice %69 {offsets = [160, 0], sizes = [32, 64], strides = [1, 1]} : vector<256x64xf32> to vector<32x64xf32>
    %95 = vector.broadcast %3 : vector<1x64xf32> to vector<32x64xf32>
    %96 = arith.mulf %94, %95 : vector<32x64xf32>
    %97 = arith.addf %96, %17 : vector<32x64xf32>
    %98 = arith.maximumf %93, %97 : vector<32x64xf32>
    %99 = vector.extract_strided_slice %69 {offsets = [192, 0], sizes = [32, 64], strides = [1, 1]} : vector<256x64xf32> to vector<32x64xf32>
    %100 = vector.broadcast %3 : vector<1x64xf32> to vector<32x64xf32>
    %101 = arith.mulf %99, %100 : vector<32x64xf32>
    %102 = arith.addf %101, %17 : vector<32x64xf32>
    %103 = arith.maximumf %98, %102 : vector<32x64xf32>
    %104 = vector.extract_strided_slice %69 {offsets = [224, 0], sizes = [32, 64], strides = [1, 1]} : vector<256x64xf32> to vector<32x64xf32>
    %105 = vector.broadcast %3 : vector<1x64xf32> to vector<32x64xf32>
    %106 = arith.mulf %104, %105 : vector<32x64xf32>
    %107 = arith.addf %106, %17 : vector<32x64xf32>
    %108 = arith.maximumf %103, %107 : vector<32x64xf32>
    %cst_33 = arith.constant 0.000000e+00 : f32
    %109 = vector.broadcast %cst_33 : f32 to vector<32x64xf32>
    %110 = arith.cmpf ogt, %108, %109 : vector<32x64xf32>
    %cst_34 = arith.constant 2.000000e-01 : f32
    %111 = vector.broadcast %cst_34 : f32 to vector<32x64xf32>
    %112 = arith.mulf %111, %108 : vector<32x64xf32>
    %113 = arith.select %110, %108, %112 : vector<32x64xi1>, vector<32x64xf32>
    %c0_35 = arith.constant 0 : index
    %c0_36 = arith.constant 0 : index
    %c0_37 = arith.constant 0 : index
    %114 = vector.load %arg8[%c0_35, %c0_36, %c0_37] : memref<1x32x64xf32, #tpu.memory_space<vmem>>, vector<1x32x64xf32>
    %115 = vector.shape_cast %114 : vector<1x32x64xf32> to vector<32x64xf32>
    %116 = vector.shape_cast %113 : vector<32x64xf32> to vector<1x32x64xf32>
    tpu.vector_store %arg8[%c0_35, %c0_36, %c0_37], %116 {strides = array<i32>} : memref<1x32x64xf32, #tpu.memory_space<vmem>>, vector<1x32x64xf32>,
    return
  }
  func.func @transform_0(%arg0: i32, %arg1: i32) -> (i32, i32, i32) {
    %c0_i32 = arith.constant 0 : i32
    %c0_i32_0 = arith.constant 0 : i32
    %c0_i32_1 = arith.constant 0 : i32
    return %arg0, %c0_i32, %c0_i32_0 : i32, i32, i32
  }
  func.func @transform_1(%arg0: i32, %arg1: i32) -> (i32, i32, i32) {
    %c0_i32 = arith.constant 0 : i32
    %c0_i32_0 = arith.constant 0 : i32
    return %arg0, %arg1, %c0_i32 : i32, i32, i32
  }
  func.func @transform_2(%arg0: i32, %arg1: i32) -> (i32, i32) {
    %c0_i32 = arith.constant 0 : i32
    %c0_i32_0 = arith.constant 0 : i32
    %c0_i32_1 = arith.constant 0 : i32
    return %c0_i32, %c0_i32_0 : i32, i32
  }
  func.func @transform_3(%arg0: i32, %arg1: i32) -> (i32, i32) {
    %c0_i32 = arith.constant 0 : i32
    %c0_i32_0 = arith.constant 0 : i32
    %c0_i32_1 = arith.constant 0 : i32
    return %c0_i32, %c0_i32_0 : i32, i32
  }
  func.func @transform_4(%arg0: i32, %arg1: i32) -> (i32, i32) {
    %c0_i32 = arith.constant 0 : i32
    %c0_i32_0 = arith.constant 0 : i32
    %c0_i32_1 = arith.constant 0 : i32
    return %c0_i32, %c0_i32_0 : i32, i32
  }
  func.func @transform_5(%arg0: i32, %arg1: i32) -> (i32, i32) {
    %c0_i32 = arith.constant 0 : i32
    %c0_i32_0 = arith.constant 0 : i32
    %c0_i32_1 = arith.constant 0 : i32
    return %c0_i32, %c0_i32_0 : i32, i32
  }
  func.func @transform_6(%arg0: i32, %arg1: i32) -> (i32, i32, i32) {
    %c0_i32 = arith.constant 0 : i32
    %c0_i32_0 = arith.constant 0 : i32
    return %arg0, %arg1, %c0_i32 : i32, i32, i32
  }
}

module attributes {stable_mosaic.version = 11 : i64} {
  func.func @_edge_conv_kernel(%arg0: i32, %arg1: i32, %arg2: memref<1x64x64xf32, #tpu.memory_space<vmem>>, %arg3: memref<1x32x8xi32, #tpu.memory_space<vmem>>, %arg4: memref<64x128xf32, #tpu.memory_space<vmem>>, %arg5: memref<64x128xf32, #tpu.memory_space<vmem>>, %arg6: memref<1x128xf32, #tpu.memory_space<vmem>>, %arg7: memref<1x128xf32, #tpu.memory_space<vmem>>, %arg8: memref<1x32x128xf32, #tpu.memory_space<vmem>>) attributes {dimension_semantics = [#tpu.dimension_semantics<parallel>, #tpu.dimension_semantics<parallel>], iteration_bounds = array<i64: 2, 2>, scalar_prefetch = 0 : i64, scratch_operands = 0 : i64, tpu.core_type = #tpu.core_type<tc>, window_params = [{transform_indices = @transform_0, window_bounds = array<i64: 1, 64, 64>}, {transform_indices = @transform_1, window_bounds = array<i64: 1, 32, 8>}, {pipeline_mode = #tpu.pipeline_mode<synchronous>, transform_indices = @transform_2, window_bounds = array<i64: 64, 128>}, {pipeline_mode = #tpu.pipeline_mode<synchronous>, transform_indices = @transform_3, window_bounds = array<i64: 64, 128>}, {pipeline_mode = #tpu.pipeline_mode<synchronous>, transform_indices = @transform_4, window_bounds = array<i64: 1, 128>}, {pipeline_mode = #tpu.pipeline_mode<synchronous>, transform_indices = @transform_5, window_bounds = array<i64: 1, 128>}, {transform_indices = @transform_6, window_bounds = array<i64: 1, 32, 128>}]} {
    %c0 = arith.constant 0 : index
    %c0_0 = arith.constant 0 : index
    %c0_1 = arith.constant 0 : index
    %0 = vector.load %arg2[%c0, %c0_0, %c0_1] : memref<1x64x64xf32, #tpu.memory_space<vmem>>, vector<1x64x64xf32>
    %1 = vector.shape_cast %0 : vector<1x64x64xf32> to vector<64x64xf32>
    %c0_2 = arith.constant 0 : index
    %c0_3 = arith.constant 0 : index
    %2 = vector.load %arg4[%c0_2, %c0_3] : memref<64x128xf32, #tpu.memory_space<vmem>>, vector<64x128xf32>
    %c0_4 = arith.constant 0 : index
    %c0_5 = arith.constant 0 : index
    %3 = vector.load %arg6[%c0_4, %c0_5] : memref<1x128xf32, #tpu.memory_space<vmem>>, vector<1x128xf32>
    %c0_6 = arith.constant 0 : index
    %c0_7 = arith.constant 0 : index
    %4 = vector.load %arg7[%c0_6, %c0_7] : memref<1x128xf32, #tpu.memory_space<vmem>>, vector<1x128xf32>
    %c32_i32 = arith.constant 32 : i32
    %5 = arith.muli %arg1, %c32_i32 : i32
    %6 = tpu.assume_multiple %5, 32 : i32
    %c0_8 = arith.constant 0 : index
    %7 = arith.index_cast %6 : i32 to index
    %c0_9 = arith.constant 0 : index
    %8 = vector.load %arg2[%c0_8, %7, %c0_9] : memref<1x64x64xf32, #tpu.memory_space<vmem>>, vector<1x32x64xf32>
    %9 = vector.shape_cast %8 : vector<1x32x64xf32> to vector<32x64xf32>
    %c0_10 = arith.constant 0 : index
    %c0_11 = arith.constant 0 : index
    %c0_12 = arith.constant 0 : index
    %10 = vector.load %arg3[%c0_10, %c0_11, %c0_12] : memref<1x32x8xi32, #tpu.memory_space<vmem>>, vector<1x32x8xi32>
    %11 = vector.shape_cast %10 : vector<1x32x8xi32> to vector<32x8xi32>
    %c0_13 = arith.constant 0 : index
    %c0_14 = arith.constant 0 : index
    %12 = vector.load %arg5[%c0_13, %c0_14] : memref<64x128xf32, #tpu.memory_space<vmem>>, vector<64x128xf32>
    %cst = arith.constant dense<0.000000e+00> : vector<32x128xf32>
    %13 = tpu.matmul %9, %12, %cst {dimension_numbers = #tpu.dot_dimension_numbers<[1], [0], [0], [1], [0, 0, 1, 1], [], []>} : vector<32x64xf32>, vector<64x128xf32>, vector<32x128xf32> -> vector<32x128xf32>
    %14 = vector.broadcast %3 : vector<1x128xf32> to vector<32x128xf32>
    %15 = arith.mulf %13, %14 : vector<32x128xf32>
    %16 = vector.broadcast %4 : vector<1x128xf32> to vector<32x128xf32>
    %17 = arith.addf %15, %16 : vector<32x128xf32>
    %cst_15 = arith.constant dense<0.000000e+00> : vector<64x128xf32>
    %18 = tpu.matmul %1, %2, %cst_15 {dimension_numbers = #tpu.dot_dimension_numbers<[1], [0], [0], [1], [0, 0, 1, 1], [], []>} : vector<64x64xf32>, vector<64x128xf32>, vector<64x128xf32> -> vector<64x128xf32>
    %19 = tpu.iota {dimensions = array<i32: 1>} : vector<32x64xi32>
    %20 = vector.extract_strided_slice %11 {offsets = [0, 0], sizes = [32, 1], strides = [1, 1]} : vector<32x8xi32> to vector<32x1xi32>
    %21 = vector.broadcast %20 : vector<32x1xi32> to vector<32x64xi32>
    %22 = arith.cmpi eq, %21, %19 : vector<32x64xi32>
    %cst_16 = arith.constant 1.000000e+00 : f32
    %cst_17 = arith.constant 0.000000e+00 : f32
    %23 = vector.broadcast %cst_16 : f32 to vector<32x64xf32>
    %24 = vector.broadcast %cst_17 : f32 to vector<32x64xf32>
    %25 = arith.select %22, %23, %24 : vector<32x64xi1>, vector<32x64xf32>
    %26 = vector.extract_strided_slice %11 {offsets = [0, 1], sizes = [32, 1], strides = [1, 1]} : vector<32x8xi32> to vector<32x1xi32>
    %27 = vector.broadcast %26 : vector<32x1xi32> to vector<32x64xi32>
    %28 = arith.cmpi eq, %27, %19 : vector<32x64xi32>
    %cst_18 = arith.constant 1.000000e+00 : f32
    %cst_19 = arith.constant 0.000000e+00 : f32
    %29 = vector.broadcast %cst_18 : f32 to vector<32x64xf32>
    %30 = vector.broadcast %cst_19 : f32 to vector<32x64xf32>
    %31 = arith.select %28, %29, %30 : vector<32x64xi1>, vector<32x64xf32>
    %32 = vector.extract_strided_slice %11 {offsets = [0, 2], sizes = [32, 1], strides = [1, 1]} : vector<32x8xi32> to vector<32x1xi32>
    %33 = vector.broadcast %32 : vector<32x1xi32> to vector<32x64xi32>
    %34 = arith.cmpi eq, %33, %19 : vector<32x64xi32>
    %cst_20 = arith.constant 1.000000e+00 : f32
    %cst_21 = arith.constant 0.000000e+00 : f32
    %35 = vector.broadcast %cst_20 : f32 to vector<32x64xf32>
    %36 = vector.broadcast %cst_21 : f32 to vector<32x64xf32>
    %37 = arith.select %34, %35, %36 : vector<32x64xi1>, vector<32x64xf32>
    %38 = vector.extract_strided_slice %11 {offsets = [0, 3], sizes = [32, 1], strides = [1, 1]} : vector<32x8xi32> to vector<32x1xi32>
    %39 = vector.broadcast %38 : vector<32x1xi32> to vector<32x64xi32>
    %40 = arith.cmpi eq, %39, %19 : vector<32x64xi32>
    %cst_22 = arith.constant 1.000000e+00 : f32
    %cst_23 = arith.constant 0.000000e+00 : f32
    %41 = vector.broadcast %cst_22 : f32 to vector<32x64xf32>
    %42 = vector.broadcast %cst_23 : f32 to vector<32x64xf32>
    %43 = arith.select %40, %41, %42 : vector<32x64xi1>, vector<32x64xf32>
    %44 = vector.extract_strided_slice %11 {offsets = [0, 4], sizes = [32, 1], strides = [1, 1]} : vector<32x8xi32> to vector<32x1xi32>
    %45 = vector.broadcast %44 : vector<32x1xi32> to vector<32x64xi32>
    %46 = arith.cmpi eq, %45, %19 : vector<32x64xi32>
    %cst_24 = arith.constant 1.000000e+00 : f32
    %cst_25 = arith.constant 0.000000e+00 : f32
    %47 = vector.broadcast %cst_24 : f32 to vector<32x64xf32>
    %48 = vector.broadcast %cst_25 : f32 to vector<32x64xf32>
    %49 = arith.select %46, %47, %48 : vector<32x64xi1>, vector<32x64xf32>
    %50 = vector.extract_strided_slice %11 {offsets = [0, 5], sizes = [32, 1], strides = [1, 1]} : vector<32x8xi32> to vector<32x1xi32>
    %51 = vector.broadcast %50 : vector<32x1xi32> to vector<32x64xi32>
    %52 = arith.cmpi eq, %51, %19 : vector<32x64xi32>
    %cst_26 = arith.constant 1.000000e+00 : f32
    %cst_27 = arith.constant 0.000000e+00 : f32
    %53 = vector.broadcast %cst_26 : f32 to vector<32x64xf32>
    %54 = vector.broadcast %cst_27 : f32 to vector<32x64xf32>
    %55 = arith.select %52, %53, %54 : vector<32x64xi1>, vector<32x64xf32>
    %56 = vector.extract_strided_slice %11 {offsets = [0, 6], sizes = [32, 1], strides = [1, 1]} : vector<32x8xi32> to vector<32x1xi32>
    %57 = vector.broadcast %56 : vector<32x1xi32> to vector<32x64xi32>
    %58 = arith.cmpi eq, %57, %19 : vector<32x64xi32>
    %cst_28 = arith.constant 1.000000e+00 : f32
    %cst_29 = arith.constant 0.000000e+00 : f32
    %59 = vector.broadcast %cst_28 : f32 to vector<32x64xf32>
    %60 = vector.broadcast %cst_29 : f32 to vector<32x64xf32>
    %61 = arith.select %58, %59, %60 : vector<32x64xi1>, vector<32x64xf32>
    %62 = vector.extract_strided_slice %11 {offsets = [0, 7], sizes = [32, 1], strides = [1, 1]} : vector<32x8xi32> to vector<32x1xi32>
    %63 = vector.broadcast %62 : vector<32x1xi32> to vector<32x64xi32>
    %64 = arith.cmpi eq, %63, %19 : vector<32x64xi32>
    %cst_30 = arith.constant 1.000000e+00 : f32
    %cst_31 = arith.constant 0.000000e+00 : f32
    %65 = vector.broadcast %cst_30 : f32 to vector<32x64xf32>
    %66 = vector.broadcast %cst_31 : f32 to vector<32x64xf32>
    %67 = arith.select %64, %65, %66 : vector<32x64xi1>, vector<32x64xf32>
    %68 = tpu.concatenate %25, %31, %37, %43, %49, %55, %61, %67 in 0 : vector<32x64xf32>, vector<32x64xf32>, vector<32x64xf32>, vector<32x64xf32>, vector<32x64xf32>, vector<32x64xf32>, vector<32x64xf32>, vector<32x64xf32> -> vector<256x64xf32>
    %cst_32 = arith.constant dense<0.000000e+00> : vector<256x128xf32>
    %69 = tpu.matmul %68, %18, %cst_32 {dimension_numbers = #tpu.dot_dimension_numbers<[1], [0], [0], [1], [0, 0, 1, 1], [], []>} : vector<256x64xf32>, vector<64x128xf32>, vector<256x128xf32> -> vector<256x128xf32>
    %70 = vector.extract_strided_slice %69 {offsets = [0, 0], sizes = [32, 128], strides = [1, 1]} : vector<256x128xf32> to vector<32x128xf32>
    %71 = vector.broadcast %3 : vector<1x128xf32> to vector<32x128xf32>
    %72 = arith.mulf %70, %71 : vector<32x128xf32>
    %73 = arith.addf %72, %17 : vector<32x128xf32>
    %74 = vector.extract_strided_slice %69 {offsets = [32, 0], sizes = [32, 128], strides = [1, 1]} : vector<256x128xf32> to vector<32x128xf32>
    %75 = vector.broadcast %3 : vector<1x128xf32> to vector<32x128xf32>
    %76 = arith.mulf %74, %75 : vector<32x128xf32>
    %77 = arith.addf %76, %17 : vector<32x128xf32>
    %78 = arith.maximumf %73, %77 : vector<32x128xf32>
    %79 = vector.extract_strided_slice %69 {offsets = [64, 0], sizes = [32, 128], strides = [1, 1]} : vector<256x128xf32> to vector<32x128xf32>
    %80 = vector.broadcast %3 : vector<1x128xf32> to vector<32x128xf32>
    %81 = arith.mulf %79, %80 : vector<32x128xf32>
    %82 = arith.addf %81, %17 : vector<32x128xf32>
    %83 = arith.maximumf %78, %82 : vector<32x128xf32>
    %84 = vector.extract_strided_slice %69 {offsets = [96, 0], sizes = [32, 128], strides = [1, 1]} : vector<256x128xf32> to vector<32x128xf32>
    %85 = vector.broadcast %3 : vector<1x128xf32> to vector<32x128xf32>
    %86 = arith.mulf %84, %85 : vector<32x128xf32>
    %87 = arith.addf %86, %17 : vector<32x128xf32>
    %88 = arith.maximumf %83, %87 : vector<32x128xf32>
    %89 = vector.extract_strided_slice %69 {offsets = [128, 0], sizes = [32, 128], strides = [1, 1]} : vector<256x128xf32> to vector<32x128xf32>
    %90 = vector.broadcast %3 : vector<1x128xf32> to vector<32x128xf32>
    %91 = arith.mulf %89, %90 : vector<32x128xf32>
    %92 = arith.addf %91, %17 : vector<32x128xf32>
    %93 = arith.maximumf %88, %92 : vector<32x128xf32>
    %94 = vector.extract_strided_slice %69 {offsets = [160, 0], sizes = [32, 128], strides = [1, 1]} : vector<256x128xf32> to vector<32x128xf32>
    %95 = vector.broadcast %3 : vector<1x128xf32> to vector<32x128xf32>
    %96 = arith.mulf %94, %95 : vector<32x128xf32>
    %97 = arith.addf %96, %17 : vector<32x128xf32>
    %98 = arith.maximumf %93, %97 : vector<32x128xf32>
    %99 = vector.extract_strided_slice %69 {offsets = [192, 0], sizes = [32, 128], strides = [1, 1]} : vector<256x128xf32> to vector<32x128xf32>
    %100 = vector.broadcast %3 : vector<1x128xf32> to vector<32x128xf32>
    %101 = arith.mulf %99, %100 : vector<32x128xf32>
    %102 = arith.addf %101, %17 : vector<32x128xf32>
    %103 = arith.maximumf %98, %102 : vector<32x128xf32>
    %104 = vector.extract_strided_slice %69 {offsets = [224, 0], sizes = [32, 128], strides = [1, 1]} : vector<256x128xf32> to vector<32x128xf32>
    %105 = vector.broadcast %3 : vector<1x128xf32> to vector<32x128xf32>
    %106 = arith.mulf %104, %105 : vector<32x128xf32>
    %107 = arith.addf %106, %17 : vector<32x128xf32>
    %108 = arith.maximumf %103, %107 : vector<32x128xf32>
    %cst_33 = arith.constant 0.000000e+00 : f32
    %109 = vector.broadcast %cst_33 : f32 to vector<32x128xf32>
    %110 = arith.cmpf ogt, %108, %109 : vector<32x128xf32>
    %cst_34 = arith.constant 2.000000e-01 : f32
    %111 = vector.broadcast %cst_34 : f32 to vector<32x128xf32>
    %112 = arith.mulf %111, %108 : vector<32x128xf32>
    %113 = arith.select %110, %108, %112 : vector<32x128xi1>, vector<32x128xf32>
    %c0_35 = arith.constant 0 : index
    %c0_36 = arith.constant 0 : index
    %c0_37 = arith.constant 0 : index
    %114 = vector.load %arg8[%c0_35, %c0_36, %c0_37] : memref<1x32x128xf32, #tpu.memory_space<vmem>>, vector<1x32x128xf32>
    %115 = vector.shape_cast %114 : vector<1x32x128xf32> to vector<32x128xf32>
    %116 = vector.shape_cast %113 : vector<32x128xf32> to vector<1x32x128xf32>
    tpu.vector_store %arg8[%c0_35, %c0_36, %c0_37], %116 {strides = array<i32>} : memref<1x32x128xf32, #tpu.memory_space<vmem>>, vector<1x32x128xf32>,
    return
  }
  func.func @transform_0(%arg0: i32, %arg1: i32) -> (i32, i32, i32) {
    %c0_i32 = arith.constant 0 : i32
    %c0_i32_0 = arith.constant 0 : i32
    %c0_i32_1 = arith.constant 0 : i32
    return %arg0, %c0_i32, %c0_i32_0 : i32, i32, i32
  }
  func.func @transform_1(%arg0: i32, %arg1: i32) -> (i32, i32, i32) {
    %c0_i32 = arith.constant 0 : i32
    %c0_i32_0 = arith.constant 0 : i32
    return %arg0, %arg1, %c0_i32 : i32, i32, i32
  }
  func.func @transform_2(%arg0: i32, %arg1: i32) -> (i32, i32) {
    %c0_i32 = arith.constant 0 : i32
    %c0_i32_0 = arith.constant 0 : i32
    %c0_i32_1 = arith.constant 0 : i32
    return %c0_i32, %c0_i32_0 : i32, i32
  }
  func.func @transform_3(%arg0: i32, %arg1: i32) -> (i32, i32) {
    %c0_i32 = arith.constant 0 : i32
    %c0_i32_0 = arith.constant 0 : i32
    %c0_i32_1 = arith.constant 0 : i32
    return %c0_i32, %c0_i32_0 : i32, i32
  }
  func.func @transform_4(%arg0: i32, %arg1: i32) -> (i32, i32) {
    %c0_i32 = arith.constant 0 : i32
    %c0_i32_0 = arith.constant 0 : i32
    %c0_i32_1 = arith.constant 0 : i32
    return %c0_i32, %c0_i32_0 : i32, i32
  }
  func.func @transform_5(%arg0: i32, %arg1: i32) -> (i32, i32) {
    %c0_i32 = arith.constant 0 : i32
    %c0_i32_0 = arith.constant 0 : i32
    %c0_i32_1 = arith.constant 0 : i32
    return %c0_i32, %c0_i32_0 : i32, i32
  }
  func.func @transform_6(%arg0: i32, %arg1: i32) -> (i32, i32, i32) {
    %c0_i32 = arith.constant 0 : i32
    %c0_i32_0 = arith.constant 0 : i32
    return %arg0, %arg1, %c0_i32 : i32, i32, i32
  }
}

module attributes {stable_mosaic.version = 11 : i64} {
  func.func @_edge_conv_kernel(%arg0: i32, %arg1: i32, %arg2: memref<1x64x128xf32, #tpu.memory_space<vmem>>, %arg3: memref<1x32x8xi32, #tpu.memory_space<vmem>>, %arg4: memref<128x256xf32, #tpu.memory_space<vmem>>, %arg5: memref<128x256xf32, #tpu.memory_space<vmem>>, %arg6: memref<1x256xf32, #tpu.memory_space<vmem>>, %arg7: memref<1x256xf32, #tpu.memory_space<vmem>>, %arg8: memref<1x32x256xf32, #tpu.memory_space<vmem>>) attributes {dimension_semantics = [#tpu.dimension_semantics<parallel>, #tpu.dimension_semantics<parallel>], iteration_bounds = array<i64: 2, 2>, scalar_prefetch = 0 : i64, scratch_operands = 0 : i64, tpu.core_type = #tpu.core_type<tc>, window_params = [{transform_indices = @transform_0, window_bounds = array<i64: 1, 64, 128>}, {transform_indices = @transform_1, window_bounds = array<i64: 1, 32, 8>}, {pipeline_mode = #tpu.pipeline_mode<synchronous>, transform_indices = @transform_2, window_bounds = array<i64: 128, 256>}, {pipeline_mode = #tpu.pipeline_mode<synchronous>, transform_indices = @transform_3, window_bounds = array<i64: 128, 256>}, {pipeline_mode = #tpu.pipeline_mode<synchronous>, transform_indices = @transform_4, window_bounds = array<i64: 1, 256>}, {pipeline_mode = #tpu.pipeline_mode<synchronous>, transform_indices = @transform_5, window_bounds = array<i64: 1, 256>}, {transform_indices = @transform_6, window_bounds = array<i64: 1, 32, 256>}]} {
    %c0 = arith.constant 0 : index
    %c0_0 = arith.constant 0 : index
    %c0_1 = arith.constant 0 : index
    %0 = vector.load %arg2[%c0, %c0_0, %c0_1] : memref<1x64x128xf32, #tpu.memory_space<vmem>>, vector<1x64x128xf32>
    %1 = vector.shape_cast %0 : vector<1x64x128xf32> to vector<64x128xf32>
    %c0_2 = arith.constant 0 : index
    %c0_3 = arith.constant 0 : index
    %2 = vector.load %arg4[%c0_2, %c0_3] : memref<128x256xf32, #tpu.memory_space<vmem>>, vector<128x256xf32>
    %c0_4 = arith.constant 0 : index
    %c0_5 = arith.constant 0 : index
    %3 = vector.load %arg6[%c0_4, %c0_5] : memref<1x256xf32, #tpu.memory_space<vmem>>, vector<1x256xf32>
    %c0_6 = arith.constant 0 : index
    %c0_7 = arith.constant 0 : index
    %4 = vector.load %arg7[%c0_6, %c0_7] : memref<1x256xf32, #tpu.memory_space<vmem>>, vector<1x256xf32>
    %c32_i32 = arith.constant 32 : i32
    %5 = arith.muli %arg1, %c32_i32 : i32
    %6 = tpu.assume_multiple %5, 32 : i32
    %c0_8 = arith.constant 0 : index
    %7 = arith.index_cast %6 : i32 to index
    %c0_9 = arith.constant 0 : index
    %8 = vector.load %arg2[%c0_8, %7, %c0_9] : memref<1x64x128xf32, #tpu.memory_space<vmem>>, vector<1x32x128xf32>
    %9 = vector.shape_cast %8 : vector<1x32x128xf32> to vector<32x128xf32>
    %c0_10 = arith.constant 0 : index
    %c0_11 = arith.constant 0 : index
    %c0_12 = arith.constant 0 : index
    %10 = vector.load %arg3[%c0_10, %c0_11, %c0_12] : memref<1x32x8xi32, #tpu.memory_space<vmem>>, vector<1x32x8xi32>
    %11 = vector.shape_cast %10 : vector<1x32x8xi32> to vector<32x8xi32>
    %c0_13 = arith.constant 0 : index
    %c0_14 = arith.constant 0 : index
    %12 = vector.load %arg5[%c0_13, %c0_14] : memref<128x256xf32, #tpu.memory_space<vmem>>, vector<128x256xf32>
    %cst = arith.constant dense<0.000000e+00> : vector<32x256xf32>
    %13 = tpu.matmul %9, %12, %cst {dimension_numbers = #tpu.dot_dimension_numbers<[1], [0], [0], [1], [0, 0, 1, 1], [], []>} : vector<32x128xf32>, vector<128x256xf32>, vector<32x256xf32> -> vector<32x256xf32>
    %14 = vector.broadcast %3 : vector<1x256xf32> to vector<32x256xf32>
    %15 = arith.mulf %13, %14 : vector<32x256xf32>
    %16 = vector.broadcast %4 : vector<1x256xf32> to vector<32x256xf32>
    %17 = arith.addf %15, %16 : vector<32x256xf32>
    %cst_15 = arith.constant dense<0.000000e+00> : vector<64x256xf32>
    %18 = tpu.matmul %1, %2, %cst_15 {dimension_numbers = #tpu.dot_dimension_numbers<[1], [0], [0], [1], [0, 0, 1, 1], [], []>} : vector<64x128xf32>, vector<128x256xf32>, vector<64x256xf32> -> vector<64x256xf32>
    %19 = tpu.iota {dimensions = array<i32: 1>} : vector<32x64xi32>
    %20 = vector.extract_strided_slice %11 {offsets = [0, 0], sizes = [32, 1], strides = [1, 1]} : vector<32x8xi32> to vector<32x1xi32>
    %21 = vector.broadcast %20 : vector<32x1xi32> to vector<32x64xi32>
    %22 = arith.cmpi eq, %21, %19 : vector<32x64xi32>
    %cst_16 = arith.constant 1.000000e+00 : f32
    %cst_17 = arith.constant 0.000000e+00 : f32
    %23 = vector.broadcast %cst_16 : f32 to vector<32x64xf32>
    %24 = vector.broadcast %cst_17 : f32 to vector<32x64xf32>
    %25 = arith.select %22, %23, %24 : vector<32x64xi1>, vector<32x64xf32>
    %26 = vector.extract_strided_slice %11 {offsets = [0, 1], sizes = [32, 1], strides = [1, 1]} : vector<32x8xi32> to vector<32x1xi32>
    %27 = vector.broadcast %26 : vector<32x1xi32> to vector<32x64xi32>
    %28 = arith.cmpi eq, %27, %19 : vector<32x64xi32>
    %cst_18 = arith.constant 1.000000e+00 : f32
    %cst_19 = arith.constant 0.000000e+00 : f32
    %29 = vector.broadcast %cst_18 : f32 to vector<32x64xf32>
    %30 = vector.broadcast %cst_19 : f32 to vector<32x64xf32>
    %31 = arith.select %28, %29, %30 : vector<32x64xi1>, vector<32x64xf32>
    %32 = vector.extract_strided_slice %11 {offsets = [0, 2], sizes = [32, 1], strides = [1, 1]} : vector<32x8xi32> to vector<32x1xi32>
    %33 = vector.broadcast %32 : vector<32x1xi32> to vector<32x64xi32>
    %34 = arith.cmpi eq, %33, %19 : vector<32x64xi32>
    %cst_20 = arith.constant 1.000000e+00 : f32
    %cst_21 = arith.constant 0.000000e+00 : f32
    %35 = vector.broadcast %cst_20 : f32 to vector<32x64xf32>
    %36 = vector.broadcast %cst_21 : f32 to vector<32x64xf32>
    %37 = arith.select %34, %35, %36 : vector<32x64xi1>, vector<32x64xf32>
    %38 = vector.extract_strided_slice %11 {offsets = [0, 3], sizes = [32, 1], strides = [1, 1]} : vector<32x8xi32> to vector<32x1xi32>
    %39 = vector.broadcast %38 : vector<32x1xi32> to vector<32x64xi32>
    %40 = arith.cmpi eq, %39, %19 : vector<32x64xi32>
    %cst_22 = arith.constant 1.000000e+00 : f32
    %cst_23 = arith.constant 0.000000e+00 : f32
    %41 = vector.broadcast %cst_22 : f32 to vector<32x64xf32>
    %42 = vector.broadcast %cst_23 : f32 to vector<32x64xf32>
    %43 = arith.select %40, %41, %42 : vector<32x64xi1>, vector<32x64xf32>
    %44 = vector.extract_strided_slice %11 {offsets = [0, 4], sizes = [32, 1], strides = [1, 1]} : vector<32x8xi32> to vector<32x1xi32>
    %45 = vector.broadcast %44 : vector<32x1xi32> to vector<32x64xi32>
    %46 = arith.cmpi eq, %45, %19 : vector<32x64xi32>
    %cst_24 = arith.constant 1.000000e+00 : f32
    %cst_25 = arith.constant 0.000000e+00 : f32
    %47 = vector.broadcast %cst_24 : f32 to vector<32x64xf32>
    %48 = vector.broadcast %cst_25 : f32 to vector<32x64xf32>
    %49 = arith.select %46, %47, %48 : vector<32x64xi1>, vector<32x64xf32>
    %50 = vector.extract_strided_slice %11 {offsets = [0, 5], sizes = [32, 1], strides = [1, 1]} : vector<32x8xi32> to vector<32x1xi32>
    %51 = vector.broadcast %50 : vector<32x1xi32> to vector<32x64xi32>
    %52 = arith.cmpi eq, %51, %19 : vector<32x64xi32>
    %cst_26 = arith.constant 1.000000e+00 : f32
    %cst_27 = arith.constant 0.000000e+00 : f32
    %53 = vector.broadcast %cst_26 : f32 to vector<32x64xf32>
    %54 = vector.broadcast %cst_27 : f32 to vector<32x64xf32>
    %55 = arith.select %52, %53, %54 : vector<32x64xi1>, vector<32x64xf32>
    %56 = vector.extract_strided_slice %11 {offsets = [0, 6], sizes = [32, 1], strides = [1, 1]} : vector<32x8xi32> to vector<32x1xi32>
    %57 = vector.broadcast %56 : vector<32x1xi32> to vector<32x64xi32>
    %58 = arith.cmpi eq, %57, %19 : vector<32x64xi32>
    %cst_28 = arith.constant 1.000000e+00 : f32
    %cst_29 = arith.constant 0.000000e+00 : f32
    %59 = vector.broadcast %cst_28 : f32 to vector<32x64xf32>
    %60 = vector.broadcast %cst_29 : f32 to vector<32x64xf32>
    %61 = arith.select %58, %59, %60 : vector<32x64xi1>, vector<32x64xf32>
    %62 = vector.extract_strided_slice %11 {offsets = [0, 7], sizes = [32, 1], strides = [1, 1]} : vector<32x8xi32> to vector<32x1xi32>
    %63 = vector.broadcast %62 : vector<32x1xi32> to vector<32x64xi32>
    %64 = arith.cmpi eq, %63, %19 : vector<32x64xi32>
    %cst_30 = arith.constant 1.000000e+00 : f32
    %cst_31 = arith.constant 0.000000e+00 : f32
    %65 = vector.broadcast %cst_30 : f32 to vector<32x64xf32>
    %66 = vector.broadcast %cst_31 : f32 to vector<32x64xf32>
    %67 = arith.select %64, %65, %66 : vector<32x64xi1>, vector<32x64xf32>
    %68 = tpu.concatenate %25, %31, %37, %43, %49, %55, %61, %67 in 0 : vector<32x64xf32>, vector<32x64xf32>, vector<32x64xf32>, vector<32x64xf32>, vector<32x64xf32>, vector<32x64xf32>, vector<32x64xf32>, vector<32x64xf32> -> vector<256x64xf32>
    %cst_32 = arith.constant dense<0.000000e+00> : vector<256x256xf32>
    %69 = tpu.matmul %68, %18, %cst_32 {dimension_numbers = #tpu.dot_dimension_numbers<[1], [0], [0], [1], [0, 0, 1, 1], [], []>} : vector<256x64xf32>, vector<64x256xf32>, vector<256x256xf32> -> vector<256x256xf32>
    %70 = vector.extract_strided_slice %69 {offsets = [0, 0], sizes = [32, 256], strides = [1, 1]} : vector<256x256xf32> to vector<32x256xf32>
    %71 = vector.broadcast %3 : vector<1x256xf32> to vector<32x256xf32>
    %72 = arith.mulf %70, %71 : vector<32x256xf32>
    %73 = arith.addf %72, %17 : vector<32x256xf32>
    %74 = vector.extract_strided_slice %69 {offsets = [32, 0], sizes = [32, 256], strides = [1, 1]} : vector<256x256xf32> to vector<32x256xf32>
    %75 = vector.broadcast %3 : vector<1x256xf32> to vector<32x256xf32>
    %76 = arith.mulf %74, %75 : vector<32x256xf32>
    %77 = arith.addf %76, %17 : vector<32x256xf32>
    %78 = arith.maximumf %73, %77 : vector<32x256xf32>
    %79 = vector.extract_strided_slice %69 {offsets = [64, 0], sizes = [32, 256], strides = [1, 1]} : vector<256x256xf32> to vector<32x256xf32>
    %80 = vector.broadcast %3 : vector<1x256xf32> to vector<32x256xf32>
    %81 = arith.mulf %79, %80 : vector<32x256xf32>
    %82 = arith.addf %81, %17 : vector<32x256xf32>
    %83 = arith.maximumf %78, %82 : vector<32x256xf32>
    %84 = vector.extract_strided_slice %69 {offsets = [96, 0], sizes = [32, 256], strides = [1, 1]} : vector<256x256xf32> to vector<32x256xf32>
    %85 = vector.broadcast %3 : vector<1x256xf32> to vector<32x256xf32>
    %86 = arith.mulf %84, %85 : vector<32x256xf32>
    %87 = arith.addf %86, %17 : vector<32x256xf32>
    %88 = arith.maximumf %83, %87 : vector<32x256xf32>
    %89 = vector.extract_strided_slice %69 {offsets = [128, 0], sizes = [32, 256], strides = [1, 1]} : vector<256x256xf32> to vector<32x256xf32>
    %90 = vector.broadcast %3 : vector<1x256xf32> to vector<32x256xf32>
    %91 = arith.mulf %89, %90 : vector<32x256xf32>
    %92 = arith.addf %91, %17 : vector<32x256xf32>
    %93 = arith.maximumf %88, %92 : vector<32x256xf32>
    %94 = vector.extract_strided_slice %69 {offsets = [160, 0], sizes = [32, 256], strides = [1, 1]} : vector<256x256xf32> to vector<32x256xf32>
    %95 = vector.broadcast %3 : vector<1x256xf32> to vector<32x256xf32>
    %96 = arith.mulf %94, %95 : vector<32x256xf32>
    %97 = arith.addf %96, %17 : vector<32x256xf32>
    %98 = arith.maximumf %93, %97 : vector<32x256xf32>
    %99 = vector.extract_strided_slice %69 {offsets = [192, 0], sizes = [32, 256], strides = [1, 1]} : vector<256x256xf32> to vector<32x256xf32>
    %100 = vector.broadcast %3 : vector<1x256xf32> to vector<32x256xf32>
    %101 = arith.mulf %99, %100 : vector<32x256xf32>
    %102 = arith.addf %101, %17 : vector<32x256xf32>
    %103 = arith.maximumf %98, %102 : vector<32x256xf32>
    %104 = vector.extract_strided_slice %69 {offsets = [224, 0], sizes = [32, 256], strides = [1, 1]} : vector<256x256xf32> to vector<32x256xf32>
    %105 = vector.broadcast %3 : vector<1x256xf32> to vector<32x256xf32>
    %106 = arith.mulf %104, %105 : vector<32x256xf32>
    %107 = arith.addf %106, %17 : vector<32x256xf32>
    %108 = arith.maximumf %103, %107 : vector<32x256xf32>
    %cst_33 = arith.constant 0.000000e+00 : f32
    %109 = vector.broadcast %cst_33 : f32 to vector<32x256xf32>
    %110 = arith.cmpf ogt, %108, %109 : vector<32x256xf32>
    %cst_34 = arith.constant 2.000000e-01 : f32
    %111 = vector.broadcast %cst_34 : f32 to vector<32x256xf32>
    %112 = arith.mulf %111, %108 : vector<32x256xf32>
    %113 = arith.select %110, %108, %112 : vector<32x256xi1>, vector<32x256xf32>
    %c0_35 = arith.constant 0 : index
    %c0_36 = arith.constant 0 : index
    %c0_37 = arith.constant 0 : index
    %114 = vector.load %arg8[%c0_35, %c0_36, %c0_37] : memref<1x32x256xf32, #tpu.memory_space<vmem>>, vector<1x32x256xf32>
    %115 = vector.shape_cast %114 : vector<1x32x256xf32> to vector<32x256xf32>
    %116 = vector.shape_cast %113 : vector<32x256xf32> to vector<1x32x256xf32>
    tpu.vector_store %arg8[%c0_35, %c0_36, %c0_37], %116 {strides = array<i32>} : memref<1x32x256xf32, #tpu.memory_space<vmem>>, vector<1x32x256xf32>,
    return
  }
  func.func @transform_0(%arg0: i32, %arg1: i32) -> (i32, i32, i32) {
    %c0_i32 = arith.constant 0 : i32
    %c0_i32_0 = arith.constant 0 : i32
    %c0_i32_1 = arith.constant 0 : i32
    return %arg0, %c0_i32, %c0_i32_0 : i32, i32, i32
  }
  func.func @transform_1(%arg0: i32, %arg1: i32) -> (i32, i32, i32) {
    %c0_i32 = arith.constant 0 : i32
    %c0_i32_0 = arith.constant 0 : i32
    return %arg0, %arg1, %c0_i32 : i32, i32, i32
  }
  func.func @transform_2(%arg0: i32, %arg1: i32) -> (i32, i32) {
    %c0_i32 = arith.constant 0 : i32
    %c0_i32_0 = arith.constant 0 : i32
    %c0_i32_1 = arith.constant 0 : i32
    return %c0_i32, %c0_i32_0 : i32, i32
  }
  func.func @transform_3(%arg0: i32, %arg1: i32) -> (i32, i32) {
    %c0_i32 = arith.constant 0 : i32
    %c0_i32_0 = arith.constant 0 : i32
    %c0_i32_1 = arith.constant 0 : i32
    return %c0_i32, %c0_i32_0 : i32, i32
  }
  func.func @transform_4(%arg0: i32, %arg1: i32) -> (i32, i32) {
    %c0_i32 = arith.constant 0 : i32
    %c0_i32_0 = arith.constant 0 : i32
    %c0_i32_1 = arith.constant 0 : i32
    return %c0_i32, %c0_i32_0 : i32, i32
  }
  func.func @transform_5(%arg0: i32, %arg1: i32) -> (i32, i32) {
    %c0_i32 = arith.constant 0 : i32
    %c0_i32_0 = arith.constant 0 : i32
    %c0_i32_1 = arith.constant 0 : i32
    return %c0_i32, %c0_i32_0 : i32, i32
  }
  func.func @transform_6(%arg0: i32, %arg1: i32) -> (i32, i32, i32) {
    %c0_i32 = arith.constant 0 : i32
    %c0_i32_0 = arith.constant 0 : i32
    return %arg0, %arg1, %c0_i32 : i32, i32, i32
  }
}

module attributes {stable_mosaic.version = 11 : i64} {
  func.func @_conv5_max_kernel(%arg0: i32, %arg1: i32, %arg2: memref<1x64x64xf32, #tpu.memory_space<vmem>>, %arg3: memref<1x64x64xf32, #tpu.memory_space<vmem>>, %arg4: memref<1x64x128xf32, #tpu.memory_space<vmem>>, %arg5: memref<1x64x256xf32, #tpu.memory_space<vmem>>, %arg6: memref<64x128xf32, #tpu.memory_space<vmem>>, %arg7: memref<64x128xf32, #tpu.memory_space<vmem>>, %arg8: memref<128x128xf32, #tpu.memory_space<vmem>>, %arg9: memref<256x128xf32, #tpu.memory_space<vmem>>, %arg10: memref<1x128xf32, #tpu.memory_space<vmem>>, %arg11: memref<1x128xf32, #tpu.memory_space<vmem>>, %arg12: memref<1x1x128xf32, #tpu.memory_space<vmem>>, %arg13: memref<1x128xf32, #tpu.memory_space<vmem>>) attributes {dimension_semantics = [#tpu.dimension_semantics<parallel>, #tpu.dimension_semantics<arbitrary>], iteration_bounds = array<i64: 2, 1>, scalar_prefetch = 0 : i64, scratch_operands = 1 : i64, tpu.core_type = #tpu.core_type<tc>, window_params = [{transform_indices = @transform_0, window_bounds = array<i64: 1, 64, 64>}, {transform_indices = @transform_1, window_bounds = array<i64: 1, 64, 64>}, {transform_indices = @transform_2, window_bounds = array<i64: 1, 64, 128>}, {transform_indices = @transform_3, window_bounds = array<i64: 1, 64, 256>}, {pipeline_mode = #tpu.pipeline_mode<synchronous>, transform_indices = @transform_4, window_bounds = array<i64: 64, 128>}, {pipeline_mode = #tpu.pipeline_mode<synchronous>, transform_indices = @transform_5, window_bounds = array<i64: 64, 128>}, {pipeline_mode = #tpu.pipeline_mode<synchronous>, transform_indices = @transform_6, window_bounds = array<i64: 128, 128>}, {pipeline_mode = #tpu.pipeline_mode<synchronous>, transform_indices = @transform_7, window_bounds = array<i64: 256, 128>}, {pipeline_mode = #tpu.pipeline_mode<synchronous>, transform_indices = @transform_8, window_bounds = array<i64: 1, 128>}, {pipeline_mode = #tpu.pipeline_mode<synchronous>, transform_indices = @transform_9, window_bounds = array<i64: 1, 128>}, {transform_indices = @transform_10, window_bounds = array<i64: 1, 1, 128>}]} {
    %c0 = arith.constant 0 : index
    %c0_0 = arith.constant 0 : index
    %c0_1 = arith.constant 0 : index
    %0 = vector.load %arg2[%c0, %c0_0, %c0_1] : memref<1x64x64xf32, #tpu.memory_space<vmem>>, vector<1x64x64xf32>
    %1 = vector.shape_cast %0 : vector<1x64x64xf32> to vector<64x64xf32>
    %c0_2 = arith.constant 0 : index
    %c0_3 = arith.constant 0 : index
    %2 = vector.load %arg6[%c0_2, %c0_3] : memref<64x128xf32, #tpu.memory_space<vmem>>, vector<64x128xf32>
    %cst = arith.constant dense<0.000000e+00> : vector<64x128xf32>
    %3 = tpu.matmul %1, %2, %cst {dimension_numbers = #tpu.dot_dimension_numbers<[1], [0], [0], [1], [0, 0, 1, 1], [], []>} : vector<64x64xf32>, vector<64x128xf32>, vector<64x128xf32> -> vector<64x128xf32>
    %c0_4 = arith.constant 0 : index
    %c0_5 = arith.constant 0 : index
    %c0_6 = arith.constant 0 : index
    %4 = vector.load %arg3[%c0_4, %c0_5, %c0_6] : memref<1x64x64xf32, #tpu.memory_space<vmem>>, vector<1x64x64xf32>
    %5 = vector.shape_cast %4 : vector<1x64x64xf32> to vector<64x64xf32>
    %c0_7 = arith.constant 0 : index
    %c0_8 = arith.constant 0 : index
    %6 = vector.load %arg7[%c0_7, %c0_8] : memref<64x128xf32, #tpu.memory_space<vmem>>, vector<64x128xf32>
    %cst_9 = arith.constant dense<0.000000e+00> : vector<64x128xf32>
    %7 = tpu.matmul %5, %6, %cst_9 {dimension_numbers = #tpu.dot_dimension_numbers<[1], [0], [0], [1], [0, 0, 1, 1], [], []>} : vector<64x64xf32>, vector<64x128xf32>, vector<64x128xf32> -> vector<64x128xf32>
    %8 = arith.addf %3, %7 : vector<64x128xf32>
    %c0_10 = arith.constant 0 : index
    %c0_11 = arith.constant 0 : index
    %c0_12 = arith.constant 0 : index
    %9 = vector.load %arg4[%c0_10, %c0_11, %c0_12] : memref<1x64x128xf32, #tpu.memory_space<vmem>>, vector<1x64x128xf32>
    %10 = vector.shape_cast %9 : vector<1x64x128xf32> to vector<64x128xf32>
    %c0_13 = arith.constant 0 : index
    %c0_14 = arith.constant 0 : index
    %11 = vector.load %arg8[%c0_13, %c0_14] : memref<128x128xf32, #tpu.memory_space<vmem>>, vector<128x128xf32>
    %cst_15 = arith.constant dense<0.000000e+00> : vector<64x128xf32>
    %12 = tpu.matmul %10, %11, %cst_15 {dimension_numbers = #tpu.dot_dimension_numbers<[1], [0], [0], [1], [0, 0, 1, 1], [], []>} : vector<64x128xf32>, vector<128x128xf32>, vector<64x128xf32> -> vector<64x128xf32>
    %13 = arith.addf %8, %12 : vector<64x128xf32>
    %c0_16 = arith.constant 0 : index
    %c0_17 = arith.constant 0 : index
    %c0_18 = arith.constant 0 : index
    %14 = vector.load %arg5[%c0_16, %c0_17, %c0_18] : memref<1x64x256xf32, #tpu.memory_space<vmem>>, vector<1x64x256xf32>
    %15 = vector.shape_cast %14 : vector<1x64x256xf32> to vector<64x256xf32>
    %c0_19 = arith.constant 0 : index
    %c0_20 = arith.constant 0 : index
    %16 = vector.load %arg9[%c0_19, %c0_20] : memref<256x128xf32, #tpu.memory_space<vmem>>, vector<256x128xf32>
    %cst_21 = arith.constant dense<0.000000e+00> : vector<64x128xf32>
    %17 = tpu.matmul %15, %16, %cst_21 {dimension_numbers = #tpu.dot_dimension_numbers<[1], [0], [0], [1], [0, 0, 1, 1], [], []>} : vector<64x256xf32>, vector<256x128xf32>, vector<64x128xf32> -> vector<64x128xf32>
    %18 = arith.addf %13, %17 : vector<64x128xf32>
    %c0_22 = arith.constant 0 : index
    %c0_23 = arith.constant 0 : index
    %19 = vector.load %arg10[%c0_22, %c0_23] : memref<1x128xf32, #tpu.memory_space<vmem>>, vector<1x128xf32>
    %20 = vector.broadcast %19 : vector<1x128xf32> to vector<64x128xf32>
    %21 = arith.mulf %18, %20 : vector<64x128xf32>
    %c0_24 = arith.constant 0 : index
    %c0_25 = arith.constant 0 : index
    %22 = vector.load %arg11[%c0_24, %c0_25] : memref<1x128xf32, #tpu.memory_space<vmem>>, vector<1x128xf32>
    %23 = vector.broadcast %22 : vector<1x128xf32> to vector<64x128xf32>
    %24 = arith.addf %21, %23 : vector<64x128xf32>
    %cst_26 = arith.constant dense<0xFF800000> : vector<128xf32>
    %25 = vector.multi_reduction <maximumf>, %24, %cst_26 [0] : vector<64x128xf32> to vector<128xf32>
    %26 = vector.shape_cast %25 : vector<128xf32> to vector<1x128xf32>
    %c0_i32 = arith.constant 0 : i32
    %27 = arith.cmpi eq, %arg1, %c0_i32 : i32
    %28 = arith.extui %27 : i1 to i32
    %c0_i32_27 = arith.constant 0 : i32
    %29 = arith.cmpi ne, %28, %c0_i32_27 : i32
    scf.if %29 {
      %c0_32 = arith.constant 0 : index
      %c0_33 = arith.constant 0 : index
      %36 = vector.load %arg13[%c0_32, %c0_33] : memref<1x128xf32, #tpu.memory_space<vmem>>, vector<1x128xf32>
      tpu.vector_store %arg13[%c0_32, %c0_33], %26 {strides = array<i32>} : memref<1x128xf32, #tpu.memory_space<vmem>>, vector<1x128xf32>,
    } else {
    }
    %c0_i32_28 = arith.constant 0 : i32
    %30 = arith.cmpi sgt, %arg1, %c0_i32_28 : i32
    %31 = arith.extui %30 : i1 to i32
    %c0_i32_29 = arith.constant 0 : i32
    %32 = arith.cmpi ne, %31, %c0_i32_29 : i32
    scf.if %32 {
      %c0_32 = arith.constant 0 : index
      %c0_33 = arith.constant 0 : index
      %36 = vector.load %arg13[%c0_32, %c0_33] : memref<1x128xf32, #tpu.memory_space<vmem>>, vector<1x128xf32>
      %37 = arith.maximumf %36, %26 : vector<1x128xf32>
      %c0_34 = arith.constant 0 : index
      %c0_35 = arith.constant 0 : index
      %38 = vector.load %arg13[%c0_34, %c0_35] : memref<1x128xf32, #tpu.memory_space<vmem>>, vector<1x128xf32>
      tpu.vector_store %arg13[%c0_34, %c0_35], %37 {strides = array<i32>} : memref<1x128xf32, #tpu.memory_space<vmem>>, vector<1x128xf32>,
    } else {
    }
    %c0_i32_30 = arith.constant 0 : i32
    %33 = arith.cmpi eq, %arg1, %c0_i32_30 : i32
    %34 = arith.extui %33 : i1 to i32
    %c0_i32_31 = arith.constant 0 : i32
    %35 = arith.cmpi ne, %34, %c0_i32_31 : i32
    scf.if %35 {
      %c0_32 = arith.constant 0 : index
      %c0_33 = arith.constant 0 : index
      %36 = vector.load %arg13[%c0_32, %c0_33] : memref<1x128xf32, #tpu.memory_space<vmem>>, vector<1x128xf32>
      %cst_34 = arith.constant 0.000000e+00 : f32
      %37 = vector.broadcast %cst_34 : f32 to vector<1x128xf32>
      %38 = arith.cmpf ogt, %36, %37 : vector<1x128xf32>
      %cst_35 = arith.constant 2.000000e-01 : f32
      %39 = vector.broadcast %cst_35 : f32 to vector<1x128xf32>
      %40 = arith.mulf %39, %36 : vector<1x128xf32>
      %41 = arith.select %38, %36, %40 : vector<1x128xi1>, vector<1x128xf32>
      %c0_36 = arith.constant 0 : index
      %c0_37 = arith.constant 0 : index
      %c0_38 = arith.constant 0 : index
      %42 = vector.load %arg12[%c0_36, %c0_37, %c0_38] : memref<1x1x128xf32, #tpu.memory_space<vmem>>, vector<1x1x128xf32>
      %43 = vector.shape_cast %42 : vector<1x1x128xf32> to vector<1x128xf32>
      %44 = vector.shape_cast %41 : vector<1x128xf32> to vector<1x1x128xf32>
      tpu.vector_store %arg12[%c0_36, %c0_37, %c0_38], %44 {strides = array<i32>} : memref<1x1x128xf32, #tpu.memory_space<vmem>>, vector<1x1x128xf32>,
    } else {
    }
    return
  }
  func.func @transform_0(%arg0: i32, %arg1: i32) -> (i32, i32, i32) {
    %c0_i32 = arith.constant 0 : i32
    %c0_i32_0 = arith.constant 0 : i32
    return %arg0, %arg1, %c0_i32 : i32, i32, i32
  }
  func.func @transform_1(%arg0: i32, %arg1: i32) -> (i32, i32, i32) {
    %c0_i32 = arith.constant 0 : i32
    %c0_i32_0 = arith.constant 0 : i32
    return %arg0, %arg1, %c0_i32 : i32, i32, i32
  }
  func.func @transform_2(%arg0: i32, %arg1: i32) -> (i32, i32, i32) {
    %c0_i32 = arith.constant 0 : i32
    %c0_i32_0 = arith.constant 0 : i32
    return %arg0, %arg1, %c0_i32 : i32, i32, i32
  }
  func.func @transform_3(%arg0: i32, %arg1: i32) -> (i32, i32, i32) {
    %c0_i32 = arith.constant 0 : i32
    %c0_i32_0 = arith.constant 0 : i32
    return %arg0, %arg1, %c0_i32 : i32, i32, i32
  }
  func.func @transform_4(%arg0: i32, %arg1: i32) -> (i32, i32) {
    %c0_i32 = arith.constant 0 : i32
    %c0_i32_0 = arith.constant 0 : i32
    %c0_i32_1 = arith.constant 0 : i32
    return %c0_i32, %c0_i32_0 : i32, i32
  }
  func.func @transform_5(%arg0: i32, %arg1: i32) -> (i32, i32) {
    %c0_i32 = arith.constant 0 : i32
    %c0_i32_0 = arith.constant 0 : i32
    %c0_i32_1 = arith.constant 0 : i32
    return %c0_i32, %c0_i32_0 : i32, i32
  }
  func.func @transform_6(%arg0: i32, %arg1: i32) -> (i32, i32) {
    %c0_i32 = arith.constant 0 : i32
    %c0_i32_0 = arith.constant 0 : i32
    %c0_i32_1 = arith.constant 0 : i32
    return %c0_i32, %c0_i32_0 : i32, i32
  }
  func.func @transform_7(%arg0: i32, %arg1: i32) -> (i32, i32) {
    %c0_i32 = arith.constant 0 : i32
    %c0_i32_0 = arith.constant 0 : i32
    %c0_i32_1 = arith.constant 0 : i32
    return %c0_i32, %c0_i32_0 : i32, i32
  }
  func.func @transform_8(%arg0: i32, %arg1: i32) -> (i32, i32) {
    %c0_i32 = arith.constant 0 : i32
    %c0_i32_0 = arith.constant 0 : i32
    %c0_i32_1 = arith.constant 0 : i32
    return %c0_i32, %c0_i32_0 : i32, i32
  }
  func.func @transform_9(%arg0: i32, %arg1: i32) -> (i32, i32) {
    %c0_i32 = arith.constant 0 : i32
    %c0_i32_0 = arith.constant 0 : i32
    %c0_i32_1 = arith.constant 0 : i32
    return %c0_i32, %c0_i32_0 : i32, i32
  }
  func.func @transform_10(%arg0: i32, %arg1: i32) -> (i32, i32, i32) {
    %c0_i32 = arith.constant 0 : i32
    %c0_i32_0 = arith.constant 0 : i32
    %c0_i32_1 = arith.constant 0 : i32
    return %arg0, %c0_i32, %c0_i32_0 : i32, i32, i32
  }
}

</mosaic_0001>

<llo_original>
// kernel: sub.53
$region0: #{sub.53}
  #allocation0 [shape = 's32[1]{0}', space=sflag, size = 0x4, scoped, tag = 'scoped memory for sub.53']
  %s0 = inlined_call_operand.vmem [shape: f32[64,64], index: 0, kind: input, shape index: {}]
  %s1 = inlined_call_operand.vmem [shape: f32[64,64], index: 1, kind: input, shape index: {}]
  %s2 = inlined_call_operand.vmem [shape: f32[64,64], index: 2, kind: output, shape index: {}]
  %v3 = vld [vmem:[%s0] sm:$0xff]
  %v4 = vld [vmem:[%s1] sm:$0xff]
  %5 = xla_tuple %v3, %v4
  %6 = xla_tuple %5
  %v7 = vsub.f32 %v3, %v4
  %8 = xla_tuple %v7
  %9 = vst [vmem:[%s2] sm:$0xff] %v7
  %s10 = scalar_lea.vmem %s0, 8
  %v11 = vld [vmem:[%s10] sm:$0xff]
  %s12 = scalar_lea.vmem %s1, 8
  %v13 = vld [vmem:[%s12] sm:$0xff]
  %14 = xla_tuple %v11, %v13
  %15 = xla_tuple %14
  %v16 = vsub.f32 %v11, %v13
  %17 = xla_tuple %v16
  %s18 = scalar_lea.vmem %s2, 8
  %19 = vst [vmem:[%s18] sm:$0xff] %v16
  %s20 = scalar_lea.vmem %s0, 16
  %v21 = vld [vmem:[%s20] sm:$0xff]
  %s22 = scalar_lea.vmem %s1, 16
  %v23 = vld [vmem:[%s22] sm:$0xff]
  %24 = xla_tuple %v21, %v23
  %25 = xla_tuple %24
  %v26 = vsub.f32 %v21, %v23
  %27 = xla_tuple %v26
  %s28 = scalar_lea.vmem %s2, 16
  %29 = vst [vmem:[%s28] sm:$0xff] %v26
  %s30 = scalar_lea.vmem %s0, 24
  %v31 = vld [vmem:[%s30] sm:$0xff]
  %s32 = scalar_lea.vmem %s1, 24
  %v33 = vld [vmem:[%s32] sm:$0xff]
  %34 = xla_tuple %v31, %v33
  %35 = xla_tuple %34
  %v36 = vsub.f32 %v31, %v33
  %37 = xla_tuple %v36
  %s38 = scalar_lea.vmem %s2, 24
  %39 = vst [vmem:[%s38] sm:$0xff] %v36
  %s40 = scalar_lea.vmem %s0, 32
  %v41 = vld [vmem:[%s40] sm:$0xff]
  %s42 = scalar_lea.vmem %s1, 32
  %v43 = vld [vmem:[%s42] sm:$0xff]
  %44 = xla_tuple %v41, %v43
  %45 = xla_tuple %44
  %v46 = vsub.f32 %v41, %v43
  %47 = xla_tuple %v46
  %s48 = scalar_lea.vmem %s2, 32
  %49 = vst [vmem:[%s48] sm:$0xff] %v46
  %s50 = scalar_lea.vmem %s0, 40
  %v51 = vld [vmem:[%s50] sm:$0xff]
  %s52 = scalar_lea.vmem %s1, 40
  %v53 = vld [vmem:[%s52] sm:$0xff]
  %54 = xla_tuple %v51, %v53
  %55 = xla_tuple %54
  %v56 = vsub.f32 %v51, %v53
  %57 = xla_tuple %v56
  %s58 = scalar_lea.vmem %s2, 40
  %59 = vst [vmem:[%s58] sm:$0xff] %v56
  %s60 = scalar_lea.vmem %s0, 48
  %v61 = vld [vmem:[%s60] sm:$0xff]
  %s62 = scalar_lea.vmem %s1, 48
  %v63 = vld [vmem:[%s62] sm:$0xff]
  %64 = xla_tuple %v61, %v63
  %65 = xla_tuple %64
  %v66 = vsub.f32 %v61, %v63
  %67 = xla_tuple %v66
  %s68 = scalar_lea.vmem %s2, 48
  %69 = vst [vmem:[%s68] sm:$0xff] %v66
  %s70 = scalar_lea.vmem %s0, 56
  %v71 = vld [vmem:[%s70] sm:$0xff]
  %s72 = scalar_lea.vmem %s1, 56
  %v73 = vld [vmem:[%s72] sm:$0xff]
  %74 = xla_tuple %v71, %v73
  %75 = xla_tuple %74
  %v76 = vsub.f32 %v71, %v73
  %77 = xla_tuple %v76
  %s78 = scalar_lea.vmem %s2, 56
  %79 = vst [vmem:[%s78] sm:$0xff] %v76

// kernel: pallas_forward.5
$region0: #{pallas_forward.5}
  #allocation0 [shape = 'u32[]', space=smem, size = 0x4, offset = 0x4, fixed_abs, tag = 'smem constant byte address 0x4 - core index']
  #allocation1 [shape = 'u32[144,128]{1,0:T(1,128)}', space=vmem, size = 0x12000, scoped, tag = 'internal scratch']
  %s0 = inlined_call_operand.vmem [shape: f32[2,64,3], index: 0, kind: input, shape index: {}]
  %s1 = inlined_call_operand.vmem [shape: s32[2,64,8], index: 1, kind: input, shape index: {}]
  %s2 = inlined_call_operand.vmem [shape: f32[3,64], index: 2, kind: input, shape index: {}]
  %s3 = inlined_call_operand.vmem [shape: f32[3,64], index: 3, kind: input, shape index: {}]
  %s4 = inlined_call_operand.vmem [shape: f32[1,64], index: 4, kind: input, shape index: {}]
  %s5 = inlined_call_operand.vmem [shape: f32[1,64], index: 5, kind: input, shape index: {}]
  %s6 = inlined_call_operand.vmem [shape: f32[2,64,64], index: 6, kind: output, shape index: {}]
  %s7 = sld [smem:[#allocation0]]
  $region57: #{pallas_forward.5} parent=0
    _
  %s9 = ssub.s32 1, %s7
  %s10 = scalar_select 0, %s9, %s7
  loop: start=0, step=1, limit=6
  $region2: #{pallas_forward.5} parent=0 // loop_pre_header
    _
  $region3: #{pallas_forward.5} parent=0 // loop_header
    %s12 = sphi 0, %s16
    %p13 = scmp.ge.s32.totalorder %s12, 6
    %s19 = sphi 0, %s31
    %s20 = sphi 0, %s27
    %s21 = sphi 0, %s19
    %s22 = sphi 0, %s20
    %s23 = sphi 0, %s21
    %s24 = sphi 0, %s22
    %s34 = sphi 0, %s36
    %s37 = sphi 0, %s34
    %s38 = sphi 0, %s37
    %s54 = sphi 0, %s38
    %s62 = sphi 0, %s64
    %s65 = sphi 0, %s62
    %s66 = sphi 0, %s65
    %s82 = sphi 0, %s66
    %s86 = sphi 0, %s86
    %s88 = sphi 0, %s86
    %s89 = sphi 0, %s88
    %s103 = sphi 0, %s89
    %s107 = sphi 0, %s107
    %s109 = sphi 0, %s107
    %s110 = sphi 0, %s109
    %s124 = sphi 0, %s110
    %s128 = sphi 0, %s128
    %s130 = sphi 0, %s128
    %s131 = sphi 0, %s130
    %s145 = sphi 0, %s131
    %s149 = sphi 0, %s149
    %s151 = sphi 0, %s149
    %s152 = sphi 0, %s151
    %s166 = sphi 0, %s152
    %s174 = sphi 0, %s176
    %s177 = sphi 0, %s174
    %s178 = sphi 0, %s177
    %s194 = sphi 0, %s178
  $region4: #{pallas_forward.5} parent=0 // loop_header_branch
    %15 = sbr.rel (%p13) target = $region8
  $region5: #{pallas_forward.5} parent=0 // loop_body
    %s17 = ssub.s32 %s12, 1
    %s18 = ssub.s32 %s12, 2
    %s25 = sadd.s32 1, %s20
    %p26 = scmp.ge.s32.totalorder %s25, 2
    %s27 = scalar_select %p26, 0, %s25
    %s28 = sadd.s32 1, %s19
    %s29 = scalar_select %p26, %s28, %s19
    %p30 = scmp.ge.s32.totalorder %s29, 2
    %s31 = scalar_select %p30, 0, %s29
    %s32 = ssub.s32 %s19, %s31
    %p33 = scmp.eq.s32.totalorder %s32, 0
    %s35 = sadd.s32 %s34, 1
    %s36 = scalar_select %p33, %s34, %s35
    %p39 = pneg %p33
    %p40 = scmp.eq.s32.totalorder %s12, 3
    %p41 = por %p39, %p40
    %p42 = scmp.ne.s32.totalorder %s34, %s37
    %p43 = scmp.eq.s32.totalorder %s12, 0
    %p44 = por %p42, %p43
    %p45 = scmp.ne.s32.totalorder %s34, %s37
    %p46 = scmp.eq.s32.totalorder %s17, 3
    %p47 = por %p45, %p46
    %p48 = scmp.ne.s32.totalorder %s37, %s38
    %p49 = scmp.eq.s32.totalorder %s17, 0
    %p50 = por %p48, %p49
    %p51 = scmp.ne.s32.totalorder %s37, %s38
    %p52 = scmp.eq.s32.totalorder %s18, 3
    %p53 = por %p51, %p52
    %p55 = scmp.ne.s32.totalorder %s38, %s54
    %p56 = scmp.eq.s32.totalorder %s18, 0
    %p57 = por %p55, %p56
    %s58 = ssub.s32 %s19, %s31
    %s59 = ssub.s32 %s20, %s27
    %s60 = sor.u32 %s58, %s59
    %p61 = scmp.eq.s32.totalorder %s60, 0
    %s63 = sadd.s32 %s62, 1
    %s64 = scalar_select %p61, %s62, %s63
    %p67 = pneg %p61
    %p68 = scmp.eq.s32.totalorder %s12, 3
    %p69 = por %p67, %p68
    %p70 = scmp.ne.s32.totalorder %s62, %s65
    %p71 = scmp.eq.s32.totalorder %s12, 0
    %p72 = por %p70, %p71
    %p73 = scmp.ne.s32.totalorder %s62, %s65
    %p74 = scmp.eq.s32.totalorder %s17, 3
    %p75 = por %p73, %p74
    %p76 = scmp.ne.s32.totalorder %s65, %s66
    %p77 = scmp.eq.s32.totalorder %s17, 0
    %p78 = por %p76, %p77
    %p79 = scmp.ne.s32.totalorder %s65, %s66
    %p80 = scmp.eq.s32.totalorder %s18, 3
    %p81 = por %p79, %p80
    %p83 = scmp.ne.s32.totalorder %s66, %s82
    %p84 = scmp.eq.s32.totalorder %s18, 0
    %p85 = por %p83, %p84
    %s87 = sadd.s32 %s86, 1
    %p90 = scmp.eq.s32.totalorder %s12, 3
    %p91 = scmp.ne.s32.totalorder %s86, %s88
    %p92 = scmp.eq.s32.totalorder %s12, 0
    %p93 = por %p91, %p92
    %p94 = scmp.ne.s32.totalorder %s86, %s88
    %p95 = scmp.eq.s32.totalorder %s17, 3
    %p96 = por %p94, %p95
    %p97 = scmp.ne.s32.totalorder %s88, %s89
    %p98 = scmp.eq.s32.totalorder %s17, 0
    %p99 = por %p97, %p98
    %p100 = scmp.ne.s32.totalorder %s88, %s89
    %p101 = scmp.eq.s32.totalorder %s18, 3
    %p102 = por %p100, %p101
    %p104 = scmp.ne.s32.totalorder %s89, %s103
    %p105 = scmp.eq.s32.totalorder %s18, 0
    %p106 = por %p104, %p105
    %s108 = sadd.s32 %s107, 1
    %p111 = scmp.eq.s32.totalorder %s12, 3
    %p112 = scmp.ne.s32.totalorder %s107, %s109
    %p113 = scmp.eq.s32.totalorder %s12, 0
    %p114 = por %p112, %p113
    %p115 = scmp.ne.s32.totalorder %s107, %s109
    %p116 = scmp.eq.s32.totalorder %s17, 3
    %p117 = por %p115, %p116
    %p118 = scmp.ne.s32.totalorder %s109, %s110
    %p119 = scmp.eq.s32.totalorder %s17, 0
    %p120 = por %p118, %p119
    %p121 = scmp.ne.s32.totalorder %s109, %s110
    %p122 = scmp.eq.s32.totalorder %s18, 3
    %p123 = por %p121, %p122
    %p125 = scmp.ne.s32.totalorder %s110, %s124
    %p126 = scmp.eq.s32.totalorder %s18, 0
    %p127 = por %p125, %p126
    %s129 = sadd.s32 %s128, 1
    %p132 = scmp.eq.s32.totalorder %s12, 3
    %p133 = scmp.ne.s32.totalorder %s128, %s130
    %p134 = scmp.eq.s32.totalorder %s12, 0
    %p135 = por %p133, %p134
    %p136 = scmp.ne.s32.totalorder %s128, %s130
    %p137 = scmp.eq.s32.totalorder %s17, 3
    %p138 = por %p136, %p137
    %p139 = scmp.ne.s32.totalorder %s130, %s131
    %p140 = scmp.eq.s32.totalorder %s17, 0
    %p141 = por %p139, %p140
    %p142 = scmp.ne.s32.totalorder %s130, %s131
    %p143 = scmp.eq.s32.totalorder %s18, 3
    %p144 = por %p142, %p143
    %p146 = scmp.ne.s32.totalorder %s131, %s145
    %p147 = scmp.eq.s32.totalorder %s18, 0
    %p148 = por %p146, %p147
    %s150 = sadd.s32 %s149, 1
    %p153 = scmp.eq.s32.totalorder %s12, 3
    %p154 = scmp.ne.s32.totalorder %s149, %s151
    %p155 = scmp.eq.s32.totalorder %s12, 0
    %p156 = por %p154, %p155
    %p157 = scmp.ne.s32.totalorder %s149, %s151
    %p158 = scmp.eq.s32.totalorder %s17, 3
    %p159 = por %p157, %p158
    %p160 = scmp.ne.s32.totalorder %s151, %s152
    %p161 = scmp.eq.s32.totalorder %s17, 0
    %p162 = por %p160, %p161
    %p163 = scmp.ne.s32.totalorder %s151, %s152
    %p164 = scmp.eq.s32.totalorder %s18, 3
    %p165 = por %p163, %p164
    %p167 = scmp.ne.s32.totalorder %s152, %s166
    %p168 = scmp.eq.s32.totalorder %s18, 0
    %p169 = por %p167, %p168
    %s170 = ssub.s32 %s19, %s31
    %s171 = ssub.s32 %s20, %s27
    %s172 = sor.u32 %s170, %s171
    %p173 = scmp.eq.s32.totalorder %s172, 0
    %s175 = sadd.s32 %s174, 1
    %s176 = scalar_select %p173, %s174, %s175
    %p179 = pneg %p173
    %p180 = scmp.eq.s32.totalorder %s12, 3
    %p181 = por %p179, %p180
    %p182 = scmp.ne.s32.totalorder %s174, %s177
    %p183 = scmp.eq.s32.totalorder %s12, 0
    %p184 = por %p182, %p183
    %p185 = scmp.ne.s32.totalorder %s174, %s177
    %p186 = scmp.eq.s32.totalorder %s17, 3
    %p187 = por %p185, %p186
    %p188 = scmp.ne.s32.totalorder %s177, %s178
    %p189 = scmp.eq.s32.totalorder %s17, 0
    %p190 = por %p188, %p189
    %p191 = scmp.ne.s32.totalorder %s177, %s178
    %p192 = scmp.eq.s32.totalorder %s18, 3
    %p193 = por %p191, %p192
    %p195 = scmp.ne.s32.totalorder %s178, %s194
    %p196 = scmp.eq.s32.totalorder %s18, 0
    %p197 = por %p195, %p196
    %p198 = scmp.le.s32.totalorder 1, %s12
    %p199 = scmp.lt.s32.totalorder %s12, 5
    %p200 = pnand %p198, %p199
    %p201 = pneg %p200
    // Predicated region
    $region9: #{pallas_forward.5} parent=5 // pred_check
      _
    $region10: #{pallas_forward.5} parent=5 // pred_check_branch
      %203 = sbr.rel (%p200) target = $region12
    $region11: #{pallas_forward.5} parent=5 // pred_region
      %s204 = ssub.s32 %s12, 1
      // Predicated region
      $region13: #{pallas_forward.5} parent=11 // pred_check
        %p205 = pneg %p99
      $region14: #{pallas_forward.5} parent=11 // pred_check_branch
        %207 = sbr.rel (%p205) target = $region16
      $region15: #{pallas_forward.5} parent=11 // pred_region
        _
      $region16: #{pallas_forward.5} parent=11 // pred_fallthru
        _
      // Predicated region
      $region17: #{pallas_forward.5} parent=11 // pred_check
        %p208 = pneg %p120
      $region18: #{pallas_forward.5} parent=11 // pred_check_branch
        %210 = sbr.rel (%p208) target = $region20
      $region19: #{pallas_forward.5} parent=11 // pred_region
        _
      $region20: #{pallas_forward.5} parent=11 // pred_fallthru
        _
      // Predicated region
      $region21: #{pallas_forward.5} parent=11 // pred_check
        %p211 = pneg %p141
      $region22: #{pallas_forward.5} parent=11 // pred_check_branch
        %213 = sbr.rel (%p211) target = $region24
      $region23: #{pallas_forward.5} parent=11 // pred_region
        _
      $region24: #{pallas_forward.5} parent=11 // pred_fallthru
        _
      // Predicated region
      $region25: #{pallas_forward.5} parent=11 // pred_check
        %p214 = pneg %p162
      $region26: #{pallas_forward.5} parent=11 // pred_check_branch
        %216 = sbr.rel (%p214) target = $region28
      $region27: #{pallas_forward.5} parent=11 // pred_region
        _
      $region28: #{pallas_forward.5} parent=11 // pred_fallthru
        _
    $region12: #{pallas_forward.5} parent=5 // pred_fallthru
      _
    %p217 = scmp.lt.s32.totalorder %s12, 4
    // Predicated region
    $region29: #{pallas_forward.5} parent=5 // pred_check
      %p218 = pneg %p217
    $region30: #{pallas_forward.5} parent=5 // pred_check_branch
      %220 = sbr.rel (%p218) target = $region32
    $region31: #{pallas_forward.5} parent=5 // pred_region
      // Predicated region
      $region33: #{pallas_forward.5} parent=31 // pred_check
        %p221 = pneg %p44
      $region34: #{pallas_forward.5} parent=31 // pred_check_branch
        %223 = sbr.rel (%p221) target = $region36
      $region35: #{pallas_forward.5} parent=31 // pred_region
        %p224 = scmp.lt.s32.totalorder %s19, 1
        %s225 = scalar_select %p224, %s19, 1
        %s226 = smul.addr %s225, 8
        %s227 = smul.addr %s226, 8
        %s228 = scalar_lea.vmem %s0, %s227
      $region36: #{pallas_forward.5} parent=31 // pred_fallthru
        _
      // Predicated region
      $region37: #{pallas_forward.5} parent=31 // pred_check
        %p229 = pneg %p72
      $region38: #{pallas_forward.5} parent=31 // pred_check_branch
        %231 = sbr.rel (%p229) target = $region40
      $region39: #{pallas_forward.5} parent=31 // pred_region
        %s232 = smul.u32 4, %s20
        %p233 = scmp.lt.s32.totalorder %s19, 1
        %s234 = scalar_select %p233, %s19, 1
        %p235 = scmp.lt.s32.totalorder %s232, 7
        %s236 = scalar_select %p235, %s232, 7
        %s237 = smul.addr %s234, 8
        %s238 = sadd.s32 %s236, %s237
        %s239 = smul.addr %s238, 8
        %s240 = scalar_lea.vmem %s1, %s239
        %s241 = smul.u32 4, %s20
      $region40: #{pallas_forward.5} parent=31 // pred_fallthru
        _
    $region32: #{pallas_forward.5} parent=5 // pred_fallthru
      _
    %p242 = scmp.le.s32.totalorder 1, %s12
    %p243 = scmp.lt.s32.totalorder %s12, 5
    %p244 = pnand %p242, %p243
    %p245 = pneg %p244
    // Predicated region
    $region41: #{pallas_forward.5} parent=5 // pred_check
      _
    $region42: #{pallas_forward.5} parent=5 // pred_check_branch
      %247 = sbr.rel (%p244) target = $region44
    $region43: #{pallas_forward.5} parent=5 // pred_region
      %s248 = ssub.s32 %s12, 1
      %p249 = scmp.lt.s32.totalorder %s21, 1
      %s250 = scalar_select %p249, %s21, 1
      %s251 = smul.addr %s250, 8
      %s252 = smul.addr %s251, 8
      %s253 = scalar_lea.vmem %s0, %s252
      %p254 = pneg %p50
      %p255 = pneg %p47
      %s256 = smul.u32 4, %s22
      %p257 = scmp.lt.s32.totalorder %s21, 1
      %s258 = scalar_select %p257, %s21, 1
      %p259 = scmp.lt.s32.totalorder %s256, 7
      %s260 = scalar_select %p259, %s256, 7
      %s261 = smul.addr %s258, 8
      %s262 = sadd.s32 %s260, %s261
      %s263 = smul.addr %s262, 8
      %s264 = scalar_lea.vmem %s1, %s263
      %p265 = pneg %p78
      %p266 = pneg %p75
      %p267 = pneg %p99
      %p268 = pneg %p96
      %p269 = pneg %p120
      %p270 = pneg %p117
      %p271 = pneg %p141
      %p272 = pneg %p138
      %p273 = pneg %p162
      %p274 = pneg %p159
      %p275 = pneg %p190
      %p276 = pneg %p187
      %s277 = smul.u32 4, %s22
      %p278 = scmp.lt.s32.totalorder %s21, 1
      %s279 = scalar_select %p278, %s21, 1
      %p280 = scmp.lt.s32.totalorder %s277, 7
      %s281 = scalar_select %p280, %s277, 7
      %s282 = smul.addr %s279, 8
      %s283 = sadd.s32 %s281, %s282
      %s284 = smul.addr %s283, 8
      %s285 = scalar_lea.vmem %s6, %s284
      %p286 = scmp.lt.s32.totalorder %s21, 1
      %s287 = scalar_select %p286, %s21, 1
      %s288 = smul.addr %s287, 8
      %s289 = smul.addr %s288, 8
      %s290 = scalar_lea.vmem %s0, %s289
      %s291 = smul.u32 4, %s22
      %p292 = scmp.lt.s32.totalorder %s21, 1
      %s293 = scalar_select %p292, %s21, 1
      %p294 = scmp.lt.s32.totalorder %s291, 7
      %s295 = scalar_select %p294, %s291, 7
      %s296 = smul.addr %s293, 8
      %s297 = sadd.s32 %s295, %s296
      %s298 = smul.addr %s297, 8
      %s299 = scalar_lea.vmem %s1, %s298
      %s300 = smul.u32 4, %s22
      %s301 = smul.u32 4, %s22
      %p302 = scmp.lt.s32.totalorder %s21, 1
      %s303 = scalar_select %p302, %s21, 1
      %p304 = scmp.lt.s32.totalorder %s301, 7
      %s305 = scalar_select %p304, %s301, 7
      %s306 = smul.addr %s303, 8
      %s307 = sadd.s32 %s305, %s306
      %s308 = smul.addr %s307, 8
      %s309 = scalar_lea.vmem %s6, %s308
      %s310 = smul.u32 4, %s22
      %v311 = vld [vmem:[%s290] sm:$0xff]
      %v312 = vld [vmem:[%s290 + $0x8] sm:$0xff]
      %v313 = vld [vmem:[%s290 + $0x10] sm:$0xff]
      %v314 = vld [vmem:[%s290 + $0x18] sm:$0xff]
      %v315 = vld [vmem:[%s290 + $0x20] sm:$0xff]
      %v316 = vld [vmem:[%s290 + $0x28] sm:$0xff]
      %v317 = vld [vmem:[%s290 + $0x30] sm:$0xff]
      %v318 = vld [vmem:[%s290 + $0x38] sm:$0xff]
      %v319 = vld [vmem:[%s2] sm:$0x7]
      %v320 = vld [vmem:[%s4] sm:$0x1]
      %v321 = vld [vmem:[%s5] sm:$0x1]
      %s322 = smul.u32 %s22, 32
      %s323 = scalar_lea.vmem %s290, %s322
      %v324 = vld [vmem:[%s323] sm:$0xff]
      %v325 = vld [vmem:[%s323 + $0x8] sm:$0xff]
      %v326 = vld [vmem:[%s323 + $0x10] sm:$0xff]
      %v327 = vld [vmem:[%s323 + $0x18] sm:$0xff]
      %v328 = vld [vmem:[%s299] sm:$0xff]
      %v329 = vld [vmem:[%s299 + $0x8] sm:$0xff]
      %v330 = vld [vmem:[%s299 + $0x10] sm:$0xff]
      %v331 = vld [vmem:[%s299 + $0x18] sm:$0xff]
      %v332 = vld [vmem:[%s3] sm:$0x7]
      %vm333 = vcmask 23552
      %v335 = vsel %vm333, %v324, 0
      %v338 = vsel %vm333, %v325, 0
      %v341 = vsel %vm333, %v326, 0
      %v344 = vsel %vm333, %v327, 0
      %vm346 = vcmask 1042432
      %v348 = vsel %vm346, %v332, 0
      %350 = vmatprep.subr.mxu0 0.0
      %351 = vmatpush1.msra.mxu0 %v348
      %352 = vmatprep.subr.mxu0 0.0
      %353 = vmatpush1.msra.mxu0 0.0
      %354 = vmatprep.subr.mxu0 0.0
      %355 = vmatpush1.msra.mxu0 0.0
      %356 = vmatprep.subr.mxu0 0.0
      %357 = vmatpush1.msra.mxu0 0.0
      %358 = vmatprep.subr.mxu0 0.0
      %359 = vmatpush1.msra.mxu0 0.0
      %360 = vmatprep.subr.mxu0 0.0
      %361 = vmatpush1.msra.mxu0 0.0
      %362 = vmatprep.subr.mxu0 0.0
      %363 = vmatpush1.msra.mxu0 0.0
      %364 = vmatprep.subr.mxu0 0.0
      %365 = vmatpush1.msra.mxu0 0.0
      %366 = vmatprep.subr.mxu0 0.0
      %367 = vmatpush1.msra.mxu0 0.0
      %368 = vmatprep.subr.mxu0 0.0
      %369 = vmatpush1.msra.mxu0 0.0
      %370 = vmatprep.subr.mxu0 0.0
      %371 = vmatpush1.msra.mxu0 0.0
      %372 = vmatprep.subr.mxu0 0.0
      %373 = vmatpush1.msra.mxu0 0.0
      %374 = vmatprep.subr.mxu0 0.0
      %375 = vmatpush1.msra.mxu0 0.0
      %376 = vmatprep.subr.mxu0 0.0
      %377 = vmatpush1.msra.mxu0 0.0
      %378 = vmatprep.subr.mxu0 0.0
      %379 = vmatpush1.msra.mxu0 0.0
      %380 = vmatprep.subr.mxu0 0.0
      %381 = vmatpush1.msra.mxu0 0.0
      %382 = vmatprep.subr.mxu0 0.0
      %383 = vmatpush1.msra.mxu0 0.0
      %384 = vmatprep.subr.mxu0 0.0
      %385 = vmatpush1.msra.mxu0 0.0
      %386 = vmatprep.subr.mxu0 0.0
      %387 = vmatpush1.msra.mxu0 0.0
      %388 = vmatprep.subr.mxu0 0.0
      %389 = vmatpush1.msra.mxu0 0.0
      %390 = vmatprep.subr.mxu0 0.0
      %391 = vmatpush1.msra.mxu0 0.0
      %392 = vmatprep.subr.mxu0 0.0
      %393 = vmatpush1.msra.mxu0 0.0
      %394 = vmatprep.subr.mxu0 0.0
      %395 = vmatpush1.msra.mxu0 0.0
      %396 = vmatprep.subr.mxu0 0.0
      %397 = vmatpush1.msra.mxu0 0.0
      %398 = vmatprep.subr.mxu0 0.0
      %399 = vmatpush1.msra.mxu0 0.0
      %400 = vmatprep.subr.mxu0 0.0
      %401 = vmatpush1.msra.mxu0 0.0
      %402 = vmatprep.subr.mxu0 0.0
      %403 = vmatpush1.msra.mxu0 0.0
      %404 = vmatprep.subr.mxu0 0.0
      %405 = vmatpush1.msra.mxu0 0.0
      %406 = vmatprep.subr.mxu0 0.0
      %407 = vmatpush1.msra.mxu0 0.0
      %408 = vmatprep.subr.mxu0 0.0
      %409 = vmatpush1.msra.mxu0 0.0
      %410 = vmatprep.subr.mxu0 0.0
      %411 = vmatpush1.msra.mxu0 0.0
      %412 = vmatprep.subr.mxu0 0.0
      %413 = vmatpush1.msra.mxu0 0.0
      %414 = vmatprep.mubr.f32.mxu0 0.0
      %415 = vmatmul.mubr.f32.gmra.mrb[0].mxu0 %v335
      %v416 = vpop.f32.mrb[0].mxu0
      %v417 = vadd.f32 0.0, %v416
      %v418 = vpop.f32.mrb[0].mxu0
      %419 = vmatprep.mubr.f32.mxu0 0.0
      %420 = vmatmul.mubr.f32.gmra.mrb[0].mxu0 %v338
      %v421 = vpop.f32.mrb[0].mxu0
      %v422 = vadd.f32 0.0, %v421
      %v423 = vpop.f32.mrb[0].mxu0
      %424 = vmatprep.mubr.f32.mxu0 0.0
      %425 = vmatmul.mubr.f32.gmra.mrb[0].mxu0 %v341
      %v426 = vpop.f32.mrb[0].mxu0
      %v427 = vadd.f32 0.0, %v426
      %v428 = vpop.f32.mrb[0].mxu0
      %429 = vmatprep.mubr.f32.mxu0 0.0
      %430 = vmatmul.mubr.f32.gmra.mrb[0].mxu0 %v344
      %v431 = vpop.f32.mrb[0].mxu0
      %v432 = vadd.f32 0.0, %v431
      %v433 = vpop.f32.mrb[0].mxu0
      %434 = vdwg.mxu0
      %v436 = vlaneseq
      %v437 = vshrl.u32 %v436, 7
      %v438 = vsub.s32 0, %v437
      %v439 = vrot.slane %v320, %v438
      %v441 = vmul.f32 %v417, %v439
      %v442 = vmul.f32 %v422, %v439
      %v443 = vmul.f32 %v427, %v439
      %v444 = vmul.f32 %v432, %v439
      %v446 = vlaneseq
      %v447 = vshrl.u32 %v446, 7
      %v448 = vsub.s32 0, %v447
      %v449 = vrot.slane %v321, %v448
      %v451 = vadd.f32 %v441, %v449
      %v452 = vadd.f32 %v442, %v449
      %v453 = vadd.f32 %v443, %v449
      %v454 = vadd.f32 %v444, %v449
      %v456 = vsel %vm333, %v311, 0
      %v459 = vsel %vm333, %v312, 0
      %v462 = vsel %vm333, %v313, 0
      %v465 = vsel %vm333, %v314, 0
      %v468 = vsel %vm333, %v315, 0
      %v471 = vsel %vm333, %v316, 0
      %v474 = vsel %vm333, %v317, 0
      %v477 = vsel %vm333, %v318, 0
      %v480 = vsel %vm346, %v319, 0
      %482 = vmatprep.subr.mxu0 0.0
      %483 = vmatpush1.msra.mxu0 %v480
      %484 = vmatprep.subr.mxu0 0.0
      %485 = vmatpush1.msra.mxu0 0.0
      %486 = vmatprep.subr.mxu0 0.0
      %487 = vmatpush1.msra.mxu0 0.0
      %488 = vmatprep.subr.mxu0 0.0
      %489 = vmatpush1.msra.mxu0 0.0
      %490 = vmatprep.subr.mxu0 0.0
      %491 = vmatpush1.msra.mxu0 0.0
      %492 = vmatprep.subr.mxu0 0.0
      %493 = vmatpush1.msra.mxu0 0.0
      %494 = vmatprep.subr.mxu0 0.0
      %495 = vmatpush1.msra.mxu0 0.0
      %496 = vmatprep.subr.mxu0 0.0
      %497 = vmatpush1.msra.mxu0 0.0
      %498 = vmatprep.subr.mxu0 0.0
      %499 = vmatpush1.msra.mxu0 0.0
      %500 = vmatprep.subr.mxu0 0.0
      %501 = vmatpush1.msra.mxu0 0.0
      %502 = vmatprep.subr.mxu0 0.0
      %503 = vmatpush1.msra.mxu0 0.0
      %504 = vmatprep.subr.mxu0 0.0
      %505 = vmatpush1.msra.mxu0 0.0
      %506 = vmatprep.subr.mxu0 0.0
      %507 = vmatpush1.msra.mxu0 0.0
      %508 = vmatprep.subr.mxu0 0.0
      %509 = vmatpush1.msra.mxu0 0.0
      %510 = vmatprep.subr.mxu0 0.0
      %511 = vmatpush1.msra.mxu0 0.0
      %512 = vmatprep.subr.mxu0 0.0
      %513 = vmatpush1.msra.mxu0 0.0
      %514 = vmatprep.subr.mxu0 0.0
      %515 = vmatpush1.msra.mxu0 0.0
      %516 = vmatprep.subr.mxu0 0.0
      %517 = vmatpush1.msra.mxu0 0.0
      %518 = vmatprep.subr.mxu0 0.0
      %519 = vmatpush1.msra.mxu0 0.0
      %520 = vmatprep.subr.mxu0 0.0
      %521 = vmatpush1.msra.mxu0 0.0
      %522 = vmatprep.subr.mxu0 0.0
      %523 = vmatpush1.msra.mxu0 0.0
      %524 = vmatprep.subr.mxu0 0.0
      %525 = vmatpush1.msra.mxu0 0.0
      %526 = vmatprep.subr.mxu0 0.0
      %527 = vmatpush1.msra.mxu0 0.0
      %528 = vmatprep.subr.mxu0 0.0
      %529 = vmatpush1.msra.mxu0 0.0
      %530 = vmatprep.subr.mxu0 0.0
      %531 = vmatpush1.msra.mxu0 0.0
      %532 = vmatprep.subr.mxu0 0.0
      %533 = vmatpush1.msra.mxu0 0.0
      %534 = vmatprep.subr.mxu0 0.0
      %535 = vmatpush1.msra.mxu0 0.0
      %536 = vmatprep.subr.mxu0 0.0
      %537 = vmatpush1.msra.mxu0 0.0
      %538 = vmatprep.subr.mxu0 0.0
      %539 = vmatpush1.msra.mxu0 0.0
      %540 = vmatprep.subr.mxu0 0.0
      %541 = vmatpush1.msra.mxu0 0.0
      %542 = vmatprep.subr.mxu0 0.0
      %543 = vmatpush1.msra.mxu0 0.0
      %544 = vmatprep.subr.mxu0 0.0
      %545 = vmatpush1.msra.mxu0 0.0
      %546 = vmatprep.mubr.f32.mxu0 0.0
      %547 = vmatmul.mubr.f32.gmra.mrb[0].mxu0 %v456
      %v548 = vpop.f32.mrb[0].mxu0
      %v549 = vadd.f32 0.0, %v548
      %v550 = vpop.f32.mrb[0].mxu0
      %551 = vmatprep.mubr.f32.mxu0 0.0
      %552 = vmatmul.mubr.f32.gmra.mrb[0].mxu0 %v459
      %v553 = vpop.f32.mrb[0].mxu0
      %v554 = vadd.f32 0.0, %v553
      %v555 = vpop.f32.mrb[0].mxu0
      %556 = vmatprep.mubr.f32.mxu0 0.0
      %557 = vmatmul.mubr.f32.gmra.mrb[0].mxu0 %v462
      %v558 = vpop.f32.mrb[0].mxu0
      %v559 = vadd.f32 0.0, %v558
      %v560 = vpop.f32.mrb[0].mxu0
      %561 = vmatprep.mubr.f32.mxu0 0.0
      %562 = vmatmul.mubr.f32.gmra.mrb[0].mxu0 %v465
      %v563 = vpop.f32.mrb[0].mxu0
      %v564 = vadd.f32 0.0, %v563
      %v565 = vpop.f32.mrb[0].mxu0
      %566 = vmatprep.mubr.f32.mxu0 0.0
      %567 = vmatmul.mubr.f32.gmra.mrb[0].mxu0 %v468
      %v568 = vpop.f32.mrb[0].mxu0
      %v569 = vadd.f32 0.0, %v568
      %v570 = vpop.f32.mrb[0].mxu0
      %571 = vmatprep.mubr.f32.mxu0 0.0
      %572 = vmatmul.mubr.f32.gmra.mrb[0].mxu0 %v471
      %v573 = vpop.f32.mrb[0].mxu0
      %v574 = vadd.f32 0.0, %v573
      %v575 = vpop.f32.mrb[0].mxu0
      %576 = vmatprep.mubr.f32.mxu0 0.0
      %577 = vmatmul.mubr.f32.gmra.mrb[0].mxu0 %v474
      %v578 = vpop.f32.mrb[0].mxu0
      %v579 = vadd.f32 0.0, %v578
      %v580 = vpop.f32.mrb[0].mxu0
      %581 = vmatprep.mubr.f32.mxu0 0.0
      %582 = vmatmul.mubr.f32.gmra.mrb[0].mxu0 %v477
      %v583 = vpop.f32.mrb[0].mxu0
      %v584 = vadd.f32 0.0, %v583
      %v585 = vpop.f32.mrb[0].mxu0
      %586 = vdwg.mxu0
      %v587 = vlaneseq
      %v588 = vand.u32 %v587, 127
      %589 = vset.pattern.permute.xlu0 0
      %590 = vperm.xlu0 %589, %v328
      %v591 = vpop.permute.xlu0 %590
      %592 = vset.pattern.permute.xlu0 0
      %593 = vperm.xlu0 %592, %v329
      %v594 = vpop.permute.xlu0 %593
      %595 = vset.pattern.permute.xlu0 0
      %596 = vperm.xlu0 %595, %v330
      %v597 = vpop.permute.xlu0 %596
      %598 = vset.pattern.permute.xlu0 0
      %599 = vperm.xlu0 %598, %v331
      %v600 = vpop.permute.xlu0 %599
      %vm601 = vcmp.eq.s32.totalorder %v591, %v588
      %vm602 = vcmp.eq.s32.totalorder %v594, %v588
      %vm603 = vcmp.eq.s32.totalorder %v597, %v588
      %vm604 = vcmp.eq.s32.totalorder %v600, %v588
      %v605 = vsel %vm601, 1.0, 0.0
      %v606 = vsel %vm602, 1.0, 0.0
      %v607 = vsel %vm603, 1.0, 0.0
      %v608 = vsel %vm604, 1.0, 0.0
      %609 = vset.pattern.permute.xlu0 1
      %610 = vperm.xlu0 %609, %v328
      %v611 = vpop.permute.xlu0 %610
      %612 = vset.pattern.permute.xlu0 1
      %613 = vperm.xlu0 %612, %v329
      %v614 = vpop.permute.xlu0 %613
      %615 = vset.pattern.permute.xlu0 1
      %616 = vperm.xlu0 %615, %v330
      %v617 = vpop.permute.xlu0 %616
      %618 = vset.pattern.permute.xlu0 1
      %619 = vperm.xlu0 %618, %v331
      %v620 = vpop.permute.xlu0 %619
      %vm621 = vcmp.eq.s32.totalorder %v611, %v588
      %vm622 = vcmp.eq.s32.totalorder %v614, %v588
      %vm623 = vcmp.eq.s32.totalorder %v617, %v588
      %vm624 = vcmp.eq.s32.totalorder %v620, %v588
      %v625 = vsel %vm621, 1.0, 0.0
      %v626 = vsel %vm622, 1.0, 0.0
      %v627 = vsel %vm623, 1.0, 0.0
      %v628 = vsel %vm624, 1.0, 0.0
      %629 = vset.pattern.permute.xlu0 2
      %630 = vperm.xlu0 %629, %v328
      %v631 = vpop.permute.xlu0 %630
      %632 = vset.pattern.permute.xlu0 2
      %633 = vperm.xlu0 %632, %v329
      %v634 = vpop.permute.xlu0 %633
      %635 = vset.pattern.permute.xlu0 2
      %636 = vperm.xlu0 %635, %v330
      %v637 = vpop.permute.xlu0 %636
      %638 = vset.pattern.permute.xlu0 2
      %639 = vperm.xlu0 %638, %v331
      %v640 = vpop.permute.xlu0 %639
      %vm641 = vcmp.eq.s32.totalorder %v631, %v588
      %vm642 = vcmp.eq.s32.totalorder %v634, %v588
      %vm643 = vcmp.eq.s32.totalorder %v637, %v588
      %vm644 = vcmp.eq.s32.totalorder %v640, %v588
      %v645 = vsel %vm641, 1.0, 0.0
      %v646 = vsel %vm642, 1.0, 0.0
      %v647 = vsel %vm643, 1.0, 0.0
      %v648 = vsel %vm644, 1.0, 0.0
      %649 = vset.pattern.permute.xlu0 3
      %650 = vperm.xlu0 %649, %v328
      %v651 = vpop.permute.xlu0 %650
      %652 = vset.pattern.permute.xlu0 3
      %653 = vperm.xlu0 %652, %v329
      %v654 = vpop.permute.xlu0 %653
      %655 = vset.pattern.permute.xlu0 3
      %656 = vperm.xlu0 %655, %v330
      %v657 = vpop.permute.xlu0 %656
      %658 = vset.pattern.permute.xlu0 3
      %659 = vperm.xlu0 %658, %v331
      %v660 = vpop.permute.xlu0 %659
      %vm661 = vcmp.eq.s32.totalorder %v651, %v588
      %vm662 = vcmp.eq.s32.totalorder %v654, %v588
      %vm663 = vcmp.eq.s32.totalorder %v657, %v588
      %vm664 = vcmp.eq.s32.totalorder %v660, %v588
      %v665 = vsel %vm661, 1.0, 0.0
      %v666 = vsel %vm662, 1.0, 0.0
      %v667 = vsel %vm663, 1.0, 0.0
      %v668 = vsel %vm664, 1.0, 0.0
      %669 = vset.pattern.permute.xlu0 4
      %670 = vperm.xlu0 %669, %v328
      %v671 = vpop.permute.xlu0 %670
      %672 = vset.pattern.permute.xlu0 4
      %673 = vperm.xlu0 %672, %v329
      %v674 = vpop.permute.xlu0 %673
      %675 = vset.pattern.permute.xlu0 4
      %676 = vperm.xlu0 %675, %v330
      %v677 = vpop.permute.xlu0 %676
      %678 = vset.pattern.permute.xlu0 4
      %679 = vperm.xlu0 %678, %v331
      %v680 = vpop.permute.xlu0 %679
      %vm681 = vcmp.eq.s32.totalorder %v671, %v588
      %vm682 = vcmp.eq.s32.totalorder %v674, %v588
      %vm683 = vcmp.eq.s32.totalorder %v677, %v588
      %vm684 = vcmp.eq.s32.totalorder %v680, %v588
      %v685 = vsel %vm681, 1.0, 0.0
      %v686 = vsel %vm682, 1.0, 0.0
      %v687 = vsel %vm683, 1.0, 0.0
      %v688 = vsel %vm684, 1.0, 0.0
      %689 = vset.pattern.permute.xlu0 5
      %690 = vperm.xlu0 %689, %v328
      %v691 = vpop.permute.xlu0 %690
      %692 = vset.pattern.permute.xlu0 5
      %693 = vperm.xlu0 %692, %v329
      %v694 = vpop.permute.xlu0 %693
      %695 = vset.pattern.permute.xlu0 5
      %696 = vperm.xlu0 %695, %v330
      %v697 = vpop.permute.xlu0 %696
      %698 = vset.pattern.permute.xlu0 5
      %699 = vperm.xlu0 %698, %v331
      %v700 = vpop.permute.xlu0 %699
      %vm701 = vcmp.eq.s32.totalorder %v691, %v588
      %vm702 = vcmp.eq.s32.totalorder %v694, %v588
      %vm703 = vcmp.eq.s32.totalorder %v697, %v588
      %vm704 = vcmp.eq.s32.totalorder %v700, %v588
      %v705 = vsel %vm701, 1.0, 0.0
      %v706 = vsel %vm702, 1.0, 0.0
      %v707 = vsel %vm703, 1.0, 0.0
      %v708 = vsel %vm704, 1.0, 0.0
      %709 = vset.pattern.permute.xlu0 6
      %710 = vperm.xlu0 %709, %v328
      %v711 = vpop.permute.xlu0 %710
      %712 = vset.pattern.permute.xlu0 6
      %713 = vperm.xlu0 %712, %v329
      %v714 = vpop.permute.xlu0 %713
      %715 = vset.pattern.permute.xlu0 6
      %716 = vperm.xlu0 %715, %v330
      %v717 = vpop.permute.xlu0 %716
      %718 = vset.pattern.permute.xlu0 6
      %719 = vperm.xlu0 %718, %v331
      %v720 = vpop.permute.xlu0 %719
      %vm721 = vcmp.eq.s32.totalorder %v711, %v588
      %vm722 = vcmp.eq.s32.totalorder %v714, %v588
      %vm723 = vcmp.eq.s32.totalorder %v717, %v588
      %vm724 = vcmp.eq.s32.totalorder %v720, %v588
      %v725 = vsel %vm721, 1.0, 0.0
      %v726 = vsel %vm722, 1.0, 0.0
      %v727 = vsel %vm723, 1.0, 0.0
      %v728 = vsel %vm724, 1.0, 0.0
      %729 = vset.pattern.permute.xlu0 7
      %730 = vperm.xlu0 %729, %v328
      %v731 = vpop.permute.xlu0 %730
      %732 = vset.pattern.permute.xlu0 7
      %733 = vperm.xlu0 %732, %v329
      %v734 = vpop.permute.xlu0 %733
      %735 = vset.pattern.permute.xlu0 7
      %736 = vperm.xlu0 %735, %v330
      %v737 = vpop.permute.xlu0 %736
      %738 = vset.pattern.permute.xlu0 7
      %739 = vperm.xlu0 %738, %v331
      %v740 = vpop.permute.xlu0 %739
      %vm741 = vcmp.eq.s32.totalorder %v731, %v588
      %vm742 = vcmp.eq.s32.totalorder %v734, %v588
      %vm743 = vcmp.eq.s32.totalorder %v737, %v588
      %vm744 = vcmp.eq.s32.totalorder %v740, %v588
      %v745 = vsel %vm741, 1.0, 0.0
      %v746 = vsel %vm742, 1.0, 0.0
      %v747 = vsel %vm743, 1.0, 0.0
      %v748 = vsel %vm744, 1.0, 0.0
      %vm749 = vcmask 523264
      %v751 = vsel %vm749, %v605, 0
      %v754 = vsel %vm749, %v606, 0
      %v757 = vsel %vm749, %v607, 0
      %v760 = vsel %vm749, %v608, 0
      %v763 = vsel %vm749, %v625, 0
      %v766 = vsel %vm749, %v626, 0
      %v769 = vsel %vm749, %v627, 0
      %v772 = vsel %vm749, %v628, 0
      %v775 = vsel %vm749, %v645, 0
      %v778 = vsel %vm749, %v646, 0
      %v781 = vsel %vm749, %v647, 0
      %v784 = vsel %vm749, %v648, 0
      %v787 = vsel %vm749, %v665, 0
      %v790 = vsel %vm749, %v666, 0
      %v793 = vsel %vm749, %v667, 0
      %v796 = vsel %vm749, %v668, 0
      %v799 = vsel %vm749, %v685, 0
      %v802 = vsel %vm749, %v686, 0
      %v805 = vsel %vm749, %v687, 0
      %v808 = vsel %vm749, %v688, 0
      %v811 = vsel %vm749, %v705, 0
      %v814 = vsel %vm749, %v706, 0
      %v817 = vsel %vm749, %v707, 0
      %v820 = vsel %vm749, %v708, 0
      %v823 = vsel %vm749, %v725, 0
      %v826 = vsel %vm749, %v726, 0
      %v829 = vsel %vm749, %v727, 0
      %v832 = vsel %vm749, %v728, 0
      %v835 = vsel %vm749, %v745, 0
      %v838 = vsel %vm749, %v746, 0
      %v841 = vsel %vm749, %v747, 0
      %v844 = vsel %vm749, %v748, 0
      %846 = vmatprep.subr.mxu0 0.0
      %847 = vmatpush1.msra.mxu0 %v549
      %848 = vmatprep.subr.mxu0 0.0
      %849 = vmatpush1.msra.mxu0 %v554
      %850 = vmatprep.subr.mxu0 0.0
      %851 = vmatpush1.msra.mxu0 %v559
      %852 = vmatprep.subr.mxu0 0.0
      %853 = vmatpush1.msra.mxu0 %v564
      %854 = vmatprep.subr.mxu0 0.0
      %855 = vmatpush1.msra.mxu0 %v569
      %856 = vmatprep.subr.mxu0 0.0
      %857 = vmatpush1.msra.mxu0 %v574
      %858 = vmatprep.subr.mxu0 0.0
      %859 = vmatpush1.msra.mxu0 %v579
      %860 = vmatprep.subr.mxu0 0.0
      %861 = vmatpush1.msra.mxu0 %v584
      %862 = vmatprep.subr.mxu0 0.0
      %863 = vmatpush1.msra.mxu0 0.0
      %864 = vmatprep.subr.mxu0 0.0
      %865 = vmatpush1.msra.mxu0 0.0
      %866 = vmatprep.subr.mxu0 0.0
      %867 = vmatpush1.msra.mxu0 0.0
      %868 = vmatprep.subr.mxu0 0.0
      %869 = vmatpush1.msra.mxu0 0.0
      %870 = vmatprep.subr.mxu0 0.0
      %871 = vmatpush1.msra.mxu0 0.0
      %872 = vmatprep.subr.mxu0 0.0
      %873 = vmatpush1.msra.mxu0 0.0
      %874 = vmatprep.subr.mxu0 0.0
      %875 = vmatpush1.msra.mxu0 0.0
      %876 = vmatprep.subr.mxu0 0.0
      %877 = vmatpush1.msra.mxu0 0.0
      %878 = vmatprep.subr.mxu0 0.0
      %879 = vmatpush1.msra.mxu0 0.0
      %880 = vmatprep.subr.mxu0 0.0
      %881 = vmatpush1.msra.mxu0 0.0
      %882 = vmatprep.subr.mxu0 0.0
      %883 = vmatpush1.msra.mxu0 0.0
      %884 = vmatprep.subr.mxu0 0.0
      %885 = vmatpush1.msra.mxu0 0.0
      %886 = vmatprep.subr.mxu0 0.0
      %887 = vmatpush1.msra.mxu0 0.0
      %888 = vmatprep.subr.mxu0 0.0
      %889 = vmatpush1.msra.mxu0 0.0
      %890 = vmatprep.subr.mxu0 0.0
      %891 = vmatpush1.msra.mxu0 0.0
      %892 = vmatprep.subr.mxu0 0.0
      %893 = vmatpush1.msra.mxu0 0.0
      %894 = vmatprep.subr.mxu0 0.0
      %895 = vmatpush1.msra.mxu0 0.0
      %896 = vmatprep.subr.mxu0 0.0
      %897 = vmatpush1.msra.mxu0 0.0
      %898 = vmatprep.subr.mxu0 0.0
      %899 = vmatpush1.msra.mxu0 0.0
      %900 = vmatprep.subr.mxu0 0.0
      %901 = vmatpush1.msra.mxu0 0.0
      %902 = vmatprep.subr.mxu0 0.0
      %903 = vmatpush1.msra.mxu0 0.0
      %904 = vmatprep.subr.mxu0 0.0
      %905 = vmatpush1.msra.mxu0 0.0
      %906 = vmatprep.subr.mxu0 0.0
      %907 = vmatpush1.msra.mxu0 0.0
      %908 = vmatprep.subr.mxu0 0.0
      %909 = vmatpush1.msra.mxu0 0.0
      %910 = vmatprep.mubr.f32.mxu0 0.0
      %911 = vmatmul.mubr.f32.gmra.mrb[0].mxu0 %v751
      %v912 = vpop.f32.mrb[0].mxu0
      %v913 = vadd.f32 0.0, %v912
      %v914 = vpop.f32.mrb[0].mxu0
      %915 = vmatprep.mubr.f32.mxu0 0.0
      %916 = vmatmul.mubr.f32.gmra.mrb[0].mxu0 %v754
      %v917 = vpop.f32.mrb[0].mxu0
      %v918 = vadd.f32 0.0, %v917
      %v919 = vpop.f32.mrb[0].mxu0
      %920 = vmatprep.mubr.f32.mxu0 0.0
      %921 = vmatmul.mubr.f32.gmra.mrb[0].mxu0 %v757
      %v922 = vpop.f32.mrb[0].mxu0
      %v923 = vadd.f32 0.0, %v922
      %v924 = vpop.f32.mrb[0].mxu0
      %925 = vmatprep.mubr.f32.mxu0 0.0
      %926 = vmatmul.mubr.f32.gmra.mrb[0].mxu0 %v760
      %v927 = vpop.f32.mrb[0].mxu0
      %v928 = vadd.f32 0.0, %v927
      %v929 = vpop.f32.mrb[0].mxu0
      %930 = vmatprep.mubr.f32.mxu0 0.0
      %931 = vmatmul.mubr.f32.gmra.mrb[0].mxu0 %v763
      %v932 = vpop.f32.mrb[0].mxu0
      %v933 = vadd.f32 0.0, %v932
      %v934 = vpop.f32.mrb[0].mxu0
      %935 = vmatprep.mubr.f32.mxu0 0.0
      %936 = vmatmul.mubr.f32.gmra.mrb[0].mxu0 %v766
      %v937 = vpop.f32.mrb[0].mxu0
      %v938 = vadd.f32 0.0, %v937
      %v939 = vpop.f32.mrb[0].mxu0
      %940 = vmatprep.mubr.f32.mxu0 0.0
      %941 = vmatmul.mubr.f32.gmra.mrb[0].mxu0 %v769
      %v942 = vpop.f32.mrb[0].mxu0
      %v943 = vadd.f32 0.0, %v942
      %v944 = vpop.f32.mrb[0].mxu0
      %945 = vmatprep.mubr.f32.mxu0 0.0
      %946 = vmatmul.mubr.f32.gmra.mrb[0].mxu0 %v772
      %v947 = vpop.f32.mrb[0].mxu0
      %v948 = vadd.f32 0.0, %v947
      %v949 = vpop.f32.mrb[0].mxu0
      %950 = vmatprep.mubr.f32.mxu0 0.0
      %951 = vmatmul.mubr.f32.gmra.mrb[0].mxu0 %v775
      %v952 = vpop.f32.mrb[0].mxu0
      %v953 = vadd.f32 0.0, %v952
      %v954 = vpop.f32.mrb[0].mxu0
      %955 = vmatprep.mubr.f32.mxu0 0.0
      %956 = vmatmul.mubr.f32.gmra.mrb[0].mxu0 %v778
      %v957 = vpop.f32.mrb[0].mxu0
      %v958 = vadd.f32 0.0, %v957
      %v959 = vpop.f32.mrb[0].mxu0
      %960 = vmatprep.mubr.f32.mxu0 0.0
      %961 = vmatmul.mubr.f32.gmra.mrb[0].mxu0 %v781
      %v962 = vpop.f32.mrb[0].mxu0
      %v963 = vadd.f32 0.0, %v962
      %v964 = vpop.f32.mrb[0].mxu0
      %965 = vmatprep.mubr.f32.mxu0 0.0
      %966 = vmatmul.mubr.f32.gmra.mrb[0].mxu0 %v784
      %v967 = vpop.f32.mrb[0].mxu0
      %v968 = vadd.f32 0.0, %v967
      %v969 = vpop.f32.mrb[0].mxu0
      %970 = vmatprep.mubr.f32.mxu0 0.0
      %971 = vmatmul.mubr.f32.gmra.mrb[0].mxu0 %v787
      %v972 = vpop.f32.mrb[0].mxu0
      %v973 = vadd.f32 0.0, %v972
      %v974 = vpop.f32.mrb[0].mxu0
      %975 = vmatprep.mubr.f32.mxu0 0.0
      %976 = vmatmul.mubr.f32.gmra.mrb[0].mxu0 %v790
      %v977 = vpop.f32.mrb[0].mxu0
      %v978 = vadd.f32 0.0, %v977
      %v979 = vpop.f32.mrb[0].mxu0
      %980 = vmatprep.mubr.f32.mxu0 0.0
      %981 = vmatmul.mubr.f32.gmra.mrb[0].mxu0 %v793
      %v982 = vpop.f32.mrb[0].mxu0
      %v983 = vadd.f32 0.0, %v982
      %v984 = vpop.f32.mrb[0].mxu0
      %985 = vmatprep.mubr.f32.mxu0 0.0
      %986 = vmatmul.mubr.f32.gmra.mrb[0].mxu0 %v796
      %v987 = vpop.f32.mrb[0].mxu0
      %v988 = vadd.f32 0.0, %v987
      %v989 = vpop.f32.mrb[0].mxu0
      %990 = vmatprep.mubr.f32.mxu0 0.0
      %991 = vmatmul.mubr.f32.gmra.mrb[0].mxu0 %v799
      %v992 = vpop.f32.mrb[0].mxu0
      %v993 = vadd.f32 0.0, %v992
      %v994 = vpop.f32.mrb[0].mxu0
      %995 = vmatprep.mubr.f32.mxu0 0.0
      %996 = vmatmul.mubr.f32.gmra.mrb[0].mxu0 %v802
      %v997 = vpop.f32.mrb[0].mxu0
      %v998 = vadd.f32 0.0, %v997
      %v999 = vpop.f32.mrb[0].mxu0
      %1000 = vmatprep.mubr.f32.mxu0 0.0
      %1001 = vmatmul.mubr.f32.gmra.mrb[0].mxu0 %v805
      %v1002 = vpop.f32.mrb[0].mxu0
      %v1003 = vadd.f32 0.0, %v1002
      %v1004 = vpop.f32.mrb[0].mxu0
      %1005 = vmatprep.mubr.f32.mxu0 0.0
      %1006 = vmatmul.mubr.f32.gmra.mrb[0].mxu0 %v808
      %v1007 = vpop.f32.mrb[0].mxu0
      %v1008 = vadd.f32 0.0, %v1007
      %v1009 = vpop.f32.mrb[0].mxu0
      %1010 = vmatprep.mubr.f32.mxu0 0.0
      %1011 = vmatmul.mubr.f32.gmra.mrb[0].mxu0 %v811
      %v1012 = vpop.f32.mrb[0].mxu0
      %v1013 = vadd.f32 0.0, %v1012
      %v1014 = vpop.f32.mrb[0].mxu0
      %1015 = vmatprep.mubr.f32.mxu0 0.0
      %1016 = vmatmul.mubr.f32.gmra.mrb[0].mxu0 %v814
      %v1017 = vpop.f32.mrb[0].mxu0
      %v1018 = vadd.f32 0.0, %v1017
      %v1019 = vpop.f32.mrb[0].mxu0
      %1020 = vmatprep.mubr.f32.mxu0 0.0
      %1021 = vmatmul.mubr.f32.gmra.mrb[0].mxu0 %v817
      %v1022 = vpop.f32.mrb[0].mxu0
      %v1023 = vadd.f32 0.0, %v1022
      %v1024 = vpop.f32.mrb[0].mxu0
      %1025 = vmatprep.mubr.f32.mxu0 0.0
      %1026 = vmatmul.mubr.f32.gmra.mrb[0].mxu0 %v820
      %v1027 = vpop.f32.mrb[0].mxu0
      %v1028 = vadd.f32 0.0, %v1027
      %v1029 = vpop.f32.mrb[0].mxu0
      %1030 = vmatprep.mubr.f32.mxu0 0.0
      %1031 = vmatmul.mubr.f32.gmra.mrb[0].mxu0 %v823
      %v1032 = vpop.f32.mrb[0].mxu0
      %v1033 = vadd.f32 0.0, %v1032
      %v1034 = vpop.f32.mrb[0].mxu0
      %1035 = vmatprep.mubr.f32.mxu0 0.0
      %1036 = vmatmul.mubr.f32.gmra.mrb[0].mxu0 %v826
      %v1037 = vpop.f32.mrb[0].mxu0
      %v1038 = vadd.f32 0.0, %v1037
      %v1039 = vpop.f32.mrb[0].mxu0
      %1040 = vmatprep.mubr.f32.mxu0 0.0
      %1041 = vmatmul.mubr.f32.gmra.mrb[0].mxu0 %v829
      %v1042 = vpop.f32.mrb[0].mxu0
      %v1043 = vadd.f32 0.0, %v1042
      %v1044 = vpop.f32.mrb[0].mxu0
      %1045 = vmatprep.mubr.f32.mxu0 0.0
      %1046 = vmatmul.mubr.f32.gmra.mrb[0].mxu0 %v832
      %v1047 = vpop.f32.mrb[0].mxu0
      %v1048 = vadd.f32 0.0, %v1047
      %v1049 = vpop.f32.mrb[0].mxu0
      %1050 = vmatprep.mubr.f32.mxu0 0.0
      %1051 = vmatmul.mubr.f32.gmra.mrb[0].mxu0 %v835
      %v1052 = vpop.f32.mrb[0].mxu0
      %v1053 = vadd.f32 0.0, %v1052
      %v1054 = vpop.f32.mrb[0].mxu0
      %1055 = vmatprep.mubr.f32.mxu0 0.0
      %1056 = vmatmul.mubr.f32.gmra.mrb[0].mxu0 %v838
      %v1057 = vpop.f32.mrb[0].mxu0
      %v1058 = vadd.f32 0.0, %v1057
      %v1059 = vpop.f32.mrb[0].mxu0
      %1060 = vmatprep.mubr.f32.mxu0 0.0
      %1061 = vmatmul.mubr.f32.gmra.mrb[0].mxu0 %v841
      %v1062 = vpop.f32.mrb[0].mxu0
      %v1063 = vadd.f32 0.0, %v1062
      %v1064 = vpop.f32.mrb[0].mxu0
      %1065 = vmatprep.mubr.f32.mxu0 0.0
      %1066 = vmatmul.mubr.f32.gmra.mrb[0].mxu0 %v844
      %v1067 = vpop.f32.mrb[0].mxu0
      %v1068 = vadd.f32 0.0, %v1067
      %v1069 = vpop.f32.mrb[0].mxu0
      %1070 = vdwg.mxu0
      %v1071 = vmul.f32 %v913, %v439
      %v1072 = vmul.f32 %v918, %v439
      %v1073 = vmul.f32 %v923, %v439
      %v1074 = vmul.f32 %v928, %v439
      %v1075 = vadd.f32 %v1071, %v451
      %v1076 = vadd.f32 %v1072, %v452
      %v1077 = vadd.f32 %v1073, %v453
      %v1078 = vadd.f32 %v1074, %v454
      %v1079 = vmul.f32 %v933, %v439
      %v1080 = vmul.f32 %v938, %v439
      %v1081 = vmul.f32 %v943, %v439
      %v1082 = vmul.f32 %v948, %v439
      %v1083 = vadd.f32 %v1079, %v451
      %v1084 = vadd.f32 %v1080, %v452
      %v1085 = vadd.f32 %v1081, %v453
      %v1086 = vadd.f32 %v1082, %v454
      %v1087 = vmax.f32 %v1075, %v1083
      %v1088 = vmax.f32 %v1076, %v1084
      %v1089 = vmax.f32 %v1077, %v1085
      %v1090 = vmax.f32 %v1078, %v1086
      %v1091 = vmul.f32 %v953, %v439
      %v1092 = vmul.f32 %v958, %v439
      %v1093 = vmul.f32 %v963, %v439
      %v1094 = vmul.f32 %v968, %v439
      %v1095 = vadd.f32 %v1091, %v451
      %v1096 = vadd.f32 %v1092, %v452
      %v1097 = vadd.f32 %v1093, %v453
      %v1098 = vadd.f32 %v1094, %v454
      %v1099 = vmax.f32 %v1087, %v1095
      %v1100 = vmax.f32 %v1088, %v1096
      %v1101 = vmax.f32 %v1089, %v1097
      %v1102 = vmax.f32 %v1090, %v1098
      %v1103 = vmul.f32 %v973, %v439
      %v1104 = vmul.f32 %v978, %v439
      %v1105 = vmul.f32 %v983, %v439
      %v1106 = vmul.f32 %v988, %v439
      %v1107 = vadd.f32 %v1103, %v451
      %v1108 = vadd.f32 %v1104, %v452
      %v1109 = vadd.f32 %v1105, %v453
      %v1110 = vadd.f32 %v1106, %v454
      %v1111 = vmax.f32 %v1099, %v1107
      %v1112 = vmax.f32 %v1100, %v1108
      %v1113 = vmax.f32 %v1101, %v1109
      %v1114 = vmax.f32 %v1102, %v1110
      %v1115 = vmul.f32 %v993, %v439
      %v1116 = vmul.f32 %v998, %v439
      %v1117 = vmul.f32 %v1003, %v439
      %v1118 = vmul.f32 %v1008, %v439
      %v1119 = vadd.f32 %v1115, %v451
      %v1120 = vadd.f32 %v1116, %v452
      %v1121 = vadd.f32 %v1117, %v453
      %v1122 = vadd.f32 %v1118, %v454
      %v1123 = vmax.f32 %v1111, %v1119
      %v1124 = vmax.f32 %v1112, %v1120
      %v1125 = vmax.f32 %v1113, %v1121
      %v1126 = vmax.f32 %v1114, %v1122
      %v1127 = vmul.f32 %v1013, %v439
      %v1128 = vmul.f32 %v1018, %v439
      %v1129 = vmul.f32 %v1023, %v439
      %v1130 = vmul.f32 %v1028, %v439
      %v1131 = vadd.f32 %v1127, %v451
      %v1132 = vadd.f32 %v1128, %v452
      %v1133 = vadd.f32 %v1129, %v453
      %v1134 = vadd.f32 %v1130, %v454
      %v1135 = vmax.f32 %v1123, %v1131
      %v1136 = vmax.f32 %v1124, %v1132
      %v1137 = vmax.f32 %v1125, %v1133
      %v1138 = vmax.f32 %v1126, %v1134
      %v1139 = vmul.f32 %v1033, %v439
      %v1140 = vmul.f32 %v1038, %v439
      %v1141 = vmul.f32 %v1043, %v439
      %v1142 = vmul.f32 %v1048, %v439
      %v1143 = vadd.f32 %v1139, %v451
      %v1144 = vadd.f32 %v1140, %v452
      %v1145 = vadd.f32 %v1141, %v453
      %v1146 = vadd.f32 %v1142, %v454
      %v1147 = vmax.f32 %v1135, %v1143
      %v1148 = vmax.f32 %v1136, %v1144
      %v1149 = vmax.f32 %v1137, %v1145
      %v1150 = vmax.f32 %v1138, %v1146
      %v1151 = vmul.f32 %v1053, %v439
      %v1152 = vmul.f32 %v1058, %v439
      %v1153 = vmul.f32 %v1063, %v439
      %v1154 = vmul.f32 %v1068, %v439
      %v1155 = vadd.f32 %v1151, %v451
      %v1156 = vadd.f32 %v1152, %v452
      %v1157 = vadd.f32 %v1153, %v453
      %v1158 = vadd.f32 %v1154, %v454
      %v1159 = vmax.f32 %v1147, %v1155
      %v1160 = vmax.f32 %v1148, %v1156
      %v1161 = vmax.f32 %v1149, %v1157
      %v1162 = vmax.f32 %v1150, %v1158
      %vm1163 = vcmp.gt.f32.partialorder %v1159, 0.0
      %vm1164 = vcmp.gt.f32.partialorder %v1160, 0.0
      %vm1165 = vcmp.gt.f32.partialorder %v1161, 0.0
      %vm1166 = vcmp.gt.f32.partialorder %v1162, 0.0
      %v1167 = vmul.f32 %v1159, 0.2
      %v1168 = vmul.f32 %v1160, 0.2
      %v1169 = vmul.f32 %v1161, 0.2
      %v1170 = vmul.f32 %v1162, 0.2
      %v1171 = vsel %vm1163, %v1159, %v1167
      %v1172 = vsel %vm1164, %v1160, %v1168
      %v1173 = vsel %vm1165, %v1161, %v1169
      %v1174 = vsel %vm1166, %v1162, %v1170
      %1175 = vst.msk [vmem:[%s309] sm:$0xff] %vm749, %v1171
      %1176 = vst.msk [vmem:[%s309 + $0x8] sm:$0xff] %vm749, %v1172
      %1177 = vst.msk [vmem:[%s309 + $0x10] sm:$0xff] %vm749, %v1173
      %1178 = vst.msk [vmem:[%s309 + $0x18] sm:$0xff] %vm749, %v1174
      %s1179 = smul.u32 4, %s22
      %p1180 = scmp.lt.s32.totalorder %s21, 1
      %s1181 = scalar_select %p1180, %s21, 1
      %p1182 = scmp.lt.s32.totalorder %s1179, 7
      %s1183 = scalar_select %p1182, %s1179, 7
      %s1184 = smul.addr %s1181, 8
      %s1185 = sadd.s32 %s1183, %s1184
      %s1186 = smul.addr %s1185, 8
      %s1187 = scalar_lea.vmem %s6, %s1186
      // Predicated region
      $region45: #{pallas_forward.5} parent=43 // pred_check
        %p1188 = pneg %p187
      $region46: #{pallas_forward.5} parent=43 // pred_check_branch
        %1190 = sbr.rel (%p1188) target = $region48
      $region47: #{pallas_forward.5} parent=43 // pred_region
        %s1191 = smul.u32 4, %s22
      $region48: #{pallas_forward.5} parent=43 // pred_fallthru
        _
    $region44: #{pallas_forward.5} parent=5 // pred_fallthru
      _
    %p1192 = scmp.le.s32.totalorder 2, %s12
    // Predicated region
    $region49: #{pallas_forward.5} parent=5 // pred_check
      %p1193 = pneg %p1192
    $region50: #{pallas_forward.5} parent=5 // pred_check_branch
      %1195 = sbr.rel (%p1193) target = $region52
    $region51: #{pallas_forward.5} parent=5 // pred_region
      %s1196 = ssub.s32 %s12, 2
      // Predicated region
      $region53: #{pallas_forward.5} parent=51 // pred_check
        %p1197 = pneg %p193
      $region54: #{pallas_forward.5} parent=51 // pred_check_branch
        %1199 = sbr.rel (%p1197) target = $region56
      $region55: #{pallas_forward.5} parent=51 // pred_region
        %s1200 = smul.u32 4, %s24
        %p1201 = scmp.lt.s32.totalorder %s23, 1
        %s1202 = scalar_select %p1201, %s23, 1
        %p1203 = scmp.lt.s32.totalorder %s1200, 7
        %s1204 = scalar_select %p1203, %s1200, 7
        %s1205 = smul.addr %s1202, 8
        %s1206 = sadd.s32 %s1204, %s1205
        %s1207 = smul.addr %s1206, 8
        %s1208 = scalar_lea.vmem %s6, %s1207
      $region56: #{pallas_forward.5} parent=51 // pred_fallthru
        _
    $region52: #{pallas_forward.5} parent=5 // pred_fallthru
      _
  $region6: #{pallas_forward.5} parent=0 // loop_footer
    %s16 = sadd.s32 1, %s12
  $region7: #{pallas_forward.5} parent=0 // loop_footer_branch
    %11 = sbr.rel target = $region3
  $region8: #{pallas_forward.5} parent=0 // loop_exit
    _

// kernel: pallas_forward.7
$region0: #{pallas_forward.7}
  #allocation0 [shape = 'u32[]', space=smem, size = 0x4, offset = 0x4, fixed_abs, tag = 'smem constant byte address 0x4 - core index']
  #allocation1 [shape = 'u32[144,128]{1,0:T(1,128)}', space=vmem, size = 0x12000, scoped, tag = 'internal scratch']
  %s0 = inlined_call_operand.vmem [shape: f32[2,64,64], index: 0, kind: input, shape index: {}]
  %s1 = inlined_call_operand.vmem [shape: s32[2,64,8], index: 1, kind: input, shape index: {}]
  %s2 = inlined_call_operand.vmem [shape: f32[64,128], index: 2, kind: input, shape index: {}]
  %s3 = inlined_call_operand.vmem [shape: f32[64,128], index: 3, kind: input, shape index: {}]
  %s4 = inlined_call_operand.vmem [shape: f32[1,128], index: 4, kind: input, shape index: {}]
  %s5 = inlined_call_operand.vmem [shape: f32[1,128], index: 5, kind: input, shape index: {}]
  %s6 = inlined_call_operand.vmem [shape: f32[2,64,128], index: 6, kind: output, shape index: {}]
  %s7 = sld [smem:[#allocation0]]
  $region57: #{pallas_forward.7} parent=0
    _
  %s9 = ssub.s32 1, %s7
  %s10 = scalar_select 0, %s9, %s7
  loop: start=0, step=1, limit=6
  $region2: #{pallas_forward.7} parent=0 // loop_pre_header
    _
  $region3: #{pallas_forward.7} parent=0 // loop_header
    %s12 = sphi 0, %s16
    %p13 = scmp.ge.s32.totalorder %s12, 6
    %s19 = sphi 0, %s31
    %s20 = sphi 0, %s27
    %s21 = sphi 0, %s19
    %s22 = sphi 0, %s20
    %s23 = sphi 0, %s21
    %s24 = sphi 0, %s22
    %s34 = sphi 0, %s36
    %s37 = sphi 0, %s34
    %s38 = sphi 0, %s37
    %s54 = sphi 0, %s38
    %s62 = sphi 0, %s64
    %s65 = sphi 0, %s62
    %s66 = sphi 0, %s65
    %s82 = sphi 0, %s66
    %s86 = sphi 0, %s86
    %s88 = sphi 0, %s86
    %s89 = sphi 0, %s88
    %s103 = sphi 0, %s89
    %s107 = sphi 0, %s107
    %s109 = sphi 0, %s107
    %s110 = sphi 0, %s109
    %s124 = sphi 0, %s110
    %s128 = sphi 0, %s128
    %s130 = sphi 0, %s128
    %s131 = sphi 0, %s130
    %s145 = sphi 0, %s131
    %s149 = sphi 0, %s149
    %s151 = sphi 0, %s149
    %s152 = sphi 0, %s151
    %s166 = sphi 0, %s152
    %s174 = sphi 0, %s176
    %s177 = sphi 0, %s174
    %s178 = sphi 0, %s177
    %s194 = sphi 0, %s178
  $region4: #{pallas_forward.7} parent=0 // loop_header_branch
    %15 = sbr.rel (%p13) target = $region8
  $region5: #{pallas_forward.7} parent=0 // loop_body
    %s17 = ssub.s32 %s12, 1
    %s18 = ssub.s32 %s12, 2
    %s25 = sadd.s32 1, %s20
    %p26 = scmp.ge.s32.totalorder %s25, 2
    %s27 = scalar_select %p26, 0, %s25
    %s28 = sadd.s32 1, %s19
    %s29 = scalar_select %p26, %s28, %s19
    %p30 = scmp.ge.s32.totalorder %s29, 2
    %s31 = scalar_select %p30, 0, %s29
    %s32 = ssub.s32 %s19, %s31
    %p33 = scmp.eq.s32.totalorder %s32, 0
    %s35 = sadd.s32 %s34, 1
    %s36 = scalar_select %p33, %s34, %s35
    %p39 = pneg %p33
    %p40 = scmp.eq.s32.totalorder %s12, 3
    %p41 = por %p39, %p40
    %p42 = scmp.ne.s32.totalorder %s34, %s37
    %p43 = scmp.eq.s32.totalorder %s12, 0
    %p44 = por %p42, %p43
    %p45 = scmp.ne.s32.totalorder %s34, %s37
    %p46 = scmp.eq.s32.totalorder %s17, 3
    %p47 = por %p45, %p46
    %p48 = scmp.ne.s32.totalorder %s37, %s38
    %p49 = scmp.eq.s32.totalorder %s17, 0
    %p50 = por %p48, %p49
    %p51 = scmp.ne.s32.totalorder %s37, %s38
    %p52 = scmp.eq.s32.totalorder %s18, 3
    %p53 = por %p51, %p52
    %p55 = scmp.ne.s32.totalorder %s38, %s54
    %p56 = scmp.eq.s32.totalorder %s18, 0
    %p57 = por %p55, %p56
    %s58 = ssub.s32 %s19, %s31
    %s59 = ssub.s32 %s20, %s27
    %s60 = sor.u32 %s58, %s59
    %p61 = scmp.eq.s32.totalorder %s60, 0
    %s63 = sadd.s32 %s62, 1
    %s64 = scalar_select %p61, %s62, %s63
    %p67 = pneg %p61
    %p68 = scmp.eq.s32.totalorder %s12, 3
    %p69 = por %p67, %p68
    %p70 = scmp.ne.s32.totalorder %s62, %s65
    %p71 = scmp.eq.s32.totalorder %s12, 0
    %p72 = por %p70, %p71
    %p73 = scmp.ne.s32.totalorder %s62, %s65
    %p74 = scmp.eq.s32.totalorder %s17, 3
    %p75 = por %p73, %p74
    %p76 = scmp.ne.s32.totalorder %s65, %s66
    %p77 = scmp.eq.s32.totalorder %s17, 0
    %p78 = por %p76, %p77
    %p79 = scmp.ne.s32.totalorder %s65, %s66
    %p80 = scmp.eq.s32.totalorder %s18, 3
    %p81 = por %p79, %p80
    %p83 = scmp.ne.s32.totalorder %s66, %s82
    %p84 = scmp.eq.s32.totalorder %s18, 0
    %p85 = por %p83, %p84
    %s87 = sadd.s32 %s86, 1
    %p90 = scmp.eq.s32.totalorder %s12, 3
    %p91 = scmp.ne.s32.totalorder %s86, %s88
    %p92 = scmp.eq.s32.totalorder %s12, 0
    %p93 = por %p91, %p92
    %p94 = scmp.ne.s32.totalorder %s86, %s88
    %p95 = scmp.eq.s32.totalorder %s17, 3
    %p96 = por %p94, %p95
    %p97 = scmp.ne.s32.totalorder %s88, %s89
    %p98 = scmp.eq.s32.totalorder %s17, 0
    %p99 = por %p97, %p98
    %p100 = scmp.ne.s32.totalorder %s88, %s89
    %p101 = scmp.eq.s32.totalorder %s18, 3
    %p102 = por %p100, %p101
    %p104 = scmp.ne.s32.totalorder %s89, %s103
    %p105 = scmp.eq.s32.totalorder %s18, 0
    %p106 = por %p104, %p105
    %s108 = sadd.s32 %s107, 1
    %p111 = scmp.eq.s32.totalorder %s12, 3
    %p112 = scmp.ne.s32.totalorder %s107, %s109
    %p113 = scmp.eq.s32.totalorder %s12, 0
    %p114 = por %p112, %p113
    %p115 = scmp.ne.s32.totalorder %s107, %s109
    %p116 = scmp.eq.s32.totalorder %s17, 3
    %p117 = por %p115, %p116
    %p118 = scmp.ne.s32.totalorder %s109, %s110
    %p119 = scmp.eq.s32.totalorder %s17, 0
    %p120 = por %p118, %p119
    %p121 = scmp.ne.s32.totalorder %s109, %s110
    %p122 = scmp.eq.s32.totalorder %s18, 3
    %p123 = por %p121, %p122
    %p125 = scmp.ne.s32.totalorder %s110, %s124
    %p126 = scmp.eq.s32.totalorder %s18, 0
    %p127 = por %p125, %p126
    %s129 = sadd.s32 %s128, 1
    %p132 = scmp.eq.s32.totalorder %s12, 3
    %p133 = scmp.ne.s32.totalorder %s128, %s130
    %p134 = scmp.eq.s32.totalorder %s12, 0
    %p135 = por %p133, %p134
    %p136 = scmp.ne.s32.totalorder %s128, %s130
    %p137 = scmp.eq.s32.totalorder %s17, 3
    %p138 = por %p136, %p137
    %p139 = scmp.ne.s32.totalorder %s130, %s131
    %p140 = scmp.eq.s32.totalorder %s17, 0
    %p141 = por %p139, %p140
    %p142 = scmp.ne.s32.totalorder %s130, %s131
    %p143 = scmp.eq.s32.totalorder %s18, 3
    %p144 = por %p142, %p143
    %p146 = scmp.ne.s32.totalorder %s131, %s145
    %p147 = scmp.eq.s32.totalorder %s18, 0
    %p148 = por %p146, %p147
    %s150 = sadd.s32 %s149, 1
    %p153 = scmp.eq.s32.totalorder %s12, 3
    %p154 = scmp.ne.s32.totalorder %s149, %s151
    %p155 = scmp.eq.s32.totalorder %s12, 0
    %p156 = por %p154, %p155
    %p157 = scmp.ne.s32.totalorder %s149, %s151
    %p158 = scmp.eq.s32.totalorder %s17, 3
    %p159 = por %p157, %p158
    %p160 = scmp.ne.s32.totalorder %s151, %s152
    %p161 = scmp.eq.s32.totalorder %s17, 0
    %p162 = por %p160, %p161
    %p163 = scmp.ne.s32.totalorder %s151, %s152
    %p164 = scmp.eq.s32.totalorder %s18, 3
    %p165 = por %p163, %p164
    %p167 = scmp.ne.s32.totalorder %s152, %s166
    %p168 = scmp.eq.s32.totalorder %s18, 0
    %p169 = por %p167, %p168
    %s170 = ssub.s32 %s19, %s31
    %s171 = ssub.s32 %s20, %s27
    %s172 = sor.u32 %s170, %s171
    %p173 = scmp.eq.s32.totalorder %s172, 0
    %s175 = sadd.s32 %s174, 1
    %s176 = scalar_select %p173, %s174, %s175
    %p179 = pneg %p173
    %p180 = scmp.eq.s32.totalorder %s12, 3
    %p181 = por %p179, %p180
    %p182 = scmp.ne.s32.totalorder %s174, %s177
    %p183 = scmp.eq.s32.totalorder %s12, 0
    %p184 = por %p182, %p183
    %p185 = scmp.ne.s32.totalorder %s174, %s177
    %p186 = scmp.eq.s32.totalorder %s17, 3
    %p187 = por %p185, %p186
    %p188 = scmp.ne.s32.totalorder %s177, %s178
    %p189 = scmp.eq.s32.totalorder %s17, 0
    %p190 = por %p188, %p189
    %p191 = scmp.ne.s32.totalorder %s177, %s178
    %p192 = scmp.eq.s32.totalorder %s18, 3
    %p193 = por %p191, %p192
    %p195 = scmp.ne.s32.totalorder %s178, %s194
    %p196 = scmp.eq.s32.totalorder %s18, 0
    %p197 = por %p195, %p196
    %p198 = scmp.le.s32.totalorder 1, %s12
    %p199 = scmp.lt.s32.totalorder %s12, 5
    %p200 = pnand %p198, %p199
    %p201 = pneg %p200
    // Predicated region
    $region9: #{pallas_forward.7} parent=5 // pred_check
      _
    $region10: #{pallas_forward.7} parent=5 // pred_check_branch
      %203 = sbr.rel (%p200) target = $region12
    $region11: #{pallas_forward.7} parent=5 // pred_region
      %s204 = ssub.s32 %s12, 1
      // Predicated region
      $region13: #{pallas_forward.7} parent=11 // pred_check
        %p205 = pneg %p99
      $region14: #{pallas_forward.7} parent=11 // pred_check_branch
        %207 = sbr.rel (%p205) target = $region16
      $region15: #{pallas_forward.7} parent=11 // pred_region
        _
      $region16: #{pallas_forward.7} parent=11 // pred_fallthru
        _
      // Predicated region
      $region17: #{pallas_forward.7} parent=11 // pred_check
        %p208 = pneg %p120
      $region18: #{pallas_forward.7} parent=11 // pred_check_branch
        %210 = sbr.rel (%p208) target = $region20
      $region19: #{pallas_forward.7} parent=11 // pred_region
        _
      $region20: #{pallas_forward.7} parent=11 // pred_fallthru
        _
      // Predicated region
      $region21: #{pallas_forward.7} parent=11 // pred_check
        %p211 = pneg %p141
      $region22: #{pallas_forward.7} parent=11 // pred_check_branch
        %213 = sbr.rel (%p211) target = $region24
      $region23: #{pallas_forward.7} parent=11 // pred_region
        _
      $region24: #{pallas_forward.7} parent=11 // pred_fallthru
        _
      // Predicated region
      $region25: #{pallas_forward.7} parent=11 // pred_check
        %p214 = pneg %p162
      $region26: #{pallas_forward.7} parent=11 // pred_check_branch
        %216 = sbr.rel (%p214) target = $region28
      $region27: #{pallas_forward.7} parent=11 // pred_region
        _
      $region28: #{pallas_forward.7} parent=11 // pred_fallthru
        _
    $region12: #{pallas_forward.7} parent=5 // pred_fallthru
      _
    %p217 = scmp.lt.s32.totalorder %s12, 4
    // Predicated region
    $region29: #{pallas_forward.7} parent=5 // pred_check
      %p218 = pneg %p217
    $region30: #{pallas_forward.7} parent=5 // pred_check_branch
      %220 = sbr.rel (%p218) target = $region32
    $region31: #{pallas_forward.7} parent=5 // pred_region
      // Predicated region
      $region33: #{pallas_forward.7} parent=31 // pred_check
        %p221 = pneg %p44
      $region34: #{pallas_forward.7} parent=31 // pred_check_branch
        %223 = sbr.rel (%p221) target = $region36
      $region35: #{pallas_forward.7} parent=31 // pred_region
        %p224 = scmp.lt.s32.totalorder %s19, 1
        %s225 = scalar_select %p224, %s19, 1
        %s226 = smul.addr %s225, 8
        %s227 = smul.addr %s226, 8
        %s228 = scalar_lea.vmem %s0, %s227
      $region36: #{pallas_forward.7} parent=31 // pred_fallthru
        _
      // Predicated region
      $region37: #{pallas_forward.7} parent=31 // pred_check
        %p229 = pneg %p72
      $region38: #{pallas_forward.7} parent=31 // pred_check_branch
        %231 = sbr.rel (%p229) target = $region40
      $region39: #{pallas_forward.7} parent=31 // pred_region
        %s232 = smul.u32 4, %s20
        %p233 = scmp.lt.s32.totalorder %s19, 1
        %s234 = scalar_select %p233, %s19, 1
        %p235 = scmp.lt.s32.totalorder %s232, 7
        %s236 = scalar_select %p235, %s232, 7
        %s237 = smul.addr %s234, 8
        %s238 = sadd.s32 %s236, %s237
        %s239 = smul.addr %s238, 8
        %s240 = scalar_lea.vmem %s1, %s239
        %s241 = smul.u32 4, %s20
      $region40: #{pallas_forward.7} parent=31 // pred_fallthru
        _
    $region32: #{pallas_forward.7} parent=5 // pred_fallthru
      _
    %p242 = scmp.le.s32.totalorder 1, %s12
    %p243 = scmp.lt.s32.totalorder %s12, 5
    %p244 = pnand %p242, %p243
    %p245 = pneg %p244
    // Predicated region
    $region41: #{pallas_forward.7} parent=5 // pred_check
      _
    $region42: #{pallas_forward.7} parent=5 // pred_check_branch
      %247 = sbr.rel (%p244) target = $region44
    $region43: #{pallas_forward.7} parent=5 // pred_region
      %s248 = ssub.s32 %s12, 1
      %p249 = scmp.lt.s32.totalorder %s21, 1
      %s250 = scalar_select %p249, %s21, 1
      %s251 = smul.addr %s250, 8
      %s252 = smul.addr %s251, 8
      %s253 = scalar_lea.vmem %s0, %s252
      %p254 = pneg %p50
      %p255 = pneg %p47
      %s256 = smul.u32 4, %s22
      %p257 = scmp.lt.s32.totalorder %s21, 1
      %s258 = scalar_select %p257, %s21, 1
      %p259 = scmp.lt.s32.totalorder %s256, 7
      %s260 = scalar_select %p259, %s256, 7
      %s261 = smul.addr %s258, 8
      %s262 = sadd.s32 %s260, %s261
      %s263 = smul.addr %s262, 8
      %s264 = scalar_lea.vmem %s1, %s263
      %p265 = pneg %p78
      %p266 = pneg %p75
      %p267 = pneg %p99
      %p268 = pneg %p96
      %p269 = pneg %p120
      %p270 = pneg %p117
      %p271 = pneg %p141
      %p272 = pneg %p138
      %p273 = pneg %p162
      %p274 = pneg %p159
      %p275 = pneg %p190
      %p276 = pneg %p187
      %s277 = smul.u32 4, %s22
      %p278 = scmp.lt.s32.totalorder %s21, 1
      %s279 = scalar_select %p278, %s21, 1
      %p280 = scmp.lt.s32.totalorder %s277, 7
      %s281 = scalar_select %p280, %s277, 7
      %s282 = smul.addr %s279, 8
      %s283 = sadd.s32 %s281, %s282
      %s284 = smul.addr %s283, 8
      %s285 = scalar_lea.vmem %s6, %s284
      %p286 = scmp.lt.s32.totalorder %s21, 1
      %s287 = scalar_select %p286, %s21, 1
      %s288 = smul.addr %s287, 8
      %s289 = smul.addr %s288, 8
      %s290 = scalar_lea.vmem %s0, %s289
      %s291 = smul.u32 4, %s22
      %p292 = scmp.lt.s32.totalorder %s21, 1
      %s293 = scalar_select %p292, %s21, 1
      %p294 = scmp.lt.s32.totalorder %s291, 7
      %s295 = scalar_select %p294, %s291, 7
      %s296 = smul.addr %s293, 8
      %s297 = sadd.s32 %s295, %s296
      %s298 = smul.addr %s297, 8
      %s299 = scalar_lea.vmem %s1, %s298
      %s300 = smul.u32 4, %s22
      %s301 = smul.u32 4, %s22
      %p302 = scmp.lt.s32.totalorder %s21, 1
      %s303 = scalar_select %p302, %s21, 1
      %p304 = scmp.lt.s32.totalorder %s301, 7
      %s305 = scalar_select %p304, %s301, 7
      %s306 = smul.addr %s303, 8
      %s307 = sadd.s32 %s305, %s306
      %s308 = smul.addr %s307, 8
      %s309 = scalar_lea.vmem %s6, %s308
      %s310 = smul.u32 4, %s22
      %v311 = vld [vmem:[%s290] sm:$0xff]
      %v312 = vld [vmem:[%s290 + $0x8] sm:$0xff]
      %v313 = vld [vmem:[%s290 + $0x10] sm:$0xff]
      %v314 = vld [vmem:[%s290 + $0x18] sm:$0xff]
      %v315 = vld [vmem:[%s290 + $0x20] sm:$0xff]
      %v316 = vld [vmem:[%s290 + $0x28] sm:$0xff]
      %v317 = vld [vmem:[%s290 + $0x30] sm:$0xff]
      %v318 = vld [vmem:[%s290 + $0x38] sm:$0xff]
      %v319 = vld [vmem:[%s2] sm:$0xff]
      %v320 = vld [vmem:[%s2 + $0x8] sm:$0xff]
      %v321 = vld [vmem:[%s2 + $0x10] sm:$0xff]
      %v322 = vld [vmem:[%s2 + $0x18] sm:$0xff]
      %v323 = vld [vmem:[%s2 + $0x20] sm:$0xff]
      %v324 = vld [vmem:[%s2 + $0x28] sm:$0xff]
      %v325 = vld [vmem:[%s2 + $0x30] sm:$0xff]
      %v326 = vld [vmem:[%s2 + $0x38] sm:$0xff]
      %v327 = vld [vmem:[%s4] sm:$0x1]
      %v328 = vld [vmem:[%s5] sm:$0x1]
      %s329 = smul.u32 %s22, 32
      %s330 = scalar_lea.vmem %s290, %s329
      %v331 = vld [vmem:[%s330] sm:$0xff]
      %v332 = vld [vmem:[%s330 + $0x8] sm:$0xff]
      %v333 = vld [vmem:[%s330 + $0x10] sm:$0xff]
      %v334 = vld [vmem:[%s330 + $0x18] sm:$0xff]
      %v335 = vld [vmem:[%s299] sm:$0xff]
      %v336 = vld [vmem:[%s299 + $0x8] sm:$0xff]
      %v337 = vld [vmem:[%s299 + $0x10] sm:$0xff]
      %v338 = vld [vmem:[%s299 + $0x18] sm:$0xff]
      %v339 = vld [vmem:[%s3] sm:$0xff]
      %v340 = vld [vmem:[%s3 + $0x8] sm:$0xff]
      %v341 = vld [vmem:[%s3 + $0x10] sm:$0xff]
      %v342 = vld [vmem:[%s3 + $0x18] sm:$0xff]
      %v343 = vld [vmem:[%s3 + $0x20] sm:$0xff]
      %v344 = vld [vmem:[%s3 + $0x28] sm:$0xff]
      %v345 = vld [vmem:[%s3 + $0x30] sm:$0xff]
      %v346 = vld [vmem:[%s3 + $0x38] sm:$0xff]
      %vm347 = vcmask 523264
      %v349 = vsel %vm347, %v331, 0
      %v352 = vsel %vm347, %v332, 0
      %v355 = vsel %vm347, %v333, 0
      %v358 = vsel %vm347, %v334, 0
      %360 = vmatprep.subr.mxu0 0.0
      %361 = vmatpush1.msra.mxu0 %v339
      %362 = vmatprep.subr.mxu0 0.0
      %363 = vmatpush1.msra.mxu0 %v340
      %364 = vmatprep.subr.mxu0 0.0
      %365 = vmatpush1.msra.mxu0 %v341
      %366 = vmatprep.subr.mxu0 0.0
      %367 = vmatpush1.msra.mxu0 %v342
      %368 = vmatprep.subr.mxu0 0.0
      %369 = vmatpush1.msra.mxu0 %v343
      %370 = vmatprep.subr.mxu0 0.0
      %371 = vmatpush1.msra.mxu0 %v344
      %372 = vmatprep.subr.mxu0 0.0
      %373 = vmatpush1.msra.mxu0 %v345
      %374 = vmatprep.subr.mxu0 0.0
      %375 = vmatpush1.msra.mxu0 %v346
      %376 = vmatprep.subr.mxu0 0.0
      %377 = vmatpush1.msra.mxu0 0.0
      %378 = vmatprep.subr.mxu0 0.0
      %379 = vmatpush1.msra.mxu0 0.0
      %380 = vmatprep.subr.mxu0 0.0
      %381 = vmatpush1.msra.mxu0 0.0
      %382 = vmatprep.subr.mxu0 0.0
      %383 = vmatpush1.msra.mxu0 0.0
      %384 = vmatprep.subr.mxu0 0.0
      %385 = vmatpush1.msra.mxu0 0.0
      %386 = vmatprep.subr.mxu0 0.0
      %387 = vmatpush1.msra.mxu0 0.0
      %388 = vmatprep.subr.mxu0 0.0
      %389 = vmatpush1.msra.mxu0 0.0
      %390 = vmatprep.subr.mxu0 0.0
      %391 = vmatpush1.msra.mxu0 0.0
      %392 = vmatprep.subr.mxu0 0.0
      %393 = vmatpush1.msra.mxu0 0.0
      %394 = vmatprep.subr.mxu0 0.0
      %395 = vmatpush1.msra.mxu0 0.0
      %396 = vmatprep.subr.mxu0 0.0
      %397 = vmatpush1.msra.mxu0 0.0
      %398 = vmatprep.subr.mxu0 0.0
      %399 = vmatpush1.msra.mxu0 0.0
      %400 = vmatprep.subr.mxu0 0.0
      %401 = vmatpush1.msra.mxu0 0.0
      %402 = vmatprep.subr.mxu0 0.0
      %403 = vmatpush1.msra.mxu0 0.0
      %404 = vmatprep.subr.mxu0 0.0
      %405 = vmatpush1.msra.mxu0 0.0
      %406 = vmatprep.subr.mxu0 0.0
      %407 = vmatpush1.msra.mxu0 0.0
      %408 = vmatprep.subr.mxu0 0.0
      %409 = vmatpush1.msra.mxu0 0.0
      %410 = vmatprep.subr.mxu0 0.0
      %411 = vmatpush1.msra.mxu0 0.0
      %412 = vmatprep.subr.mxu0 0.0
      %413 = vmatpush1.msra.mxu0 0.0
      %414 = vmatprep.subr.mxu0 0.0
      %415 = vmatpush1.msra.mxu0 0.0
      %416 = vmatprep.subr.mxu0 0.0
      %417 = vmatpush1.msra.mxu0 0.0
      %418 = vmatprep.subr.mxu0 0.0
      %419 = vmatpush1.msra.mxu0 0.0
      %420 = vmatprep.subr.mxu0 0.0
      %421 = vmatpush1.msra.mxu0 0.0
      %422 = vmatprep.subr.mxu0 0.0
      %423 = vmatpush1.msra.mxu0 0.0
      %424 = vmatprep.mubr.f32.mxu0 0.0
      %425 = vmatmul.mubr.f32.gmra.mrb[0].mxu0 %v349
      %v426 = vpop.f32.mrb[0].mxu0
      %v427 = vadd.f32 0.0, %v426
      %v428 = vpop.f32.mrb[0].mxu0
      %429 = vmatprep.mubr.f32.mxu0 0.0
      %430 = vmatmul.mubr.f32.gmra.mrb[0].mxu0 %v352
      %v431 = vpop.f32.mrb[0].mxu0
      %v432 = vadd.f32 0.0, %v431
      %v433 = vpop.f32.mrb[0].mxu0
      %434 = vmatprep.mubr.f32.mxu0 0.0
      %435 = vmatmul.mubr.f32.gmra.mrb[0].mxu0 %v355
      %v436 = vpop.f32.mrb[0].mxu0
      %v437 = vadd.f32 0.0, %v436
      %v438 = vpop.f32.mrb[0].mxu0
      %439 = vmatprep.mubr.f32.mxu0 0.0
      %440 = vmatmul.mubr.f32.gmra.mrb[0].mxu0 %v358
      %v441 = vpop.f32.mrb[0].mxu0
      %v442 = vadd.f32 0.0, %v441
      %v443 = vpop.f32.mrb[0].mxu0
      %444 = vdwg.mxu0
      %v446 = vlaneseq
      %v447 = vshrl.u32 %v446, 7
      %v448 = vsub.s32 0, %v447
      %v449 = vrot.slane %v327, %v448
      %v451 = vmul.f32 %v427, %v449
      %v452 = vmul.f32 %v432, %v449
      %v453 = vmul.f32 %v437, %v449
      %v454 = vmul.f32 %v442, %v449
      %v456 = vlaneseq
      %v457 = vshrl.u32 %v456, 7
      %v458 = vsub.s32 0, %v457
      %v459 = vrot.slane %v328, %v458
      %v461 = vadd.f32 %v451, %v459
      %v462 = vadd.f32 %v452, %v459
      %v463 = vadd.f32 %v453, %v459
      %v464 = vadd.f32 %v454, %v459
      %v466 = vsel %vm347, %v311, 0
      %v469 = vsel %vm347, %v312, 0
      %v472 = vsel %vm347, %v313, 0
      %v475 = vsel %vm347, %v314, 0
      %v478 = vsel %vm347, %v315, 0
      %v481 = vsel %vm347, %v316, 0
      %v484 = vsel %vm347, %v317, 0
      %v487 = vsel %vm347, %v318, 0
      %489 = vmatprep.subr.mxu0 0.0
      %490 = vmatpush1.msra.mxu0 %v319
      %491 = vmatprep.subr.mxu0 0.0
      %492 = vmatpush1.msra.mxu0 %v320
      %493 = vmatprep.subr.mxu0 0.0
      %494 = vmatpush1.msra.mxu0 %v321
      %495 = vmatprep.subr.mxu0 0.0
      %496 = vmatpush1.msra.mxu0 %v322
      %497 = vmatprep.subr.mxu0 0.0
      %498 = vmatpush1.msra.mxu0 %v323
      %499 = vmatprep.subr.mxu0 0.0
      %500 = vmatpush1.msra.mxu0 %v324
      %501 = vmatprep.subr.mxu0 0.0
      %502 = vmatpush1.msra.mxu0 %v325
      %503 = vmatprep.subr.mxu0 0.0
      %504 = vmatpush1.msra.mxu0 %v326
      %505 = vmatprep.subr.mxu0 0.0
      %506 = vmatpush1.msra.mxu0 0.0
      %507 = vmatprep.subr.mxu0 0.0
      %508 = vmatpush1.msra.mxu0 0.0
      %509 = vmatprep.subr.mxu0 0.0
      %510 = vmatpush1.msra.mxu0 0.0
      %511 = vmatprep.subr.mxu0 0.0
      %512 = vmatpush1.msra.mxu0 0.0
      %513 = vmatprep.subr.mxu0 0.0
      %514 = vmatpush1.msra.mxu0 0.0
      %515 = vmatprep.subr.mxu0 0.0
      %516 = vmatpush1.msra.mxu0 0.0
      %517 = vmatprep.subr.mxu0 0.0
      %518 = vmatpush1.msra.mxu0 0.0
      %519 = vmatprep.subr.mxu0 0.0
      %520 = vmatpush1.msra.mxu0 0.0
      %521 = vmatprep.subr.mxu0 0.0
      %522 = vmatpush1.msra.mxu0 0.0
      %523 = vmatprep.subr.mxu0 0.0
      %524 = vmatpush1.msra.mxu0 0.0
      %525 = vmatprep.subr.mxu0 0.0
      %526 = vmatpush1.msra.mxu0 0.0
      %527 = vmatprep.subr.mxu0 0.0
      %528 = vmatpush1.msra.mxu0 0.0
      %529 = vmatprep.subr.mxu0 0.0
      %530 = vmatpush1.msra.mxu0 0.0
      %531 = vmatprep.subr.mxu0 0.0
      %532 = vmatpush1.msra.mxu0 0.0
      %533 = vmatprep.subr.mxu0 0.0
      %534 = vmatpush1.msra.mxu0 0.0
      %535 = vmatprep.subr.mxu0 0.0
      %536 = vmatpush1.msra.mxu0 0.0
      %537 = vmatprep.subr.mxu0 0.0
      %538 = vmatpush1.msra.mxu0 0.0
      %539 = vmatprep.subr.mxu0 0.0
      %540 = vmatpush1.msra.mxu0 0.0
      %541 = vmatprep.subr.mxu0 0.0
      %542 = vmatpush1.msra.mxu0 0.0
      %543 = vmatprep.subr.mxu0 0.0
      %544 = vmatpush1.msra.mxu0 0.0
      %545 = vmatprep.subr.mxu0 0.0
      %546 = vmatpush1.msra.mxu0 0.0
      %547 = vmatprep.subr.mxu0 0.0
      %548 = vmatpush1.msra.mxu0 0.0
      %549 = vmatprep.subr.mxu0 0.0
      %550 = vmatpush1.msra.mxu0 0.0
      %551 = vmatprep.subr.mxu0 0.0
      %552 = vmatpush1.msra.mxu0 0.0
      %553 = vmatprep.mubr.f32.mxu0 0.0
      %554 = vmatmul.mubr.f32.gmra.mrb[0].mxu0 %v466
      %v555 = vpop.f32.mrb[0].mxu0
      %v556 = vadd.f32 0.0, %v555
      %v557 = vpop.f32.mrb[0].mxu0
      %558 = vmatprep.mubr.f32.mxu0 0.0
      %559 = vmatmul.mubr.f32.gmra.mrb[0].mxu0 %v469
      %v560 = vpop.f32.mrb[0].mxu0
      %v561 = vadd.f32 0.0, %v560
      %v562 = vpop.f32.mrb[0].mxu0
      %563 = vmatprep.mubr.f32.mxu0 0.0
      %564 = vmatmul.mubr.f32.gmra.mrb[0].mxu0 %v472
      %v565 = vpop.f32.mrb[0].mxu0
      %v566 = vadd.f32 0.0, %v565
      %v567 = vpop.f32.mrb[0].mxu0
      %568 = vmatprep.mubr.f32.mxu0 0.0
      %569 = vmatmul.mubr.f32.gmra.mrb[0].mxu0 %v475
      %v570 = vpop.f32.mrb[0].mxu0
      %v571 = vadd.f32 0.0, %v570
      %v572 = vpop.f32.mrb[0].mxu0
      %573 = vmatprep.mubr.f32.mxu0 0.0
      %574 = vmatmul.mubr.f32.gmra.mrb[0].mxu0 %v478
      %v575 = vpop.f32.mrb[0].mxu0
      %v576 = vadd.f32 0.0, %v575
      %v577 = vpop.f32.mrb[0].mxu0
      %578 = vmatprep.mubr.f32.mxu0 0.0
      %579 = vmatmul.mubr.f32.gmra.mrb[0].mxu0 %v481
      %v580 = vpop.f32.mrb[0].mxu0
      %v581 = vadd.f32 0.0, %v580
      %v582 = vpop.f32.mrb[0].mxu0
      %583 = vmatprep.mubr.f32.mxu0 0.0
      %584 = vmatmul.mubr.f32.gmra.mrb[0].mxu0 %v484
      %v585 = vpop.f32.mrb[0].mxu0
      %v586 = vadd.f32 0.0, %v585
      %v587 = vpop.f32.mrb[0].mxu0
      %588 = vmatprep.mubr.f32.mxu0 0.0
      %589 = vmatmul.mubr.f32.gmra.mrb[0].mxu0 %v487
      %v590 = vpop.f32.mrb[0].mxu0
      %v591 = vadd.f32 0.0, %v590
      %v592 = vpop.f32.mrb[0].mxu0
      %593 = vdwg.mxu0
      %v594 = vlaneseq
      %v595 = vand.u32 %v594, 127
      %596 = vset.pattern.permute.xlu0 0
      %597 = vperm.xlu0 %596, %v335
      %v598 = vpop.permute.xlu0 %597
      %599 = vset.pattern.permute.xlu0 0
      %600 = vperm.xlu0 %599, %v336
      %v601 = vpop.permute.xlu0 %600
      %602 = vset.pattern.permute.xlu0 0
      %603 = vperm.xlu0 %602, %v337
      %v604 = vpop.permute.xlu0 %603
      %605 = vset.pattern.permute.xlu0 0
      %606 = vperm.xlu0 %605, %v338
      %v607 = vpop.permute.xlu0 %606
      %vm608 = vcmp.eq.s32.totalorder %v598, %v595
      %vm609 = vcmp.eq.s32.totalorder %v601, %v595
      %vm610 = vcmp.eq.s32.totalorder %v604, %v595
      %vm611 = vcmp.eq.s32.totalorder %v607, %v595
      %v612 = vsel %vm608, 1.0, 0.0
      %v613 = vsel %vm609, 1.0, 0.0
      %v614 = vsel %vm610, 1.0, 0.0
      %v615 = vsel %vm611, 1.0, 0.0
      %616 = vset.pattern.permute.xlu0 1
      %617 = vperm.xlu0 %616, %v335
      %v618 = vpop.permute.xlu0 %617
      %619 = vset.pattern.permute.xlu0 1
      %620 = vperm.xlu0 %619, %v336
      %v621 = vpop.permute.xlu0 %620
      %622 = vset.pattern.permute.xlu0 1
      %623 = vperm.xlu0 %622, %v337
      %v624 = vpop.permute.xlu0 %623
      %625 = vset.pattern.permute.xlu0 1
      %626 = vperm.xlu0 %625, %v338
      %v627 = vpop.permute.xlu0 %626
      %vm628 = vcmp.eq.s32.totalorder %v618, %v595
      %vm629 = vcmp.eq.s32.totalorder %v621, %v595
      %vm630 = vcmp.eq.s32.totalorder %v624, %v595
      %vm631 = vcmp.eq.s32.totalorder %v627, %v595
      %v632 = vsel %vm628, 1.0, 0.0
      %v633 = vsel %vm629, 1.0, 0.0
      %v634 = vsel %vm630, 1.0, 0.0
      %v635 = vsel %vm631, 1.0, 0.0
      %636 = vset.pattern.permute.xlu0 2
      %637 = vperm.xlu0 %636, %v335
      %v638 = vpop.permute.xlu0 %637
      %639 = vset.pattern.permute.xlu0 2
      %640 = vperm.xlu0 %639, %v336
      %v641 = vpop.permute.xlu0 %640
      %642 = vset.pattern.permute.xlu0 2
      %643 = vperm.xlu0 %642, %v337
      %v644 = vpop.permute.xlu0 %643
      %645 = vset.pattern.permute.xlu0 2
      %646 = vperm.xlu0 %645, %v338
      %v647 = vpop.permute.xlu0 %646
      %vm648 = vcmp.eq.s32.totalorder %v638, %v595
      %vm649 = vcmp.eq.s32.totalorder %v641, %v595
      %vm650 = vcmp.eq.s32.totalorder %v644, %v595
      %vm651 = vcmp.eq.s32.totalorder %v647, %v595
      %v652 = vsel %vm648, 1.0, 0.0
      %v653 = vsel %vm649, 1.0, 0.0
      %v654 = vsel %vm650, 1.0, 0.0
      %v655 = vsel %vm651, 1.0, 0.0
      %656 = vset.pattern.permute.xlu0 3
      %657 = vperm.xlu0 %656, %v335
      %v658 = vpop.permute.xlu0 %657
      %659 = vset.pattern.permute.xlu0 3
      %660 = vperm.xlu0 %659, %v336
      %v661 = vpop.permute.xlu0 %660
      %662 = vset.pattern.permute.xlu0 3
      %663 = vperm.xlu0 %662, %v337
      %v664 = vpop.permute.xlu0 %663
      %665 = vset.pattern.permute.xlu0 3
      %666 = vperm.xlu0 %665, %v338
      %v667 = vpop.permute.xlu0 %666
      %vm668 = vcmp.eq.s32.totalorder %v658, %v595
      %vm669 = vcmp.eq.s32.totalorder %v661, %v595
      %vm670 = vcmp.eq.s32.totalorder %v664, %v595
      %vm671 = vcmp.eq.s32.totalorder %v667, %v595
      %v672 = vsel %vm668, 1.0, 0.0
      %v673 = vsel %vm669, 1.0, 0.0
      %v674 = vsel %vm670, 1.0, 0.0
      %v675 = vsel %vm671, 1.0, 0.0
      %676 = vset.pattern.permute.xlu0 4
      %677 = vperm.xlu0 %676, %v335
      %v678 = vpop.permute.xlu0 %677
      %679 = vset.pattern.permute.xlu0 4
      %680 = vperm.xlu0 %679, %v336
      %v681 = vpop.permute.xlu0 %680
      %682 = vset.pattern.permute.xlu0 4
      %683 = vperm.xlu0 %682, %v337
      %v684 = vpop.permute.xlu0 %683
      %685 = vset.pattern.permute.xlu0 4
      %686 = vperm.xlu0 %685, %v338
      %v687 = vpop.permute.xlu0 %686
      %vm688 = vcmp.eq.s32.totalorder %v678, %v595
      %vm689 = vcmp.eq.s32.totalorder %v681, %v595
      %vm690 = vcmp.eq.s32.totalorder %v684, %v595
      %vm691 = vcmp.eq.s32.totalorder %v687, %v595
      %v692 = vsel %vm688, 1.0, 0.0
      %v693 = vsel %vm689, 1.0, 0.0
      %v694 = vsel %vm690, 1.0, 0.0
      %v695 = vsel %vm691, 1.0, 0.0
      %696 = vset.pattern.permute.xlu0 5
      %697 = vperm.xlu0 %696, %v335
      %v698 = vpop.permute.xlu0 %697
      %699 = vset.pattern.permute.xlu0 5
      %700 = vperm.xlu0 %699, %v336
      %v701 = vpop.permute.xlu0 %700
      %702 = vset.pattern.permute.xlu0 5
      %703 = vperm.xlu0 %702, %v337
      %v704 = vpop.permute.xlu0 %703
      %705 = vset.pattern.permute.xlu0 5
      %706 = vperm.xlu0 %705, %v338
      %v707 = vpop.permute.xlu0 %706
      %vm708 = vcmp.eq.s32.totalorder %v698, %v595
      %vm709 = vcmp.eq.s32.totalorder %v701, %v595
      %vm710 = vcmp.eq.s32.totalorder %v704, %v595
      %vm711 = vcmp.eq.s32.totalorder %v707, %v595
      %v712 = vsel %vm708, 1.0, 0.0
      %v713 = vsel %vm709, 1.0, 0.0
      %v714 = vsel %vm710, 1.0, 0.0
      %v715 = vsel %vm711, 1.0, 0.0
      %716 = vset.pattern.permute.xlu0 6
      %717 = vperm.xlu0 %716, %v335
      %v718 = vpop.permute.xlu0 %717
      %719 = vset.pattern.permute.xlu0 6
      %720 = vperm.xlu0 %719, %v336
      %v721 = vpop.permute.xlu0 %720
      %722 = vset.pattern.permute.xlu0 6
      %723 = vperm.xlu0 %722, %v337
      %v724 = vpop.permute.xlu0 %723
      %725 = vset.pattern.permute.xlu0 6
      %726 = vperm.xlu0 %725, %v338
      %v727 = vpop.permute.xlu0 %726
      %vm728 = vcmp.eq.s32.totalorder %v718, %v595
      %vm729 = vcmp.eq.s32.totalorder %v721, %v595
      %vm730 = vcmp.eq.s32.totalorder %v724, %v595
      %vm731 = vcmp.eq.s32.totalorder %v727, %v595
      %v732 = vsel %vm728, 1.0, 0.0
      %v733 = vsel %vm729, 1.0, 0.0
      %v734 = vsel %vm730, 1.0, 0.0
      %v735 = vsel %vm731, 1.0, 0.0
      %736 = vset.pattern.permute.xlu0 7
      %737 = vperm.xlu0 %736, %v335
      %v738 = vpop.permute.xlu0 %737
      %739 = vset.pattern.permute.xlu0 7
      %740 = vperm.xlu0 %739, %v336
      %v741 = vpop.permute.xlu0 %740
      %742 = vset.pattern.permute.xlu0 7
      %743 = vperm.xlu0 %742, %v337
      %v744 = vpop.permute.xlu0 %743
      %745 = vset.pattern.permute.xlu0 7
      %746 = vperm.xlu0 %745, %v338
      %v747 = vpop.permute.xlu0 %746
      %vm748 = vcmp.eq.s32.totalorder %v738, %v595
      %vm749 = vcmp.eq.s32.totalorder %v741, %v595
      %vm750 = vcmp.eq.s32.totalorder %v744, %v595
      %vm751 = vcmp.eq.s32.totalorder %v747, %v595
      %v752 = vsel %vm748, 1.0, 0.0
      %v753 = vsel %vm749, 1.0, 0.0
      %v754 = vsel %vm750, 1.0, 0.0
      %v755 = vsel %vm751, 1.0, 0.0
      %v757 = vsel %vm347, %v612, 0
      %v760 = vsel %vm347, %v613, 0
      %v763 = vsel %vm347, %v614, 0
      %v766 = vsel %vm347, %v615, 0
      %v769 = vsel %vm347, %v632, 0
      %v772 = vsel %vm347, %v633, 0
      %v775 = vsel %vm347, %v634, 0
      %v778 = vsel %vm347, %v635, 0
      %v781 = vsel %vm347, %v652, 0
      %v784 = vsel %vm347, %v653, 0
      %v787 = vsel %vm347, %v654, 0
      %v790 = vsel %vm347, %v655, 0
      %v793 = vsel %vm347, %v672, 0
      %v796 = vsel %vm347, %v673, 0
      %v799 = vsel %vm347, %v674, 0
      %v802 = vsel %vm347, %v675, 0
      %v805 = vsel %vm347, %v692, 0
      %v808 = vsel %vm347, %v693, 0
      %v811 = vsel %vm347, %v694, 0
      %v814 = vsel %vm347, %v695, 0
      %v817 = vsel %vm347, %v712, 0
      %v820 = vsel %vm347, %v713, 0
      %v823 = vsel %vm347, %v714, 0
      %v826 = vsel %vm347, %v715, 0
      %v829 = vsel %vm347, %v732, 0
      %v832 = vsel %vm347, %v733, 0
      %v835 = vsel %vm347, %v734, 0
      %v838 = vsel %vm347, %v735, 0
      %v841 = vsel %vm347, %v752, 0
      %v844 = vsel %vm347, %v753, 0
      %v847 = vsel %vm347, %v754, 0
      %v850 = vsel %vm347, %v755, 0
      %852 = vmatprep.subr.mxu0 0.0
      %853 = vmatpush1.msra.mxu0 %v556
      %854 = vmatprep.subr.mxu0 0.0
      %855 = vmatpush1.msra.mxu0 %v561
      %856 = vmatprep.subr.mxu0 0.0
      %857 = vmatpush1.msra.mxu0 %v566
      %858 = vmatprep.subr.mxu0 0.0
      %859 = vmatpush1.msra.mxu0 %v571
      %860 = vmatprep.subr.mxu0 0.0
      %861 = vmatpush1.msra.mxu0 %v576
      %862 = vmatprep.subr.mxu0 0.0
      %863 = vmatpush1.msra.mxu0 %v581
      %864 = vmatprep.subr.mxu0 0.0
      %865 = vmatpush1.msra.mxu0 %v586
      %866 = vmatprep.subr.mxu0 0.0
      %867 = vmatpush1.msra.mxu0 %v591
      %868 = vmatprep.subr.mxu0 0.0
      %869 = vmatpush1.msra.mxu0 0.0
      %870 = vmatprep.subr.mxu0 0.0
      %871 = vmatpush1.msra.mxu0 0.0
      %872 = vmatprep.subr.mxu0 0.0
      %873 = vmatpush1.msra.mxu0 0.0
      %874 = vmatprep.subr.mxu0 0.0
      %875 = vmatpush1.msra.mxu0 0.0
      %876 = vmatprep.subr.mxu0 0.0
      %877 = vmatpush1.msra.mxu0 0.0
      %878 = vmatprep.subr.mxu0 0.0
      %879 = vmatpush1.msra.mxu0 0.0
      %880 = vmatprep.subr.mxu0 0.0
      %881 = vmatpush1.msra.mxu0 0.0
      %882 = vmatprep.subr.mxu0 0.0
      %883 = vmatpush1.msra.mxu0 0.0
      %884 = vmatprep.subr.mxu0 0.0
      %885 = vmatpush1.msra.mxu0 0.0
      %886 = vmatprep.subr.mxu0 0.0
      %887 = vmatpush1.msra.mxu0 0.0
      %888 = vmatprep.subr.mxu0 0.0
      %889 = vmatpush1.msra.mxu0 0.0
      %890 = vmatprep.subr.mxu0 0.0
      %891 = vmatpush1.msra.mxu0 0.0
      %892 = vmatprep.subr.mxu0 0.0
      %893 = vmatpush1.msra.mxu0 0.0
      %894 = vmatprep.subr.mxu0 0.0
      %895 = vmatpush1.msra.mxu0 0.0
      %896 = vmatprep.subr.mxu0 0.0
      %897 = vmatpush1.msra.mxu0 0.0
      %898 = vmatprep.subr.mxu0 0.0
      %899 = vmatpush1.msra.mxu0 0.0
      %900 = vmatprep.subr.mxu0 0.0
      %901 = vmatpush1.msra.mxu0 0.0
      %902 = vmatprep.subr.mxu0 0.0
      %903 = vmatpush1.msra.mxu0 0.0
      %904 = vmatprep.subr.mxu0 0.0
      %905 = vmatpush1.msra.mxu0 0.0
      %906 = vmatprep.subr.mxu0 0.0
      %907 = vmatpush1.msra.mxu0 0.0
      %908 = vmatprep.subr.mxu0 0.0
      %909 = vmatpush1.msra.mxu0 0.0
      %910 = vmatprep.subr.mxu0 0.0
      %911 = vmatpush1.msra.mxu0 0.0
      %912 = vmatprep.subr.mxu0 0.0
      %913 = vmatpush1.msra.mxu0 0.0
      %914 = vmatprep.subr.mxu0 0.0
      %915 = vmatpush1.msra.mxu0 0.0
      %916 = vmatprep.mubr.f32.mxu0 0.0
      %917 = vmatmul.mubr.f32.gmra.mrb[0].mxu0 %v757
      %v918 = vpop.f32.mrb[0].mxu0
      %v919 = vadd.f32 0.0, %v918
      %v920 = vpop.f32.mrb[0].mxu0
      %921 = vmatprep.mubr.f32.mxu0 0.0
      %922 = vmatmul.mubr.f32.gmra.mrb[0].mxu0 %v760
      %v923 = vpop.f32.mrb[0].mxu0
      %v924 = vadd.f32 0.0, %v923
      %v925 = vpop.f32.mrb[0].mxu0
      %926 = vmatprep.mubr.f32.mxu0 0.0
      %927 = vmatmul.mubr.f32.gmra.mrb[0].mxu0 %v763
      %v928 = vpop.f32.mrb[0].mxu0
      %v929 = vadd.f32 0.0, %v928
      %v930 = vpop.f32.mrb[0].mxu0
      %931 = vmatprep.mubr.f32.mxu0 0.0
      %932 = vmatmul.mubr.f32.gmra.mrb[0].mxu0 %v766
      %v933 = vpop.f32.mrb[0].mxu0
      %v934 = vadd.f32 0.0, %v933
      %v935 = vpop.f32.mrb[0].mxu0
      %936 = vmatprep.mubr.f32.mxu0 0.0
      %937 = vmatmul.mubr.f32.gmra.mrb[0].mxu0 %v769
      %v938 = vpop.f32.mrb[0].mxu0
      %v939 = vadd.f32 0.0, %v938
      %v940 = vpop.f32.mrb[0].mxu0
      %941 = vmatprep.mubr.f32.mxu0 0.0
      %942 = vmatmul.mubr.f32.gmra.mrb[0].mxu0 %v772
      %v943 = vpop.f32.mrb[0].mxu0
      %v944 = vadd.f32 0.0, %v943
      %v945 = vpop.f32.mrb[0].mxu0
      %946 = vmatprep.mubr.f32.mxu0 0.0
      %947 = vmatmul.mubr.f32.gmra.mrb[0].mxu0 %v775
      %v948 = vpop.f32.mrb[0].mxu0
      %v949 = vadd.f32 0.0, %v948
      %v950 = vpop.f32.mrb[0].mxu0
      %951 = vmatprep.mubr.f32.mxu0 0.0
      %952 = vmatmul.mubr.f32.gmra.mrb[0].mxu0 %v778
      %v953 = vpop.f32.mrb[0].mxu0
      %v954 = vadd.f32 0.0, %v953
      %v955 = vpop.f32.mrb[0].mxu0
      %956 = vmatprep.mubr.f32.mxu0 0.0
      %957 = vmatmul.mubr.f32.gmra.mrb[0].mxu0 %v781
      %v958 = vpop.f32.mrb[0].mxu0
      %v959 = vadd.f32 0.0, %v958
      %v960 = vpop.f32.mrb[0].mxu0
      %961 = vmatprep.mubr.f32.mxu0 0.0
      %962 = vmatmul.mubr.f32.gmra.mrb[0].mxu0 %v784
      %v963 = vpop.f32.mrb[0].mxu0
      %v964 = vadd.f32 0.0, %v963
      %v965 = vpop.f32.mrb[0].mxu0
      %966 = vmatprep.mubr.f32.mxu0 0.0
      %967 = vmatmul.mubr.f32.gmra.mrb[0].mxu0 %v787
      %v968 = vpop.f32.mrb[0].mxu0
      %v969 = vadd.f32 0.0, %v968
      %v970 = vpop.f32.mrb[0].mxu0
      %971 = vmatprep.mubr.f32.mxu0 0.0
      %972 = vmatmul.mubr.f32.gmra.mrb[0].mxu0 %v790
      %v973 = vpop.f32.mrb[0].mxu0
      %v974 = vadd.f32 0.0, %v973
      %v975 = vpop.f32.mrb[0].mxu0
      %976 = vmatprep.mubr.f32.mxu0 0.0
      %977 = vmatmul.mubr.f32.gmra.mrb[0].mxu0 %v793
      %v978 = vpop.f32.mrb[0].mxu0
      %v979 = vadd.f32 0.0, %v978
      %v980 = vpop.f32.mrb[0].mxu0
      %981 = vmatprep.mubr.f32.mxu0 0.0
      %982 = vmatmul.mubr.f32.gmra.mrb[0].mxu0 %v796
      %v983 = vpop.f32.mrb[0].mxu0
      %v984 = vadd.f32 0.0, %v983
      %v985 = vpop.f32.mrb[0].mxu0
      %986 = vmatprep.mubr.f32.mxu0 0.0
      %987 = vmatmul.mubr.f32.gmra.mrb[0].mxu0 %v799
      %v988 = vpop.f32.mrb[0].mxu0
      %v989 = vadd.f32 0.0, %v988
      %v990 = vpop.f32.mrb[0].mxu0
      %991 = vmatprep.mubr.f32.mxu0 0.0
      %992 = vmatmul.mubr.f32.gmra.mrb[0].mxu0 %v802
      %v993 = vpop.f32.mrb[0].mxu0
      %v994 = vadd.f32 0.0, %v993
      %v995 = vpop.f32.mrb[0].mxu0
      %996 = vmatprep.mubr.f32.mxu0 0.0
      %997 = vmatmul.mubr.f32.gmra.mrb[0].mxu0 %v805
      %v998 = vpop.f32.mrb[0].mxu0
      %v999 = vadd.f32 0.0, %v998
      %v1000 = vpop.f32.mrb[0].mxu0
      %1001 = vmatprep.mubr.f32.mxu0 0.0
      %1002 = vmatmul.mubr.f32.gmra.mrb[0].mxu0 %v808
      %v1003 = vpop.f32.mrb[0].mxu0
      %v1004 = vadd.f32 0.0, %v1003
      %v1005 = vpop.f32.mrb[0].mxu0
      %1006 = vmatprep.mubr.f32.mxu0 0.0
      %1007 = vmatmul.mubr.f32.gmra.mrb[0].mxu0 %v811
      %v1008 = vpop.f32.mrb[0].mxu0
      %v1009 = vadd.f32 0.0, %v1008
      %v1010 = vpop.f32.mrb[0].mxu0
      %1011 = vmatprep.mubr.f32.mxu0 0.0
      %1012 = vmatmul.mubr.f32.gmra.mrb[0].mxu0 %v814
      %v1013 = vpop.f32.mrb[0].mxu0
      %v1014 = vadd.f32 0.0, %v1013
      %v1015 = vpop.f32.mrb[0].mxu0
      %1016 = vmatprep.mubr.f32.mxu0 0.0
      %1017 = vmatmul.mubr.f32.gmra.mrb[0].mxu0 %v817
      %v1018 = vpop.f32.mrb[0].mxu0
      %v1019 = vadd.f32 0.0, %v1018
      %v1020 = vpop.f32.mrb[0].mxu0
      %1021 = vmatprep.mubr.f32.mxu0 0.0
      %1022 = vmatmul.mubr.f32.gmra.mrb[0].mxu0 %v820
      %v1023 = vpop.f32.mrb[0].mxu0
      %v1024 = vadd.f32 0.0, %v1023
      %v1025 = vpop.f32.mrb[0].mxu0
      %1026 = vmatprep.mubr.f32.mxu0 0.0
      %1027 = vmatmul.mubr.f32.gmra.mrb[0].mxu0 %v823
      %v1028 = vpop.f32.mrb[0].mxu0
      %v1029 = vadd.f32 0.0, %v1028
      %v1030 = vpop.f32.mrb[0].mxu0
      %1031 = vmatprep.mubr.f32.mxu0 0.0
      %1032 = vmatmul.mubr.f32.gmra.mrb[0].mxu0 %v826
      %v1033 = vpop.f32.mrb[0].mxu0
      %v1034 = vadd.f32 0.0, %v1033
      %v1035 = vpop.f32.mrb[0].mxu0
      %1036 = vmatprep.mubr.f32.mxu0 0.0
      %1037 = vmatmul.mubr.f32.gmra.mrb[0].mxu0 %v829
      %v1038 = vpop.f32.mrb[0].mxu0
      %v1039 = vadd.f32 0.0, %v1038
      %v1040 = vpop.f32.mrb[0].mxu0
      %1041 = vmatprep.mubr.f32.mxu0 0.0
      %1042 = vmatmul.mubr.f32.gmra.mrb[0].mxu0 %v832
      %v1043 = vpop.f32.mrb[0].mxu0
      %v1044 = vadd.f32 0.0, %v1043
      %v1045 = vpop.f32.mrb[0].mxu0
      %1046 = vmatprep.mubr.f32.mxu0 0.0
      %1047 = vmatmul.mubr.f32.gmra.mrb[0].mxu0 %v835
      %v1048 = vpop.f32.mrb[0].mxu0
      %v1049 = vadd.f32 0.0, %v1048
      %v1050 = vpop.f32.mrb[0].mxu0
      %1051 = vmatprep.mubr.f32.mxu0 0.0
      %1052 = vmatmul.mubr.f32.gmra.mrb[0].mxu0 %v838
      %v1053 = vpop.f32.mrb[0].mxu0
      %v1054 = vadd.f32 0.0, %v1053
      %v1055 = vpop.f32.mrb[0].mxu0
      %1056 = vmatprep.mubr.f32.mxu0 0.0
      %1057 = vmatmul.mubr.f32.gmra.mrb[0].mxu0 %v841
      %v1058 = vpop.f32.mrb[0].mxu0
      %v1059 = vadd.f32 0.0, %v1058
      %v1060 = vpop.f32.mrb[0].mxu0
      %1061 = vmatprep.mubr.f32.mxu0 0.0
      %1062 = vmatmul.mubr.f32.gmra.mrb[0].mxu0 %v844
      %v1063 = vpop.f32.mrb[0].mxu0
      %v1064 = vadd.f32 0.0, %v1063
      %v1065 = vpop.f32.mrb[0].mxu0
      %1066 = vmatprep.mubr.f32.mxu0 0.0
      %1067 = vmatmul.mubr.f32.gmra.mrb[0].mxu0 %v847
      %v1068 = vpop.f32.mrb[0].mxu0
      %v1069 = vadd.f32 0.0, %v1068
      %v1070 = vpop.f32.mrb[0].mxu0
      %1071 = vmatprep.mubr.f32.mxu0 0.0
      %1072 = vmatmul.mubr.f32.gmra.mrb[0].mxu0 %v850
      %v1073 = vpop.f32.mrb[0].mxu0
      %v1074 = vadd.f32 0.0, %v1073
      %v1075 = vpop.f32.mrb[0].mxu0
      %1076 = vdwg.mxu0
      %v1077 = vmul.f32 %v919, %v449
      %v1078 = vmul.f32 %v924, %v449
      %v1079 = vmul.f32 %v929, %v449
      %v1080 = vmul.f32 %v934, %v449
      %v1081 = vadd.f32 %v1077, %v461
      %v1082 = vadd.f32 %v1078, %v462
      %v1083 = vadd.f32 %v1079, %v463
      %v1084 = vadd.f32 %v1080, %v464
      %v1085 = vmul.f32 %v939, %v449
      %v1086 = vmul.f32 %v944, %v449
      %v1087 = vmul.f32 %v949, %v449
      %v1088 = vmul.f32 %v954, %v449
      %v1089 = vadd.f32 %v1085, %v461
      %v1090 = vadd.f32 %v1086, %v462
      %v1091 = vadd.f32 %v1087, %v463
      %v1092 = vadd.f32 %v1088, %v464
      %v1093 = vmax.f32 %v1081, %v1089
      %v1094 = vmax.f32 %v1082, %v1090
      %v1095 = vmax.f32 %v1083, %v1091
      %v1096 = vmax.f32 %v1084, %v1092
      %v1097 = vmul.f32 %v959, %v449
      %v1098 = vmul.f32 %v964, %v449
      %v1099 = vmul.f32 %v969, %v449
      %v1100 = vmul.f32 %v974, %v449
      %v1101 = vadd.f32 %v1097, %v461
      %v1102 = vadd.f32 %v1098, %v462
      %v1103 = vadd.f32 %v1099, %v463
      %v1104 = vadd.f32 %v1100, %v464
      %v1105 = vmax.f32 %v1093, %v1101
      %v1106 = vmax.f32 %v1094, %v1102
      %v1107 = vmax.f32 %v1095, %v1103
      %v1108 = vmax.f32 %v1096, %v1104
      %v1109 = vmul.f32 %v979, %v449
      %v1110 = vmul.f32 %v984, %v449
      %v1111 = vmul.f32 %v989, %v449
      %v1112 = vmul.f32 %v994, %v449
      %v1113 = vadd.f32 %v1109, %v461
      %v1114 = vadd.f32 %v1110, %v462
      %v1115 = vadd.f32 %v1111, %v463
      %v1116 = vadd.f32 %v1112, %v464
      %v1117 = vmax.f32 %v1105, %v1113
      %v1118 = vmax.f32 %v1106, %v1114
      %v1119 = vmax.f32 %v1107, %v1115
      %v1120 = vmax.f32 %v1108, %v1116
      %v1121 = vmul.f32 %v999, %v449
      %v1122 = vmul.f32 %v1004, %v449
      %v1123 = vmul.f32 %v1009, %v449
      %v1124 = vmul.f32 %v1014, %v449
      %v1125 = vadd.f32 %v1121, %v461
      %v1126 = vadd.f32 %v1122, %v462
      %v1127 = vadd.f32 %v1123, %v463
      %v1128 = vadd.f32 %v1124, %v464
      %v1129 = vmax.f32 %v1117, %v1125
      %v1130 = vmax.f32 %v1118, %v1126
      %v1131 = vmax.f32 %v1119, %v1127
      %v1132 = vmax.f32 %v1120, %v1128
      %v1133 = vmul.f32 %v1019, %v449
      %v1134 = vmul.f32 %v1024, %v449
      %v1135 = vmul.f32 %v1029, %v449
      %v1136 = vmul.f32 %v1034, %v449
      %v1137 = vadd.f32 %v1133, %v461
      %v1138 = vadd.f32 %v1134, %v462
      %v1139 = vadd.f32 %v1135, %v463
      %v1140 = vadd.f32 %v1136, %v464
      %v1141 = vmax.f32 %v1129, %v1137
      %v1142 = vmax.f32 %v1130, %v1138
      %v1143 = vmax.f32 %v1131, %v1139
      %v1144 = vmax.f32 %v1132, %v1140
      %v1145 = vmul.f32 %v1039, %v449
      %v1146 = vmul.f32 %v1044, %v449
      %v1147 = vmul.f32 %v1049, %v449
      %v1148 = vmul.f32 %v1054, %v449
      %v1149 = vadd.f32 %v1145, %v461
      %v1150 = vadd.f32 %v1146, %v462
      %v1151 = vadd.f32 %v1147, %v463
      %v1152 = vadd.f32 %v1148, %v464
      %v1153 = vmax.f32 %v1141, %v1149
      %v1154 = vmax.f32 %v1142, %v1150
      %v1155 = vmax.f32 %v1143, %v1151
      %v1156 = vmax.f32 %v1144, %v1152
      %v1157 = vmul.f32 %v1059, %v449
      %v1158 = vmul.f32 %v1064, %v449
      %v1159 = vmul.f32 %v1069, %v449
      %v1160 = vmul.f32 %v1074, %v449
      %v1161 = vadd.f32 %v1157, %v461
      %v1162 = vadd.f32 %v1158, %v462
      %v1163 = vadd.f32 %v1159, %v463
      %v1164 = vadd.f32 %v1160, %v464
      %v1165 = vmax.f32 %v1153, %v1161
      %v1166 = vmax.f32 %v1154, %v1162
      %v1167 = vmax.f32 %v1155, %v1163
      %v1168 = vmax.f32 %v1156, %v1164
      %vm1169 = vcmp.gt.f32.partialorder %v1165, 0.0
      %vm1170 = vcmp.gt.f32.partialorder %v1166, 0.0
      %vm1171 = vcmp.gt.f32.partialorder %v1167, 0.0
      %vm1172 = vcmp.gt.f32.partialorder %v1168, 0.0
      %v1173 = vmul.f32 %v1165, 0.2
      %v1174 = vmul.f32 %v1166, 0.2
      %v1175 = vmul.f32 %v1167, 0.2
      %v1176 = vmul.f32 %v1168, 0.2
      %v1177 = vsel %vm1169, %v1165, %v1173
      %v1178 = vsel %vm1170, %v1166, %v1174
      %v1179 = vsel %vm1171, %v1167, %v1175
      %v1180 = vsel %vm1172, %v1168, %v1176
      %1181 = vst [vmem:[%s309] sm:$0xff] %v1177
      %1182 = vst [vmem:[%s309 + $0x8] sm:$0xff] %v1178
      %1183 = vst [vmem:[%s309 + $0x10] sm:$0xff] %v1179
      %1184 = vst [vmem:[%s309 + $0x18] sm:$0xff] %v1180
      %s1185 = smul.u32 4, %s22
      %p1186 = scmp.lt.s32.totalorder %s21, 1
      %s1187 = scalar_select %p1186, %s21, 1
      %p1188 = scmp.lt.s32.totalorder %s1185, 7
      %s1189 = scalar_select %p1188, %s1185, 7
      %s1190 = smul.addr %s1187, 8
      %s1191 = sadd.s32 %s1189, %s1190
      %s1192 = smul.addr %s1191, 8
      %s1193 = scalar_lea.vmem %s6, %s1192
      // Predicated region
      $region45: #{pallas_forward.7} parent=43 // pred_check
        %p1194 = pneg %p187
      $region46: #{pallas_forward.7} parent=43 // pred_check_branch
        %1196 = sbr.rel (%p1194) target = $region48
      $region47: #{pallas_forward.7} parent=43 // pred_region
        %s1197 = smul.u32 4, %s22
      $region48: #{pallas_forward.7} parent=43 // pred_fallthru
        _
    $region44: #{pallas_forward.7} parent=5 // pred_fallthru
      _
    %p1198 = scmp.le.s32.totalorder 2, %s12
    // Predicated region
    $region49: #{pallas_forward.7} parent=5 // pred_check
      %p1199 = pneg %p1198
    $region50: #{pallas_forward.7} parent=5 // pred_check_branch
      %1201 = sbr.rel (%p1199) target = $region52
    $region51: #{pallas_forward.7} parent=5 // pred_region
      %s1202 = ssub.s32 %s12, 2
      // Predicated region
      $region53: #{pallas_forward.7} parent=51 // pred_check
        %p1203 = pneg %p193
      $region54: #{pallas_forward.7} parent=51 // pred_check_branch
        %1205 = sbr.rel (%p1203) target = $region56
      $region55: #{pallas_forward.7} parent=51 // pred_region
        %s1206 = smul.u32 4, %s24
        %p1207 = scmp.lt.s32.totalorder %s23, 1
        %s1208 = scalar_select %p1207, %s23, 1
        %p1209 = scmp.lt.s32.totalorder %s1206, 7
        %s1210 = scalar_select %p1209, %s1206, 7
        %s1211 = smul.addr %s1208, 8
        %s1212 = sadd.s32 %s1210, %s1211
        %s1213 = smul.addr %s1212, 8
        %s1214 = scalar_lea.vmem %s6, %s1213
      $region56: #{pallas_forward.7} parent=51 // pred_fallthru
        _
    $region52: #{pallas_forward.7} parent=5 // pred_fallthru
      _
  $region6: #{pallas_forward.7} parent=0 // loop_footer
    %s16 = sadd.s32 1, %s12
  $region7: #{pallas_forward.7} parent=0 // loop_footer_branch
    %11 = sbr.rel target = $region3
  $region8: #{pallas_forward.7} parent=0 // loop_exit
    _

// kernel: pallas_forward.6
$region0: #{pallas_forward.6}
  #allocation0 [shape = 'u32[]', space=smem, size = 0x4, offset = 0x4, fixed_abs, tag = 'smem constant byte address 0x4 - core index']
  #allocation1 [shape = 'u32[144,128]{1,0:T(1,128)}', space=vmem, size = 0x12000, scoped, tag = 'internal scratch']
  %s0 = inlined_call_operand.vmem [shape: f32[2,64,64], index: 0, kind: input, shape index: {}]
  %s1 = inlined_call_operand.vmem [shape: s32[2,64,8], index: 1, kind: input, shape index: {}]
  %s2 = inlined_call_operand.vmem [shape: f32[64,64], index: 2, kind: input, shape index: {}]
  %s3 = inlined_call_operand.vmem [shape: f32[64,64], index: 3, kind: input, shape index: {}]
  %s4 = inlined_call_operand.vmem [shape: f32[1,64], index: 4, kind: input, shape index: {}]
  %s5 = inlined_call_operand.vmem [shape: f32[1,64], index: 5, kind: input, shape index: {}]
  %s6 = inlined_call_operand.vmem [shape: f32[2,64,64], index: 6, kind: output, shape index: {}]
  %s7 = sld [smem:[#allocation0]]
  $region57: #{pallas_forward.6} parent=0
    _
  %s9 = ssub.s32 1, %s7
  %s10 = scalar_select 0, %s9, %s7
  loop: start=0, step=1, limit=6
  $region2: #{pallas_forward.6} parent=0 // loop_pre_header
    _
  $region3: #{pallas_forward.6} parent=0 // loop_header
    %s12 = sphi 0, %s16
    %p13 = scmp.ge.s32.totalorder %s12, 6
    %s19 = sphi 0, %s31
    %s20 = sphi 0, %s27
    %s21 = sphi 0, %s19
    %s22 = sphi 0, %s20
    %s23 = sphi 0, %s21
    %s24 = sphi 0, %s22
    %s34 = sphi 0, %s36
    %s37 = sphi 0, %s34
    %s38 = sphi 0, %s37
    %s54 = sphi 0, %s38
    %s62 = sphi 0, %s64
    %s65 = sphi 0, %s62
    %s66 = sphi 0, %s65
    %s82 = sphi 0, %s66
    %s86 = sphi 0, %s86
    %s88 = sphi 0, %s86
    %s89 = sphi 0, %s88
    %s103 = sphi 0, %s89
    %s107 = sphi 0, %s107
    %s109 = sphi 0, %s107
    %s110 = sphi 0, %s109
    %s124 = sphi 0, %s110
    %s128 = sphi 0, %s128
    %s130 = sphi 0, %s128
    %s131 = sphi 0, %s130
    %s145 = sphi 0, %s131
    %s149 = sphi 0, %s149
    %s151 = sphi 0, %s149
    %s152 = sphi 0, %s151
    %s166 = sphi 0, %s152
    %s174 = sphi 0, %s176
    %s177 = sphi 0, %s174
    %s178 = sphi 0, %s177
    %s194 = sphi 0, %s178
  $region4: #{pallas_forward.6} parent=0 // loop_header_branch
    %15 = sbr.rel (%p13) target = $region8
  $region5: #{pallas_forward.6} parent=0 // loop_body
    %s17 = ssub.s32 %s12, 1
    %s18 = ssub.s32 %s12, 2
    %s25 = sadd.s32 1, %s20
    %p26 = scmp.ge.s32.totalorder %s25, 2
    %s27 = scalar_select %p26, 0, %s25
    %s28 = sadd.s32 1, %s19
    %s29 = scalar_select %p26, %s28, %s19
    %p30 = scmp.ge.s32.totalorder %s29, 2
    %s31 = scalar_select %p30, 0, %s29
    %s32 = ssub.s32 %s19, %s31
    %p33 = scmp.eq.s32.totalorder %s32, 0
    %s35 = sadd.s32 %s34, 1
    %s36 = scalar_select %p33, %s34, %s35
    %p39 = pneg %p33
    %p40 = scmp.eq.s32.totalorder %s12, 3
    %p41 = por %p39, %p40
    %p42 = scmp.ne.s32.totalorder %s34, %s37
    %p43 = scmp.eq.s32.totalorder %s12, 0
    %p44 = por %p42, %p43
    %p45 = scmp.ne.s32.totalorder %s34, %s37
    %p46 = scmp.eq.s32.totalorder %s17, 3
    %p47 = por %p45, %p46
    %p48 = scmp.ne.s32.totalorder %s37, %s38
    %p49 = scmp.eq.s32.totalorder %s17, 0
    %p50 = por %p48, %p49
    %p51 = scmp.ne.s32.totalorder %s37, %s38
    %p52 = scmp.eq.s32.totalorder %s18, 3
    %p53 = por %p51, %p52
    %p55 = scmp.ne.s32.totalorder %s38, %s54
    %p56 = scmp.eq.s32.totalorder %s18, 0
    %p57 = por %p55, %p56
    %s58 = ssub.s32 %s19, %s31
    %s59 = ssub.s32 %s20, %s27
    %s60 = sor.u32 %s58, %s59
    %p61 = scmp.eq.s32.totalorder %s60, 0
    %s63 = sadd.s32 %s62, 1
    %s64 = scalar_select %p61, %s62, %s63
    %p67 = pneg %p61
    %p68 = scmp.eq.s32.totalorder %s12, 3
    %p69 = por %p67, %p68
    %p70 = scmp.ne.s32.totalorder %s62, %s65
    %p71 = scmp.eq.s32.totalorder %s12, 0
    %p72 = por %p70, %p71
    %p73 = scmp.ne.s32.totalorder %s62, %s65
    %p74 = scmp.eq.s32.totalorder %s17, 3
    %p75 = por %p73, %p74
    %p76 = scmp.ne.s32.totalorder %s65, %s66
    %p77 = scmp.eq.s32.totalorder %s17, 0
    %p78 = por %p76, %p77
    %p79 = scmp.ne.s32.totalorder %s65, %s66
    %p80 = scmp.eq.s32.totalorder %s18, 3
    %p81 = por %p79, %p80
    %p83 = scmp.ne.s32.totalorder %s66, %s82
    %p84 = scmp.eq.s32.totalorder %s18, 0
    %p85 = por %p83, %p84
    %s87 = sadd.s32 %s86, 1
    %p90 = scmp.eq.s32.totalorder %s12, 3
    %p91 = scmp.ne.s32.totalorder %s86, %s88
    %p92 = scmp.eq.s32.totalorder %s12, 0
    %p93 = por %p91, %p92
    %p94 = scmp.ne.s32.totalorder %s86, %s88
    %p95 = scmp.eq.s32.totalorder %s17, 3
    %p96 = por %p94, %p95
    %p97 = scmp.ne.s32.totalorder %s88, %s89
    %p98 = scmp.eq.s32.totalorder %s17, 0
    %p99 = por %p97, %p98
    %p100 = scmp.ne.s32.totalorder %s88, %s89
    %p101 = scmp.eq.s32.totalorder %s18, 3
    %p102 = por %p100, %p101
    %p104 = scmp.ne.s32.totalorder %s89, %s103
    %p105 = scmp.eq.s32.totalorder %s18, 0
    %p106 = por %p104, %p105
    %s108 = sadd.s32 %s107, 1
    %p111 = scmp.eq.s32.totalorder %s12, 3
    %p112 = scmp.ne.s32.totalorder %s107, %s109
    %p113 = scmp.eq.s32.totalorder %s12, 0
    %p114 = por %p112, %p113
    %p115 = scmp.ne.s32.totalorder %s107, %s109
    %p116 = scmp.eq.s32.totalorder %s17, 3
    %p117 = por %p115, %p116
    %p118 = scmp.ne.s32.totalorder %s109, %s110
    %p119 = scmp.eq.s32.totalorder %s17, 0
    %p120 = por %p118, %p119
    %p121 = scmp.ne.s32.totalorder %s109, %s110
    %p122 = scmp.eq.s32.totalorder %s18, 3
    %p123 = por %p121, %p122
    %p125 = scmp.ne.s32.totalorder %s110, %s124
    %p126 = scmp.eq.s32.totalorder %s18, 0
    %p127 = por %p125, %p126
    %s129 = sadd.s32 %s128, 1
    %p132 = scmp.eq.s32.totalorder %s12, 3
    %p133 = scmp.ne.s32.totalorder %s128, %s130
    %p134 = scmp.eq.s32.totalorder %s12, 0
    %p135 = por %p133, %p134
    %p136 = scmp.ne.s32.totalorder %s128, %s130
    %p137 = scmp.eq.s32.totalorder %s17, 3
    %p138 = por %p136, %p137
    %p139 = scmp.ne.s32.totalorder %s130, %s131
    %p140 = scmp.eq.s32.totalorder %s17, 0
    %p141 = por %p139, %p140
    %p142 = scmp.ne.s32.totalorder %s130, %s131
    %p143 = scmp.eq.s32.totalorder %s18, 3
    %p144 = por %p142, %p143
    %p146 = scmp.ne.s32.totalorder %s131, %s145
    %p147 = scmp.eq.s32.totalorder %s18, 0
    %p148 = por %p146, %p147
    %s150 = sadd.s32 %s149, 1
    %p153 = scmp.eq.s32.totalorder %s12, 3
    %p154 = scmp.ne.s32.totalorder %s149, %s151
    %p155 = scmp.eq.s32.totalorder %s12, 0
    %p156 = por %p154, %p155
    %p157 = scmp.ne.s32.totalorder %s149, %s151
    %p158 = scmp.eq.s32.totalorder %s17, 3
    %p159 = por %p157, %p158
    %p160 = scmp.ne.s32.totalorder %s151, %s152
    %p161 = scmp.eq.s32.totalorder %s17, 0
    %p162 = por %p160, %p161
    %p163 = scmp.ne.s32.totalorder %s151, %s152
    %p164 = scmp.eq.s32.totalorder %s18, 3
    %p165 = por %p163, %p164
    %p167 = scmp.ne.s32.totalorder %s152, %s166
    %p168 = scmp.eq.s32.totalorder %s18, 0
    %p169 = por %p167, %p168
    %s170 = ssub.s32 %s19, %s31
    %s171 = ssub.s32 %s20, %s27
    %s172 = sor.u32 %s170, %s171
    %p173 = scmp.eq.s32.totalorder %s172, 0
    %s175 = sadd.s32 %s174, 1
    %s176 = scalar_select %p173, %s174, %s175
    %p179 = pneg %p173
    %p180 = scmp.eq.s32.totalorder %s12, 3
    %p181 = por %p179, %p180
    %p182 = scmp.ne.s32.totalorder %s174, %s177
    %p183 = scmp.eq.s32.totalorder %s12, 0
    %p184 = por %p182, %p183
    %p185 = scmp.ne.s32.totalorder %s174, %s177
    %p186 = scmp.eq.s32.totalorder %s17, 3
    %p187 = por %p185, %p186
    %p188 = scmp.ne.s32.totalorder %s177, %s178
    %p189 = scmp.eq.s32.totalorder %s17, 0
    %p190 = por %p188, %p189
    %p191 = scmp.ne.s32.totalorder %s177, %s178
    %p192 = scmp.eq.s32.totalorder %s18, 3
    %p193 = por %p191, %p192
    %p195 = scmp.ne.s32.totalorder %s178, %s194
    %p196 = scmp.eq.s32.totalorder %s18, 0
    %p197 = por %p195, %p196
    %p198 = scmp.le.s32.totalorder 1, %s12
    %p199 = scmp.lt.s32.totalorder %s12, 5
    %p200 = pnand %p198, %p199
    %p201 = pneg %p200
    // Predicated region
    $region9: #{pallas_forward.6} parent=5 // pred_check
      _
    $region10: #{pallas_forward.6} parent=5 // pred_check_branch
      %203 = sbr.rel (%p200) target = $region12
    $region11: #{pallas_forward.6} parent=5 // pred_region
      %s204 = ssub.s32 %s12, 1
      // Predicated region
      $region13: #{pallas_forward.6} parent=11 // pred_check
        %p205 = pneg %p99
      $region14: #{pallas_forward.6} parent=11 // pred_check_branch
        %207 = sbr.rel (%p205) target = $region16
      $region15: #{pallas_forward.6} parent=11 // pred_region
        _
      $region16: #{pallas_forward.6} parent=11 // pred_fallthru
        _
      // Predicated region
      $region17: #{pallas_forward.6} parent=11 // pred_check
        %p208 = pneg %p120
      $region18: #{pallas_forward.6} parent=11 // pred_check_branch
        %210 = sbr.rel (%p208) target = $region20
      $region19: #{pallas_forward.6} parent=11 // pred_region
        _
      $region20: #{pallas_forward.6} parent=11 // pred_fallthru
        _
      // Predicated region
      $region21: #{pallas_forward.6} parent=11 // pred_check
        %p211 = pneg %p141
      $region22: #{pallas_forward.6} parent=11 // pred_check_branch
        %213 = sbr.rel (%p211) target = $region24
      $region23: #{pallas_forward.6} parent=11 // pred_region
        _
      $region24: #{pallas_forward.6} parent=11 // pred_fallthru
        _
      // Predicated region
      $region25: #{pallas_forward.6} parent=11 // pred_check
        %p214 = pneg %p162
      $region26: #{pallas_forward.6} parent=11 // pred_check_branch
        %216 = sbr.rel (%p214) target = $region28
      $region27: #{pallas_forward.6} parent=11 // pred_region
        _
      $region28: #{pallas_forward.6} parent=11 // pred_fallthru
        _
    $region12: #{pallas_forward.6} parent=5 // pred_fallthru
      _
    %p217 = scmp.lt.s32.totalorder %s12, 4
    // Predicated region
    $region29: #{pallas_forward.6} parent=5 // pred_check
      %p218 = pneg %p217
    $region30: #{pallas_forward.6} parent=5 // pred_check_branch
      %220 = sbr.rel (%p218) target = $region32
    $region31: #{pallas_forward.6} parent=5 // pred_region
      // Predicated region
      $region33: #{pallas_forward.6} parent=31 // pred_check
        %p221 = pneg %p44
      $region34: #{pallas_forward.6} parent=31 // pred_check_branch
        %223 = sbr.rel (%p221) target = $region36
      $region35: #{pallas_forward.6} parent=31 // pred_region
        %p224 = scmp.lt.s32.totalorder %s19, 1
        %s225 = scalar_select %p224, %s19, 1
        %s226 = smul.addr %s225, 8
        %s227 = smul.addr %s226, 8
        %s228 = scalar_lea.vmem %s0, %s227
      $region36: #{pallas_forward.6} parent=31 // pred_fallthru
        _
      // Predicated region
      $region37: #{pallas_forward.6} parent=31 // pred_check
        %p229 = pneg %p72
      $region38: #{pallas_forward.6} parent=31 // pred_check_branch
        %231 = sbr.rel (%p229) target = $region40
      $region39: #{pallas_forward.6} parent=31 // pred_region
        %s232 = smul.u32 4, %s20
        %p233 = scmp.lt.s32.totalorder %s19, 1
        %s234 = scalar_select %p233, %s19, 1
        %p235 = scmp.lt.s32.totalorder %s232, 7
        %s236 = scalar_select %p235, %s232, 7
        %s237 = smul.addr %s234, 8
        %s238 = sadd.s32 %s236, %s237
        %s239 = smul.addr %s238, 8
        %s240 = scalar_lea.vmem %s1, %s239
        %s241 = smul.u32 4, %s20
      $region40: #{pallas_forward.6} parent=31 // pred_fallthru
        _
    $region32: #{pallas_forward.6} parent=5 // pred_fallthru
      _
    %p242 = scmp.le.s32.totalorder 1, %s12
    %p243 = scmp.lt.s32.totalorder %s12, 5
    %p244 = pnand %p242, %p243
    %p245 = pneg %p244
    // Predicated region
    $region41: #{pallas_forward.6} parent=5 // pred_check
      _
    $region42: #{pallas_forward.6} parent=5 // pred_check_branch
      %247 = sbr.rel (%p244) target = $region44
    $region43: #{pallas_forward.6} parent=5 // pred_region
      %s248 = ssub.s32 %s12, 1
      %p249 = scmp.lt.s32.totalorder %s21, 1
      %s250 = scalar_select %p249, %s21, 1
      %s251 = smul.addr %s250, 8
      %s252 = smul.addr %s251, 8
      %s253 = scalar_lea.vmem %s0, %s252
      %p254 = pneg %p50
      %p255 = pneg %p47
      %s256 = smul.u32 4, %s22
      %p257 = scmp.lt.s32.totalorder %s21, 1
      %s258 = scalar_select %p257, %s21, 1
      %p259 = scmp.lt.s32.totalorder %s256, 7
      %s260 = scalar_select %p259, %s256, 7
      %s261 = smul.addr %s258, 8
      %s262 = sadd.s32 %s260, %s261
      %s263 = smul.addr %s262, 8
      %s264 = scalar_lea.vmem %s1, %s263
      %p265 = pneg %p78
      %p266 = pneg %p75
      %p267 = pneg %p99
      %p268 = pneg %p96
      %p269 = pneg %p120
      %p270 = pneg %p117
      %p271 = pneg %p141
      %p272 = pneg %p138
      %p273 = pneg %p162
      %p274 = pneg %p159
      %p275 = pneg %p190
      %p276 = pneg %p187
      %s277 = smul.u32 4, %s22
      %p278 = scmp.lt.s32.totalorder %s21, 1
      %s279 = scalar_select %p278, %s21, 1
      %p280 = scmp.lt.s32.totalorder %s277, 7
      %s281 = scalar_select %p280, %s277, 7
      %s282 = smul.addr %s279, 8
      %s283 = sadd.s32 %s281, %s282
      %s284 = smul.addr %s283, 8
      %s285 = scalar_lea.vmem %s6, %s284
      %p286 = scmp.lt.s32.totalorder %s21, 1
      %s287 = scalar_select %p286, %s21, 1
      %s288 = smul.addr %s287, 8
      %s289 = smul.addr %s288, 8
      %s290 = scalar_lea.vmem %s0, %s289
      %s291 = smul.u32 4, %s22
      %p292 = scmp.lt.s32.totalorder %s21, 1
      %s293 = scalar_select %p292, %s21, 1
      %p294 = scmp.lt.s32.totalorder %s291, 7
      %s295 = scalar_select %p294, %s291, 7
      %s296 = smul.addr %s293, 8
      %s297 = sadd.s32 %s295, %s296
      %s298 = smul.addr %s297, 8
      %s299 = scalar_lea.vmem %s1, %s298
      %s300 = smul.u32 4, %s22
      %s301 = smul.u32 4, %s22
      %p302 = scmp.lt.s32.totalorder %s21, 1
      %s303 = scalar_select %p302, %s21, 1
      %p304 = scmp.lt.s32.totalorder %s301, 7
      %s305 = scalar_select %p304, %s301, 7
      %s306 = smul.addr %s303, 8
      %s307 = sadd.s32 %s305, %s306
      %s308 = smul.addr %s307, 8
      %s309 = scalar_lea.vmem %s6, %s308
      %s310 = smul.u32 4, %s22
      %v311 = vld [vmem:[%s290] sm:$0xff]
      %v312 = vld [vmem:[%s290 + $0x8] sm:$0xff]
      %v313 = vld [vmem:[%s290 + $0x10] sm:$0xff]
      %v314 = vld [vmem:[%s290 + $0x18] sm:$0xff]
      %v315 = vld [vmem:[%s290 + $0x20] sm:$0xff]
      %v316 = vld [vmem:[%s290 + $0x28] sm:$0xff]
      %v317 = vld [vmem:[%s290 + $0x30] sm:$0xff]
      %v318 = vld [vmem:[%s290 + $0x38] sm:$0xff]
      %v319 = vld [vmem:[%s2] sm:$0xff]
      %v320 = vld [vmem:[%s2 + $0x8] sm:$0xff]
      %v321 = vld [vmem:[%s2 + $0x10] sm:$0xff]
      %v322 = vld [vmem:[%s2 + $0x18] sm:$0xff]
      %v323 = vld [vmem:[%s2 + $0x20] sm:$0xff]
      %v324 = vld [vmem:[%s2 + $0x28] sm:$0xff]
      %v325 = vld [vmem:[%s2 + $0x30] sm:$0xff]
      %v326 = vld [vmem:[%s2 + $0x38] sm:$0xff]
      %v327 = vld [vmem:[%s4] sm:$0x1]
      %v328 = vld [vmem:[%s5] sm:$0x1]
      %s329 = smul.u32 %s22, 32
      %s330 = scalar_lea.vmem %s290, %s329
      %v331 = vld [vmem:[%s330] sm:$0xff]
      %v332 = vld [vmem:[%s330 + $0x8] sm:$0xff]
      %v333 = vld [vmem:[%s330 + $0x10] sm:$0xff]
      %v334 = vld [vmem:[%s330 + $0x18] sm:$0xff]
      %v335 = vld [vmem:[%s299] sm:$0xff]
      %v336 = vld [vmem:[%s299 + $0x8] sm:$0xff]
      %v337 = vld [vmem:[%s299 + $0x10] sm:$0xff]
      %v338 = vld [vmem:[%s299 + $0x18] sm:$0xff]
      %v339 = vld [vmem:[%s3] sm:$0xff]
      %v340 = vld [vmem:[%s3 + $0x8] sm:$0xff]
      %v341 = vld [vmem:[%s3 + $0x10] sm:$0xff]
      %v342 = vld [vmem:[%s3 + $0x18] sm:$0xff]
      %v343 = vld [vmem:[%s3 + $0x20] sm:$0xff]
      %v344 = vld [vmem:[%s3 + $0x28] sm:$0xff]
      %v345 = vld [vmem:[%s3 + $0x30] sm:$0xff]
      %v346 = vld [vmem:[%s3 + $0x38] sm:$0xff]
      %vm347 = vcmask 523264
      %v349 = vsel %vm347, %v331, 0
      %v352 = vsel %vm347, %v332, 0
      %v355 = vsel %vm347, %v333, 0
      %v358 = vsel %vm347, %v334, 0
      %360 = vmatprep.subr.mxu0 0.0
      %361 = vmatpush1.msra.mxu0 %v339
      %362 = vmatprep.subr.mxu0 0.0
      %363 = vmatpush1.msra.mxu0 %v340
      %364 = vmatprep.subr.mxu0 0.0
      %365 = vmatpush1.msra.mxu0 %v341
      %366 = vmatprep.subr.mxu0 0.0
      %367 = vmatpush1.msra.mxu0 %v342
      %368 = vmatprep.subr.mxu0 0.0
      %369 = vmatpush1.msra.mxu0 %v343
      %370 = vmatprep.subr.mxu0 0.0
      %371 = vmatpush1.msra.mxu0 %v344
      %372 = vmatprep.subr.mxu0 0.0
      %373 = vmatpush1.msra.mxu0 %v345
      %374 = vmatprep.subr.mxu0 0.0
      %375 = vmatpush1.msra.mxu0 %v346
      %376 = vmatprep.subr.mxu0 0.0
      %377 = vmatpush1.msra.mxu0 0.0
      %378 = vmatprep.subr.mxu0 0.0
      %379 = vmatpush1.msra.mxu0 0.0
      %380 = vmatprep.subr.mxu0 0.0
      %381 = vmatpush1.msra.mxu0 0.0
      %382 = vmatprep.subr.mxu0 0.0
      %383 = vmatpush1.msra.mxu0 0.0
      %384 = vmatprep.subr.mxu0 0.0
      %385 = vmatpush1.msra.mxu0 0.0
      %386 = vmatprep.subr.mxu0 0.0
      %387 = vmatpush1.msra.mxu0 0.0
      %388 = vmatprep.subr.mxu0 0.0
      %389 = vmatpush1.msra.mxu0 0.0
      %390 = vmatprep.subr.mxu0 0.0
      %391 = vmatpush1.msra.mxu0 0.0
      %392 = vmatprep.subr.mxu0 0.0
      %393 = vmatpush1.msra.mxu0 0.0
      %394 = vmatprep.subr.mxu0 0.0
      %395 = vmatpush1.msra.mxu0 0.0
      %396 = vmatprep.subr.mxu0 0.0
      %397 = vmatpush1.msra.mxu0 0.0
      %398 = vmatprep.subr.mxu0 0.0
      %399 = vmatpush1.msra.mxu0 0.0
      %400 = vmatprep.subr.mxu0 0.0
      %401 = vmatpush1.msra.mxu0 0.0
      %402 = vmatprep.subr.mxu0 0.0
      %403 = vmatpush1.msra.mxu0 0.0
      %404 = vmatprep.subr.mxu0 0.0
      %405 = vmatpush1.msra.mxu0 0.0
      %406 = vmatprep.subr.mxu0 0.0
      %407 = vmatpush1.msra.mxu0 0.0
      %408 = vmatprep.subr.mxu0 0.0
      %409 = vmatpush1.msra.mxu0 0.0
      %410 = vmatprep.subr.mxu0 0.0
      %411 = vmatpush1.msra.mxu0 0.0
      %412 = vmatprep.subr.mxu0 0.0
      %413 = vmatpush1.msra.mxu0 0.0
      %414 = vmatprep.subr.mxu0 0.0
      %415 = vmatpush1.msra.mxu0 0.0
      %416 = vmatprep.subr.mxu0 0.0
      %417 = vmatpush1.msra.mxu0 0.0
      %418 = vmatprep.subr.mxu0 0.0
      %419 = vmatpush1.msra.mxu0 0.0
      %420 = vmatprep.subr.mxu0 0.0
      %421 = vmatpush1.msra.mxu0 0.0
      %422 = vmatprep.subr.mxu0 0.0
      %423 = vmatpush1.msra.mxu0 0.0
      %424 = vmatprep.mubr.f32.mxu0 0.0
      %425 = vmatmul.mubr.f32.gmra.mrb[0].mxu0 %v349
      %v426 = vpop.f32.mrb[0].mxu0
      %v427 = vadd.f32 0.0, %v426
      %v428 = vpop.f32.mrb[0].mxu0
      %429 = vmatprep.mubr.f32.mxu0 0.0
      %430 = vmatmul.mubr.f32.gmra.mrb[0].mxu0 %v352
      %v431 = vpop.f32.mrb[0].mxu0
      %v432 = vadd.f32 0.0, %v431
      %v433 = vpop.f32.mrb[0].mxu0
      %434 = vmatprep.mubr.f32.mxu0 0.0
      %435 = vmatmul.mubr.f32.gmra.mrb[0].mxu0 %v355
      %v436 = vpop.f32.mrb[0].mxu0
      %v437 = vadd.f32 0.0, %v436
      %v438 = vpop.f32.mrb[0].mxu0
      %439 = vmatprep.mubr.f32.mxu0 0.0
      %440 = vmatmul.mubr.f32.gmra.mrb[0].mxu0 %v358
      %v441 = vpop.f32.mrb[0].mxu0
      %v442 = vadd.f32 0.0, %v441
      %v443 = vpop.f32.mrb[0].mxu0
      %444 = vdwg.mxu0
      %v446 = vlaneseq
      %v447 = vshrl.u32 %v446, 7
      %v448 = vsub.s32 0, %v447
      %v449 = vrot.slane %v327, %v448
      %v451 = vmul.f32 %v427, %v449
      %v452 = vmul.f32 %v432, %v449
      %v453 = vmul.f32 %v437, %v449
      %v454 = vmul.f32 %v442, %v449
      %v456 = vlaneseq
      %v457 = vshrl.u32 %v456, 7
      %v458 = vsub.s32 0, %v457
      %v459 = vrot.slane %v328, %v458
      %v461 = vadd.f32 %v451, %v459
      %v462 = vadd.f32 %v452, %v459
      %v463 = vadd.f32 %v453, %v459
      %v464 = vadd.f32 %v454, %v459
      %v466 = vsel %vm347, %v311, 0
      %v469 = vsel %vm347, %v312, 0
      %v472 = vsel %vm347, %v313, 0
      %v475 = vsel %vm347, %v314, 0
      %v478 = vsel %vm347, %v315, 0
      %v481 = vsel %vm347, %v316, 0
      %v484 = vsel %vm347, %v317, 0
      %v487 = vsel %vm347, %v318, 0
      %489 = vmatprep.subr.mxu0 0.0
      %490 = vmatpush1.msra.mxu0 %v319
      %491 = vmatprep.subr.mxu0 0.0
      %492 = vmatpush1.msra.mxu0 %v320
      %493 = vmatprep.subr.mxu0 0.0
      %494 = vmatpush1.msra.mxu0 %v321
      %495 = vmatprep.subr.mxu0 0.0
      %496 = vmatpush1.msra.mxu0 %v322
      %497 = vmatprep.subr.mxu0 0.0
      %498 = vmatpush1.msra.mxu0 %v323
      %499 = vmatprep.subr.mxu0 0.0
      %500 = vmatpush1.msra.mxu0 %v324
      %501 = vmatprep.subr.mxu0 0.0
      %502 = vmatpush1.msra.mxu0 %v325
      %503 = vmatprep.subr.mxu0 0.0
      %504 = vmatpush1.msra.mxu0 %v326
      %505 = vmatprep.subr.mxu0 0.0
      %506 = vmatpush1.msra.mxu0 0.0
      %507 = vmatprep.subr.mxu0 0.0
      %508 = vmatpush1.msra.mxu0 0.0
      %509 = vmatprep.subr.mxu0 0.0
      %510 = vmatpush1.msra.mxu0 0.0
      %511 = vmatprep.subr.mxu0 0.0
      %512 = vmatpush1.msra.mxu0 0.0
      %513 = vmatprep.subr.mxu0 0.0
      %514 = vmatpush1.msra.mxu0 0.0
      %515 = vmatprep.subr.mxu0 0.0
      %516 = vmatpush1.msra.mxu0 0.0
      %517 = vmatprep.subr.mxu0 0.0
      %518 = vmatpush1.msra.mxu0 0.0
      %519 = vmatprep.subr.mxu0 0.0
      %520 = vmatpush1.msra.mxu0 0.0
      %521 = vmatprep.subr.mxu0 0.0
      %522 = vmatpush1.msra.mxu0 0.0
      %523 = vmatprep.subr.mxu0 0.0
      %524 = vmatpush1.msra.mxu0 0.0
      %525 = vmatprep.subr.mxu0 0.0
      %526 = vmatpush1.msra.mxu0 0.0
      %527 = vmatprep.subr.mxu0 0.0
      %528 = vmatpush1.msra.mxu0 0.0
      %529 = vmatprep.subr.mxu0 0.0
      %530 = vmatpush1.msra.mxu0 0.0
      %531 = vmatprep.subr.mxu0 0.0
      %532 = vmatpush1.msra.mxu0 0.0
      %533 = vmatprep.subr.mxu0 0.0
      %534 = vmatpush1.msra.mxu0 0.0
      %535 = vmatprep.subr.mxu0 0.0
      %536 = vmatpush1.msra.mxu0 0.0
      %537 = vmatprep.subr.mxu0 0.0
      %538 = vmatpush1.msra.mxu0 0.0
      %539 = vmatprep.subr.mxu0 0.0
      %540 = vmatpush1.msra.mxu0 0.0
      %541 = vmatprep.subr.mxu0 0.0
      %542 = vmatpush1.msra.mxu0 0.0
      %543 = vmatprep.subr.mxu0 0.0
      %544 = vmatpush1.msra.mxu0 0.0
      %545 = vmatprep.subr.mxu0 0.0
      %546 = vmatpush1.msra.mxu0 0.0
      %547 = vmatprep.subr.mxu0 0.0
      %548 = vmatpush1.msra.mxu0 0.0
      %549 = vmatprep.subr.mxu0 0.0
      %550 = vmatpush1.msra.mxu0 0.0
      %551 = vmatprep.subr.mxu0 0.0
      %552 = vmatpush1.msra.mxu0 0.0
      %553 = vmatprep.mubr.f32.mxu0 0.0
      %554 = vmatmul.mubr.f32.gmra.mrb[0].mxu0 %v466
      %v555 = vpop.f32.mrb[0].mxu0
      %v556 = vadd.f32 0.0, %v555
      %v557 = vpop.f32.mrb[0].mxu0
      %558 = vmatprep.mubr.f32.mxu0 0.0
      %559 = vmatmul.mubr.f32.gmra.mrb[0].mxu0 %v469
      %v560 = vpop.f32.mrb[0].mxu0
      %v561 = vadd.f32 0.0, %v560
      %v562 = vpop.f32.mrb[0].mxu0
      %563 = vmatprep.mubr.f32.mxu0 0.0
      %564 = vmatmul.mubr.f32.gmra.mrb[0].mxu0 %v472
      %v565 = vpop.f32.mrb[0].mxu0
      %v566 = vadd.f32 0.0, %v565
      %v567 = vpop.f32.mrb[0].mxu0
      %568 = vmatprep.mubr.f32.mxu0 0.0
      %569 = vmatmul.mubr.f32.gmra.mrb[0].mxu0 %v475
      %v570 = vpop.f32.mrb[0].mxu0
      %v571 = vadd.f32 0.0, %v570
      %v572 = vpop.f32.mrb[0].mxu0
      %573 = vmatprep.mubr.f32.mxu0 0.0
      %574 = vmatmul.mubr.f32.gmra.mrb[0].mxu0 %v478
      %v575 = vpop.f32.mrb[0].mxu0
      %v576 = vadd.f32 0.0, %v575
      %v577 = vpop.f32.mrb[0].mxu0
      %578 = vmatprep.mubr.f32.mxu0 0.0
      %579 = vmatmul.mubr.f32.gmra.mrb[0].mxu0 %v481
      %v580 = vpop.f32.mrb[0].mxu0
      %v581 = vadd.f32 0.0, %v580
      %v582 = vpop.f32.mrb[0].mxu0
      %583 = vmatprep.mubr.f32.mxu0 0.0
      %584 = vmatmul.mubr.f32.gmra.mrb[0].mxu0 %v484
      %v585 = vpop.f32.mrb[0].mxu0
      %v586 = vadd.f32 0.0, %v585
      %v587 = vpop.f32.mrb[0].mxu0
      %588 = vmatprep.mubr.f32.mxu0 0.0
      %589 = vmatmul.mubr.f32.gmra.mrb[0].mxu0 %v487
      %v590 = vpop.f32.mrb[0].mxu0
      %v591 = vadd.f32 0.0, %v590
      %v592 = vpop.f32.mrb[0].mxu0
      %593 = vdwg.mxu0
      %v594 = vlaneseq
      %v595 = vand.u32 %v594, 127
      %596 = vset.pattern.permute.xlu0 0
      %597 = vperm.xlu0 %596, %v335
      %v598 = vpop.permute.xlu0 %597
      %599 = vset.pattern.permute.xlu0 0
      %600 = vperm.xlu0 %599, %v336
      %v601 = vpop.permute.xlu0 %600
      %602 = vset.pattern.permute.xlu0 0
      %603 = vperm.xlu0 %602, %v337
      %v604 = vpop.permute.xlu0 %603
      %605 = vset.pattern.permute.xlu0 0
      %606 = vperm.xlu0 %605, %v338
      %v607 = vpop.permute.xlu0 %606
      %vm608 = vcmp.eq.s32.totalorder %v598, %v595
      %vm609 = vcmp.eq.s32.totalorder %v601, %v595
      %vm610 = vcmp.eq.s32.totalorder %v604, %v595
      %vm611 = vcmp.eq.s32.totalorder %v607, %v595
      %v612 = vsel %vm608, 1.0, 0.0
      %v613 = vsel %vm609, 1.0, 0.0
      %v614 = vsel %vm610, 1.0, 0.0
      %v615 = vsel %vm611, 1.0, 0.0
      %616 = vset.pattern.permute.xlu0 1
      %617 = vperm.xlu0 %616, %v335
      %v618 = vpop.permute.xlu0 %617
      %619 = vset.pattern.permute.xlu0 1
      %620 = vperm.xlu0 %619, %v336
      %v621 = vpop.permute.xlu0 %620
      %622 = vset.pattern.permute.xlu0 1
      %623 = vperm.xlu0 %622, %v337
      %v624 = vpop.permute.xlu0 %623
      %625 = vset.pattern.permute.xlu0 1
      %626 = vperm.xlu0 %625, %v338
      %v627 = vpop.permute.xlu0 %626
      %vm628 = vcmp.eq.s32.totalorder %v618, %v595
      %vm629 = vcmp.eq.s32.totalorder %v621, %v595
      %vm630 = vcmp.eq.s32.totalorder %v624, %v595
      %vm631 = vcmp.eq.s32.totalorder %v627, %v595
      %v632 = vsel %vm628, 1.0, 0.0
      %v633 = vsel %vm629, 1.0, 0.0
      %v634 = vsel %vm630, 1.0, 0.0
      %v635 = vsel %vm631, 1.0, 0.0
      %636 = vset.pattern.permute.xlu0 2
      %637 = vperm.xlu0 %636, %v335
      %v638 = vpop.permute.xlu0 %637
      %639 = vset.pattern.permute.xlu0 2
      %640 = vperm.xlu0 %639, %v336
      %v641 = vpop.permute.xlu0 %640
      %642 = vset.pattern.permute.xlu0 2
      %643 = vperm.xlu0 %642, %v337
      %v644 = vpop.permute.xlu0 %643
      %645 = vset.pattern.permute.xlu0 2
      %646 = vperm.xlu0 %645, %v338
      %v647 = vpop.permute.xlu0 %646
      %vm648 = vcmp.eq.s32.totalorder %v638, %v595
      %vm649 = vcmp.eq.s32.totalorder %v641, %v595
      %vm650 = vcmp.eq.s32.totalorder %v644, %v595
      %vm651 = vcmp.eq.s32.totalorder %v647, %v595
      %v652 = vsel %vm648, 1.0, 0.0
      %v653 = vsel %vm649, 1.0, 0.0
      %v654 = vsel %vm650, 1.0, 0.0
      %v655 = vsel %vm651, 1.0, 0.0
      %656 = vset.pattern.permute.xlu0 3
      %657 = vperm.xlu0 %656, %v335
      %v658 = vpop.permute.xlu0 %657
      %659 = vset.pattern.permute.xlu0 3
      %660 = vperm.xlu0 %659, %v336
      %v661 = vpop.permute.xlu0 %660
      %662 = vset.pattern.permute.xlu0 3
      %663 = vperm.xlu0 %662, %v337
      %v664 = vpop.permute.xlu0 %663
      %665 = vset.pattern.permute.xlu0 3
      %666 = vperm.xlu0 %665, %v338
      %v667 = vpop.permute.xlu0 %666
      %vm668 = vcmp.eq.s32.totalorder %v658, %v595
      %vm669 = vcmp.eq.s32.totalorder %v661, %v595
      %vm670 = vcmp.eq.s32.totalorder %v664, %v595
      %vm671 = vcmp.eq.s32.totalorder %v667, %v595
      %v672 = vsel %vm668, 1.0, 0.0
      %v673 = vsel %vm669, 1.0, 0.0
      %v674 = vsel %vm670, 1.0, 0.0
      %v675 = vsel %vm671, 1.0, 0.0
      %676 = vset.pattern.permute.xlu0 4
      %677 = vperm.xlu0 %676, %v335
      %v678 = vpop.permute.xlu0 %677
      %679 = vset.pattern.permute.xlu0 4
      %680 = vperm.xlu0 %679, %v336
      %v681 = vpop.permute.xlu0 %680
      %682 = vset.pattern.permute.xlu0 4
      %683 = vperm.xlu0 %682, %v337
      %v684 = vpop.permute.xlu0 %683
      %685 = vset.pattern.permute.xlu0 4
      %686 = vperm.xlu0 %685, %v338
      %v687 = vpop.permute.xlu0 %686
      %vm688 = vcmp.eq.s32.totalorder %v678, %v595
      %vm689 = vcmp.eq.s32.totalorder %v681, %v595
      %vm690 = vcmp.eq.s32.totalorder %v684, %v595
      %vm691 = vcmp.eq.s32.totalorder %v687, %v595
      %v692 = vsel %vm688, 1.0, 0.0
      %v693 = vsel %vm689, 1.0, 0.0
      %v694 = vsel %vm690, 1.0, 0.0
      %v695 = vsel %vm691, 1.0, 0.0
      %696 = vset.pattern.permute.xlu0 5
      %697 = vperm.xlu0 %696, %v335
      %v698 = vpop.permute.xlu0 %697
      %699 = vset.pattern.permute.xlu0 5
      %700 = vperm.xlu0 %699, %v336
      %v701 = vpop.permute.xlu0 %700
      %702 = vset.pattern.permute.xlu0 5
      %703 = vperm.xlu0 %702, %v337
      %v704 = vpop.permute.xlu0 %703
      %705 = vset.pattern.permute.xlu0 5
      %706 = vperm.xlu0 %705, %v338
      %v707 = vpop.permute.xlu0 %706
      %vm708 = vcmp.eq.s32.totalorder %v698, %v595
      %vm709 = vcmp.eq.s32.totalorder %v701, %v595
      %vm710 = vcmp.eq.s32.totalorder %v704, %v595
      %vm711 = vcmp.eq.s32.totalorder %v707, %v595
      %v712 = vsel %vm708, 1.0, 0.0
      %v713 = vsel %vm709, 1.0, 0.0
      %v714 = vsel %vm710, 1.0, 0.0
      %v715 = vsel %vm711, 1.0, 0.0
      %716 = vset.pattern.permute.xlu0 6
      %717 = vperm.xlu0 %716, %v335
      %v718 = vpop.permute.xlu0 %717
      %719 = vset.pattern.permute.xlu0 6
      %720 = vperm.xlu0 %719, %v336
      %v721 = vpop.permute.xlu0 %720
      %722 = vset.pattern.permute.xlu0 6
      %723 = vperm.xlu0 %722, %v337
      %v724 = vpop.permute.xlu0 %723
      %725 = vset.pattern.permute.xlu0 6
      %726 = vperm.xlu0 %725, %v338
      %v727 = vpop.permute.xlu0 %726
      %vm728 = vcmp.eq.s32.totalorder %v718, %v595
      %vm729 = vcmp.eq.s32.totalorder %v721, %v595
      %vm730 = vcmp.eq.s32.totalorder %v724, %v595
      %vm731 = vcmp.eq.s32.totalorder %v727, %v595
      %v732 = vsel %vm728, 1.0, 0.0
      %v733 = vsel %vm729, 1.0, 0.0
      %v734 = vsel %vm730, 1.0, 0.0
      %v735 = vsel %vm731, 1.0, 0.0
      %736 = vset.pattern.permute.xlu0 7
      %737 = vperm.xlu0 %736, %v335
      %v738 = vpop.permute.xlu0 %737
      %739 = vset.pattern.permute.xlu0 7
      %740 = vperm.xlu0 %739, %v336
      %v741 = vpop.permute.xlu0 %740
      %742 = vset.pattern.permute.xlu0 7
      %743 = vperm.xlu0 %742, %v337
      %v744 = vpop.permute.xlu0 %743
      %745 = vset.pattern.permute.xlu0 7
      %746 = vperm.xlu0 %745, %v338
      %v747 = vpop.permute.xlu0 %746
      %vm748 = vcmp.eq.s32.totalorder %v738, %v595
      %vm749 = vcmp.eq.s32.totalorder %v741, %v595
      %vm750 = vcmp.eq.s32.totalorder %v744, %v595
      %vm751 = vcmp.eq.s32.totalorder %v747, %v595
      %v752 = vsel %vm748, 1.0, 0.0
      %v753 = vsel %vm749, 1.0, 0.0
      %v754 = vsel %vm750, 1.0, 0.0
      %v755 = vsel %vm751, 1.0, 0.0
      %v757 = vsel %vm347, %v612, 0
      %v760 = vsel %vm347, %v613, 0
      %v763 = vsel %vm347, %v614, 0
      %v766 = vsel %vm347, %v615, 0
      %v769 = vsel %vm347, %v632, 0
      %v772 = vsel %vm347, %v633, 0
      %v775 = vsel %vm347, %v634, 0
      %v778 = vsel %vm347, %v635, 0
      %v781 = vsel %vm347, %v652, 0
      %v784 = vsel %vm347, %v653, 0
      %v787 = vsel %vm347, %v654, 0
      %v790 = vsel %vm347, %v655, 0
      %v793 = vsel %vm347, %v672, 0
      %v796 = vsel %vm347, %v673, 0
      %v799 = vsel %vm347, %v674, 0
      %v802 = vsel %vm347, %v675, 0
      %v805 = vsel %vm347, %v692, 0
      %v808 = vsel %vm347, %v693, 0
      %v811 = vsel %vm347, %v694, 0
      %v814 = vsel %vm347, %v695, 0
      %v817 = vsel %vm347, %v712, 0
      %v820 = vsel %vm347, %v713, 0
      %v823 = vsel %vm347, %v714, 0
      %v826 = vsel %vm347, %v715, 0
      %v829 = vsel %vm347, %v732, 0
      %v832 = vsel %vm347, %v733, 0
      %v835 = vsel %vm347, %v734, 0
      %v838 = vsel %vm347, %v735, 0
      %v841 = vsel %vm347, %v752, 0
      %v844 = vsel %vm347, %v753, 0
      %v847 = vsel %vm347, %v754, 0
      %v850 = vsel %vm347, %v755, 0
      %852 = vmatprep.subr.mxu0 0.0
      %853 = vmatpush1.msra.mxu0 %v556
      %854 = vmatprep.subr.mxu0 0.0
      %855 = vmatpush1.msra.mxu0 %v561
      %856 = vmatprep.subr.mxu0 0.0
      %857 = vmatpush1.msra.mxu0 %v566
      %858 = vmatprep.subr.mxu0 0.0
      %859 = vmatpush1.msra.mxu0 %v571
      %860 = vmatprep.subr.mxu0 0.0
      %861 = vmatpush1.msra.mxu0 %v576
      %862 = vmatprep.subr.mxu0 0.0
      %863 = vmatpush1.msra.mxu0 %v581
      %864 = vmatprep.subr.mxu0 0.0
      %865 = vmatpush1.msra.mxu0 %v586
      %866 = vmatprep.subr.mxu0 0.0
      %867 = vmatpush1.msra.mxu0 %v591
      %868 = vmatprep.subr.mxu0 0.0
      %869 = vmatpush1.msra.mxu0 0.0
      %870 = vmatprep.subr.mxu0 0.0
      %871 = vmatpush1.msra.mxu0 0.0
      %872 = vmatprep.subr.mxu0 0.0
      %873 = vmatpush1.msra.mxu0 0.0
      %874 = vmatprep.subr.mxu0 0.0
      %875 = vmatpush1.msra.mxu0 0.0
      %876 = vmatprep.subr.mxu0 0.0
      %877 = vmatpush1.msra.mxu0 0.0
      %878 = vmatprep.subr.mxu0 0.0
      %879 = vmatpush1.msra.mxu0 0.0
      %880 = vmatprep.subr.mxu0 0.0
      %881 = vmatpush1.msra.mxu0 0.0
      %882 = vmatprep.subr.mxu0 0.0
      %883 = vmatpush1.msra.mxu0 0.0
      %884 = vmatprep.subr.mxu0 0.0
      %885 = vmatpush1.msra.mxu0 0.0
      %886 = vmatprep.subr.mxu0 0.0
      %887 = vmatpush1.msra.mxu0 0.0
      %888 = vmatprep.subr.mxu0 0.0
      %889 = vmatpush1.msra.mxu0 0.0
      %890 = vmatprep.subr.mxu0 0.0
      %891 = vmatpush1.msra.mxu0 0.0
      %892 = vmatprep.subr.mxu0 0.0
      %893 = vmatpush1.msra.mxu0 0.0
      %894 = vmatprep.subr.mxu0 0.0
      %895 = vmatpush1.msra.mxu0 0.0
      %896 = vmatprep.subr.mxu0 0.0
      %897 = vmatpush1.msra.mxu0 0.0
      %898 = vmatprep.subr.mxu0 0.0
      %899 = vmatpush1.msra.mxu0 0.0
      %900 = vmatprep.subr.mxu0 0.0
      %901 = vmatpush1.msra.mxu0 0.0
      %902 = vmatprep.subr.mxu0 0.0
      %903 = vmatpush1.msra.mxu0 0.0
      %904 = vmatprep.subr.mxu0 0.0
      %905 = vmatpush1.msra.mxu0 0.0
      %906 = vmatprep.subr.mxu0 0.0
      %907 = vmatpush1.msra.mxu0 0.0
      %908 = vmatprep.subr.mxu0 0.0
      %909 = vmatpush1.msra.mxu0 0.0
      %910 = vmatprep.subr.mxu0 0.0
      %911 = vmatpush1.msra.mxu0 0.0
      %912 = vmatprep.subr.mxu0 0.0
      %913 = vmatpush1.msra.mxu0 0.0
      %914 = vmatprep.subr.mxu0 0.0
      %915 = vmatpush1.msra.mxu0 0.0
      %916 = vmatprep.mubr.f32.mxu0 0.0
      %917 = vmatmul.mubr.f32.gmra.mrb[0].mxu0 %v757
      %v918 = vpop.f32.mrb[0].mxu0
      %v919 = vadd.f32 0.0, %v918
      %v920 = vpop.f32.mrb[0].mxu0
      %921 = vmatprep.mubr.f32.mxu0 0.0
      %922 = vmatmul.mubr.f32.gmra.mrb[0].mxu0 %v760
      %v923 = vpop.f32.mrb[0].mxu0
      %v924 = vadd.f32 0.0, %v923
      %v925 = vpop.f32.mrb[0].mxu0
      %926 = vmatprep.mubr.f32.mxu0 0.0
      %927 = vmatmul.mubr.f32.gmra.mrb[0].mxu0 %v763
      %v928 = vpop.f32.mrb[0].mxu0
      %v929 = vadd.f32 0.0, %v928
      %v930 = vpop.f32.mrb[0].mxu0
      %931 = vmatprep.mubr.f32.mxu0 0.0
      %932 = vmatmul.mubr.f32.gmra.mrb[0].mxu0 %v766
      %v933 = vpop.f32.mrb[0].mxu0
      %v934 = vadd.f32 0.0, %v933
      %v935 = vpop.f32.mrb[0].mxu0
      %936 = vmatprep.mubr.f32.mxu0 0.0
      %937 = vmatmul.mubr.f32.gmra.mrb[0].mxu0 %v769
      %v938 = vpop.f32.mrb[0].mxu0
      %v939 = vadd.f32 0.0, %v938
      %v940 = vpop.f32.mrb[0].mxu0
      %941 = vmatprep.mubr.f32.mxu0 0.0
      %942 = vmatmul.mubr.f32.gmra.mrb[0].mxu0 %v772
      %v943 = vpop.f32.mrb[0].mxu0
      %v944 = vadd.f32 0.0, %v943
      %v945 = vpop.f32.mrb[0].mxu0
      %946 = vmatprep.mubr.f32.mxu0 0.0
      %947 = vmatmul.mubr.f32.gmra.mrb[0].mxu0 %v775
      %v948 = vpop.f32.mrb[0].mxu0
      %v949 = vadd.f32 0.0, %v948
      %v950 = vpop.f32.mrb[0].mxu0
      %951 = vmatprep.mubr.f32.mxu0 0.0
      %952 = vmatmul.mubr.f32.gmra.mrb[0].mxu0 %v778
      %v953 = vpop.f32.mrb[0].mxu0
      %v954 = vadd.f32 0.0, %v953
      %v955 = vpop.f32.mrb[0].mxu0
      %956 = vmatprep.mubr.f32.mxu0 0.0
      %957 = vmatmul.mubr.f32.gmra.mrb[0].mxu0 %v781
      %v958 = vpop.f32.mrb[0].mxu0
      %v959 = vadd.f32 0.0, %v958
      %v960 = vpop.f32.mrb[0].mxu0
      %961 = vmatprep.mubr.f32.mxu0 0.0
      %962 = vmatmul.mubr.f32.gmra.mrb[0].mxu0 %v784
      %v963 = vpop.f32.mrb[0].mxu0
      %v964 = vadd.f32 0.0, %v963
      %v965 = vpop.f32.mrb[0].mxu0
      %966 = vmatprep.mubr.f32.mxu0 0.0
      %967 = vmatmul.mubr.f32.gmra.mrb[0].mxu0 %v787
      %v968 = vpop.f32.mrb[0].mxu0
      %v969 = vadd.f32 0.0, %v968
      %v970 = vpop.f32.mrb[0].mxu0
      %971 = vmatprep.mubr.f32.mxu0 0.0
      %972 = vmatmul.mubr.f32.gmra.mrb[0].mxu0 %v790
      %v973 = vpop.f32.mrb[0].mxu0
      %v974 = vadd.f32 0.0, %v973
      %v975 = vpop.f32.mrb[0].mxu0
      %976 = vmatprep.mubr.f32.mxu0 0.0
      %977 = vmatmul.mubr.f32.gmra.mrb[0].mxu0 %v793
      %v978 = vpop.f32.mrb[0].mxu0
      %v979 = vadd.f32 0.0, %v978
      %v980 = vpop.f32.mrb[0].mxu0
      %981 = vmatprep.mubr.f32.mxu0 0.0
      %982 = vmatmul.mubr.f32.gmra.mrb[0].mxu0 %v796
      %v983 = vpop.f32.mrb[0].mxu0
      %v984 = vadd.f32 0.0, %v983
      %v985 = vpop.f32.mrb[0].mxu0
      %986 = vmatprep.mubr.f32.mxu0 0.0
      %987 = vmatmul.mubr.f32.gmra.mrb[0].mxu0 %v799
      %v988 = vpop.f32.mrb[0].mxu0
      %v989 = vadd.f32 0.0, %v988
      %v990 = vpop.f32.mrb[0].mxu0
      %991 = vmatprep.mubr.f32.mxu0 0.0
      %992 = vmatmul.mubr.f32.gmra.mrb[0].mxu0 %v802
      %v993 = vpop.f32.mrb[0].mxu0
      %v994 = vadd.f32 0.0, %v993
      %v995 = vpop.f32.mrb[0].mxu0
      %996 = vmatprep.mubr.f32.mxu0 0.0
      %997 = vmatmul.mubr.f32.gmra.mrb[0].mxu0 %v805
      %v998 = vpop.f32.mrb[0].mxu0
      %v999 = vadd.f32 0.0, %v998
      %v1000 = vpop.f32.mrb[0].mxu0
      %1001 = vmatprep.mubr.f32.mxu0 0.0
      %1002 = vmatmul.mubr.f32.gmra.mrb[0].mxu0 %v808
      %v1003 = vpop.f32.mrb[0].mxu0
      %v1004 = vadd.f32 0.0, %v1003
      %v1005 = vpop.f32.mrb[0].mxu0
      %1006 = vmatprep.mubr.f32.mxu0 0.0
      %1007 = vmatmul.mubr.f32.gmra.mrb[0].mxu0 %v811
      %v1008 = vpop.f32.mrb[0].mxu0
      %v1009 = vadd.f32 0.0, %v1008
      %v1010 = vpop.f32.mrb[0].mxu0
      %1011 = vmatprep.mubr.f32.mxu0 0.0
      %1012 = vmatmul.mubr.f32.gmra.mrb[0].mxu0 %v814
      %v1013 = vpop.f32.mrb[0].mxu0
      %v1014 = vadd.f32 0.0, %v1013
      %v1015 = vpop.f32.mrb[0].mxu0
      %1016 = vmatprep.mubr.f32.mxu0 0.0
      %1017 = vmatmul.mubr.f32.gmra.mrb[0].mxu0 %v817
      %v1018 = vpop.f32.mrb[0].mxu0
      %v1019 = vadd.f32 0.0, %v1018
      %v1020 = vpop.f32.mrb[0].mxu0
      %1021 = vmatprep.mubr.f32.mxu0 0.0
      %1022 = vmatmul.mubr.f32.gmra.mrb[0].mxu0 %v820
      %v1023 = vpop.f32.mrb[0].mxu0
      %v1024 = vadd.f32 0.0, %v1023
      %v1025 = vpop.f32.mrb[0].mxu0
      %1026 = vmatprep.mubr.f32.mxu0 0.0
      %1027 = vmatmul.mubr.f32.gmra.mrb[0].mxu0 %v823
      %v1028 = vpop.f32.mrb[0].mxu0
      %v1029 = vadd.f32 0.0, %v1028
      %v1030 = vpop.f32.mrb[0].mxu0
      %1031 = vmatprep.mubr.f32.mxu0 0.0
      %1032 = vmatmul.mubr.f32.gmra.mrb[0].mxu0 %v826
      %v1033 = vpop.f32.mrb[0].mxu0
      %v1034 = vadd.f32 0.0, %v1033
      %v1035 = vpop.f32.mrb[0].mxu0
      %1036 = vmatprep.mubr.f32.mxu0 0.0
      %1037 = vmatmul.mubr.f32.gmra.mrb[0].mxu0 %v829
      %v1038 = vpop.f32.mrb[0].mxu0
      %v1039 = vadd.f32 0.0, %v1038
      %v1040 = vpop.f32.mrb[0].mxu0
      %1041 = vmatprep.mubr.f32.mxu0 0.0
      %1042 = vmatmul.mubr.f32.gmra.mrb[0].mxu0 %v832
      %v1043 = vpop.f32.mrb[0].mxu0
      %v1044 = vadd.f32 0.0, %v1043
      %v1045 = vpop.f32.mrb[0].mxu0
      %1046 = vmatprep.mubr.f32.mxu0 0.0
      %1047 = vmatmul.mubr.f32.gmra.mrb[0].mxu0 %v835
      %v1048 = vpop.f32.mrb[0].mxu0
      %v1049 = vadd.f32 0.0, %v1048
      %v1050 = vpop.f32.mrb[0].mxu0
      %1051 = vmatprep.mubr.f32.mxu0 0.0
      %1052 = vmatmul.mubr.f32.gmra.mrb[0].mxu0 %v838
      %v1053 = vpop.f32.mrb[0].mxu0
      %v1054 = vadd.f32 0.0, %v1053
      %v1055 = vpop.f32.mrb[0].mxu0
      %1056 = vmatprep.mubr.f32.mxu0 0.0
      %1057 = vmatmul.mubr.f32.gmra.mrb[0].mxu0 %v841
      %v1058 = vpop.f32.mrb[0].mxu0
      %v1059 = vadd.f32 0.0, %v1058
      %v1060 = vpop.f32.mrb[0].mxu0
      %1061 = vmatprep.mubr.f32.mxu0 0.0
      %1062 = vmatmul.mubr.f32.gmra.mrb[0].mxu0 %v844
      %v1063 = vpop.f32.mrb[0].mxu0
      %v1064 = vadd.f32 0.0, %v1063
      %v1065 = vpop.f32.mrb[0].mxu0
      %1066 = vmatprep.mubr.f32.mxu0 0.0
      %1067 = vmatmul.mubr.f32.gmra.mrb[0].mxu0 %v847
      %v1068 = vpop.f32.mrb[0].mxu0
      %v1069 = vadd.f32 0.0, %v1068
      %v1070 = vpop.f32.mrb[0].mxu0
      %1071 = vmatprep.mubr.f32.mxu0 0.0
      %1072 = vmatmul.mubr.f32.gmra.mrb[0].mxu0 %v850
      %v1073 = vpop.f32.mrb[0].mxu0
      %v1074 = vadd.f32 0.0, %v1073
      %v1075 = vpop.f32.mrb[0].mxu0
      %1076 = vdwg.mxu0
      %v1077 = vmul.f32 %v919, %v449
      %v1078 = vmul.f32 %v924, %v449
      %v1079 = vmul.f32 %v929, %v449
      %v1080 = vmul.f32 %v934, %v449
      %v1081 = vadd.f32 %v1077, %v461
      %v1082 = vadd.f32 %v1078, %v462
      %v1083 = vadd.f32 %v1079, %v463
      %v1084 = vadd.f32 %v1080, %v464
      %v1085 = vmul.f32 %v939, %v449
      %v1086 = vmul.f32 %v944, %v449
      %v1087 = vmul.f32 %v949, %v449
      %v1088 = vmul.f32 %v954, %v449
      %v1089 = vadd.f32 %v1085, %v461
      %v1090 = vadd.f32 %v1086, %v462
      %v1091 = vadd.f32 %v1087, %v463
      %v1092 = vadd.f32 %v1088, %v464
      %v1093 = vmax.f32 %v1081, %v1089
      %v1094 = vmax.f32 %v1082, %v1090
      %v1095 = vmax.f32 %v1083, %v1091
      %v1096 = vmax.f32 %v1084, %v1092
      %v1097 = vmul.f32 %v959, %v449
      %v1098 = vmul.f32 %v964, %v449
      %v1099 = vmul.f32 %v969, %v449
      %v1100 = vmul.f32 %v974, %v449
      %v1101 = vadd.f32 %v1097, %v461
      %v1102 = vadd.f32 %v1098, %v462
      %v1103 = vadd.f32 %v1099, %v463
      %v1104 = vadd.f32 %v1100, %v464
      %v1105 = vmax.f32 %v1093, %v1101
      %v1106 = vmax.f32 %v1094, %v1102
      %v1107 = vmax.f32 %v1095, %v1103
      %v1108 = vmax.f32 %v1096, %v1104
      %v1109 = vmul.f32 %v979, %v449
      %v1110 = vmul.f32 %v984, %v449
      %v1111 = vmul.f32 %v989, %v449
      %v1112 = vmul.f32 %v994, %v449
      %v1113 = vadd.f32 %v1109, %v461
      %v1114 = vadd.f32 %v1110, %v462
      %v1115 = vadd.f32 %v1111, %v463
      %v1116 = vadd.f32 %v1112, %v464
      %v1117 = vmax.f32 %v1105, %v1113
      %v1118 = vmax.f32 %v1106, %v1114
      %v1119 = vmax.f32 %v1107, %v1115
      %v1120 = vmax.f32 %v1108, %v1116
      %v1121 = vmul.f32 %v999, %v449
      %v1122 = vmul.f32 %v1004, %v449
      %v1123 = vmul.f32 %v1009, %v449
      %v1124 = vmul.f32 %v1014, %v449
      %v1125 = vadd.f32 %v1121, %v461
      %v1126 = vadd.f32 %v1122, %v462
      %v1127 = vadd.f32 %v1123, %v463
      %v1128 = vadd.f32 %v1124, %v464
      %v1129 = vmax.f32 %v1117, %v1125
      %v1130 = vmax.f32 %v1118, %v1126
      %v1131 = vmax.f32 %v1119, %v1127
      %v1132 = vmax.f32 %v1120, %v1128
      %v1133 = vmul.f32 %v1019, %v449
      %v1134 = vmul.f32 %v1024, %v449
      %v1135 = vmul.f32 %v1029, %v449
      %v1136 = vmul.f32 %v1034, %v449
      %v1137 = vadd.f32 %v1133, %v461
      %v1138 = vadd.f32 %v1134, %v462
      %v1139 = vadd.f32 %v1135, %v463
      %v1140 = vadd.f32 %v1136, %v464
      %v1141 = vmax.f32 %v1129, %v1137
      %v1142 = vmax.f32 %v1130, %v1138
      %v1143 = vmax.f32 %v1131, %v1139
      %v1144 = vmax.f32 %v1132, %v1140
      %v1145 = vmul.f32 %v1039, %v449
      %v1146 = vmul.f32 %v1044, %v449
      %v1147 = vmul.f32 %v1049, %v449
      %v1148 = vmul.f32 %v1054, %v449
      %v1149 = vadd.f32 %v1145, %v461
      %v1150 = vadd.f32 %v1146, %v462
      %v1151 = vadd.f32 %v1147, %v463
      %v1152 = vadd.f32 %v1148, %v464
      %v1153 = vmax.f32 %v1141, %v1149
      %v1154 = vmax.f32 %v1142, %v1150
      %v1155 = vmax.f32 %v1143, %v1151
      %v1156 = vmax.f32 %v1144, %v1152
      %v1157 = vmul.f32 %v1059, %v449
      %v1158 = vmul.f32 %v1064, %v449
      %v1159 = vmul.f32 %v1069, %v449
      %v1160 = vmul.f32 %v1074, %v449
      %v1161 = vadd.f32 %v1157, %v461
      %v1162 = vadd.f32 %v1158, %v462
      %v1163 = vadd.f32 %v1159, %v463
      %v1164 = vadd.f32 %v1160, %v464
      %v1165 = vmax.f32 %v1153, %v1161
      %v1166 = vmax.f32 %v1154, %v1162
      %v1167 = vmax.f32 %v1155, %v1163
      %v1168 = vmax.f32 %v1156, %v1164
      %vm1169 = vcmp.gt.f32.partialorder %v1165, 0.0
      %vm1170 = vcmp.gt.f32.partialorder %v1166, 0.0
      %vm1171 = vcmp.gt.f32.partialorder %v1167, 0.0
      %vm1172 = vcmp.gt.f32.partialorder %v1168, 0.0
      %v1173 = vmul.f32 %v1165, 0.2
      %v1174 = vmul.f32 %v1166, 0.2
      %v1175 = vmul.f32 %v1167, 0.2
      %v1176 = vmul.f32 %v1168, 0.2
      %v1177 = vsel %vm1169, %v1165, %v1173
      %v1178 = vsel %vm1170, %v1166, %v1174
      %v1179 = vsel %vm1171, %v1167, %v1175
      %v1180 = vsel %vm1172, %v1168, %v1176
      %1181 = vst.msk [vmem:[%s309] sm:$0xff] %vm347, %v1177
      %1182 = vst.msk [vmem:[%s309 + $0x8] sm:$0xff] %vm347, %v1178
      %1183 = vst.msk [vmem:[%s309 + $0x10] sm:$0xff] %vm347, %v1179
      %1184 = vst.msk [vmem:[%s309 + $0x18] sm:$0xff] %vm347, %v1180
      %s1185 = smul.u32 4, %s22
      %p1186 = scmp.lt.s32.totalorder %s21, 1
      %s1187 = scalar_select %p1186, %s21, 1
      %p1188 = scmp.lt.s32.totalorder %s1185, 7
      %s1189 = scalar_select %p1188, %s1185, 7
      %s1190 = smul.addr %s1187, 8
      %s1191 = sadd.s32 %s1189, %s1190
      %s1192 = smul.addr %s1191, 8
      %s1193 = scalar_lea.vmem %s6, %s1192
      // Predicated region
      $region45: #{pallas_forward.6} parent=43 // pred_check
        %p1194 = pneg %p187
      $region46: #{pallas_forward.6} parent=43 // pred_check_branch
        %1196 = sbr.rel (%p1194) target = $region48
      $region47: #{pallas_forward.6} parent=43 // pred_region
        %s1197 = smul.u32 4, %s22
      $region48: #{pallas_forward.6} parent=43 // pred_fallthru
        _
    $region44: #{pallas_forward.6} parent=5 // pred_fallthru
      _
    %p1198 = scmp.le.s32.totalorder 2, %s12
    // Predicated region
    $region49: #{pallas_forward.6} parent=5 // pred_check
      %p1199 = pneg %p1198
    $region50: #{pallas_forward.6} parent=5 // pred_check_branch
      %1201 = sbr.rel (%p1199) target = $region52
    $region51: #{pallas_forward.6} parent=5 // pred_region
      %s1202 = ssub.s32 %s12, 2
      // Predicated region
      $region53: #{pallas_forward.6} parent=51 // pred_check
        %p1203 = pneg %p193
      $region54: #{pallas_forward.6} parent=51 // pred_check_branch
        %1205 = sbr.rel (%p1203) target = $region56
      $region55: #{pallas_forward.6} parent=51 // pred_region
        %s1206 = smul.u32 4, %s24
        %p1207 = scmp.lt.s32.totalorder %s23, 1
        %s1208 = scalar_select %p1207, %s23, 1
        %p1209 = scmp.lt.s32.totalorder %s1206, 7
        %s1210 = scalar_select %p1209, %s1206, 7
        %s1211 = smul.addr %s1208, 8
        %s1212 = sadd.s32 %s1210, %s1211
        %s1213 = smul.addr %s1212, 8
        %s1214 = scalar_lea.vmem %s6, %s1213
      $region56: #{pallas_forward.6} parent=51 // pred_fallthru
        _
    $region52: #{pallas_forward.6} parent=5 // pred_fallthru
      _
  $region6: #{pallas_forward.6} parent=0 // loop_footer
    %s16 = sadd.s32 1, %s12
  $region7: #{pallas_forward.6} parent=0 // loop_footer_branch
    %11 = sbr.rel target = $region3
  $region8: #{pallas_forward.6} parent=0 // loop_exit
    _

// kernel: pallas_forward.9
$region0: #{pallas_forward.9}
  #allocation0 [shape = 'u32[]', space=smem, size = 0x4, offset = 0x4, fixed_abs, tag = 'smem constant byte address 0x4 - core index']
  #allocation1 [shape = 'u32[144,128]{1,0:T(1,128)}', space=vmem, size = 0x12000, scoped, tag = 'internal scratch']
  #allocation2 [shape = 'f32[1,128]{1,0:T(1,128)}', space=vmem, size = 0x200, scoped, tag = 'scratch operand']
  %s0 = inlined_call_operand.vmem [shape: f32[2,64,64], index: 0, kind: input, shape index: {}]
  %s1 = inlined_call_operand.vmem [shape: f32[2,64,64], index: 1, kind: input, shape index: {}]
  %s2 = inlined_call_operand.vmem [shape: f32[2,64,128], index: 2, kind: input, shape index: {}]
  %s3 = inlined_call_operand.vmem [shape: f32[2,64,256], index: 3, kind: input, shape index: {}]
  %s4 = inlined_call_operand.vmem [shape: f32[64,128], index: 4, kind: input, shape index: {}]
  %s5 = inlined_call_operand.vmem [shape: f32[64,128], index: 5, kind: input, shape index: {}]
  %s6 = inlined_call_operand.vmem [shape: f32[128,128], index: 6, kind: input, shape index: {}]
  %s7 = inlined_call_operand.vmem [shape: f32[256,128], index: 7, kind: input, shape index: {}]
  %s8 = inlined_call_operand.vmem [shape: f32[1,128], index: 8, kind: input, shape index: {}]
  %s9 = inlined_call_operand.vmem [shape: f32[1,128], index: 9, kind: input, shape index: {}]
  %s10 = inlined_call_operand.hbm [shape: f32[2,1,128], index: 10, kind: output, shape index: {}]
  %s11 = sld [smem:[#allocation0]]
  $region85: #{pallas_forward.9} parent=0
    _
  %s13 = ssub.s32 1, %s11
  %s14 = scalar_select 0, %s13, %s11
  $region1: #{pallas_forward.9} parent=0
    #allocation3 [shape = 'u8[1024]{0}', space=vmem, size = 0x400, scoped, tag = 'output window, operand 0']
    #allocation4 [shape = 's32[2]{0}', space=sflag, size = 0x8, scoped, tag = 'scoped memory for pallas_forward.9']
    %15 = vsyncpa [#allocation4], 0
    %s16 = scalar_lea.sflag [#allocation4], 1
    %17 = vsyncpa %s16, 0
    loop: start=0, step=1, limit=4
    $region2: #{pallas_forward.9} parent=1 // loop_pre_header
      _
    $region3: #{pallas_forward.9} parent=1 // loop_header
      %s19 = sphi 0, %s23
      %p20 = scmp.ge.s32.totalorder %s19, 4
      %s26 = sphi 0, %s38
      %s27 = sphi 0, %s34
      %s28 = sphi 0, %s26
      %s29 = sphi 0, %s27
      %s30 = sphi 0, %s28
      %s31 = sphi 0, %s29
      %s43 = sphi 0, %s45
      %s46 = sphi 0, %s43
      %s47 = sphi 0, %s46
      %s63 = sphi 0, %s47
      %s71 = sphi 0, %s73
      %s74 = sphi 0, %s71
      %s75 = sphi 0, %s74
      %s91 = sphi 0, %s75
      %s99 = sphi 0, %s101
      %s102 = sphi 0, %s99
      %s103 = sphi 0, %s102
      %s119 = sphi 0, %s103
      %s127 = sphi 0, %s129
      %s130 = sphi 0, %s127
      %s131 = sphi 0, %s130
      %s147 = sphi 0, %s131
      %s151 = sphi 0, %s151
      %s153 = sphi 0, %s151
      %s154 = sphi 0, %s153
      %s168 = sphi 0, %s154
      %s172 = sphi 0, %s172
      %s174 = sphi 0, %s172
      %s175 = sphi 0, %s174
      %s189 = sphi 0, %s175
      %s193 = sphi 0, %s193
      %s195 = sphi 0, %s193
      %s196 = sphi 0, %s195
      %s210 = sphi 0, %s196
      %s214 = sphi 0, %s214
      %s216 = sphi 0, %s214
      %s217 = sphi 0, %s216
      %s231 = sphi 0, %s217
      %s235 = sphi 0, %s235
      %s237 = sphi 0, %s235
      %s238 = sphi 0, %s237
      %s252 = sphi 0, %s238
      %s256 = sphi 0, %s256
      %s258 = sphi 0, %s256
      %s259 = sphi 0, %s258
      %s273 = sphi 0, %s259
      %s279 = sphi 0, %s281
      %s282 = sphi 0, %s279
      %s283 = sphi 0, %s282
      %s299 = sphi 0, %s283
    $region4: #{pallas_forward.9} parent=1 // loop_header_branch
      %22 = sbr.rel (%p20) target = $region8
    $region5: #{pallas_forward.9} parent=1 // loop_body
      %s24 = ssub.s32 %s19, 1
      %s25 = ssub.s32 %s19, 2
      %s32 = sadd.s32 1, %s27
      %p33 = scmp.ge.s32.totalorder %s32, 1
      %s34 = scalar_select %p33, 0, %s32
      %s35 = sadd.s32 1, %s26
      %s36 = scalar_select %p33, %s35, %s26
      %p37 = scmp.ge.s32.totalorder %s36, 2
      %s38 = scalar_select %p37, 0, %s36
      %s39 = ssub.s32 %s26, %s38
      %s40 = ssub.s32 %s27, %s34
      %s41 = sor.u32 %s39, %s40
      %p42 = scmp.eq.s32.totalorder %s41, 0
      %s44 = sadd.s32 %s43, 1
      %s45 = scalar_select %p42, %s43, %s44
      %p48 = pneg %p42
      %p49 = scmp.eq.s32.totalorder %s19, 1
      %p50 = por %p48, %p49
      %p51 = scmp.ne.s32.totalorder %s43, %s46
      %p52 = scmp.eq.s32.totalorder %s19, 0
      %p53 = por %p51, %p52
      %p54 = scmp.ne.s32.totalorder %s43, %s46
      %p55 = scmp.eq.s32.totalorder %s24, 1
      %p56 = por %p54, %p55
      %p57 = scmp.ne.s32.totalorder %s46, %s47
      %p58 = scmp.eq.s32.totalorder %s24, 0
      %p59 = por %p57, %p58
      %p60 = scmp.ne.s32.totalorder %s46, %s47
      %p61 = scmp.eq.s32.totalorder %s25, 1
      %p62 = por %p60, %p61
      %p64 = scmp.ne.s32.totalorder %s47, %s63
      %p65 = scmp.eq.s32.totalorder %s25, 0
      %p66 = por %p64, %p65
      %s67 = ssub.s32 %s26, %s38
      %s68 = ssub.s32 %s27, %s34
      %s69 = sor.u32 %s67, %s68
      %p70 = scmp.eq.s32.totalorder %s69, 0
      %s72 = sadd.s32 %s71, 1
      %s73 = scalar_select %p70, %s71, %s72
      %p76 = pneg %p70
      %p77 = scmp.eq.s32.totalorder %s19, 1
      %p78 = por %p76, %p77
      %p79 = scmp.ne.s32.totalorder %s71, %s74
      %p80 = scmp.eq.s32.totalorder %s19, 0
      %p81 = por %p79, %p80
      %p82 = scmp.ne.s32.totalorder %s71, %s74
      %p83 = scmp.eq.s32.totalorder %s24, 1
      %p84 = por %p82, %p83
      %p85 = scmp.ne.s32.totalorder %s74, %s75
      %p86 = scmp.eq.s32.totalorder %s24, 0
      %p87 = por %p85, %p86
      %p88 = scmp.ne.s32.totalorder %s74, %s75
      %p89 = scmp.eq.s32.totalorder %s25, 1
      %p90 = por %p88, %p89
      %p92 = scmp.ne.s32.totalorder %s75, %s91
      %p93 = scmp.eq.s32.totalorder %s25, 0
      %p94 = por %p92, %p93
      %s95 = ssub.s32 %s26, %s38
      %s96 = ssub.s32 %s27, %s34
      %s97 = sor.u32 %s95, %s96
      %p98 = scmp.eq.s32.totalorder %s97, 0
      %s100 = sadd.s32 %s99, 1
      %s101 = scalar_select %p98, %s99, %s100
      %p104 = pneg %p98
      %p105 = scmp.eq.s32.totalorder %s19, 1
      %p106 = por %p104, %p105
      %p107 = scmp.ne.s32.totalorder %s99, %s102
      %p108 = scmp.eq.s32.totalorder %s19, 0
      %p109 = por %p107, %p108
      %p110 = scmp.ne.s32.totalorder %s99, %s102
      %p111 = scmp.eq.s32.totalorder %s24, 1
      %p112 = por %p110, %p111
      %p113 = scmp.ne.s32.totalorder %s102, %s103
      %p114 = scmp.eq.s32.totalorder %s24, 0
      %p115 = por %p113, %p114
      %p116 = scmp.ne.s32.totalorder %s102, %s103
      %p117 = scmp.eq.s32.totalorder %s25, 1
      %p118 = por %p116, %p117
      %p120 = scmp.ne.s32.totalorder %s103, %s119
      %p121 = scmp.eq.s32.totalorder %s25, 0
      %p122 = por %p120, %p121
      %s123 = ssub.s32 %s26, %s38
      %s124 = ssub.s32 %s27, %s34
      %s125 = sor.u32 %s123, %s124
      %p126 = scmp.eq.s32.totalorder %s125, 0
      %s128 = sadd.s32 %s127, 1
      %s129 = scalar_select %p126, %s127, %s128
      %p132 = pneg %p126
      %p133 = scmp.eq.s32.totalorder %s19, 1
      %p134 = por %p132, %p133
      %p135 = scmp.ne.s32.totalorder %s127, %s130
      %p136 = scmp.eq.s32.totalorder %s19, 0
      %p137 = por %p135, %p136
      %p138 = scmp.ne.s32.totalorder %s127, %s130
      %p139 = scmp.eq.s32.totalorder %s24, 1
      %p140 = por %p138, %p139
      %p141 = scmp.ne.s32.totalorder %s130, %s131
      %p142 = scmp.eq.s32.totalorder %s24, 0
      %p143 = por %p141, %p142
      %p144 = scmp.ne.s32.totalorder %s130, %s131
      %p145 = scmp.eq.s32.totalorder %s25, 1
      %p146 = por %p144, %p145
      %p148 = scmp.ne.s32.totalorder %s131, %s147
      %p149 = scmp.eq.s32.totalorder %s25, 0
      %p150 = por %p148, %p149
      %s152 = sadd.s32 %s151, 1
      %p155 = scmp.eq.s32.totalorder %s19, 1
      %p156 = scmp.ne.s32.totalorder %s151, %s153
      %p157 = scmp.eq.s32.totalorder %s19, 0
      %p158 = por %p156, %p157
      %p159 = scmp.ne.s32.totalorder %s151, %s153
      %p160 = scmp.eq.s32.totalorder %s24, 1
      %p161 = por %p159, %p160
      %p162 = scmp.ne.s32.totalorder %s153, %s154
      %p163 = scmp.eq.s32.totalorder %s24, 0
      %p164 = por %p162, %p163
      %p165 = scmp.ne.s32.totalorder %s153, %s154
      %p166 = scmp.eq.s32.totalorder %s25, 1
      %p167 = por %p165, %p166
      %p169 = scmp.ne.s32.totalorder %s154, %s168
      %p170 = scmp.eq.s32.totalorder %s25, 0
      %p171 = por %p169, %p170
      %s173 = sadd.s32 %s172, 1
      %p176 = scmp.eq.s32.totalorder %s19, 1
      %p177 = scmp.ne.s32.totalorder %s172, %s174
      %p178 = scmp.eq.s32.totalorder %s19, 0
      %p179 = por %p177, %p178
      %p180 = scmp.ne.s32.totalorder %s172, %s174
      %p181 = scmp.eq.s32.totalorder %s24, 1
      %p182 = por %p180, %p181
      %p183 = scmp.ne.s32.totalorder %s174, %s175
      %p184 = scmp.eq.s32.totalorder %s24, 0
      %p185 = por %p183, %p184
      %p186 = scmp.ne.s32.totalorder %s174, %s175
      %p187 = scmp.eq.s32.totalorder %s25, 1
      %p188 = por %p186, %p187
      %p190 = scmp.ne.s32.totalorder %s175, %s189
      %p191 = scmp.eq.s32.totalorder %s25, 0
      %p192 = por %p190, %p191
      %s194 = sadd.s32 %s193, 1
      %p197 = scmp.eq.s32.totalorder %s19, 1
      %p198 = scmp.ne.s32.totalorder %s193, %s195
      %p199 = scmp.eq.s32.totalorder %s19, 0
      %p200 = por %p198, %p199
      %p201 = scmp.ne.s32.totalorder %s193, %s195
      %p202 = scmp.eq.s32.totalorder %s24, 1
      %p203 = por %p201, %p202
      %p204 = scmp.ne.s32.totalorder %s195, %s196
      %p205 = scmp.eq.s32.totalorder %s24, 0
      %p206 = por %p204, %p205
      %p207 = scmp.ne.s32.totalorder %s195, %s196
      %p208 = scmp.eq.s32.totalorder %s25, 1
      %p209 = por %p207, %p208
      %p211 = scmp.ne.s32.totalorder %s196, %s210
      %p212 = scmp.eq.s32.totalorder %s25, 0
      %p213 = por %p211, %p212
      %s215 = sadd.s32 %s214, 1
      %p218 = scmp.eq.s32.totalorder %s19, 1
      %p219 = scmp.ne.s32.totalorder %s214, %s216
      %p220 = scmp.eq.s32.totalorder %s19, 0
      %p221 = por %p219, %p220
      %p222 = scmp.ne.s32.totalorder %s214, %s216
      %p223 = scmp.eq.s32.totalorder %s24, 1
      %p224 = por %p222, %p223
      %p225 = scmp.ne.s32.totalorder %s216, %s217
      %p226 = scmp.eq.s32.totalorder %s24, 0
      %p227 = por %p225, %p226
      %p228 = scmp.ne.s32.totalorder %s216, %s217
      %p229 = scmp.eq.s32.totalorder %s25, 1
      %p230 = por %p228, %p229
      %p232 = scmp.ne.s32.totalorder %s217, %s231
      %p233 = scmp.eq.s32.totalorder %s25, 0
      %p234 = por %p232, %p233
      %s236 = sadd.s32 %s235, 1
      %p239 = scmp.eq.s32.totalorder %s19, 1
      %p240 = scmp.ne.s32.totalorder %s235, %s237
      %p241 = scmp.eq.s32.totalorder %s19, 0
      %p242 = por %p240, %p241
      %p243 = scmp.ne.s32.totalorder %s235, %s237
      %p244 = scmp.eq.s32.totalorder %s24, 1
      %p245 = por %p243, %p244
      %p246 = scmp.ne.s32.totalorder %s237, %s238
      %p247 = scmp.eq.s32.totalorder %s24, 0
      %p248 = por %p246, %p247
      %p249 = scmp.ne.s32.totalorder %s237, %s238
      %p250 = scmp.eq.s32.totalorder %s25, 1
      %p251 = por %p249, %p250
      %p253 = scmp.ne.s32.totalorder %s238, %s252
      %p254 = scmp.eq.s32.totalorder %s25, 0
      %p255 = por %p253, %p254
      %s257 = sadd.s32 %s256, 1
      %p260 = scmp.eq.s32.totalorder %s19, 1
      %p261 = scmp.ne.s32.totalorder %s256, %s258
      %p262 = scmp.eq.s32.totalorder %s19, 0
      %p263 = por %p261, %p262
      %p264 = scmp.ne.s32.totalorder %s256, %s258
      %p265 = scmp.eq.s32.totalorder %s24, 1
      %p266 = por %p264, %p265
      %p267 = scmp.ne.s32.totalorder %s258, %s259
      %p268 = scmp.eq.s32.totalorder %s24, 0
      %p269 = por %p267, %p268
      %p270 = scmp.ne.s32.totalorder %s258, %s259
      %p271 = scmp.eq.s32.totalorder %s25, 1
      %p272 = por %p270, %p271
      %p274 = scmp.ne.s32.totalorder %s259, %s273
      %p275 = scmp.eq.s32.totalorder %s25, 0
      %p276 = por %p274, %p275
      %s277 = ssub.s32 %s26, %s38
      %p278 = scmp.eq.s32.totalorder %s277, 0
      %s280 = sadd.s32 %s279, 1
      %s281 = scalar_select %p278, %s279, %s280
      %p284 = pneg %p278
      %p285 = scmp.eq.s32.totalorder %s19, 1
      %p286 = por %p284, %p285
      %p287 = scmp.ne.s32.totalorder %s279, %s282
      %p288 = scmp.eq.s32.totalorder %s19, 0
      %p289 = por %p287, %p288
      %p290 = scmp.ne.s32.totalorder %s279, %s282
      %p291 = scmp.eq.s32.totalorder %s24, 1
      %p292 = por %p290, %p291
      %p293 = scmp.ne.s32.totalorder %s282, %s283
      %p294 = scmp.eq.s32.totalorder %s24, 0
      %p295 = por %p293, %p294
      %p296 = scmp.ne.s32.totalorder %s282, %s283
      %p297 = scmp.eq.s32.totalorder %s25, 1
      %p298 = por %p296, %p297
      %p300 = scmp.ne.s32.totalorder %s283, %s299
      %p301 = scmp.eq.s32.totalorder %s25, 0
      %p302 = por %p300, %p301
      %p303 = scmp.le.s32.totalorder 1, %s19
      %p304 = scmp.lt.s32.totalorder %s19, 3
      %p305 = pnand %p303, %p304
      %p306 = pneg %p305
      // Predicated region
      $region9: #{pallas_forward.9} parent=5 // pred_check
        _
      $region10: #{pallas_forward.9} parent=5 // pred_check_branch
        %308 = sbr.rel (%p305) target = $region12
      $region11: #{pallas_forward.9} parent=5 // pred_region
        %s309 = ssub.s32 %s19, 1
        // Predicated region
        $region13: #{pallas_forward.9} parent=11 // pred_check
          %p310 = pneg %p164
        $region14: #{pallas_forward.9} parent=11 // pred_check_branch
          %312 = sbr.rel (%p310) target = $region16
        $region15: #{pallas_forward.9} parent=11 // pred_region
          _
        $region16: #{pallas_forward.9} parent=11 // pred_fallthru
          _
        // Predicated region
        $region17: #{pallas_forward.9} parent=11 // pred_check
          %p313 = pneg %p185
        $region18: #{pallas_forward.9} parent=11 // pred_check_branch
          %315 = sbr.rel (%p313) target = $region20
        $region19: #{pallas_forward.9} parent=11 // pred_region
          _
        $region20: #{pallas_forward.9} parent=11 // pred_fallthru
          _
        // Predicated region
        $region21: #{pallas_forward.9} parent=11 // pred_check
          %p316 = pneg %p206
        $region22: #{pallas_forward.9} parent=11 // pred_check_branch
          %318 = sbr.rel (%p316) target = $region24
        $region23: #{pallas_forward.9} parent=11 // pred_region
          _
        $region24: #{pallas_forward.9} parent=11 // pred_fallthru
          _
        // Predicated region
        $region25: #{pallas_forward.9} parent=11 // pred_check
          %p319 = pneg %p227
        $region26: #{pallas_forward.9} parent=11 // pred_check_branch
          %321 = sbr.rel (%p319) target = $region28
        $region27: #{pallas_forward.9} parent=11 // pred_region
          _
        $region28: #{pallas_forward.9} parent=11 // pred_fallthru
          _
        // Predicated region
        $region29: #{pallas_forward.9} parent=11 // pred_check
          %p322 = pneg %p248
        $region30: #{pallas_forward.9} parent=11 // pred_check_branch
          %324 = sbr.rel (%p322) target = $region32
        $region31: #{pallas_forward.9} parent=11 // pred_region
          _
        $region32: #{pallas_forward.9} parent=11 // pred_fallthru
          _
        // Predicated region
        $region33: #{pallas_forward.9} parent=11 // pred_check
          %p325 = pneg %p269
        $region34: #{pallas_forward.9} parent=11 // pred_check_branch
          %327 = sbr.rel (%p325) target = $region36
        $region35: #{pallas_forward.9} parent=11 // pred_region
          _
        $region36: #{pallas_forward.9} parent=11 // pred_fallthru
          _
      $region12: #{pallas_forward.9} parent=5 // pred_fallthru
        _
      %p328 = scmp.lt.s32.totalorder %s19, 2
      // Predicated region
      $region37: #{pallas_forward.9} parent=5 // pred_check
        %p329 = pneg %p328
      $region38: #{pallas_forward.9} parent=5 // pred_check_branch
        %331 = sbr.rel (%p329) target = $region40
      $region39: #{pallas_forward.9} parent=5 // pred_region
        // Predicated region
        $region41: #{pallas_forward.9} parent=39 // pred_check
          %p332 = pneg %p53
        $region42: #{pallas_forward.9} parent=39 // pred_check_branch
          %334 = sbr.rel (%p332) target = $region44
        $region43: #{pallas_forward.9} parent=39 // pred_region
          %s335 = smul.u32 8, %s27
          %p336 = scmp.lt.s32.totalorder %s26, 1
          %s337 = scalar_select %p336, %s26, 1
          %p338 = scmp.lt.s32.totalorder %s335, 7
          %s339 = scalar_select %p338, %s335, 7
          %s340 = smul.addr %s337, 8
          %s341 = sadd.s32 %s339, %s340
          %s342 = smul.addr %s341, 8
          %s343 = scalar_lea.vmem %s0, %s342
          %s344 = smul.u32 8, %s27
        $region44: #{pallas_forward.9} parent=39 // pred_fallthru
          _
        // Predicated region
        $region45: #{pallas_forward.9} parent=39 // pred_check
          %p345 = pneg %p81
        $region46: #{pallas_forward.9} parent=39 // pred_check_branch
          %347 = sbr.rel (%p345) target = $region48
        $region47: #{pallas_forward.9} parent=39 // pred_region
          %s348 = smul.u32 8, %s27
          %p349 = scmp.lt.s32.totalorder %s26, 1
          %s350 = scalar_select %p349, %s26, 1
          %p351 = scmp.lt.s32.totalorder %s348, 7
          %s352 = scalar_select %p351, %s348, 7
          %s353 = smul.addr %s350, 8
          %s354 = sadd.s32 %s352, %s353
          %s355 = smul.addr %s354, 8
          %s356 = scalar_lea.vmem %s1, %s355
          %s357 = smul.u32 8, %s27
        $region48: #{pallas_forward.9} parent=39 // pred_fallthru
          _
        // Predicated region
        $region49: #{pallas_forward.9} parent=39 // pred_check
          %p358 = pneg %p109
        $region50: #{pallas_forward.9} parent=39 // pred_check_branch
          %360 = sbr.rel (%p358) target = $region52
        $region51: #{pallas_forward.9} parent=39 // pred_region
          %s361 = smul.u32 8, %s27
          %p362 = scmp.lt.s32.totalorder %s26, 1
          %s363 = scalar_select %p362, %s26, 1
          %p364 = scmp.lt.s32.totalorder %s361, 7
          %s365 = scalar_select %p364, %s361, 7
          %s366 = smul.addr %s363, 8
          %s367 = sadd.s32 %s365, %s366
          %s368 = smul.addr %s367, 8
          %s369 = scalar_lea.vmem %s2, %s368
          %s370 = smul.u32 8, %s27
        $region52: #{pallas_forward.9} parent=39 // pred_fallthru
          _
        // Predicated region
        $region53: #{pallas_forward.9} parent=39 // pred_check
          %p371 = pneg %p137
        $region54: #{pallas_forward.9} parent=39 // pred_check_branch
          %373 = sbr.rel (%p371) target = $region56
        $region55: #{pallas_forward.9} parent=39 // pred_region
          %s374 = smul.u32 8, %s27
          %p375 = scmp.lt.s32.totalorder %s26, 1
          %s376 = scalar_select %p375, %s26, 1
          %p377 = scmp.lt.s32.totalorder %s374, 7
          %s378 = scalar_select %p377, %s374, 7
          %s379 = smul.addr %s378, 2
          %s380 = smul.addr %s376, 16
          %s381 = sadd.s32 %s379, %s380
          %s382 = smul.addr %s381, 8
          %s383 = scalar_lea.vmem %s3, %s382
          %s384 = smul.u32 8, %s27
        $region56: #{pallas_forward.9} parent=39 // pred_fallthru
          _
      $region40: #{pallas_forward.9} parent=5 // pred_fallthru
        _
      %p385 = scmp.le.s32.totalorder 1, %s19
      %p386 = scmp.lt.s32.totalorder %s19, 3
      %p387 = pnand %p385, %p386
      %p388 = pneg %p387
      // Predicated region
      $region57: #{pallas_forward.9} parent=5 // pred_check
        _
      $region58: #{pallas_forward.9} parent=5 // pred_check_branch
        %390 = sbr.rel (%p387) target = $region60
      $region59: #{pallas_forward.9} parent=5 // pred_region
        %s391 = ssub.s32 %s19, 1
        %s392 = smul.u32 8, %s29
        %p393 = scmp.lt.s32.totalorder %s28, 1
        %s394 = scalar_select %p393, %s28, 1
        %p395 = scmp.lt.s32.totalorder %s392, 7
        %s396 = scalar_select %p395, %s392, 7
        %s397 = smul.addr %s394, 8
        %s398 = sadd.s32 %s396, %s397
        %s399 = smul.addr %s398, 8
        %s400 = scalar_lea.vmem %s0, %s399
        %p401 = pneg %p59
        %p402 = pneg %p56
        %s403 = smul.u32 8, %s29
        %p404 = scmp.lt.s32.totalorder %s28, 1
        %s405 = scalar_select %p404, %s28, 1
        %p406 = scmp.lt.s32.totalorder %s403, 7
        %s407 = scalar_select %p406, %s403, 7
        %s408 = smul.addr %s405, 8
        %s409 = sadd.s32 %s407, %s408
        %s410 = smul.addr %s409, 8
        %s411 = scalar_lea.vmem %s1, %s410
        %p412 = pneg %p87
        %p413 = pneg %p84
        %s414 = smul.u32 8, %s29
        %p415 = scmp.lt.s32.totalorder %s28, 1
        %s416 = scalar_select %p415, %s28, 1
        %p417 = scmp.lt.s32.totalorder %s414, 7
        %s418 = scalar_select %p417, %s414, 7
        %s419 = smul.addr %s416, 8
        %s420 = sadd.s32 %s418, %s419
        %s421 = smul.addr %s420, 8
        %s422 = scalar_lea.vmem %s2, %s421
        %p423 = pneg %p115
        %p424 = pneg %p112
        %s425 = smul.u32 8, %s29
        %p426 = scmp.lt.s32.totalorder %s28, 1
        %s427 = scalar_select %p426, %s28, 1
        %p428 = scmp.lt.s32.totalorder %s425, 7
        %s429 = scalar_select %p428, %s425, 7
        %s430 = smul.addr %s429, 2
        %s431 = smul.addr %s427, 16
        %s432 = sadd.s32 %s430, %s431
        %s433 = smul.addr %s432, 8
        %s434 = scalar_lea.vmem %s3, %s433
        %p435 = pneg %p143
        %p436 = pneg %p140
        %p437 = pneg %p164
        %p438 = pneg %p161
        %p439 = pneg %p185
        %p440 = pneg %p182
        %p441 = pneg %p206
        %p442 = pneg %p203
        %p443 = pneg %p227
        %p444 = pneg %p224
        %p445 = pneg %p248
        %p446 = pneg %p245
        %p447 = pneg %p269
        %p448 = pneg %p266
        %p449 = pneg %p295
        %p450 = pneg %p292
        %s451 = sand.u32 %s282, 1
        %s452 = scalar_lea.sflag [#allocation4], %s451
        %s453 = sand.u32 %s282, 1
        %s454 = scalar_lea.vmem [#allocation3], %s453
        %s455 = smul.u32 8, %s29
        %p456 = scmp.lt.s32.totalorder %s28, 1
        %s457 = scalar_select %p456, %s28, 1
        %p458 = scmp.lt.s32.totalorder %s455, 7
        %s459 = scalar_select %p458, %s455, 7
        %s460 = smul.addr %s457, 8
        %s461 = sadd.s32 %s459, %s460
        %s462 = smul.addr %s461, 8
        %s463 = scalar_lea.vmem %s0, %s462
        %s464 = smul.u32 8, %s29
        %s465 = smul.u32 8, %s29
        %p466 = scmp.lt.s32.totalorder %s28, 1
        %s467 = scalar_select %p466, %s28, 1
        %p468 = scmp.lt.s32.totalorder %s465, 7
        %s469 = scalar_select %p468, %s465, 7
        %s470 = smul.addr %s467, 8
        %s471 = sadd.s32 %s469, %s470
        %s472 = smul.addr %s471, 8
        %s473 = scalar_lea.vmem %s1, %s472
        %s474 = smul.u32 8, %s29
        %s475 = smul.u32 8, %s29
        %p476 = scmp.lt.s32.totalorder %s28, 1
        %s477 = scalar_select %p476, %s28, 1
        %p478 = scmp.lt.s32.totalorder %s475, 7
        %s479 = scalar_select %p478, %s475, 7
        %s480 = smul.addr %s477, 8
        %s481 = sadd.s32 %s479, %s480
        %s482 = smul.addr %s481, 8
        %s483 = scalar_lea.vmem %s2, %s482
        %s484 = smul.u32 8, %s29
        %s485 = smul.u32 8, %s29
        %p486 = scmp.lt.s32.totalorder %s28, 1
        %s487 = scalar_select %p486, %s28, 1
        %p488 = scmp.lt.s32.totalorder %s485, 7
        %s489 = scalar_select %p488, %s485, 7
        %s490 = smul.addr %s489, 2
        %s491 = smul.addr %s487, 16
        %s492 = sadd.s32 %s490, %s491
        %s493 = smul.addr %s492, 8
        %s494 = scalar_lea.vmem %s3, %s493
        %s495 = smul.u32 8, %s29
        %v496 = vld [vmem:[%s463] sm:$0xff]
        %v497 = vld [vmem:[%s463 + $0x8] sm:$0xff]
        %v498 = vld [vmem:[%s463 + $0x10] sm:$0xff]
        %v499 = vld [vmem:[%s463 + $0x18] sm:$0xff]
        %v500 = vld [vmem:[%s463 + $0x20] sm:$0xff]
        %v501 = vld [vmem:[%s463 + $0x28] sm:$0xff]
        %v502 = vld [vmem:[%s463 + $0x30] sm:$0xff]
        %v503 = vld [vmem:[%s463 + $0x38] sm:$0xff]
        %v504 = vld [vmem:[%s4] sm:$0xff]
        %v505 = vld [vmem:[%s4 + $0x8] sm:$0xff]
        %v506 = vld [vmem:[%s4 + $0x10] sm:$0xff]
        %v507 = vld [vmem:[%s4 + $0x18] sm:$0xff]
        %v508 = vld [vmem:[%s4 + $0x20] sm:$0xff]
        %v509 = vld [vmem:[%s4 + $0x28] sm:$0xff]
        %v510 = vld [vmem:[%s4 + $0x30] sm:$0xff]
        %v511 = vld [vmem:[%s4 + $0x38] sm:$0xff]
        %v512 = vld [vmem:[%s473] sm:$0xff]
        %v513 = vld [vmem:[%s473 + $0x8] sm:$0xff]
        %v514 = vld [vmem:[%s473 + $0x10] sm:$0xff]
        %v515 = vld [vmem:[%s473 + $0x18] sm:$0xff]
        %v516 = vld [vmem:[%s473 + $0x20] sm:$0xff]
        %v517 = vld [vmem:[%s473 + $0x28] sm:$0xff]
        %v518 = vld [vmem:[%s473 + $0x30] sm:$0xff]
        %v519 = vld [vmem:[%s473 + $0x38] sm:$0xff]
        %v520 = vld [vmem:[%s5] sm:$0xff]
        %v521 = vld [vmem:[%s5 + $0x8] sm:$0xff]
        %v522 = vld [vmem:[%s5 + $0x10] sm:$0xff]
        %v523 = vld [vmem:[%s5 + $0x18] sm:$0xff]
        %v524 = vld [vmem:[%s5 + $0x20] sm:$0xff]
        %v525 = vld [vmem:[%s5 + $0x28] sm:$0xff]
        %v526 = vld [vmem:[%s5 + $0x30] sm:$0xff]
        %v527 = vld [vmem:[%s5 + $0x38] sm:$0xff]
        %vm528 = vcmask 523264
        %v530 = vsel %vm528, %v512, 0
        %v533 = vsel %vm528, %v513, 0
        %v536 = vsel %vm528, %v514, 0
        %v539 = vsel %vm528, %v515, 0
        %v542 = vsel %vm528, %v516, 0
        %v545 = vsel %vm528, %v517, 0
        %v548 = vsel %vm528, %v518, 0
        %v551 = vsel %vm528, %v519, 0
        %553 = vmatprep.subr.mxu0 0.0
        %554 = vmatpush1.msra.mxu0 %v520
        %555 = vmatprep.subr.mxu0 0.0
        %556 = vmatpush1.msra.mxu0 %v521
        %557 = vmatprep.subr.mxu0 0.0
        %558 = vmatpush1.msra.mxu0 %v522
        %559 = vmatprep.subr.mxu0 0.0
        %560 = vmatpush1.msra.mxu0 %v523
        %561 = vmatprep.subr.mxu0 0.0
        %562 = vmatpush1.msra.mxu0 %v524
        %563 = vmatprep.subr.mxu0 0.0
        %564 = vmatpush1.msra.mxu0 %v525
        %565 = vmatprep.subr.mxu0 0.0
        %566 = vmatpush1.msra.mxu0 %v526
        %567 = vmatprep.subr.mxu0 0.0
        %568 = vmatpush1.msra.mxu0 %v527
        %569 = vmatprep.subr.mxu0 0.0
        %570 = vmatpush1.msra.mxu0 0.0
        %571 = vmatprep.subr.mxu0 0.0
        %572 = vmatpush1.msra.mxu0 0.0
        %573 = vmatprep.subr.mxu0 0.0
        %574 = vmatpush1.msra.mxu0 0.0
        %575 = vmatprep.subr.mxu0 0.0
        %576 = vmatpush1.msra.mxu0 0.0
        %577 = vmatprep.subr.mxu0 0.0
        %578 = vmatpush1.msra.mxu0 0.0
        %579 = vmatprep.subr.mxu0 0.0
        %580 = vmatpush1.msra.mxu0 0.0
        %581 = vmatprep.subr.mxu0 0.0
        %582 = vmatpush1.msra.mxu0 0.0
        %583 = vmatprep.subr.mxu0 0.0
        %584 = vmatpush1.msra.mxu0 0.0
        %585 = vmatprep.subr.mxu0 0.0
        %586 = vmatpush1.msra.mxu0 0.0
        %587 = vmatprep.subr.mxu0 0.0
        %588 = vmatpush1.msra.mxu0 0.0
        %589 = vmatprep.subr.mxu0 0.0
        %590 = vmatpush1.msra.mxu0 0.0
        %591 = vmatprep.subr.mxu0 0.0
        %592 = vmatpush1.msra.mxu0 0.0
        %593 = vmatprep.subr.mxu0 0.0
        %594 = vmatpush1.msra.mxu0 0.0
        %595 = vmatprep.subr.mxu0 0.0
        %596 = vmatpush1.msra.mxu0 0.0
        %597 = vmatprep.subr.mxu0 0.0
        %598 = vmatpush1.msra.mxu0 0.0
        %599 = vmatprep.subr.mxu0 0.0
        %600 = vmatpush1.msra.mxu0 0.0
        %601 = vmatprep.subr.mxu0 0.0
        %602 = vmatpush1.msra.mxu0 0.0
        %603 = vmatprep.subr.mxu0 0.0
        %604 = vmatpush1.msra.mxu0 0.0
        %605 = vmatprep.subr.mxu0 0.0
        %606 = vmatpush1.msra.mxu0 0.0
        %607 = vmatprep.subr.mxu0 0.0
        %608 = vmatpush1.msra.mxu0 0.0
        %609 = vmatprep.subr.mxu0 0.0
        %610 = vmatpush1.msra.mxu0 0.0
        %611 = vmatprep.subr.mxu0 0.0
        %612 = vmatpush1.msra.mxu0 0.0
        %613 = vmatprep.subr.mxu0 0.0
        %614 = vmatpush1.msra.mxu0 0.0
        %615 = vmatprep.subr.mxu0 0.0
        %616 = vmatpush1.msra.mxu0 0.0
        %617 = vmatprep.mubr.f32.mxu0 0.0
        %618 = vmatmul.mubr.f32.gmra.mrb[0].mxu0 %v530
        %v619 = vpop.f32.mrb[0].mxu0
        %v620 = vadd.f32 0.0, %v619
        %v621 = vpop.f32.mrb[0].mxu0
        %622 = vmatprep.mubr.f32.mxu0 0.0
        %623 = vmatmul.mubr.f32.gmra.mrb[0].mxu0 %v533
        %v624 = vpop.f32.mrb[0].mxu0
        %v625 = vadd.f32 0.0, %v624
        %v626 = vpop.f32.mrb[0].mxu0
        %627 = vmatprep.mubr.f32.mxu0 0.0
        %628 = vmatmul.mubr.f32.gmra.mrb[0].mxu0 %v536
        %v629 = vpop.f32.mrb[0].mxu0
        %v630 = vadd.f32 0.0, %v629
        %v631 = vpop.f32.mrb[0].mxu0
        %632 = vmatprep.mubr.f32.mxu0 0.0
        %633 = vmatmul.mubr.f32.gmra.mrb[0].mxu0 %v539
        %v634 = vpop.f32.mrb[0].mxu0
        %v635 = vadd.f32 0.0, %v634
        %v636 = vpop.f32.mrb[0].mxu0
        %637 = vmatprep.mubr.f32.mxu0 0.0
        %638 = vmatmul.mubr.f32.gmra.mrb[0].mxu0 %v542
        %v639 = vpop.f32.mrb[0].mxu0
        %v640 = vadd.f32 0.0, %v639
        %v641 = vpop.f32.mrb[0].mxu0
        %642 = vmatprep.mubr.f32.mxu0 0.0
        %643 = vmatmul.mubr.f32.gmra.mrb[0].mxu0 %v545
        %v644 = vpop.f32.mrb[0].mxu0
        %v645 = vadd.f32 0.0, %v644
        %v646 = vpop.f32.mrb[0].mxu0
        %647 = vmatprep.mubr.f32.mxu0 0.0
        %648 = vmatmul.mubr.f32.gmra.mrb[0].mxu0 %v548
        %v649 = vpop.f32.mrb[0].mxu0
        %v650 = vadd.f32 0.0, %v649
        %v651 = vpop.f32.mrb[0].mxu0
        %652 = vmatprep.mubr.f32.mxu0 0.0
        %653 = vmatmul.mubr.f32.gmra.mrb[0].mxu0 %v551
        %v654 = vpop.f32.mrb[0].mxu0
        %v655 = vadd.f32 0.0, %v654
        %v656 = vpop.f32.mrb[0].mxu0
        %657 = vdwg.mxu0
        %v659 = vsel %vm528, %v496, 0
        %v662 = vsel %vm528, %v497, 0
        %v665 = vsel %vm528, %v498, 0
        %v668 = vsel %vm528, %v499, 0
        %v671 = vsel %vm528, %v500, 0
        %v674 = vsel %vm528, %v501, 0
        %v677 = vsel %vm528, %v502, 0
        %v680 = vsel %vm528, %v503, 0
        %682 = vmatprep.subr.mxu0 0.0
        %683 = vmatpush1.msra.mxu0 %v504
        %684 = vmatprep.subr.mxu0 0.0
        %685 = vmatpush1.msra.mxu0 %v505
        %686 = vmatprep.subr.mxu0 0.0
        %687 = vmatpush1.msra.mxu0 %v506
        %688 = vmatprep.subr.mxu0 0.0
        %689 = vmatpush1.msra.mxu0 %v507
        %690 = vmatprep.subr.mxu0 0.0
        %691 = vmatpush1.msra.mxu0 %v508
        %692 = vmatprep.subr.mxu0 0.0
        %693 = vmatpush1.msra.mxu0 %v509
        %694 = vmatprep.subr.mxu0 0.0
        %695 = vmatpush1.msra.mxu0 %v510
        %696 = vmatprep.subr.mxu0 0.0
        %697 = vmatpush1.msra.mxu0 %v511
        %698 = vmatprep.subr.mxu0 0.0
        %699 = vmatpush1.msra.mxu0 0.0
        %700 = vmatprep.subr.mxu0 0.0
        %701 = vmatpush1.msra.mxu0 0.0
        %702 = vmatprep.subr.mxu0 0.0
        %703 = vmatpush1.msra.mxu0 0.0
        %704 = vmatprep.subr.mxu0 0.0
        %705 = vmatpush1.msra.mxu0 0.0
        %706 = vmatprep.subr.mxu0 0.0
        %707 = vmatpush1.msra.mxu0 0.0
        %708 = vmatprep.subr.mxu0 0.0
        %709 = vmatpush1.msra.mxu0 0.0
        %710 = vmatprep.subr.mxu0 0.0
        %711 = vmatpush1.msra.mxu0 0.0
        %712 = vmatprep.subr.mxu0 0.0
        %713 = vmatpush1.msra.mxu0 0.0
        %714 = vmatprep.subr.mxu0 0.0
        %715 = vmatpush1.msra.mxu0 0.0
        %716 = vmatprep.subr.mxu0 0.0
        %717 = vmatpush1.msra.mxu0 0.0
        %718 = vmatprep.subr.mxu0 0.0
        %719 = vmatpush1.msra.mxu0 0.0
        %720 = vmatprep.subr.mxu0 0.0
        %721 = vmatpush1.msra.mxu0 0.0
        %722 = vmatprep.subr.mxu0 0.0
        %723 = vmatpush1.msra.mxu0 0.0
        %724 = vmatprep.subr.mxu0 0.0
        %725 = vmatpush1.msra.mxu0 0.0
        %726 = vmatprep.subr.mxu0 0.0
        %727 = vmatpush1.msra.mxu0 0.0
        %728 = vmatprep.subr.mxu0 0.0
        %729 = vmatpush1.msra.mxu0 0.0
        %730 = vmatprep.subr.mxu0 0.0
        %731 = vmatpush1.msra.mxu0 0.0
        %732 = vmatprep.subr.mxu0 0.0
        %733 = vmatpush1.msra.mxu0 0.0
        %734 = vmatprep.subr.mxu0 0.0
        %735 = vmatpush1.msra.mxu0 0.0
        %736 = vmatprep.subr.mxu0 0.0
        %737 = vmatpush1.msra.mxu0 0.0
        %738 = vmatprep.subr.mxu0 0.0
        %739 = vmatpush1.msra.mxu0 0.0
        %740 = vmatprep.subr.mxu0 0.0
        %741 = vmatpush1.msra.mxu0 0.0
        %742 = vmatprep.subr.mxu0 0.0
        %743 = vmatpush1.msra.mxu0 0.0
        %744 = vmatprep.subr.mxu0 0.0
        %745 = vmatpush1.msra.mxu0 0.0
        %746 = vmatprep.mubr.f32.mxu0 0.0
        %747 = vmatmul.mubr.f32.gmra.mrb[0].mxu0 %v659
        %v748 = vpop.f32.mrb[0].mxu0
        %v749 = vadd.f32 %v620, %v748
        %v750 = vpop.f32.mrb[0].mxu0
        %751 = vmatprep.mubr.f32.mxu0 0.0
        %752 = vmatmul.mubr.f32.gmra.mrb[0].mxu0 %v662
        %v753 = vpop.f32.mrb[0].mxu0
        %v754 = vadd.f32 %v625, %v753
        %v755 = vpop.f32.mrb[0].mxu0
        %756 = vmatprep.mubr.f32.mxu0 0.0
        %757 = vmatmul.mubr.f32.gmra.mrb[0].mxu0 %v665
        %v758 = vpop.f32.mrb[0].mxu0
        %v759 = vadd.f32 %v630, %v758
        %v760 = vpop.f32.mrb[0].mxu0
        %761 = vmatprep.mubr.f32.mxu0 0.0
        %762 = vmatmul.mubr.f32.gmra.mrb[0].mxu0 %v668
        %v763 = vpop.f32.mrb[0].mxu0
        %v764 = vadd.f32 %v635, %v763
        %v765 = vpop.f32.mrb[0].mxu0
        %766 = vmatprep.mubr.f32.mxu0 0.0
        %767 = vmatmul.mubr.f32.gmra.mrb[0].mxu0 %v671
        %v768 = vpop.f32.mrb[0].mxu0
        %v769 = vadd.f32 %v640, %v768
        %v770 = vpop.f32.mrb[0].mxu0
        %771 = vmatprep.mubr.f32.mxu0 0.0
        %772 = vmatmul.mubr.f32.gmra.mrb[0].mxu0 %v674
        %v773 = vpop.f32.mrb[0].mxu0
        %v774 = vadd.f32 %v645, %v773
        %v775 = vpop.f32.mrb[0].mxu0
        %776 = vmatprep.mubr.f32.mxu0 0.0
        %777 = vmatmul.mubr.f32.gmra.mrb[0].mxu0 %v677
        %v778 = vpop.f32.mrb[0].mxu0
        %v779 = vadd.f32 %v650, %v778
        %v780 = vpop.f32.mrb[0].mxu0
        %781 = vmatprep.mubr.f32.mxu0 0.0
        %782 = vmatmul.mubr.f32.gmra.mrb[0].mxu0 %v680
        %v783 = vpop.f32.mrb[0].mxu0
        %v784 = vadd.f32 %v655, %v783
        %v785 = vpop.f32.mrb[0].mxu0
        %786 = vdwg.mxu0
        %v787 = vld [vmem:[%s483] sm:$0xff]
        %v788 = vld [vmem:[%s483 + $0x8] sm:$0xff]
        %v789 = vld [vmem:[%s483 + $0x10] sm:$0xff]
        %v790 = vld [vmem:[%s483 + $0x18] sm:$0xff]
        %v791 = vld [vmem:[%s483 + $0x20] sm:$0xff]
        %v792 = vld [vmem:[%s483 + $0x28] sm:$0xff]
        %v793 = vld [vmem:[%s483 + $0x30] sm:$0xff]
        %v794 = vld [vmem:[%s483 + $0x38] sm:$0xff]
        %v795 = vld [vmem:[%s6] sm:$0xff]
        %v796 = vld [vmem:[%s6 + $0x8] sm:$0xff]
        %v797 = vld [vmem:[%s6 + $0x10] sm:$0xff]
        %v798 = vld [vmem:[%s6 + $0x18] sm:$0xff]
        %v799 = vld [vmem:[%s6 + $0x20] sm:$0xff]
        %v800 = vld [vmem:[%s6 + $0x28] sm:$0xff]
        %v801 = vld [vmem:[%s6 + $0x30] sm:$0xff]
        %v802 = vld [vmem:[%s6 + $0x38] sm:$0xff]
        %v803 = vld [vmem:[%s6 + $0x40] sm:$0xff]
        %v804 = vld [vmem:[%s6 + $0x48] sm:$0xff]
        %v805 = vld [vmem:[%s6 + $0x50] sm:$0xff]
        %v806 = vld [vmem:[%s6 + $0x58] sm:$0xff]
        %v807 = vld [vmem:[%s6 + $0x60] sm:$0xff]
        %v808 = vld [vmem:[%s6 + $0x68] sm:$0xff]
        %v809 = vld [vmem:[%s6 + $0x70] sm:$0xff]
        %v810 = vld [vmem:[%s6 + $0x78] sm:$0xff]
        %811 = vmatprep.subr.mxu0 0.0
        %812 = vmatpush1.msra.mxu0 %v795
        %813 = vmatprep.subr.mxu0 0.0
        %814 = vmatpush1.msra.mxu0 %v796
        %815 = vmatprep.subr.mxu0 0.0
        %816 = vmatpush1.msra.mxu0 %v797
        %817 = vmatprep.subr.mxu0 0.0
        %818 = vmatpush1.msra.mxu0 %v798
        %819 = vmatprep.subr.mxu0 0.0
        %820 = vmatpush1.msra.mxu0 %v799
        %821 = vmatprep.subr.mxu0 0.0
        %822 = vmatpush1.msra.mxu0 %v800
        %823 = vmatprep.subr.mxu0 0.0
        %824 = vmatpush1.msra.mxu0 %v801
        %825 = vmatprep.subr.mxu0 0.0
        %826 = vmatpush1.msra.mxu0 %v802
        %827 = vmatprep.subr.mxu0 0.0
        %828 = vmatpush1.msra.mxu0 %v803
        %829 = vmatprep.subr.mxu0 0.0
        %830 = vmatpush1.msra.mxu0 %v804
        %831 = vmatprep.subr.mxu0 0.0
        %832 = vmatpush1.msra.mxu0 %v805
        %833 = vmatprep.subr.mxu0 0.0
        %834 = vmatpush1.msra.mxu0 %v806
        %835 = vmatprep.subr.mxu0 0.0
        %836 = vmatpush1.msra.mxu0 %v807
        %837 = vmatprep.subr.mxu0 0.0
        %838 = vmatpush1.msra.mxu0 %v808
        %839 = vmatprep.subr.mxu0 0.0
        %840 = vmatpush1.msra.mxu0 %v809
        %841 = vmatprep.subr.mxu0 0.0
        %842 = vmatpush1.msra.mxu0 %v810
        %843 = vmatprep.subr.mxu0 0.0
        %844 = vmatpush1.msra.mxu0 0.0
        %845 = vmatprep.subr.mxu0 0.0
        %846 = vmatpush1.msra.mxu0 0.0
        %847 = vmatprep.subr.mxu0 0.0
        %848 = vmatpush1.msra.mxu0 0.0
        %849 = vmatprep.subr.mxu0 0.0
        %850 = vmatpush1.msra.mxu0 0.0
        %851 = vmatprep.subr.mxu0 0.0
        %852 = vmatpush1.msra.mxu0 0.0
        %853 = vmatprep.subr.mxu0 0.0
        %854 = vmatpush1.msra.mxu0 0.0
        %855 = vmatprep.subr.mxu0 0.0
        %856 = vmatpush1.msra.mxu0 0.0
        %857 = vmatprep.subr.mxu0 0.0
        %858 = vmatpush1.msra.mxu0 0.0
        %859 = vmatprep.subr.mxu0 0.0
        %860 = vmatpush1.msra.mxu0 0.0
        %861 = vmatprep.subr.mxu0 0.0
        %862 = vmatpush1.msra.mxu0 0.0
        %863 = vmatprep.subr.mxu0 0.0
        %864 = vmatpush1.msra.mxu0 0.0
        %865 = vmatprep.subr.mxu0 0.0
        %866 = vmatpush1.msra.mxu0 0.0
        %867 = vmatprep.subr.mxu0 0.0
        %868 = vmatpush1.msra.mxu0 0.0
        %869 = vmatprep.subr.mxu0 0.0
        %870 = vmatpush1.msra.mxu0 0.0
        %871 = vmatprep.subr.mxu0 0.0
        %872 = vmatpush1.msra.mxu0 0.0
        %873 = vmatprep.subr.mxu0 0.0
        %874 = vmatpush1.msra.mxu0 0.0
        %875 = vmatprep.mubr.f32.mxu0 0.0
        %876 = vmatmul.mubr.f32.gmra.mrb[0].mxu0 %v787
        %v877 = vpop.f32.mrb[0].mxu0
        %v878 = vadd.f32 0.0, %v877
        %v879 = vpop.f32.mrb[0].mxu0
        %880 = vmatprep.mubr.f32.mxu0 0.0
        %881 = vmatmul.mubr.f32.gmra.mrb[0].mxu0 %v788
        %v882 = vpop.f32.mrb[0].mxu0
        %v883 = vadd.f32 0.0, %v882
        %v884 = vpop.f32.mrb[0].mxu0
        %885 = vmatprep.mubr.f32.mxu0 0.0
        %886 = vmatmul.mubr.f32.gmra.mrb[0].mxu0 %v789
        %v887 = vpop.f32.mrb[0].mxu0
        %v888 = vadd.f32 0.0, %v887
        %v889 = vpop.f32.mrb[0].mxu0
        %890 = vmatprep.mubr.f32.mxu0 0.0
        %891 = vmatmul.mubr.f32.gmra.mrb[0].mxu0 %v790
        %v892 = vpop.f32.mrb[0].mxu0
        %v893 = vadd.f32 0.0, %v892
        %v894 = vpop.f32.mrb[0].mxu0
        %895 = vmatprep.mubr.f32.mxu0 0.0
        %896 = vmatmul.mubr.f32.gmra.mrb[0].mxu0 %v791
        %v897 = vpop.f32.mrb[0].mxu0
        %v898 = vadd.f32 0.0, %v897
        %v899 = vpop.f32.mrb[0].mxu0
        %900 = vmatprep.mubr.f32.mxu0 0.0
        %901 = vmatmul.mubr.f32.gmra.mrb[0].mxu0 %v792
        %v902 = vpop.f32.mrb[0].mxu0
        %v903 = vadd.f32 0.0, %v902
        %v904 = vpop.f32.mrb[0].mxu0
        %905 = vmatprep.mubr.f32.mxu0 0.0
        %906 = vmatmul.mubr.f32.gmra.mrb[0].mxu0 %v793
        %v907 = vpop.f32.mrb[0].mxu0
        %v908 = vadd.f32 0.0, %v907
        %v909 = vpop.f32.mrb[0].mxu0
        %910 = vmatprep.mubr.f32.mxu0 0.0
        %911 = vmatmul.mubr.f32.gmra.mrb[0].mxu0 %v794
        %v912 = vpop.f32.mrb[0].mxu0
        %v913 = vadd.f32 0.0, %v912
        %v914 = vpop.f32.mrb[0].mxu0
        %915 = vdwg.mxu0
        %v916 = vadd.f32 %v749, %v878
        %v917 = vadd.f32 %v754, %v883
        %v918 = vadd.f32 %v759, %v888
        %v919 = vadd.f32 %v764, %v893
        %v920 = vadd.f32 %v769, %v898
        %v921 = vadd.f32 %v774, %v903
        %v922 = vadd.f32 %v779, %v908
        %v923 = vadd.f32 %v784, %v913
        %v924 = vld [vmem:[%s494] sm:$0xff]
        %v925 = vld [vmem:[%s494 + $0x8] sm:$0xff]
        %v926 = vld [vmem:[%s494 + $0x10] sm:$0xff]
        %v927 = vld [vmem:[%s494 + $0x18] sm:$0xff]
        %v928 = vld [vmem:[%s494 + $0x20] sm:$0xff]
        %v929 = vld [vmem:[%s494 + $0x28] sm:$0xff]
        %v930 = vld [vmem:[%s494 + $0x30] sm:$0xff]
        %v931 = vld [vmem:[%s494 + $0x38] sm:$0xff]
        %v932 = vld [vmem:[%s494 + $0x40] sm:$0xff]
        %v933 = vld [vmem:[%s494 + $0x48] sm:$0xff]
        %v934 = vld [vmem:[%s494 + $0x50] sm:$0xff]
        %v935 = vld [vmem:[%s494 + $0x58] sm:$0xff]
        %v936 = vld [vmem:[%s494 + $0x60] sm:$0xff]
        %v937 = vld [vmem:[%s494 + $0x68] sm:$0xff]
        %v938 = vld [vmem:[%s494 + $0x70] sm:$0xff]
        %v939 = vld [vmem:[%s494 + $0x78] sm:$0xff]
        %v940 = vld [vmem:[%s7] sm:$0xff]
        %v941 = vld [vmem:[%s7 + $0x8] sm:$0xff]
        %v942 = vld [vmem:[%s7 + $0x10] sm:$0xff]
        %v943 = vld [vmem:[%s7 + $0x18] sm:$0xff]
        %v944 = vld [vmem:[%s7 + $0x20] sm:$0xff]
        %v945 = vld [vmem:[%s7 + $0x28] sm:$0xff]
        %v946 = vld [vmem:[%s7 + $0x30] sm:$0xff]
        %v947 = vld [vmem:[%s7 + $0x38] sm:$0xff]
        %v948 = vld [vmem:[%s7 + $0x40] sm:$0xff]
        %v949 = vld [vmem:[%s7 + $0x48] sm:$0xff]
        %v950 = vld [vmem:[%s7 + $0x50] sm:$0xff]
        %v951 = vld [vmem:[%s7 + $0x58] sm:$0xff]
        %v952 = vld [vmem:[%s7 + $0x60] sm:$0xff]
        %v953 = vld [vmem:[%s7 + $0x68] sm:$0xff]
        %v954 = vld [vmem:[%s7 + $0x70] sm:$0xff]
        %v955 = vld [vmem:[%s7 + $0x78] sm:$0xff]
        %v956 = vld [vmem:[%s7 + $0x80] sm:$0xff]
        %v957 = vld [vmem:[%s7 + $0x88] sm:$0xff]
        %v958 = vld [vmem:[%s7 + $0x90] sm:$0xff]
        %v959 = vld [vmem:[%s7 + $0x98] sm:$0xff]
        %v960 = vld [vmem:[%s7 + $0xa0] sm:$0xff]
        %v961 = vld [vmem:[%s7 + $0xa8] sm:$0xff]
        %v962 = vld [vmem:[%s7 + $0xb0] sm:$0xff]
        %v963 = vld [vmem:[%s7 + $0xb8] sm:$0xff]
        %v964 = vld [vmem:[%s7 + $0xc0] sm:$0xff]
        %v965 = vld [vmem:[%s7 + $0xc8] sm:$0xff]
        %v966 = vld [vmem:[%s7 + $0xd0] sm:$0xff]
        %v967 = vld [vmem:[%s7 + $0xd8] sm:$0xff]
        %v968 = vld [vmem:[%s7 + $0xe0] sm:$0xff]
        %v969 = vld [vmem:[%s7 + $0xe8] sm:$0xff]
        %v970 = vld [vmem:[%s7 + $0xf0] sm:$0xff]
        %v971 = vld [vmem:[%s7 + $0xf8] sm:$0xff]
        %972 = vmatprep.subr.mxu0 0.0
        %973 = vmatpush1.msra.mxu0 %v940
        %974 = vmatprep.subr.mxu0 0.0
        %975 = vmatpush1.msra.mxu0 %v941
        %976 = vmatprep.subr.mxu0 0.0
        %977 = vmatpush1.msra.mxu0 %v942
        %978 = vmatprep.subr.mxu0 0.0
        %979 = vmatpush1.msra.mxu0 %v943
        %980 = vmatprep.subr.mxu0 0.0
        %981 = vmatpush1.msra.mxu0 %v944
        %982 = vmatprep.subr.mxu0 0.0
        %983 = vmatpush1.msra.mxu0 %v945
        %984 = vmatprep.subr.mxu0 0.0
        %985 = vmatpush1.msra.mxu0 %v946
        %986 = vmatprep.subr.mxu0 0.0
        %987 = vmatpush1.msra.mxu0 %v947
        %988 = vmatprep.subr.mxu0 0.0
        %989 = vmatpush1.msra.mxu0 %v948
        %990 = vmatprep.subr.mxu0 0.0
        %991 = vmatpush1.msra.mxu0 %v949
        %992 = vmatprep.subr.mxu0 0.0
        %993 = vmatpush1.msra.mxu0 %v950
        %994 = vmatprep.subr.mxu0 0.0
        %995 = vmatpush1.msra.mxu0 %v951
        %996 = vmatprep.subr.mxu0 0.0
        %997 = vmatpush1.msra.mxu0 %v952
        %998 = vmatprep.subr.mxu0 0.0
        %999 = vmatpush1.msra.mxu0 %v953
        %1000 = vmatprep.subr.mxu0 0.0
        %1001 = vmatpush1.msra.mxu0 %v954
        %1002 = vmatprep.subr.mxu0 0.0
        %1003 = vmatpush1.msra.mxu0 %v955
        %1004 = vmatprep.subr.mxu0 0.0
        %1005 = vmatpush1.msra.mxu0 %v956
        %1006 = vmatprep.subr.mxu0 0.0
        %1007 = vmatpush1.msra.mxu0 %v957
        %1008 = vmatprep.subr.mxu0 0.0
        %1009 = vmatpush1.msra.mxu0 %v958
        %1010 = vmatprep.subr.mxu0 0.0
        %1011 = vmatpush1.msra.mxu0 %v959
        %1012 = vmatprep.subr.mxu0 0.0
        %1013 = vmatpush1.msra.mxu0 %v960
        %1014 = vmatprep.subr.mxu0 0.0
        %1015 = vmatpush1.msra.mxu0 %v961
        %1016 = vmatprep.subr.mxu0 0.0
        %1017 = vmatpush1.msra.mxu0 %v962
        %1018 = vmatprep.subr.mxu0 0.0
        %1019 = vmatpush1.msra.mxu0 %v963
        %1020 = vmatprep.subr.mxu0 0.0
        %1021 = vmatpush1.msra.mxu0 %v964
        %1022 = vmatprep.subr.mxu0 0.0
        %1023 = vmatpush1.msra.mxu0 %v965
        %1024 = vmatprep.subr.mxu0 0.0
        %1025 = vmatpush1.msra.mxu0 %v966
        %1026 = vmatprep.subr.mxu0 0.0
        %1027 = vmatpush1.msra.mxu0 %v967
        %1028 = vmatprep.subr.mxu0 0.0
        %1029 = vmatpush1.msra.mxu0 %v968
        %1030 = vmatprep.subr.mxu0 0.0
        %1031 = vmatpush1.msra.mxu0 %v969
        %1032 = vmatprep.subr.mxu0 0.0
        %1033 = vmatpush1.msra.mxu0 %v970
        %1034 = vmatprep.subr.mxu0 0.0
        %1035 = vmatpush1.msra.mxu0 %v971
        %1036 = vmatprep.mubr.f32.mxu0 %v925
        %1037 = vmatmul.mubr.f32.gmra.mrb[0].mxu0 %v924
        %v1038 = vpop.f32.mrb[0].mxu0
        %v1039 = vadd.f32 0.0, %v1038
        %v1040 = vpop.f32.mrb[0].mxu0
        %1041 = vmatprep.mubr.f32.mxu0 %v927
        %1042 = vmatmul.mubr.f32.gmra.mrb[0].mxu0 %v926
        %v1043 = vpop.f32.mrb[0].mxu0
        %v1044 = vadd.f32 0.0, %v1043
        %v1045 = vpop.f32.mrb[0].mxu0
        %1046 = vmatprep.mubr.f32.mxu0 %v929
        %1047 = vmatmul.mubr.f32.gmra.mrb[0].mxu0 %v928
        %v1048 = vpop.f32.mrb[0].mxu0
        %v1049 = vadd.f32 0.0, %v1048
        %v1050 = vpop.f32.mrb[0].mxu0
        %1051 = vmatprep.mubr.f32.mxu0 %v931
        %1052 = vmatmul.mubr.f32.gmra.mrb[0].mxu0 %v930
        %v1053 = vpop.f32.mrb[0].mxu0
        %v1054 = vadd.f32 0.0, %v1053
        %v1055 = vpop.f32.mrb[0].mxu0
        %1056 = vmatprep.mubr.f32.mxu0 %v933
        %1057 = vmatmul.mubr.f32.gmra.mrb[0].mxu0 %v932
        %v1058 = vpop.f32.mrb[0].mxu0
        %v1059 = vadd.f32 0.0, %v1058
        %v1060 = vpop.f32.mrb[0].mxu0
        %1061 = vmatprep.mubr.f32.mxu0 %v935
        %1062 = vmatmul.mubr.f32.gmra.mrb[0].mxu0 %v934
        %v1063 = vpop.f32.mrb[0].mxu0
        %v1064 = vadd.f32 0.0, %v1063
        %v1065 = vpop.f32.mrb[0].mxu0
        %1066 = vmatprep.mubr.f32.mxu0 %v937
        %1067 = vmatmul.mubr.f32.gmra.mrb[0].mxu0 %v936
        %v1068 = vpop.f32.mrb[0].mxu0
        %v1069 = vadd.f32 0.0, %v1068
        %v1070 = vpop.f32.mrb[0].mxu0
        %1071 = vmatprep.mubr.f32.mxu0 %v939
        %1072 = vmatmul.mubr.f32.gmra.mrb[0].mxu0 %v938
        %v1073 = vpop.f32.mrb[0].mxu0
        %v1074 = vadd.f32 0.0, %v1073
        %v1075 = vpop.f32.mrb[0].mxu0
        %1076 = vdwg.mxu0
        %v1077 = vadd.f32 %v916, %v1039
        %v1078 = vadd.f32 %v917, %v1044
        %v1079 = vadd.f32 %v918, %v1049
        %v1080 = vadd.f32 %v919, %v1054
        %v1081 = vadd.f32 %v920, %v1059
        %v1082 = vadd.f32 %v921, %v1064
        %v1083 = vadd.f32 %v922, %v1069
        %v1084 = vadd.f32 %v923, %v1074
        %v1085 = vld [vmem:[%s8] sm:$0x1]
        %v1087 = vlaneseq
        %v1088 = vshrl.u32 %v1087, 7
        %v1089 = vsub.s32 0, %v1088
        %v1090 = vrot.slane %v1085, %v1089
        %v1092 = vmul.f32 %v1077, %v1090
        %v1093 = vmul.f32 %v1078, %v1090
        %v1094 = vmul.f32 %v1079, %v1090
        %v1095 = vmul.f32 %v1080, %v1090
        %v1096 = vmul.f32 %v1081, %v1090
        %v1097 = vmul.f32 %v1082, %v1090
        %v1098 = vmul.f32 %v1083, %v1090
        %v1099 = vmul.f32 %v1084, %v1090
        %v1100 = vld [vmem:[%s9] sm:$0x1]
        %v1102 = vlaneseq
        %v1103 = vshrl.u32 %v1102, 7
        %v1104 = vsub.s32 0, %v1103
        %v1105 = vrot.slane %v1100, %v1104
        %v1107 = vadd.f32 %v1092, %v1105
        %v1108 = vadd.f32 %v1093, %v1105
        %v1109 = vadd.f32 %v1094, %v1105
        %v1110 = vadd.f32 %v1095, %v1105
        %v1111 = vadd.f32 %v1096, %v1105
        %v1112 = vadd.f32 %v1097, %v1105
        %v1113 = vadd.f32 %v1098, %v1105
        %v1114 = vadd.f32 %v1099, %v1105
        %v1115 = vmax.f32 %v1107, %v1111
        %v1116 = vmax.f32 %v1108, %v1112
        %v1117 = vmax.f32 %v1109, %v1113
        %v1118 = vmax.f32 %v1110, %v1114
        %v1119 = vmax.f32 %v1115, %v1116
        %v1120 = vmax.f32 %v1117, %v1118
        %v1121 = vmax.f32 %v1119, %v1120
        %v1122 = vrot.slane %v1121, 4
        %v1123 = vmax.f32 %v1121, %v1122
        %v1124 = vrot.slane %v1123, 2
        %v1125 = vmax.f32 %v1123, %v1124
        %v1126 = vrot.slane %v1125, 1
        %v1127 = vmax.f32 %v1125, %v1126
        %p1128 = scmp.eq.s32.totalorder %s29, 0
        // Predicated region
        $region61: #{pallas_forward.9} parent=59 // pred_check
          %p1129 = pneg %p1128
        $region62: #{pallas_forward.9} parent=59 // pred_check_branch
          %1131 = sbr.rel (%p1129) target = $region64
        $region63: #{pallas_forward.9} parent=59 // pred_region
          %1132 = vst [vmem:[#allocation2] sm:$0x1] %v1127
        $region64: #{pallas_forward.9} parent=59 // pred_fallthru
          _
        %p1133 = scmp.gt.s32.totalorder %s29, 0
        // Predicated region
        $region65: #{pallas_forward.9} parent=59 // pred_check
          %p1134 = pneg %p1133
        $region66: #{pallas_forward.9} parent=59 // pred_check_branch
          %1136 = sbr.rel (%p1134) target = $region68
        $region67: #{pallas_forward.9} parent=59 // pred_region
          %v1137 = vld [vmem:[#allocation2] sm:$0x1]
          %v1138 = vmax.f32 %v1137, %v1127
          %1139 = vst [vmem:[#allocation2] sm:$0x1] %v1138
        $region68: #{pallas_forward.9} parent=59 // pred_fallthru
          _
        // Predicated region
        $region69: #{pallas_forward.9} parent=59 // pred_check
          %p1140 = pneg %p1128
        $region70: #{pallas_forward.9} parent=59 // pred_check_branch
          %1142 = sbr.rel (%p1140) target = $region72
        $region71: #{pallas_forward.9} parent=59 // pred_region
          %v1143 = vld [vmem:[#allocation2] sm:$0x1]
          %vm1144 = vcmp.gt.f32.partialorder %v1143, 0.0
          %v1145 = vmul.f32 %v1143, 0.2
          %v1146 = vsel %vm1144, %v1143, %v1145
          %1147 = vst [vmem:[%s454] sm:$0x1] %v1146
        $region72: #{pallas_forward.9} parent=59 // pred_fallthru
          _
        %s1148 = sand.u32 %s282, 1
        %s1149 = scalar_lea.sflag [#allocation4], %s1148
        %s1150 = sand.u32 %s282, 1
        %s1151 = scalar_lea.vmem [#allocation3], %s1150
        // Predicated region
        $region73: #{pallas_forward.9} parent=59 // pred_check
          %p1152 = pneg %p292
        $region74: #{pallas_forward.9} parent=59 // pred_check_branch
          %1154 = sbr.rel (%p1152) target = $region76
        $region75: #{pallas_forward.9} parent=59 // pred_region
          %s1156 = ssub.s32 16, 16
          %1157 = vsyncadd %s1149, %s1156
          %s1158 = smul.addr %s28, 16
          %s1159 = scalar_lea.hbm %s10, %s1158
          %s1161 = sshll.u32 %s1151, 4
          %s1162 = int_to_ptr.vmem [resolvable:$true] %s1161
          %1164 = dma.vmem_to_hbm [thread:$0]  %s1162, 16, %s1159, %s1149
        $region76: #{pallas_forward.9} parent=59 // pred_fallthru
          _
      $region60: #{pallas_forward.9} parent=5 // pred_fallthru
        _
      %p1165 = scmp.le.s32.totalorder 2, %s19
      // Predicated region
      $region77: #{pallas_forward.9} parent=5 // pred_check
        %p1166 = pneg %p1165
      $region78: #{pallas_forward.9} parent=5 // pred_check_branch
        %1168 = sbr.rel (%p1166) target = $region80
      $region79: #{pallas_forward.9} parent=5 // pred_region
        %s1169 = ssub.s32 %s19, 2
        // Predicated region
        $region81: #{pallas_forward.9} parent=79 // pred_check
          %p1170 = pneg %p298
        $region82: #{pallas_forward.9} parent=79 // pred_check_branch
          %1172 = sbr.rel (%p1170) target = $region84
        $region83: #{pallas_forward.9} parent=79 // pred_region
          %s1173 = sand.u32 %s283, 1
          %s1174 = scalar_lea.sflag [#allocation4], %s1173
          %s1175 = sand.u32 %s283, 1
          %s1176 = scalar_lea.vmem [#allocation3], %s1175
          %1177 = dma.done %s1174, 16
        $region84: #{pallas_forward.9} parent=79 // pred_fallthru
          _
      $region80: #{pallas_forward.9} parent=5 // pred_fallthru
        _
    $region6: #{pallas_forward.9} parent=1 // loop_footer
      %s23 = sadd.s32 1, %s19
    $region7: #{pallas_forward.9} parent=1 // loop_footer_branch
      %18 = sbr.rel target = $region3
    $region8: #{pallas_forward.9} parent=1 // loop_exit
      _
    %1178 = vsyncpa [#allocation4], 1
    %s1179 = scalar_lea.sflag [#allocation4], 1
    %1180 = vsyncpa %s1179, 1

// kernel: pallas_forward.8
$region0: #{pallas_forward.8}
  #allocation0 [shape = 'u32[]', space=smem, size = 0x4, offset = 0x4, fixed_abs, tag = 'smem constant byte address 0x4 - core index']
  #allocation1 [shape = 'u32[144,128]{1,0:T(1,128)}', space=vmem, size = 0x12000, scoped, tag = 'internal scratch']
  %s0 = inlined_call_operand.vmem [shape: f32[2,64,128], index: 0, kind: input, shape index: {}]
  %s1 = inlined_call_operand.vmem [shape: s32[2,64,8], index: 1, kind: input, shape index: {}]
  %s2 = inlined_call_operand.vmem [shape: f32[128,256], index: 2, kind: input, shape index: {}]
  %s3 = inlined_call_operand.vmem [shape: f32[128,256], index: 3, kind: input, shape index: {}]
  %s4 = inlined_call_operand.vmem [shape: f32[1,256], index: 4, kind: input, shape index: {}]
  %s5 = inlined_call_operand.vmem [shape: f32[1,256], index: 5, kind: input, shape index: {}]
  %s6 = inlined_call_operand.vmem [shape: f32[2,64,256], index: 6, kind: output, shape index: {}]
  %s7 = sld [smem:[#allocation0]]
  $region57: #{pallas_forward.8} parent=0
    _
  %s9 = ssub.s32 1, %s7
  %s10 = scalar_select 0, %s9, %s7
  loop: start=0, step=1, limit=6
  $region2: #{pallas_forward.8} parent=0 // loop_pre_header
    _
  $region3: #{pallas_forward.8} parent=0 // loop_header
    %s12 = sphi 0, %s16
    %p13 = scmp.ge.s32.totalorder %s12, 6
    %s19 = sphi 0, %s31
    %s20 = sphi 0, %s27
    %s21 = sphi 0, %s19
    %s22 = sphi 0, %s20
    %s23 = sphi 0, %s21
    %s24 = sphi 0, %s22
    %s34 = sphi 0, %s36
    %s37 = sphi 0, %s34
    %s38 = sphi 0, %s37
    %s54 = sphi 0, %s38
    %s62 = sphi 0, %s64
    %s65 = sphi 0, %s62
    %s66 = sphi 0, %s65
    %s82 = sphi 0, %s66
    %s86 = sphi 0, %s86
    %s88 = sphi 0, %s86
    %s89 = sphi 0, %s88
    %s103 = sphi 0, %s89
    %s107 = sphi 0, %s107
    %s109 = sphi 0, %s107
    %s110 = sphi 0, %s109
    %s124 = sphi 0, %s110
    %s128 = sphi 0, %s128
    %s130 = sphi 0, %s128
    %s131 = sphi 0, %s130
    %s145 = sphi 0, %s131
    %s149 = sphi 0, %s149
    %s151 = sphi 0, %s149
    %s152 = sphi 0, %s151
    %s166 = sphi 0, %s152
    %s174 = sphi 0, %s176
    %s177 = sphi 0, %s174
    %s178 = sphi 0, %s177
    %s194 = sphi 0, %s178
  $region4: #{pallas_forward.8} parent=0 // loop_header_branch
    %15 = sbr.rel (%p13) target = $region8
  $region5: #{pallas_forward.8} parent=0 // loop_body
    %s17 = ssub.s32 %s12, 1
    %s18 = ssub.s32 %s12, 2
    %s25 = sadd.s32 1, %s20
    %p26 = scmp.ge.s32.totalorder %s25, 2
    %s27 = scalar_select %p26, 0, %s25
    %s28 = sadd.s32 1, %s19
    %s29 = scalar_select %p26, %s28, %s19
    %p30 = scmp.ge.s32.totalorder %s29, 2
    %s31 = scalar_select %p30, 0, %s29
    %s32 = ssub.s32 %s19, %s31
    %p33 = scmp.eq.s32.totalorder %s32, 0
    %s35 = sadd.s32 %s34, 1
    %s36 = scalar_select %p33, %s34, %s35
    %p39 = pneg %p33
    %p40 = scmp.eq.s32.totalorder %s12, 3
    %p41 = por %p39, %p40
    %p42 = scmp.ne.s32.totalorder %s34, %s37
    %p43 = scmp.eq.s32.totalorder %s12, 0
    %p44 = por %p42, %p43
    %p45 = scmp.ne.s32.totalorder %s34, %s37
    %p46 = scmp.eq.s32.totalorder %s17, 3
    %p47 = por %p45, %p46
    %p48 = scmp.ne.s32.totalorder %s37, %s38
    %p49 = scmp.eq.s32.totalorder %s17, 0
    %p50 = por %p48, %p49
    %p51 = scmp.ne.s32.totalorder %s37, %s38
    %p52 = scmp.eq.s32.totalorder %s18, 3
    %p53 = por %p51, %p52
    %p55 = scmp.ne.s32.totalorder %s38, %s54
    %p56 = scmp.eq.s32.totalorder %s18, 0
    %p57 = por %p55, %p56
    %s58 = ssub.s32 %s19, %s31
    %s59 = ssub.s32 %s20, %s27
    %s60 = sor.u32 %s58, %s59
    %p61 = scmp.eq.s32.totalorder %s60, 0
    %s63 = sadd.s32 %s62, 1
    %s64 = scalar_select %p61, %s62, %s63
    %p67 = pneg %p61
    %p68 = scmp.eq.s32.totalorder %s12, 3
    %p69 = por %p67, %p68
    %p70 = scmp.ne.s32.totalorder %s62, %s65
    %p71 = scmp.eq.s32.totalorder %s12, 0
    %p72 = por %p70, %p71
    %p73 = scmp.ne.s32.totalorder %s62, %s65
    %p74 = scmp.eq.s32.totalorder %s17, 3
    %p75 = por %p73, %p74
    %p76 = scmp.ne.s32.totalorder %s65, %s66
    %p77 = scmp.eq.s32.totalorder %s17, 0
    %p78 = por %p76, %p77
    %p79 = scmp.ne.s32.totalorder %s65, %s66
    %p80 = scmp.eq.s32.totalorder %s18, 3
    %p81 = por %p79, %p80
    %p83 = scmp.ne.s32.totalorder %s66, %s82
    %p84 = scmp.eq.s32.totalorder %s18, 0
    %p85 = por %p83, %p84
    %s87 = sadd.s32 %s86, 1
    %p90 = scmp.eq.s32.totalorder %s12, 3
    %p91 = scmp.ne.s32.totalorder %s86, %s88
    %p92 = scmp.eq.s32.totalorder %s12, 0
    %p93 = por %p91, %p92
    %p94 = scmp.ne.s32.totalorder %s86, %s88
    %p95 = scmp.eq.s32.totalorder %s17, 3
    %p96 = por %p94, %p95
    %p97 = scmp.ne.s32.totalorder %s88, %s89
    %p98 = scmp.eq.s32.totalorder %s17, 0
    %p99 = por %p97, %p98
    %p100 = scmp.ne.s32.totalorder %s88, %s89
    %p101 = scmp.eq.s32.totalorder %s18, 3
    %p102 = por %p100, %p101
    %p104 = scmp.ne.s32.totalorder %s89, %s103
    %p105 = scmp.eq.s32.totalorder %s18, 0
    %p106 = por %p104, %p105
    %s108 = sadd.s32 %s107, 1
    %p111 = scmp.eq.s32.totalorder %s12, 3
    %p112 = scmp.ne.s32.totalorder %s107, %s109
    %p113 = scmp.eq.s32.totalorder %s12, 0
    %p114 = por %p112, %p113
    %p115 = scmp.ne.s32.totalorder %s107, %s109
    %p116 = scmp.eq.s32.totalorder %s17, 3
    %p117 = por %p115, %p116
    %p118 = scmp.ne.s32.totalorder %s109, %s110
    %p119 = scmp.eq.s32.totalorder %s17, 0
    %p120 = por %p118, %p119
    %p121 = scmp.ne.s32.totalorder %s109, %s110
    %p122 = scmp.eq.s32.totalorder %s18, 3
    %p123 = por %p121, %p122
    %p125 = scmp.ne.s32.totalorder %s110, %s124
    %p126 = scmp.eq.s32.totalorder %s18, 0
    %p127 = por %p125, %p126
    %s129 = sadd.s32 %s128, 1
    %p132 = scmp.eq.s32.totalorder %s12, 3
    %p133 = scmp.ne.s32.totalorder %s128, %s130
    %p134 = scmp.eq.s32.totalorder %s12, 0
    %p135 = por %p133, %p134
    %p136 = scmp.ne.s32.totalorder %s128, %s130
    %p137 = scmp.eq.s32.totalorder %s17, 3
    %p138 = por %p136, %p137
    %p139 = scmp.ne.s32.totalorder %s130, %s131
    %p140 = scmp.eq.s32.totalorder %s17, 0
    %p141 = por %p139, %p140
    %p142 = scmp.ne.s32.totalorder %s130, %s131
    %p143 = scmp.eq.s32.totalorder %s18, 3
    %p144 = por %p142, %p143
    %p146 = scmp.ne.s32.totalorder %s131, %s145
    %p147 = scmp.eq.s32.totalorder %s18, 0
    %p148 = por %p146, %p147
    %s150 = sadd.s32 %s149, 1
    %p153 = scmp.eq.s32.totalorder %s12, 3
    %p154 = scmp.ne.s32.totalorder %s149, %s151
    %p155 = scmp.eq.s32.totalorder %s12, 0
    %p156 = por %p154, %p155
    %p157 = scmp.ne.s32.totalorder %s149, %s151
    %p158 = scmp.eq.s32.totalorder %s17, 3
    %p159 = por %p157, %p158
    %p160 = scmp.ne.s32.totalorder %s151, %s152
    %p161 = scmp.eq.s32.totalorder %s17, 0
    %p162 = por %p160, %p161
    %p163 = scmp.ne.s32.totalorder %s151, %s152
    %p164 = scmp.eq.s32.totalorder %s18, 3
    %p165 = por %p163, %p164
    %p167 = scmp.ne.s32.totalorder %s152, %s166
    %p168 = scmp.eq.s32.totalorder %s18, 0
    %p169 = por %p167, %p168
    %s170 = ssub.s32 %s19, %s31
    %s171 = ssub.s32 %s20, %s27
    %s172 = sor.u32 %s170, %s171
    %p173 = scmp.eq.s32.totalorder %s172, 0
    %s175 = sadd.s32 %s174, 1
    %s176 = scalar_select %p173, %s174, %s175
    %p179 = pneg %p173
    %p180 = scmp.eq.s32.totalorder %s12, 3
    %p181 = por %p179, %p180
    %p182 = scmp.ne.s32.totalorder %s174, %s177
    %p183 = scmp.eq.s32.totalorder %s12, 0
    %p184 = por %p182, %p183
    %p185 = scmp.ne.s32.totalorder %s174, %s177
    %p186 = scmp.eq.s32.totalorder %s17, 3
    %p187 = por %p185, %p186
    %p188 = scmp.ne.s32.totalorder %s177, %s178
    %p189 = scmp.eq.s32.totalorder %s17, 0
    %p190 = por %p188, %p189
    %p191 = scmp.ne.s32.totalorder %s177, %s178
    %p192 = scmp.eq.s32.totalorder %s18, 3
    %p193 = por %p191, %p192
    %p195 = scmp.ne.s32.totalorder %s178, %s194
    %p196 = scmp.eq.s32.totalorder %s18, 0
    %p197 = por %p195, %p196
    %p198 = scmp.le.s32.totalorder 1, %s12
    %p199 = scmp.lt.s32.totalorder %s12, 5
    %p200 = pnand %p198, %p199
    %p201 = pneg %p200
    // Predicated region
    $region9: #{pallas_forward.8} parent=5 // pred_check
      _
    $region10: #{pallas_forward.8} parent=5 // pred_check_branch
      %203 = sbr.rel (%p200) target = $region12
    $region11: #{pallas_forward.8} parent=5 // pred_region
      %s204 = ssub.s32 %s12, 1
      // Predicated region
      $region13: #{pallas_forward.8} parent=11 // pred_check
        %p205 = pneg %p99
      $region14: #{pallas_forward.8} parent=11 // pred_check_branch
        %207 = sbr.rel (%p205) target = $region16
      $region15: #{pallas_forward.8} parent=11 // pred_region
        _
      $region16: #{pallas_forward.8} parent=11 // pred_fallthru
        _
      // Predicated region
      $region17: #{pallas_forward.8} parent=11 // pred_check
        %p208 = pneg %p120
      $region18: #{pallas_forward.8} parent=11 // pred_check_branch
        %210 = sbr.rel (%p208) target = $region20
      $region19: #{pallas_forward.8} parent=11 // pred_region
        _
      $region20: #{pallas_forward.8} parent=11 // pred_fallthru
        _
      // Predicated region
      $region21: #{pallas_forward.8} parent=11 // pred_check
        %p211 = pneg %p141
      $region22: #{pallas_forward.8} parent=11 // pred_check_branch
        %213 = sbr.rel (%p211) target = $region24
      $region23: #{pallas_forward.8} parent=11 // pred_region
        _
      $region24: #{pallas_forward.8} parent=11 // pred_fallthru
        _
      // Predicated region
      $region25: #{pallas_forward.8} parent=11 // pred_check
        %p214 = pneg %p162
      $region26: #{pallas_forward.8} parent=11 // pred_check_branch
        %216 = sbr.rel (%p214) target = $region28
      $region27: #{pallas_forward.8} parent=11 // pred_region
        _
      $region28: #{pallas_forward.8} parent=11 // pred_fallthru
        _
    $region12: #{pallas_forward.8} parent=5 // pred_fallthru
      _
    %p217 = scmp.lt.s32.totalorder %s12, 4
    // Predicated region
    $region29: #{pallas_forward.8} parent=5 // pred_check
      %p218 = pneg %p217
    $region30: #{pallas_forward.8} parent=5 // pred_check_branch
      %220 = sbr.rel (%p218) target = $region32
    $region31: #{pallas_forward.8} parent=5 // pred_region
      // Predicated region
      $region33: #{pallas_forward.8} parent=31 // pred_check
        %p221 = pneg %p44
      $region34: #{pallas_forward.8} parent=31 // pred_check_branch
        %223 = sbr.rel (%p221) target = $region36
      $region35: #{pallas_forward.8} parent=31 // pred_region
        %p224 = scmp.lt.s32.totalorder %s19, 1
        %s225 = scalar_select %p224, %s19, 1
        %s226 = smul.addr %s225, 8
        %s227 = smul.addr %s226, 8
        %s228 = scalar_lea.vmem %s0, %s227
      $region36: #{pallas_forward.8} parent=31 // pred_fallthru
        _
      // Predicated region
      $region37: #{pallas_forward.8} parent=31 // pred_check
        %p229 = pneg %p72
      $region38: #{pallas_forward.8} parent=31 // pred_check_branch
        %231 = sbr.rel (%p229) target = $region40
      $region39: #{pallas_forward.8} parent=31 // pred_region
        %s232 = smul.u32 4, %s20
        %p233 = scmp.lt.s32.totalorder %s19, 1
        %s234 = scalar_select %p233, %s19, 1
        %p235 = scmp.lt.s32.totalorder %s232, 7
        %s236 = scalar_select %p235, %s232, 7
        %s237 = smul.addr %s234, 8
        %s238 = sadd.s32 %s236, %s237
        %s239 = smul.addr %s238, 8
        %s240 = scalar_lea.vmem %s1, %s239
        %s241 = smul.u32 4, %s20
      $region40: #{pallas_forward.8} parent=31 // pred_fallthru
        _
    $region32: #{pallas_forward.8} parent=5 // pred_fallthru
      _
    %p242 = scmp.le.s32.totalorder 1, %s12
    %p243 = scmp.lt.s32.totalorder %s12, 5
    %p244 = pnand %p242, %p243
    %p245 = pneg %p244
    // Predicated region
    $region41: #{pallas_forward.8} parent=5 // pred_check
      _
    $region42: #{pallas_forward.8} parent=5 // pred_check_branch
      %247 = sbr.rel (%p244) target = $region44
    $region43: #{pallas_forward.8} parent=5 // pred_region
      %s248 = ssub.s32 %s12, 1
      %p249 = scmp.lt.s32.totalorder %s21, 1
      %s250 = scalar_select %p249, %s21, 1
      %s251 = smul.addr %s250, 8
      %s252 = smul.addr %s251, 8
      %s253 = scalar_lea.vmem %s0, %s252
      %p254 = pneg %p50
      %p255 = pneg %p47
      %s256 = smul.u32 4, %s22
      %p257 = scmp.lt.s32.totalorder %s21, 1
      %s258 = scalar_select %p257, %s21, 1
      %p259 = scmp.lt.s32.totalorder %s256, 7
      %s260 = scalar_select %p259, %s256, 7
      %s261 = smul.addr %s258, 8
      %s262 = sadd.s32 %s260, %s261
      %s263 = smul.addr %s262, 8
      %s264 = scalar_lea.vmem %s1, %s263
      %p265 = pneg %p78
      %p266 = pneg %p75
      %p267 = pneg %p99
      %p268 = pneg %p96
      %p269 = pneg %p120
      %p270 = pneg %p117
      %p271 = pneg %p141
      %p272 = pneg %p138
      %p273 = pneg %p162
      %p274 = pneg %p159
      %p275 = pneg %p190
      %p276 = pneg %p187
      %s277 = smul.u32 4, %s22
      %p278 = scmp.lt.s32.totalorder %s21, 1
      %s279 = scalar_select %p278, %s21, 1
      %p280 = scmp.lt.s32.totalorder %s277, 7
      %s281 = scalar_select %p280, %s277, 7
      %s282 = smul.addr %s281, 2
      %s283 = smul.addr %s279, 16
      %s284 = sadd.s32 %s282, %s283
      %s285 = smul.addr %s284, 8
      %s286 = scalar_lea.vmem %s6, %s285
      %p287 = scmp.lt.s32.totalorder %s21, 1
      %s288 = scalar_select %p287, %s21, 1
      %s289 = smul.addr %s288, 8
      %s290 = smul.addr %s289, 8
      %s291 = scalar_lea.vmem %s0, %s290
      %s292 = smul.u32 4, %s22
      %p293 = scmp.lt.s32.totalorder %s21, 1
      %s294 = scalar_select %p293, %s21, 1
      %p295 = scmp.lt.s32.totalorder %s292, 7
      %s296 = scalar_select %p295, %s292, 7
      %s297 = smul.addr %s294, 8
      %s298 = sadd.s32 %s296, %s297
      %s299 = smul.addr %s298, 8
      %s300 = scalar_lea.vmem %s1, %s299
      %s301 = smul.u32 4, %s22
      %s302 = smul.u32 4, %s22
      %p303 = scmp.lt.s32.totalorder %s21, 1
      %s304 = scalar_select %p303, %s21, 1
      %p305 = scmp.lt.s32.totalorder %s302, 7
      %s306 = scalar_select %p305, %s302, 7
      %s307 = smul.addr %s306, 2
      %s308 = smul.addr %s304, 16
      %s309 = sadd.s32 %s307, %s308
      %s310 = smul.addr %s309, 8
      %s311 = scalar_lea.vmem %s6, %s310
      %s312 = smul.u32 4, %s22
      %v313 = vld [vmem:[%s291] sm:$0xff]
      %v314 = vld [vmem:[%s291 + $0x8] sm:$0xff]
      %v315 = vld [vmem:[%s291 + $0x10] sm:$0xff]
      %v316 = vld [vmem:[%s291 + $0x18] sm:$0xff]
      %v317 = vld [vmem:[%s291 + $0x20] sm:$0xff]
      %v318 = vld [vmem:[%s291 + $0x28] sm:$0xff]
      %v319 = vld [vmem:[%s291 + $0x30] sm:$0xff]
      %v320 = vld [vmem:[%s291 + $0x38] sm:$0xff]
      %v321 = vld [vmem:[%s2] sm:$0xff]
      %v322 = vld [vmem:[%s2 + $0x8] sm:$0xff]
      %v323 = vld [vmem:[%s2 + $0x10] sm:$0xff]
      %v324 = vld [vmem:[%s2 + $0x18] sm:$0xff]
      %v325 = vld [vmem:[%s2 + $0x20] sm:$0xff]
      %v326 = vld [vmem:[%s2 + $0x28] sm:$0xff]
      %v327 = vld [vmem:[%s2 + $0x30] sm:$0xff]
      %v328 = vld [vmem:[%s2 + $0x38] sm:$0xff]
      %v329 = vld [vmem:[%s2 + $0x40] sm:$0xff]
      %v330 = vld [vmem:[%s2 + $0x48] sm:$0xff]
      %v331 = vld [vmem:[%s2 + $0x50] sm:$0xff]
      %v332 = vld [vmem:[%s2 + $0x58] sm:$0xff]
      %v333 = vld [vmem:[%s2 + $0x60] sm:$0xff]
      %v334 = vld [vmem:[%s2 + $0x68] sm:$0xff]
      %v335 = vld [vmem:[%s2 + $0x70] sm:$0xff]
      %v336 = vld [vmem:[%s2 + $0x78] sm:$0xff]
      %v337 = vld [vmem:[%s2 + $0x80] sm:$0xff]
      %v338 = vld [vmem:[%s2 + $0x88] sm:$0xff]
      %v339 = vld [vmem:[%s2 + $0x90] sm:$0xff]
      %v340 = vld [vmem:[%s2 + $0x98] sm:$0xff]
      %v341 = vld [vmem:[%s2 + $0xa0] sm:$0xff]
      %v342 = vld [vmem:[%s2 + $0xa8] sm:$0xff]
      %v343 = vld [vmem:[%s2 + $0xb0] sm:$0xff]
      %v344 = vld [vmem:[%s2 + $0xb8] sm:$0xff]
      %v345 = vld [vmem:[%s2 + $0xc0] sm:$0xff]
      %v346 = vld [vmem:[%s2 + $0xc8] sm:$0xff]
      %v347 = vld [vmem:[%s2 + $0xd0] sm:$0xff]
      %v348 = vld [vmem:[%s2 + $0xd8] sm:$0xff]
      %v349 = vld [vmem:[%s2 + $0xe0] sm:$0xff]
      %v350 = vld [vmem:[%s2 + $0xe8] sm:$0xff]
      %v351 = vld [vmem:[%s2 + $0xf0] sm:$0xff]
      %v352 = vld [vmem:[%s2 + $0xf8] sm:$0xff]
      %v353 = vld [vmem:[%s4] sm:$0x3]
      %v354 = vld [vmem:[%s5] sm:$0x3]
      %s355 = smul.u32 %s22, 32
      %s356 = scalar_lea.vmem %s291, %s355
      %v357 = vld [vmem:[%s356] sm:$0xff]
      %v358 = vld [vmem:[%s356 + $0x8] sm:$0xff]
      %v359 = vld [vmem:[%s356 + $0x10] sm:$0xff]
      %v360 = vld [vmem:[%s356 + $0x18] sm:$0xff]
      %v361 = vld [vmem:[%s300] sm:$0xff]
      %v362 = vld [vmem:[%s300 + $0x8] sm:$0xff]
      %v363 = vld [vmem:[%s300 + $0x10] sm:$0xff]
      %v364 = vld [vmem:[%s300 + $0x18] sm:$0xff]
      %v365 = vld [vmem:[%s3] sm:$0xff]
      %v366 = vld [vmem:[%s3 + $0x8] sm:$0xff]
      %v367 = vld [vmem:[%s3 + $0x10] sm:$0xff]
      %v368 = vld [vmem:[%s3 + $0x18] sm:$0xff]
      %v369 = vld [vmem:[%s3 + $0x20] sm:$0xff]
      %v370 = vld [vmem:[%s3 + $0x28] sm:$0xff]
      %v371 = vld [vmem:[%s3 + $0x30] sm:$0xff]
      %v372 = vld [vmem:[%s3 + $0x38] sm:$0xff]
      %v373 = vld [vmem:[%s3 + $0x40] sm:$0xff]
      %v374 = vld [vmem:[%s3 + $0x48] sm:$0xff]
      %v375 = vld [vmem:[%s3 + $0x50] sm:$0xff]
      %v376 = vld [vmem:[%s3 + $0x58] sm:$0xff]
      %v377 = vld [vmem:[%s3 + $0x60] sm:$0xff]
      %v378 = vld [vmem:[%s3 + $0x68] sm:$0xff]
      %v379 = vld [vmem:[%s3 + $0x70] sm:$0xff]
      %v380 = vld [vmem:[%s3 + $0x78] sm:$0xff]
      %v381 = vld [vmem:[%s3 + $0x80] sm:$0xff]
      %v382 = vld [vmem:[%s3 + $0x88] sm:$0xff]
      %v383 = vld [vmem:[%s3 + $0x90] sm:$0xff]
      %v384 = vld [vmem:[%s3 + $0x98] sm:$0xff]
      %v385 = vld [vmem:[%s3 + $0xa0] sm:$0xff]
      %v386 = vld [vmem:[%s3 + $0xa8] sm:$0xff]
      %v387 = vld [vmem:[%s3 + $0xb0] sm:$0xff]
      %v388 = vld [vmem:[%s3 + $0xb8] sm:$0xff]
      %v389 = vld [vmem:[%s3 + $0xc0] sm:$0xff]
      %v390 = vld [vmem:[%s3 + $0xc8] sm:$0xff]
      %v391 = vld [vmem:[%s3 + $0xd0] sm:$0xff]
      %v392 = vld [vmem:[%s3 + $0xd8] sm:$0xff]
      %v393 = vld [vmem:[%s3 + $0xe0] sm:$0xff]
      %v394 = vld [vmem:[%s3 + $0xe8] sm:$0xff]
      %v395 = vld [vmem:[%s3 + $0xf0] sm:$0xff]
      %v396 = vld [vmem:[%s3 + $0xf8] sm:$0xff]
      %397 = vmatprep.subr.mxu0 %v366
      %398 = vmatpush1.msra.mxu0 %v365
      %399 = vmatprep.subr.mxu0 %v368
      %400 = vmatpush1.msra.mxu0 %v367
      %401 = vmatprep.subr.mxu0 %v370
      %402 = vmatpush1.msra.mxu0 %v369
      %403 = vmatprep.subr.mxu0 %v372
      %404 = vmatpush1.msra.mxu0 %v371
      %405 = vmatprep.subr.mxu0 %v374
      %406 = vmatpush1.msra.mxu0 %v373
      %407 = vmatprep.subr.mxu0 %v376
      %408 = vmatpush1.msra.mxu0 %v375
      %409 = vmatprep.subr.mxu0 %v378
      %410 = vmatpush1.msra.mxu0 %v377
      %411 = vmatprep.subr.mxu0 %v380
      %412 = vmatpush1.msra.mxu0 %v379
      %413 = vmatprep.subr.mxu0 %v382
      %414 = vmatpush1.msra.mxu0 %v381
      %415 = vmatprep.subr.mxu0 %v384
      %416 = vmatpush1.msra.mxu0 %v383
      %417 = vmatprep.subr.mxu0 %v386
      %418 = vmatpush1.msra.mxu0 %v385
      %419 = vmatprep.subr.mxu0 %v388
      %420 = vmatpush1.msra.mxu0 %v387
      %421 = vmatprep.subr.mxu0 %v390
      %422 = vmatpush1.msra.mxu0 %v389
      %423 = vmatprep.subr.mxu0 %v392
      %424 = vmatpush1.msra.mxu0 %v391
      %425 = vmatprep.subr.mxu0 %v394
      %426 = vmatpush1.msra.mxu0 %v393
      %427 = vmatprep.subr.mxu0 %v396
      %428 = vmatpush1.msra.mxu0 %v395
      %429 = vmatprep.subr.mxu0 0.0
      %430 = vmatpush1.msra.mxu0 0.0
      %431 = vmatprep.subr.mxu0 0.0
      %432 = vmatpush1.msra.mxu0 0.0
      %433 = vmatprep.subr.mxu0 0.0
      %434 = vmatpush1.msra.mxu0 0.0
      %435 = vmatprep.subr.mxu0 0.0
      %436 = vmatpush1.msra.mxu0 0.0
      %437 = vmatprep.subr.mxu0 0.0
      %438 = vmatpush1.msra.mxu0 0.0
      %439 = vmatprep.subr.mxu0 0.0
      %440 = vmatpush1.msra.mxu0 0.0
      %441 = vmatprep.subr.mxu0 0.0
      %442 = vmatpush1.msra.mxu0 0.0
      %443 = vmatprep.subr.mxu0 0.0
      %444 = vmatpush1.msra.mxu0 0.0
      %445 = vmatprep.subr.mxu0 0.0
      %446 = vmatpush1.msra.mxu0 0.0
      %447 = vmatprep.subr.mxu0 0.0
      %448 = vmatpush1.msra.mxu0 0.0
      %449 = vmatprep.subr.mxu0 0.0
      %450 = vmatpush1.msra.mxu0 0.0
      %451 = vmatprep.subr.mxu0 0.0
      %452 = vmatpush1.msra.mxu0 0.0
      %453 = vmatprep.subr.mxu0 0.0
      %454 = vmatpush1.msra.mxu0 0.0
      %455 = vmatprep.subr.mxu0 0.0
      %456 = vmatpush1.msra.mxu0 0.0
      %457 = vmatprep.subr.mxu0 0.0
      %458 = vmatpush1.msra.mxu0 0.0
      %459 = vmatprep.subr.mxu0 0.0
      %460 = vmatpush1.msra.mxu0 0.0
      %461 = vmatprep.mubr.f32.mxu0 0.0
      %462 = vmatmul.mubr.f32.gmra.mrb[0].mxu0 %v357
      %v463 = vpop.f32.mrb[0].mxu0
      %v464 = vadd.f32 0.0, %v463
      %v465 = vpop.f32.mrb[0].mxu0
      %v466 = vadd.f32 0.0, %v465
      %467 = vmatprep.mubr.f32.mxu0 0.0
      %468 = vmatmul.mubr.f32.gmra.mrb[0].mxu0 %v358
      %v469 = vpop.f32.mrb[0].mxu0
      %v470 = vadd.f32 0.0, %v469
      %v471 = vpop.f32.mrb[0].mxu0
      %v472 = vadd.f32 0.0, %v471
      %473 = vmatprep.mubr.f32.mxu0 0.0
      %474 = vmatmul.mubr.f32.gmra.mrb[0].mxu0 %v359
      %v475 = vpop.f32.mrb[0].mxu0
      %v476 = vadd.f32 0.0, %v475
      %v477 = vpop.f32.mrb[0].mxu0
      %v478 = vadd.f32 0.0, %v477
      %479 = vmatprep.mubr.f32.mxu0 0.0
      %480 = vmatmul.mubr.f32.gmra.mrb[0].mxu0 %v360
      %v481 = vpop.f32.mrb[0].mxu0
      %v482 = vadd.f32 0.0, %v481
      %v483 = vpop.f32.mrb[0].mxu0
      %v484 = vadd.f32 0.0, %v483
      %485 = vdwg.mxu0
      %v487 = vlaneseq
      %v488 = vshrl.u32 %v487, 7
      %v489 = vsub.s32 0, %v488
      %v490 = vrot.slane %v353, %v489
      %v491 = vlaneseq
      %v492 = vshrl.u32 %v491, 7
      %v493 = vsub.s32 1, %v492
      %v494 = vrot.slane %v353, %v493
      %v497 = vmul.f32 %v464, %v490
      %v498 = vmul.f32 %v466, %v494
      %v499 = vmul.f32 %v470, %v490
      %v500 = vmul.f32 %v472, %v494
      %v501 = vmul.f32 %v476, %v490
      %v502 = vmul.f32 %v478, %v494
      %v503 = vmul.f32 %v482, %v490
      %v504 = vmul.f32 %v484, %v494
      %v506 = vlaneseq
      %v507 = vshrl.u32 %v506, 7
      %v508 = vsub.s32 0, %v507
      %v509 = vrot.slane %v354, %v508
      %v510 = vlaneseq
      %v511 = vshrl.u32 %v510, 7
      %v512 = vsub.s32 1, %v511
      %v513 = vrot.slane %v354, %v512
      %v516 = vadd.f32 %v497, %v509
      %v517 = vadd.f32 %v498, %v513
      %v518 = vadd.f32 %v499, %v509
      %v519 = vadd.f32 %v500, %v513
      %v520 = vadd.f32 %v501, %v509
      %v521 = vadd.f32 %v502, %v513
      %v522 = vadd.f32 %v503, %v509
      %v523 = vadd.f32 %v504, %v513
      %524 = vmatprep.subr.mxu0 %v322
      %525 = vmatpush1.msra.mxu0 %v321
      %526 = vmatprep.subr.mxu0 %v324
      %527 = vmatpush1.msra.mxu0 %v323
      %528 = vmatprep.subr.mxu0 %v326
      %529 = vmatpush1.msra.mxu0 %v325
      %530 = vmatprep.subr.mxu0 %v328
      %531 = vmatpush1.msra.mxu0 %v327
      %532 = vmatprep.subr.mxu0 %v330
      %533 = vmatpush1.msra.mxu0 %v329
      %534 = vmatprep.subr.mxu0 %v332
      %535 = vmatpush1.msra.mxu0 %v331
      %536 = vmatprep.subr.mxu0 %v334
      %537 = vmatpush1.msra.mxu0 %v333
      %538 = vmatprep.subr.mxu0 %v336
      %539 = vmatpush1.msra.mxu0 %v335
      %540 = vmatprep.subr.mxu0 %v338
      %541 = vmatpush1.msra.mxu0 %v337
      %542 = vmatprep.subr.mxu0 %v340
      %543 = vmatpush1.msra.mxu0 %v339
      %544 = vmatprep.subr.mxu0 %v342
      %545 = vmatpush1.msra.mxu0 %v341
      %546 = vmatprep.subr.mxu0 %v344
      %547 = vmatpush1.msra.mxu0 %v343
      %548 = vmatprep.subr.mxu0 %v346
      %549 = vmatpush1.msra.mxu0 %v345
      %550 = vmatprep.subr.mxu0 %v348
      %551 = vmatpush1.msra.mxu0 %v347
      %552 = vmatprep.subr.mxu0 %v350
      %553 = vmatpush1.msra.mxu0 %v349
      %554 = vmatprep.subr.mxu0 %v352
      %555 = vmatpush1.msra.mxu0 %v351
      %556 = vmatprep.subr.mxu0 0.0
      %557 = vmatpush1.msra.mxu0 0.0
      %558 = vmatprep.subr.mxu0 0.0
      %559 = vmatpush1.msra.mxu0 0.0
      %560 = vmatprep.subr.mxu0 0.0
      %561 = vmatpush1.msra.mxu0 0.0
      %562 = vmatprep.subr.mxu0 0.0
      %563 = vmatpush1.msra.mxu0 0.0
      %564 = vmatprep.subr.mxu0 0.0
      %565 = vmatpush1.msra.mxu0 0.0
      %566 = vmatprep.subr.mxu0 0.0
      %567 = vmatpush1.msra.mxu0 0.0
      %568 = vmatprep.subr.mxu0 0.0
      %569 = vmatpush1.msra.mxu0 0.0
      %570 = vmatprep.subr.mxu0 0.0
      %571 = vmatpush1.msra.mxu0 0.0
      %572 = vmatprep.subr.mxu0 0.0
      %573 = vmatpush1.msra.mxu0 0.0
      %574 = vmatprep.subr.mxu0 0.0
      %575 = vmatpush1.msra.mxu0 0.0
      %576 = vmatprep.subr.mxu0 0.0
      %577 = vmatpush1.msra.mxu0 0.0
      %578 = vmatprep.subr.mxu0 0.0
      %579 = vmatpush1.msra.mxu0 0.0
      %580 = vmatprep.subr.mxu0 0.0
      %581 = vmatpush1.msra.mxu0 0.0
      %582 = vmatprep.subr.mxu0 0.0
      %583 = vmatpush1.msra.mxu0 0.0
      %584 = vmatprep.subr.mxu0 0.0
      %585 = vmatpush1.msra.mxu0 0.0
      %586 = vmatprep.subr.mxu0 0.0
      %587 = vmatpush1.msra.mxu0 0.0
      %588 = vmatprep.mubr.f32.mxu0 0.0
      %589 = vmatmul.mubr.f32.gmra.mrb[0].mxu0 %v313
      %v590 = vpop.f32.mrb[0].mxu0
      %v591 = vadd.f32 0.0, %v590
      %v592 = vpop.f32.mrb[0].mxu0
      %v593 = vadd.f32 0.0, %v592
      %594 = vmatprep.mubr.f32.mxu0 0.0
      %595 = vmatmul.mubr.f32.gmra.mrb[0].mxu0 %v314
      %v596 = vpop.f32.mrb[0].mxu0
      %v597 = vadd.f32 0.0, %v596
      %v598 = vpop.f32.mrb[0].mxu0
      %v599 = vadd.f32 0.0, %v598
      %600 = vmatprep.mubr.f32.mxu0 0.0
      %601 = vmatmul.mubr.f32.gmra.mrb[0].mxu0 %v315
      %v602 = vpop.f32.mrb[0].mxu0
      %v603 = vadd.f32 0.0, %v602
      %v604 = vpop.f32.mrb[0].mxu0
      %v605 = vadd.f32 0.0, %v604
      %606 = vmatprep.mubr.f32.mxu0 0.0
      %607 = vmatmul.mubr.f32.gmra.mrb[0].mxu0 %v316
      %v608 = vpop.f32.mrb[0].mxu0
      %v609 = vadd.f32 0.0, %v608
      %v610 = vpop.f32.mrb[0].mxu0
      %v611 = vadd.f32 0.0, %v610
      %612 = vmatprep.mubr.f32.mxu0 0.0
      %613 = vmatmul.mubr.f32.gmra.mrb[0].mxu0 %v317
      %v614 = vpop.f32.mrb[0].mxu0
      %v615 = vadd.f32 0.0, %v614
      %v616 = vpop.f32.mrb[0].mxu0
      %v617 = vadd.f32 0.0, %v616
      %618 = vmatprep.mubr.f32.mxu0 0.0
      %619 = vmatmul.mubr.f32.gmra.mrb[0].mxu0 %v318
      %v620 = vpop.f32.mrb[0].mxu0
      %v621 = vadd.f32 0.0, %v620
      %v622 = vpop.f32.mrb[0].mxu0
      %v623 = vadd.f32 0.0, %v622
      %624 = vmatprep.mubr.f32.mxu0 0.0
      %625 = vmatmul.mubr.f32.gmra.mrb[0].mxu0 %v319
      %v626 = vpop.f32.mrb[0].mxu0
      %v627 = vadd.f32 0.0, %v626
      %v628 = vpop.f32.mrb[0].mxu0
      %v629 = vadd.f32 0.0, %v628
      %630 = vmatprep.mubr.f32.mxu0 0.0
      %631 = vmatmul.mubr.f32.gmra.mrb[0].mxu0 %v320
      %v632 = vpop.f32.mrb[0].mxu0
      %v633 = vadd.f32 0.0, %v632
      %v634 = vpop.f32.mrb[0].mxu0
      %v635 = vadd.f32 0.0, %v634
      %636 = vdwg.mxu0
      %v637 = vlaneseq
      %v638 = vand.u32 %v637, 127
      %639 = vset.pattern.permute.xlu0 0
      %640 = vperm.xlu0 %639, %v361
      %v641 = vpop.permute.xlu0 %640
      %642 = vset.pattern.permute.xlu0 0
      %643 = vperm.xlu0 %642, %v362
      %v644 = vpop.permute.xlu0 %643
      %645 = vset.pattern.permute.xlu0 0
      %646 = vperm.xlu0 %645, %v363
      %v647 = vpop.permute.xlu0 %646
      %648 = vset.pattern.permute.xlu0 0
      %649 = vperm.xlu0 %648, %v364
      %v650 = vpop.permute.xlu0 %649
      %vm651 = vcmp.eq.s32.totalorder %v641, %v638
      %vm652 = vcmp.eq.s32.totalorder %v644, %v638
      %vm653 = vcmp.eq.s32.totalorder %v647, %v638
      %vm654 = vcmp.eq.s32.totalorder %v650, %v638
      %v655 = vsel %vm651, 1.0, 0.0
      %v656 = vsel %vm652, 1.0, 0.0
      %v657 = vsel %vm653, 1.0, 0.0
      %v658 = vsel %vm654, 1.0, 0.0
      %659 = vset.pattern.permute.xlu0 1
      %660 = vperm.xlu0 %659, %v361
      %v661 = vpop.permute.xlu0 %660
      %662 = vset.pattern.permute.xlu0 1
      %663 = vperm.xlu0 %662, %v362
      %v664 = vpop.permute.xlu0 %663
      %665 = vset.pattern.permute.xlu0 1
      %666 = vperm.xlu0 %665, %v363
      %v667 = vpop.permute.xlu0 %666
      %668 = vset.pattern.permute.xlu0 1
      %669 = vperm.xlu0 %668, %v364
      %v670 = vpop.permute.xlu0 %669
      %vm671 = vcmp.eq.s32.totalorder %v661, %v638
      %vm672 = vcmp.eq.s32.totalorder %v664, %v638
      %vm673 = vcmp.eq.s32.totalorder %v667, %v638
      %vm674 = vcmp.eq.s32.totalorder %v670, %v638
      %v675 = vsel %vm671, 1.0, 0.0
      %v676 = vsel %vm672, 1.0, 0.0
      %v677 = vsel %vm673, 1.0, 0.0
      %v678 = vsel %vm674, 1.0, 0.0
      %679 = vset.pattern.permute.xlu0 2
      %680 = vperm.xlu0 %679, %v361
      %v681 = vpop.permute.xlu0 %680
      %682 = vset.pattern.permute.xlu0 2
      %683 = vperm.xlu0 %682, %v362
      %v684 = vpop.permute.xlu0 %683
      %685 = vset.pattern.permute.xlu0 2
      %686 = vperm.xlu0 %685, %v363
      %v687 = vpop.permute.xlu0 %686
      %688 = vset.pattern.permute.xlu0 2
      %689 = vperm.xlu0 %688, %v364
      %v690 = vpop.permute.xlu0 %689
      %vm691 = vcmp.eq.s32.totalorder %v681, %v638
      %vm692 = vcmp.eq.s32.totalorder %v684, %v638
      %vm693 = vcmp.eq.s32.totalorder %v687, %v638
      %vm694 = vcmp.eq.s32.totalorder %v690, %v638
      %v695 = vsel %vm691, 1.0, 0.0
      %v696 = vsel %vm692, 1.0, 0.0
      %v697 = vsel %vm693, 1.0, 0.0
      %v698 = vsel %vm694, 1.0, 0.0
      %699 = vset.pattern.permute.xlu0 3
      %700 = vperm.xlu0 %699, %v361
      %v701 = vpop.permute.xlu0 %700
      %702 = vset.pattern.permute.xlu0 3
      %703 = vperm.xlu0 %702, %v362
      %v704 = vpop.permute.xlu0 %703
      %705 = vset.pattern.permute.xlu0 3
      %706 = vperm.xlu0 %705, %v363
      %v707 = vpop.permute.xlu0 %706
      %708 = vset.pattern.permute.xlu0 3
      %709 = vperm.xlu0 %708, %v364
      %v710 = vpop.permute.xlu0 %709
      %vm711 = vcmp.eq.s32.totalorder %v701, %v638
      %vm712 = vcmp.eq.s32.totalorder %v704, %v638
      %vm713 = vcmp.eq.s32.totalorder %v707, %v638
      %vm714 = vcmp.eq.s32.totalorder %v710, %v638
      %v715 = vsel %vm711, 1.0, 0.0
      %v716 = vsel %vm712, 1.0, 0.0
      %v717 = vsel %vm713, 1.0, 0.0
      %v718 = vsel %vm714, 1.0, 0.0
      %719 = vset.pattern.permute.xlu0 4
      %720 = vperm.xlu0 %719, %v361
      %v721 = vpop.permute.xlu0 %720
      %722 = vset.pattern.permute.xlu0 4
      %723 = vperm.xlu0 %722, %v362
      %v724 = vpop.permute.xlu0 %723
      %725 = vset.pattern.permute.xlu0 4
      %726 = vperm.xlu0 %725, %v363
      %v727 = vpop.permute.xlu0 %726
      %728 = vset.pattern.permute.xlu0 4
      %729 = vperm.xlu0 %728, %v364
      %v730 = vpop.permute.xlu0 %729
      %vm731 = vcmp.eq.s32.totalorder %v721, %v638
      %vm732 = vcmp.eq.s32.totalorder %v724, %v638
      %vm733 = vcmp.eq.s32.totalorder %v727, %v638
      %vm734 = vcmp.eq.s32.totalorder %v730, %v638
      %v735 = vsel %vm731, 1.0, 0.0
      %v736 = vsel %vm732, 1.0, 0.0
      %v737 = vsel %vm733, 1.0, 0.0
      %v738 = vsel %vm734, 1.0, 0.0
      %739 = vset.pattern.permute.xlu0 5
      %740 = vperm.xlu0 %739, %v361
      %v741 = vpop.permute.xlu0 %740
      %742 = vset.pattern.permute.xlu0 5
      %743 = vperm.xlu0 %742, %v362
      %v744 = vpop.permute.xlu0 %743
      %745 = vset.pattern.permute.xlu0 5
      %746 = vperm.xlu0 %745, %v363
      %v747 = vpop.permute.xlu0 %746
      %748 = vset.pattern.permute.xlu0 5
      %749 = vperm.xlu0 %748, %v364
      %v750 = vpop.permute.xlu0 %749
      %vm751 = vcmp.eq.s32.totalorder %v741, %v638
      %vm752 = vcmp.eq.s32.totalorder %v744, %v638
      %vm753 = vcmp.eq.s32.totalorder %v747, %v638
      %vm754 = vcmp.eq.s32.totalorder %v750, %v638
      %v755 = vsel %vm751, 1.0, 0.0
      %v756 = vsel %vm752, 1.0, 0.0
      %v757 = vsel %vm753, 1.0, 0.0
      %v758 = vsel %vm754, 1.0, 0.0
      %759 = vset.pattern.permute.xlu0 6
      %760 = vperm.xlu0 %759, %v361
      %v761 = vpop.permute.xlu0 %760
      %762 = vset.pattern.permute.xlu0 6
      %763 = vperm.xlu0 %762, %v362
      %v764 = vpop.permute.xlu0 %763
      %765 = vset.pattern.permute.xlu0 6
      %766 = vperm.xlu0 %765, %v363
      %v767 = vpop.permute.xlu0 %766
      %768 = vset.pattern.permute.xlu0 6
      %769 = vperm.xlu0 %768, %v364
      %v770 = vpop.permute.xlu0 %769
      %vm771 = vcmp.eq.s32.totalorder %v761, %v638
      %vm772 = vcmp.eq.s32.totalorder %v764, %v638
      %vm773 = vcmp.eq.s32.totalorder %v767, %v638
      %vm774 = vcmp.eq.s32.totalorder %v770, %v638
      %v775 = vsel %vm771, 1.0, 0.0
      %v776 = vsel %vm772, 1.0, 0.0
      %v777 = vsel %vm773, 1.0, 0.0
      %v778 = vsel %vm774, 1.0, 0.0
      %779 = vset.pattern.permute.xlu0 7
      %780 = vperm.xlu0 %779, %v361
      %v781 = vpop.permute.xlu0 %780
      %782 = vset.pattern.permute.xlu0 7
      %783 = vperm.xlu0 %782, %v362
      %v784 = vpop.permute.xlu0 %783
      %785 = vset.pattern.permute.xlu0 7
      %786 = vperm.xlu0 %785, %v363
      %v787 = vpop.permute.xlu0 %786
      %788 = vset.pattern.permute.xlu0 7
      %789 = vperm.xlu0 %788, %v364
      %v790 = vpop.permute.xlu0 %789
      %vm791 = vcmp.eq.s32.totalorder %v781, %v638
      %vm792 = vcmp.eq.s32.totalorder %v784, %v638
      %vm793 = vcmp.eq.s32.totalorder %v787, %v638
      %vm794 = vcmp.eq.s32.totalorder %v790, %v638
      %v795 = vsel %vm791, 1.0, 0.0
      %v796 = vsel %vm792, 1.0, 0.0
      %v797 = vsel %vm793, 1.0, 0.0
      %v798 = vsel %vm794, 1.0, 0.0
      %vm799 = vcmask 523264
      %v801 = vsel %vm799, %v655, 0
      %v804 = vsel %vm799, %v656, 0
      %v807 = vsel %vm799, %v657, 0
      %v810 = vsel %vm799, %v658, 0
      %v813 = vsel %vm799, %v675, 0
      %v816 = vsel %vm799, %v676, 0
      %v819 = vsel %vm799, %v677, 0
      %v822 = vsel %vm799, %v678, 0
      %v825 = vsel %vm799, %v695, 0
      %v828 = vsel %vm799, %v696, 0
      %v831 = vsel %vm799, %v697, 0
      %v834 = vsel %vm799, %v698, 0
      %v837 = vsel %vm799, %v715, 0
      %v840 = vsel %vm799, %v716, 0
      %v843 = vsel %vm799, %v717, 0
      %v846 = vsel %vm799, %v718, 0
      %v849 = vsel %vm799, %v735, 0
      %v852 = vsel %vm799, %v736, 0
      %v855 = vsel %vm799, %v737, 0
      %v858 = vsel %vm799, %v738, 0
      %v861 = vsel %vm799, %v755, 0
      %v864 = vsel %vm799, %v756, 0
      %v867 = vsel %vm799, %v757, 0
      %v870 = vsel %vm799, %v758, 0
      %v873 = vsel %vm799, %v775, 0
      %v876 = vsel %vm799, %v776, 0
      %v879 = vsel %vm799, %v777, 0
      %v882 = vsel %vm799, %v778, 0
      %v885 = vsel %vm799, %v795, 0
      %v888 = vsel %vm799, %v796, 0
      %v891 = vsel %vm799, %v797, 0
      %v894 = vsel %vm799, %v798, 0
      %896 = vmatprep.subr.mxu0 %v593
      %897 = vmatpush1.msra.mxu0 %v591
      %898 = vmatprep.subr.mxu0 %v599
      %899 = vmatpush1.msra.mxu0 %v597
      %900 = vmatprep.subr.mxu0 %v605
      %901 = vmatpush1.msra.mxu0 %v603
      %902 = vmatprep.subr.mxu0 %v611
      %903 = vmatpush1.msra.mxu0 %v609
      %904 = vmatprep.subr.mxu0 %v617
      %905 = vmatpush1.msra.mxu0 %v615
      %906 = vmatprep.subr.mxu0 %v623
      %907 = vmatpush1.msra.mxu0 %v621
      %908 = vmatprep.subr.mxu0 %v629
      %909 = vmatpush1.msra.mxu0 %v627
      %910 = vmatprep.subr.mxu0 %v635
      %911 = vmatpush1.msra.mxu0 %v633
      %912 = vmatprep.subr.mxu0 0.0
      %913 = vmatpush1.msra.mxu0 0.0
      %914 = vmatprep.subr.mxu0 0.0
      %915 = vmatpush1.msra.mxu0 0.0
      %916 = vmatprep.subr.mxu0 0.0
      %917 = vmatpush1.msra.mxu0 0.0
      %918 = vmatprep.subr.mxu0 0.0
      %919 = vmatpush1.msra.mxu0 0.0
      %920 = vmatprep.subr.mxu0 0.0
      %921 = vmatpush1.msra.mxu0 0.0
      %922 = vmatprep.subr.mxu0 0.0
      %923 = vmatpush1.msra.mxu0 0.0
      %924 = vmatprep.subr.mxu0 0.0
      %925 = vmatpush1.msra.mxu0 0.0
      %926 = vmatprep.subr.mxu0 0.0
      %927 = vmatpush1.msra.mxu0 0.0
      %928 = vmatprep.subr.mxu0 0.0
      %929 = vmatpush1.msra.mxu0 0.0
      %930 = vmatprep.subr.mxu0 0.0
      %931 = vmatpush1.msra.mxu0 0.0
      %932 = vmatprep.subr.mxu0 0.0
      %933 = vmatpush1.msra.mxu0 0.0
      %934 = vmatprep.subr.mxu0 0.0
      %935 = vmatpush1.msra.mxu0 0.0
      %936 = vmatprep.subr.mxu0 0.0
      %937 = vmatpush1.msra.mxu0 0.0
      %938 = vmatprep.subr.mxu0 0.0
      %939 = vmatpush1.msra.mxu0 0.0
      %940 = vmatprep.subr.mxu0 0.0
      %941 = vmatpush1.msra.mxu0 0.0
      %942 = vmatprep.subr.mxu0 0.0
      %943 = vmatpush1.msra.mxu0 0.0
      %944 = vmatprep.subr.mxu0 0.0
      %945 = vmatpush1.msra.mxu0 0.0
      %946 = vmatprep.subr.mxu0 0.0
      %947 = vmatpush1.msra.mxu0 0.0
      %948 = vmatprep.subr.mxu0 0.0
      %949 = vmatpush1.msra.mxu0 0.0
      %950 = vmatprep.subr.mxu0 0.0
      %951 = vmatpush1.msra.mxu0 0.0
      %952 = vmatprep.subr.mxu0 0.0
      %953 = vmatpush1.msra.mxu0 0.0
      %954 = vmatprep.subr.mxu0 0.0
      %955 = vmatpush1.msra.mxu0 0.0
      %956 = vmatprep.subr.mxu0 0.0
      %957 = vmatpush1.msra.mxu0 0.0
      %958 = vmatprep.subr.mxu0 0.0
      %959 = vmatpush1.msra.mxu0 0.0
      %960 = vmatprep.mubr.f32.mxu0 0.0
      %961 = vmatmul.mubr.f32.gmra.mrb[0].mxu0 %v801
      %v962 = vpop.f32.mrb[0].mxu0
      %v963 = vadd.f32 0.0, %v962
      %v964 = vpop.f32.mrb[0].mxu0
      %v965 = vadd.f32 0.0, %v964
      %966 = vmatprep.mubr.f32.mxu0 0.0
      %967 = vmatmul.mubr.f32.gmra.mrb[0].mxu0 %v804
      %v968 = vpop.f32.mrb[0].mxu0
      %v969 = vadd.f32 0.0, %v968
      %v970 = vpop.f32.mrb[0].mxu0
      %v971 = vadd.f32 0.0, %v970
      %972 = vmatprep.mubr.f32.mxu0 0.0
      %973 = vmatmul.mubr.f32.gmra.mrb[0].mxu0 %v807
      %v974 = vpop.f32.mrb[0].mxu0
      %v975 = vadd.f32 0.0, %v974
      %v976 = vpop.f32.mrb[0].mxu0
      %v977 = vadd.f32 0.0, %v976
      %978 = vmatprep.mubr.f32.mxu0 0.0
      %979 = vmatmul.mubr.f32.gmra.mrb[0].mxu0 %v810
      %v980 = vpop.f32.mrb[0].mxu0
      %v981 = vadd.f32 0.0, %v980
      %v982 = vpop.f32.mrb[0].mxu0
      %v983 = vadd.f32 0.0, %v982
      %984 = vmatprep.mubr.f32.mxu0 0.0
      %985 = vmatmul.mubr.f32.gmra.mrb[0].mxu0 %v813
      %v986 = vpop.f32.mrb[0].mxu0
      %v987 = vadd.f32 0.0, %v986
      %v988 = vpop.f32.mrb[0].mxu0
      %v989 = vadd.f32 0.0, %v988
      %990 = vmatprep.mubr.f32.mxu0 0.0
      %991 = vmatmul.mubr.f32.gmra.mrb[0].mxu0 %v816
      %v992 = vpop.f32.mrb[0].mxu0
      %v993 = vadd.f32 0.0, %v992
      %v994 = vpop.f32.mrb[0].mxu0
      %v995 = vadd.f32 0.0, %v994
      %996 = vmatprep.mubr.f32.mxu0 0.0
      %997 = vmatmul.mubr.f32.gmra.mrb[0].mxu0 %v819
      %v998 = vpop.f32.mrb[0].mxu0
      %v999 = vadd.f32 0.0, %v998
      %v1000 = vpop.f32.mrb[0].mxu0
      %v1001 = vadd.f32 0.0, %v1000
      %1002 = vmatprep.mubr.f32.mxu0 0.0
      %1003 = vmatmul.mubr.f32.gmra.mrb[0].mxu0 %v822
      %v1004 = vpop.f32.mrb[0].mxu0
      %v1005 = vadd.f32 0.0, %v1004
      %v1006 = vpop.f32.mrb[0].mxu0
      %v1007 = vadd.f32 0.0, %v1006
      %1008 = vmatprep.mubr.f32.mxu0 0.0
      %1009 = vmatmul.mubr.f32.gmra.mrb[0].mxu0 %v825
      %v1010 = vpop.f32.mrb[0].mxu0
      %v1011 = vadd.f32 0.0, %v1010
      %v1012 = vpop.f32.mrb[0].mxu0
      %v1013 = vadd.f32 0.0, %v1012
      %1014 = vmatprep.mubr.f32.mxu0 0.0
      %1015 = vmatmul.mubr.f32.gmra.mrb[0].mxu0 %v828
      %v1016 = vpop.f32.mrb[0].mxu0
      %v1017 = vadd.f32 0.0, %v1016
      %v1018 = vpop.f32.mrb[0].mxu0
      %v1019 = vadd.f32 0.0, %v1018
      %1020 = vmatprep.mubr.f32.mxu0 0.0
      %1021 = vmatmul.mubr.f32.gmra.mrb[0].mxu0 %v831
      %v1022 = vpop.f32.mrb[0].mxu0
      %v1023 = vadd.f32 0.0, %v1022
      %v1024 = vpop.f32.mrb[0].mxu0
      %v1025 = vadd.f32 0.0, %v1024
      %1026 = vmatprep.mubr.f32.mxu0 0.0
      %1027 = vmatmul.mubr.f32.gmra.mrb[0].mxu0 %v834
      %v1028 = vpop.f32.mrb[0].mxu0
      %v1029 = vadd.f32 0.0, %v1028
      %v1030 = vpop.f32.mrb[0].mxu0
      %v1031 = vadd.f32 0.0, %v1030
      %1032 = vmatprep.mubr.f32.mxu0 0.0
      %1033 = vmatmul.mubr.f32.gmra.mrb[0].mxu0 %v837
      %v1034 = vpop.f32.mrb[0].mxu0
      %v1035 = vadd.f32 0.0, %v1034
      %v1036 = vpop.f32.mrb[0].mxu0
      %v1037 = vadd.f32 0.0, %v1036
      %1038 = vmatprep.mubr.f32.mxu0 0.0
      %1039 = vmatmul.mubr.f32.gmra.mrb[0].mxu0 %v840
      %v1040 = vpop.f32.mrb[0].mxu0
      %v1041 = vadd.f32 0.0, %v1040
      %v1042 = vpop.f32.mrb[0].mxu0
      %v1043 = vadd.f32 0.0, %v1042
      %1044 = vmatprep.mubr.f32.mxu0 0.0
      %1045 = vmatmul.mubr.f32.gmra.mrb[0].mxu0 %v843
      %v1046 = vpop.f32.mrb[0].mxu0
      %v1047 = vadd.f32 0.0, %v1046
      %v1048 = vpop.f32.mrb[0].mxu0
      %v1049 = vadd.f32 0.0, %v1048
      %1050 = vmatprep.mubr.f32.mxu0 0.0
      %1051 = vmatmul.mubr.f32.gmra.mrb[0].mxu0 %v846
      %v1052 = vpop.f32.mrb[0].mxu0
      %v1053 = vadd.f32 0.0, %v1052
      %v1054 = vpop.f32.mrb[0].mxu0
      %v1055 = vadd.f32 0.0, %v1054
      %1056 = vmatprep.mubr.f32.mxu0 0.0
      %1057 = vmatmul.mubr.f32.gmra.mrb[0].mxu0 %v849
      %v1058 = vpop.f32.mrb[0].mxu0
      %v1059 = vadd.f32 0.0, %v1058
      %v1060 = vpop.f32.mrb[0].mxu0
      %v1061 = vadd.f32 0.0, %v1060
      %1062 = vmatprep.mubr.f32.mxu0 0.0
      %1063 = vmatmul.mubr.f32.gmra.mrb[0].mxu0 %v852
      %v1064 = vpop.f32.mrb[0].mxu0
      %v1065 = vadd.f32 0.0, %v1064
      %v1066 = vpop.f32.mrb[0].mxu0
      %v1067 = vadd.f32 0.0, %v1066
      %1068 = vmatprep.mubr.f32.mxu0 0.0
      %1069 = vmatmul.mubr.f32.gmra.mrb[0].mxu0 %v855
      %v1070 = vpop.f32.mrb[0].mxu0
      %v1071 = vadd.f32 0.0, %v1070
      %v1072 = vpop.f32.mrb[0].mxu0
      %v1073 = vadd.f32 0.0, %v1072
      %1074 = vmatprep.mubr.f32.mxu0 0.0
      %1075 = vmatmul.mubr.f32.gmra.mrb[0].mxu0 %v858
      %v1076 = vpop.f32.mrb[0].mxu0
      %v1077 = vadd.f32 0.0, %v1076
      %v1078 = vpop.f32.mrb[0].mxu0
      %v1079 = vadd.f32 0.0, %v1078
      %1080 = vmatprep.mubr.f32.mxu0 0.0
      %1081 = vmatmul.mubr.f32.gmra.mrb[0].mxu0 %v861
      %v1082 = vpop.f32.mrb[0].mxu0
      %v1083 = vadd.f32 0.0, %v1082
      %v1084 = vpop.f32.mrb[0].mxu0
      %v1085 = vadd.f32 0.0, %v1084
      %1086 = vmatprep.mubr.f32.mxu0 0.0
      %1087 = vmatmul.mubr.f32.gmra.mrb[0].mxu0 %v864
      %v1088 = vpop.f32.mrb[0].mxu0
      %v1089 = vadd.f32 0.0, %v1088
      %v1090 = vpop.f32.mrb[0].mxu0
      %v1091 = vadd.f32 0.0, %v1090
      %1092 = vmatprep.mubr.f32.mxu0 0.0
      %1093 = vmatmul.mubr.f32.gmra.mrb[0].mxu0 %v867
      %v1094 = vpop.f32.mrb[0].mxu0
      %v1095 = vadd.f32 0.0, %v1094
      %v1096 = vpop.f32.mrb[0].mxu0
      %v1097 = vadd.f32 0.0, %v1096
      %1098 = vmatprep.mubr.f32.mxu0 0.0
      %1099 = vmatmul.mubr.f32.gmra.mrb[0].mxu0 %v870
      %v1100 = vpop.f32.mrb[0].mxu0
      %v1101 = vadd.f32 0.0, %v1100
      %v1102 = vpop.f32.mrb[0].mxu0
      %v1103 = vadd.f32 0.0, %v1102
      %1104 = vmatprep.mubr.f32.mxu0 0.0
      %1105 = vmatmul.mubr.f32.gmra.mrb[0].mxu0 %v873
      %v1106 = vpop.f32.mrb[0].mxu0
      %v1107 = vadd.f32 0.0, %v1106
      %v1108 = vpop.f32.mrb[0].mxu0
      %v1109 = vadd.f32 0.0, %v1108
      %1110 = vmatprep.mubr.f32.mxu0 0.0
      %1111 = vmatmul.mubr.f32.gmra.mrb[0].mxu0 %v876
      %v1112 = vpop.f32.mrb[0].mxu0
      %v1113 = vadd.f32 0.0, %v1112
      %v1114 = vpop.f32.mrb[0].mxu0
      %v1115 = vadd.f32 0.0, %v1114
      %1116 = vmatprep.mubr.f32.mxu0 0.0
      %1117 = vmatmul.mubr.f32.gmra.mrb[0].mxu0 %v879
      %v1118 = vpop.f32.mrb[0].mxu0
      %v1119 = vadd.f32 0.0, %v1118
      %v1120 = vpop.f32.mrb[0].mxu0
      %v1121 = vadd.f32 0.0, %v1120
      %1122 = vmatprep.mubr.f32.mxu0 0.0
      %1123 = vmatmul.mubr.f32.gmra.mrb[0].mxu0 %v882
      %v1124 = vpop.f32.mrb[0].mxu0
      %v1125 = vadd.f32 0.0, %v1124
      %v1126 = vpop.f32.mrb[0].mxu0
      %v1127 = vadd.f32 0.0, %v1126
      %1128 = vmatprep.mubr.f32.mxu0 0.0
      %1129 = vmatmul.mubr.f32.gmra.mrb[0].mxu0 %v885
      %v1130 = vpop.f32.mrb[0].mxu0
      %v1131 = vadd.f32 0.0, %v1130
      %v1132 = vpop.f32.mrb[0].mxu0
      %v1133 = vadd.f32 0.0, %v1132
      %1134 = vmatprep.mubr.f32.mxu0 0.0
      %1135 = vmatmul.mubr.f32.gmra.mrb[0].mxu0 %v888
      %v1136 = vpop.f32.mrb[0].mxu0
      %v1137 = vadd.f32 0.0, %v1136
      %v1138 = vpop.f32.mrb[0].mxu0
      %v1139 = vadd.f32 0.0, %v1138
      %1140 = vmatprep.mubr.f32.mxu0 0.0
      %1141 = vmatmul.mubr.f32.gmra.mrb[0].mxu0 %v891
      %v1142 = vpop.f32.mrb[0].mxu0
      %v1143 = vadd.f32 0.0, %v1142
      %v1144 = vpop.f32.mrb[0].mxu0
      %v1145 = vadd.f32 0.0, %v1144
      %1146 = vmatprep.mubr.f32.mxu0 0.0
      %1147 = vmatmul.mubr.f32.gmra.mrb[0].mxu0 %v894
      %v1148 = vpop.f32.mrb[0].mxu0
      %v1149 = vadd.f32 0.0, %v1148
      %v1150 = vpop.f32.mrb[0].mxu0
      %v1151 = vadd.f32 0.0, %v1150
      %1152 = vdwg.mxu0
      %v1153 = vmul.f32 %v963, %v490
      %v1154 = vmul.f32 %v965, %v494
      %v1155 = vmul.f32 %v969, %v490
      %v1156 = vmul.f32 %v971, %v494
      %v1157 = vmul.f32 %v975, %v490
      %v1158 = vmul.f32 %v977, %v494
      %v1159 = vmul.f32 %v981, %v490
      %v1160 = vmul.f32 %v983, %v494
      %v1161 = vadd.f32 %v1153, %v516
      %v1162 = vadd.f32 %v1154, %v517
      %v1163 = vadd.f32 %v1155, %v518
      %v1164 = vadd.f32 %v1156, %v519
      %v1165 = vadd.f32 %v1157, %v520
      %v1166 = vadd.f32 %v1158, %v521
      %v1167 = vadd.f32 %v1159, %v522
      %v1168 = vadd.f32 %v1160, %v523
      %v1169 = vmul.f32 %v987, %v490
      %v1170 = vmul.f32 %v989, %v494
      %v1171 = vmul.f32 %v993, %v490
      %v1172 = vmul.f32 %v995, %v494
      %v1173 = vmul.f32 %v999, %v490
      %v1174 = vmul.f32 %v1001, %v494
      %v1175 = vmul.f32 %v1005, %v490
      %v1176 = vmul.f32 %v1007, %v494
      %v1177 = vadd.f32 %v1169, %v516
      %v1178 = vadd.f32 %v1170, %v517
      %v1179 = vadd.f32 %v1171, %v518
      %v1180 = vadd.f32 %v1172, %v519
      %v1181 = vadd.f32 %v1173, %v520
      %v1182 = vadd.f32 %v1174, %v521
      %v1183 = vadd.f32 %v1175, %v522
      %v1184 = vadd.f32 %v1176, %v523
      %v1185 = vmax.f32 %v1161, %v1177
      %v1186 = vmax.f32 %v1162, %v1178
      %v1187 = vmax.f32 %v1163, %v1179
      %v1188 = vmax.f32 %v1164, %v1180
      %v1189 = vmax.f32 %v1165, %v1181
      %v1190 = vmax.f32 %v1166, %v1182
      %v1191 = vmax.f32 %v1167, %v1183
      %v1192 = vmax.f32 %v1168, %v1184
      %v1193 = vmul.f32 %v1011, %v490
      %v1194 = vmul.f32 %v1013, %v494
      %v1195 = vmul.f32 %v1017, %v490
      %v1196 = vmul.f32 %v1019, %v494
      %v1197 = vmul.f32 %v1023, %v490
      %v1198 = vmul.f32 %v1025, %v494
      %v1199 = vmul.f32 %v1029, %v490
      %v1200 = vmul.f32 %v1031, %v494
      %v1201 = vadd.f32 %v1193, %v516
      %v1202 = vadd.f32 %v1194, %v517
      %v1203 = vadd.f32 %v1195, %v518
      %v1204 = vadd.f32 %v1196, %v519
      %v1205 = vadd.f32 %v1197, %v520
      %v1206 = vadd.f32 %v1198, %v521
      %v1207 = vadd.f32 %v1199, %v522
      %v1208 = vadd.f32 %v1200, %v523
      %v1209 = vmax.f32 %v1185, %v1201
      %v1210 = vmax.f32 %v1186, %v1202
      %v1211 = vmax.f32 %v1187, %v1203
      %v1212 = vmax.f32 %v1188, %v1204
      %v1213 = vmax.f32 %v1189, %v1205
      %v1214 = vmax.f32 %v1190, %v1206
      %v1215 = vmax.f32 %v1191, %v1207
      %v1216 = vmax.f32 %v1192, %v1208
      %v1217 = vmul.f32 %v1035, %v490
      %v1218 = vmul.f32 %v1037, %v494
      %v1219 = vmul.f32 %v1041, %v490
      %v1220 = vmul.f32 %v1043, %v494
      %v1221 = vmul.f32 %v1047, %v490
      %v1222 = vmul.f32 %v1049, %v494
      %v1223 = vmul.f32 %v1053, %v490
      %v1224 = vmul.f32 %v1055, %v494
      %v1225 = vadd.f32 %v1217, %v516
      %v1226 = vadd.f32 %v1218, %v517
      %v1227 = vadd.f32 %v1219, %v518
      %v1228 = vadd.f32 %v1220, %v519
      %v1229 = vadd.f32 %v1221, %v520
      %v1230 = vadd.f32 %v1222, %v521
      %v1231 = vadd.f32 %v1223, %v522
      %v1232 = vadd.f32 %v1224, %v523
      %v1233 = vmax.f32 %v1209, %v1225
      %v1234 = vmax.f32 %v1210, %v1226
      %v1235 = vmax.f32 %v1211, %v1227
      %v1236 = vmax.f32 %v1212, %v1228
      %v1237 = vmax.f32 %v1213, %v1229
      %v1238 = vmax.f32 %v1214, %v1230
      %v1239 = vmax.f32 %v1215, %v1231
      %v1240 = vmax.f32 %v1216, %v1232
      %v1241 = vmul.f32 %v1059, %v490
      %v1242 = vmul.f32 %v1061, %v494
      %v1243 = vmul.f32 %v1065, %v490
      %v1244 = vmul.f32 %v1067, %v494
      %v1245 = vmul.f32 %v1071, %v490
      %v1246 = vmul.f32 %v1073, %v494
      %v1247 = vmul.f32 %v1077, %v490
      %v1248 = vmul.f32 %v1079, %v494
      %v1249 = vadd.f32 %v1241, %v516
      %v1250 = vadd.f32 %v1242, %v517
      %v1251 = vadd.f32 %v1243, %v518
      %v1252 = vadd.f32 %v1244, %v519
      %v1253 = vadd.f32 %v1245, %v520
      %v1254 = vadd.f32 %v1246, %v521
      %v1255 = vadd.f32 %v1247, %v522
      %v1256 = vadd.f32 %v1248, %v523
      %v1257 = vmax.f32 %v1233, %v1249
      %v1258 = vmax.f32 %v1234, %v1250
      %v1259 = vmax.f32 %v1235, %v1251
      %v1260 = vmax.f32 %v1236, %v1252
      %v1261 = vmax.f32 %v1237, %v1253
      %v1262 = vmax.f32 %v1238, %v1254
      %v1263 = vmax.f32 %v1239, %v1255
      %v1264 = vmax.f32 %v1240, %v1256
      %v1265 = vmul.f32 %v1083, %v490
      %v1266 = vmul.f32 %v1085, %v494
      %v1267 = vmul.f32 %v1089, %v490
      %v1268 = vmul.f32 %v1091, %v494
      %v1269 = vmul.f32 %v1095, %v490
      %v1270 = vmul.f32 %v1097, %v494
      %v1271 = vmul.f32 %v1101, %v490
      %v1272 = vmul.f32 %v1103, %v494
      %v1273 = vadd.f32 %v1265, %v516
      %v1274 = vadd.f32 %v1266, %v517
      %v1275 = vadd.f32 %v1267, %v518
      %v1276 = vadd.f32 %v1268, %v519
      %v1277 = vadd.f32 %v1269, %v520
      %v1278 = vadd.f32 %v1270, %v521
      %v1279 = vadd.f32 %v1271, %v522
      %v1280 = vadd.f32 %v1272, %v523
      %v1281 = vmax.f32 %v1257, %v1273
      %v1282 = vmax.f32 %v1258, %v1274
      %v1283 = vmax.f32 %v1259, %v1275
      %v1284 = vmax.f32 %v1260, %v1276
      %v1285 = vmax.f32 %v1261, %v1277
      %v1286 = vmax.f32 %v1262, %v1278
      %v1287 = vmax.f32 %v1263, %v1279
      %v1288 = vmax.f32 %v1264, %v1280
      %v1289 = vmul.f32 %v1107, %v490
      %v1290 = vmul.f32 %v1109, %v494
      %v1291 = vmul.f32 %v1113, %v490
      %v1292 = vmul.f32 %v1115, %v494
      %v1293 = vmul.f32 %v1119, %v490
      %v1294 = vmul.f32 %v1121, %v494
      %v1295 = vmul.f32 %v1125, %v490
      %v1296 = vmul.f32 %v1127, %v494
      %v1297 = vadd.f32 %v1289, %v516
      %v1298 = vadd.f32 %v1290, %v517
      %v1299 = vadd.f32 %v1291, %v518
      %v1300 = vadd.f32 %v1292, %v519
      %v1301 = vadd.f32 %v1293, %v520
      %v1302 = vadd.f32 %v1294, %v521
      %v1303 = vadd.f32 %v1295, %v522
      %v1304 = vadd.f32 %v1296, %v523
      %v1305 = vmax.f32 %v1281, %v1297
      %v1306 = vmax.f32 %v1282, %v1298
      %v1307 = vmax.f32 %v1283, %v1299
      %v1308 = vmax.f32 %v1284, %v1300
      %v1309 = vmax.f32 %v1285, %v1301
      %v1310 = vmax.f32 %v1286, %v1302
      %v1311 = vmax.f32 %v1287, %v1303
      %v1312 = vmax.f32 %v1288, %v1304
      %v1313 = vmul.f32 %v1131, %v490
      %v1314 = vmul.f32 %v1133, %v494
      %v1315 = vmul.f32 %v1137, %v490
      %v1316 = vmul.f32 %v1139, %v494
      %v1317 = vmul.f32 %v1143, %v490
      %v1318 = vmul.f32 %v1145, %v494
      %v1319 = vmul.f32 %v1149, %v490
      %v1320 = vmul.f32 %v1151, %v494
      %v1321 = vadd.f32 %v1313, %v516
      %v1322 = vadd.f32 %v1314, %v517
      %v1323 = vadd.f32 %v1315, %v518
      %v1324 = vadd.f32 %v1316, %v519
      %v1325 = vadd.f32 %v1317, %v520
      %v1326 = vadd.f32 %v1318, %v521
      %v1327 = vadd.f32 %v1319, %v522
      %v1328 = vadd.f32 %v1320, %v523
      %v1329 = vmax.f32 %v1305, %v1321
      %v1330 = vmax.f32 %v1306, %v1322
      %v1331 = vmax.f32 %v1307, %v1323
      %v1332 = vmax.f32 %v1308, %v1324
      %v1333 = vmax.f32 %v1309, %v1325
      %v1334 = vmax.f32 %v1310, %v1326
      %v1335 = vmax.f32 %v1311, %v1327
      %v1336 = vmax.f32 %v1312, %v1328
      %vm1337 = vcmp.gt.f32.partialorder %v1329, 0.0
      %vm1338 = vcmp.gt.f32.partialorder %v1330, 0.0
      %vm1339 = vcmp.gt.f32.partialorder %v1331, 0.0
      %vm1340 = vcmp.gt.f32.partialorder %v1332, 0.0
      %vm1341 = vcmp.gt.f32.partialorder %v1333, 0.0
      %vm1342 = vcmp.gt.f32.partialorder %v1334, 0.0
      %vm1343 = vcmp.gt.f32.partialorder %v1335, 0.0
      %vm1344 = vcmp.gt.f32.partialorder %v1336, 0.0
      %v1345 = vmul.f32 %v1329, 0.2
      %v1346 = vmul.f32 %v1330, 0.2
      %v1347 = vmul.f32 %v1331, 0.2
      %v1348 = vmul.f32 %v1332, 0.2
      %v1349 = vmul.f32 %v1333, 0.2
      %v1350 = vmul.f32 %v1334, 0.2
      %v1351 = vmul.f32 %v1335, 0.2
      %v1352 = vmul.f32 %v1336, 0.2
      %v1353 = vsel %vm1337, %v1329, %v1345
      %v1354 = vsel %vm1338, %v1330, %v1346
      %v1355 = vsel %vm1339, %v1331, %v1347
      %v1356 = vsel %vm1340, %v1332, %v1348
      %v1357 = vsel %vm1341, %v1333, %v1349
      %v1358 = vsel %vm1342, %v1334, %v1350
      %v1359 = vsel %vm1343, %v1335, %v1351
      %v1360 = vsel %vm1344, %v1336, %v1352
      %1361 = vst [vmem:[%s311] sm:$0xff] %v1353
      %1362 = vst [vmem:[%s311 + $0x8] sm:$0xff] %v1354
      %1363 = vst [vmem:[%s311 + $0x10] sm:$0xff] %v1355
      %1364 = vst [vmem:[%s311 + $0x18] sm:$0xff] %v1356
      %1365 = vst [vmem:[%s311 + $0x20] sm:$0xff] %v1357
      %1366 = vst [vmem:[%s311 + $0x28] sm:$0xff] %v1358
      %1367 = vst [vmem:[%s311 + $0x30] sm:$0xff] %v1359
      %1368 = vst [vmem:[%s311 + $0x38] sm:$0xff] %v1360
      %s1369 = smul.u32 4, %s22
      %p1370 = scmp.lt.s32.totalorder %s21, 1
      %s1371 = scalar_select %p1370, %s21, 1
      %p1372 = scmp.lt.s32.totalorder %s1369, 7
      %s1373 = scalar_select %p1372, %s1369, 7
      %s1374 = smul.addr %s1373, 2
      %s1375 = smul.addr %s1371, 16
      %s1376 = sadd.s32 %s1374, %s1375
      %s1377 = smul.addr %s1376, 8
      %s1378 = scalar_lea.vmem %s6, %s1377
      // Predicated region
      $region45: #{pallas_forward.8} parent=43 // pred_check
        %p1379 = pneg %p187
      $region46: #{pallas_forward.8} parent=43 // pred_check_branch
        %1381 = sbr.rel (%p1379) target = $region48
      $region47: #{pallas_forward.8} parent=43 // pred_region
        %s1382 = smul.u32 4, %s22
      $region48: #{pallas_forward.8} parent=43 // pred_fallthru
        _
    $region44: #{pallas_forward.8} parent=5 // pred_fallthru
      _
    %p1383 = scmp.le.s32.totalorder 2, %s12
    // Predicated region
    $region49: #{pallas_forward.8} parent=5 // pred_check
      %p1384 = pneg %p1383
    $region50: #{pallas_forward.8} parent=5 // pred_check_branch
      %1386 = sbr.rel (%p1384) target = $region52
    $region51: #{pallas_forward.8} parent=5 // pred_region
      %s1387 = ssub.s32 %s12, 2
      // Predicated region
      $region53: #{pallas_forward.8} parent=51 // pred_check
        %p1388 = pneg %p193
      $region54: #{pallas_forward.8} parent=51 // pred_check_branch
        %1390 = sbr.rel (%p1388) target = $region56
      $region55: #{pallas_forward.8} parent=51 // pred_region
        %s1391 = smul.u32 4, %s24
        %p1392 = scmp.lt.s32.totalorder %s23, 1
        %s1393 = scalar_select %p1392, %s23, 1
        %p1394 = scmp.lt.s32.totalorder %s1391, 7
        %s1395 = scalar_select %p1394, %s1391, 7
        %s1396 = smul.addr %s1395, 2
        %s1397 = smul.addr %s1393, 16
        %s1398 = sadd.s32 %s1396, %s1397
        %s1399 = smul.addr %s1398, 8
        %s1400 = scalar_lea.vmem %s6, %s1399
      $region56: #{pallas_forward.8} parent=51 // pred_fallthru
        _
    $region52: #{pallas_forward.8} parent=5 // pred_fallthru
      _
  $region6: #{pallas_forward.8} parent=0 // loop_footer
    %s16 = sadd.s32 1, %s12
  $region7: #{pallas_forward.8} parent=0 // loop_footer_branch
    %11 = sbr.rel target = $region3
  $region8: #{pallas_forward.8} parent=0 // loop_exit
    _

</llo_original>
